<compile_context>
chip_gen: v7x
topology: tpu7x:2x2x1
jax: 0.10.0
libtpu: 0.0.40
codegen_flags: <defaults>
</compile_context>

<pallas_src>
import functools

import jax
import jax.numpy as jnp
from jax.experimental import pallas as pl
from jax.experimental.pallas import tpu as pltpu


def _conv_out(n, pad, k, s):
    return (n + 2 * pad - k) // s + 1


# ----------------------------------------------------------------------------
# Kernel 1: fused ReLU + Conv(Kx1) + Conv(1xK) + BN partial moments.
# One padded image per grid step, all intermediates stay in VMEM / vregs.
# ----------------------------------------------------------------------------
def _fused_conv_kernel(x_ref, w1_ref, w2_ref, y_ref, s1_ref, s2_ref, y1p_ref,
                       *, K, stride, padding, H1, W1, H2, W2):
    # x_ref : (Cin, Hp, W1)    zero-padded rows, stride-subsampled columns, f32
    # w1_ref: (K, Cmid, Cin)   Conv(Kx1) taps      w2_ref: (K, Cout, Cmid)
    # y_ref : (Cout, H2*W2)    conv output (pre-BN), bf16
    # s1/s2 : (Cout, 1)        per-image BN partial sum / sum of squares, f32
    # y1p_ref: (Cmid, W1+2p)   scratch: one W-padded row of the Conv(Kx1) output
    s, p = stride, padding
    Cmid = w1_ref.shape[1]
    Cout = w2_ref.shape[1]

    w1 = w1_ref[...]                       # hoisted: tiny, reused every row
    w2 = w2_ref[...]

    # Zero the W-padding columns of the conv1-row scratch once; the interior
    # columns are fully overwritten for every valid row.
    y1p_ref[...] = jnp.zeros(y1p_ref.shape, y1p_ref.dtype)

    acc1 = jnp.zeros((Cout, W2), jnp.float32)   # running BN sum (vregs)
    acc2 = jnp.zeros((Cout, W2), jnp.float32)   # running BN sum of squares

    # Static walk over output rows: Conv(1xK) row h2 needs exactly one
    # Conv(Kx1) row (h1 = h2*s - p), which needs K consecutive input rows,
    # so there is no halo recompute.
    for h2 in range(H2):
        h1 = h2 * s - p
        if 0 <= h1 < H1:
            # ReLU + Conv(Kx1): one (Cmid,Cin)@(Cin,W1) MXU dot per tap.
            y1row = jnp.zeros((Cmid, W1), jnp.float32)
            for k in range(K):
                xk = jnp.maximum(x_ref[:, h1 * s + k, :], 0.0)
                y1row = y1row + jnp.dot(w1[k], xk,
                                        preferred_element_type=jnp.float32)
            y1p_ref[:, p:p + W1] = y1row

            # Conv(1xK): taps are (strided) column windows of the padded row.
            y2row = jnp.zeros((Cout, W2), jnp.float32)
            for k in range(K):
                if s == 1:
                    tap = y1p_ref[:, k:k + W2]
                else:
                    tap = y1p_ref[:, pl.ds(k, W2, s)]
                y2row = y2row + jnp.dot(w2[k], tap,
                                        preferred_element_type=jnp.float32)

            acc1 = acc1 + y2row
            acc2 = acc2 + y2row * y2row
            y_ref[:, h2 * W2:(h2 + 1) * W2] = y2row.astype(y_ref.dtype)
        else:
            # The Conv(Kx1) row lies entirely in the zero padding -> row is 0
            # (and contributes 0 to both BN moments).
            y_ref[:, h2 * W2:(h2 + 1) * W2] = jnp.zeros((Cout, W2), y_ref.dtype)

    # BN partial moments in f32 from the pre-downcast values (exact).
    s1_ref[...] = jnp.sum(acc1, axis=1, keepdims=True)
    s2_ref[...] = jnp.sum(acc2, axis=1, keepdims=True)


def _fused_conv(xps, w1k, w2k, *, K, stride, padding, H1, W1, H2, W2):
    N, Cin, Hp, _ = xps.shape
    Cmid = w1k.shape[1]
    Cout = w2k.shape[1]
    M2 = H2 * W2
    kern = functools.partial(_fused_conv_kernel, K=K, stride=stride,
                             padding=padding, H1=H1, W1=W1, H2=H2, W2=W2)
    return pl.pallas_call(
        kern,
        out_shape=(
            jax.ShapeDtypeStruct((N, Cout, M2), jnp.bfloat16),   # y2 (pre-BN)
            jax.ShapeDtypeStruct((N, Cout, 1), jnp.float32),     # partial sum
            jax.ShapeDtypeStruct((N, Cout, 1), jnp.float32),     # partial sumsq
        ),
        grid_spec=pltpu.PrefetchScalarGridSpec(
            num_scalar_prefetch=0,
            grid=(N,),
            in_specs=[
                pl.BlockSpec((None, Cin, Hp, W1), lambda n: (n, 0, 0, 0)),
                pl.BlockSpec((K, Cmid, Cin), lambda n: (0, 0, 0)),
                pl.BlockSpec((K, Cout, Cmid), lambda n: (0, 0, 0)),
            ],
            out_specs=[
                pl.BlockSpec((None, Cout, M2), lambda n: (n, 0, 0)),
                pl.BlockSpec((None, Cout, 1), lambda n: (n, 0, 0)),
                pl.BlockSpec((None, Cout, 1), lambda n: (n, 0, 0)),
            ],
            scratch_shapes=[
                pltpu.VMEM((Cmid, W1 + 2 * padding), jnp.float32),
            ],
        ),
        compiler_params=pltpu.CompilerParams(
            dimension_semantics=("parallel",)),
    )(xps, w1k, w2k)


# ----------------------------------------------------------------------------
# Kernel 2: BatchNorm apply (per-channel scale/shift), lane-dense blocks.
# ----------------------------------------------------------------------------
def _bn_apply_kernel(y_ref, sc_ref, sh_ref, o_ref):
    # y_ref: (Cout, M2) bf16   sc/sh: (Cout, 1) f32 broadcast along lanes.
    o_ref[...] = y_ref[...].astype(jnp.float32) * sc_ref[...] + sh_ref[...]


def _bn_apply(y2, scale, shift):
    N, Cout, M2 = y2.shape
    return pl.pallas_call(
        _bn_apply_kernel,
        out_shape=jax.ShapeDtypeStruct((N, Cout, M2), jnp.float32),
        grid_spec=pltpu.PrefetchScalarGridSpec(
            num_scalar_prefetch=0,
            grid=(N,),
            in_specs=[
                pl.BlockSpec((None, Cout, M2), lambda n: (n, 0, 0)),
                pl.BlockSpec((Cout, 1), lambda n: (0, 0)),
                pl.BlockSpec((Cout, 1), lambda n: (0, 0)),
            ],
            out_specs=pl.BlockSpec((None, Cout, M2), lambda n: (n, 0, 0)),
        ),
        compiler_params=pltpu.CompilerParams(
            dimension_semantics=("parallel",)),
    )(y2, scale.reshape(Cout, 1), shift.reshape(Cout, 1))


# ----------------------------------------------------------------------------
# Wrapper: FacConv forward (NCHW in, NCHW out).
# ----------------------------------------------------------------------------
@functools.partial(jax.jit, static_argnames=("stride", "padding", "eps"))
def fac_conv_forward(x, w1, w2, gamma, beta, *, stride, padding, eps=1e-5):
    """x: (N, C_in, H, W).  w1: (C_in, C_in, K, 1).  w2: (C_out, C_in, 1, K)."""
    N, Cin, H, W = x.shape
    K = w1.shape[2]
    s, p = stride, padding

    H1 = _conv_out(H, p, K, s)
    W1 = _conv_out(W, p, 1, s)
    H2 = _conv_out(H1, p, 1, s)
    W2 = _conv_out(W1, p, K, s)

    x = x.astype(jnp.float32)
    # Single cheap XLA pad of the input; columns are stride-subsampled here so
    # the kernel only ever reads contiguous full-width row slabs.
    xpad = jnp.pad(x, ((0, 0), (0, 0), (p, p), (p, p)))
    xps = xpad[:, :, :, 0:(W1 - 1) * s + 1:s]                 # (N, Cin, Hp, W1)

    # Per-tap 2D weights: (K, Cmid, Cin) and (K, Cout, Cmid).
    w1k = jnp.transpose(w1[:, :, :, 0], (2, 0, 1)).astype(jnp.float32)
    w2k = jnp.transpose(w2[:, :, 0, :], (2, 0, 1)).astype(jnp.float32)

    y2, psum, psq = _fused_conv(xps, w1k, w2k, K=K, stride=s, padding=p,
                                H1=H1, W1=W1, H2=H2, W2=W2)

    # ---- BatchNorm2d(C_out), training-mode batch statistics (biased var) ----
    # Single-pass E[x^2]-mean^2 with f32 partial sums; tolerance-close to the
    # two-pass reference (see notes) but not bit-exact.
    cnt = jnp.float32(N * H2 * W2)
    mean = jnp.sum(psum, axis=0)[:, 0] / cnt                  # (Cout,)
    ex2 = jnp.sum(psq, axis=0)[:, 0] / cnt
    var = jnp.maximum(ex2 - mean * mean, 0.0)
    inv = jax.lax.rsqrt(var + eps)
    scale = gamma.astype(jnp.float32) * inv
    shift = beta.astype(jnp.float32) - mean * scale

    out = _bn_apply(y2, scale, shift)                         # (N, Cout, H2*W2)
    return out.reshape(N, Cin if False else out.shape[1], H2, W2)


# ----------------------------------------------------------------------------
if __name__ == "__main__":
    key = jax.random.PRNGKey(0)
    k1, k2, k3, k4, k5 = jax.random.split(key, 5)

    N, C_in, C_out, H, W = 2, 4, 8, 16, 16
    K, stride, padding = 3, 1, 1

    x = jax.random.normal(k1, (N, C_in, H, W), jnp.float32)
    w1 = 0.2 * jax.random.normal(k2, (C_in, C_in, K, 1), jnp.float32)   # Conv(Kx1)
    w2 = 0.2 * jax.random.normal(k3, (C_out, C_in, 1, K), jnp.float32)  # Conv(1xK)
    gamma = 1.0 + 0.1 * jax.random.normal(k4, (C_out,), jnp.float32)    # BN weight
    beta = 0.1 * jax.random.normal(k5, (C_out,), jnp.float32)           # BN bias

    out = fac_conv_forward(x, w1, w2, gamma, beta, stride=stride, padding=padding)
    out = jax.block_until_ready(out)

    # Cross-check against a pure-JAX reference (lax convolutions + batch-stat BN).
    def ref(x, w1, w2, gamma, beta):
        xr = jnp.maximum(x, 0.0)
        pad2 = [(padding, padding), (padding, padding)]
        y1 = jax.lax.conv_general_dilated(xr, w1, (stride, stride), pad2,
                                          dimension_numbers=("NCHW", "OIHW", "NCHW"))
        y2 = jax.lax.conv_general_dilated(y1, w2, (stride, stride), pad2,
                                          dimension_numbers=("NCHW", "OIHW", "NCHW"))
        mean = jnp.mean(y2, axis=(0, 2, 3), keepdims=True)
        var = jnp.mean((y2 - mean) ** 2, axis=(0, 2, 3), keepdims=True)
        return ((y2 - mean) / jnp.sqrt(var + 1e-5)
                * gamma.reshape(1, -1, 1, 1) + beta.reshape(1, -1, 1, 1))

    expected = ref(x, w1, w2, gamma, beta)
    assert out.shape == expected.shape, (out.shape, expected.shape)
    err = float(jnp.max(jnp.abs(out - expected)))
    assert jnp.allclose(out, expected, rtol=2e-2, atol=2e-2), err
    print("KERNEL_OK")
</pallas_src>

<mosaic_0001>
module attributes {stable_mosaic.version = 11 : i64} {
  func.func @_bn_apply_kernel(%arg0: i32, %arg1: memref<1x8x324xbf16, #tpu.memory_space<vmem>>, %arg2: memref<8x1xf32, #tpu.memory_space<vmem>>, %arg3: memref<8x1xf32, #tpu.memory_space<vmem>>, %arg4: memref<1x8x324xf32, #tpu.memory_space<vmem>>) attributes {dimension_semantics = [#tpu.dimension_semantics<parallel>], iteration_bounds = array<i64: 2>, scalar_prefetch = 0 : i64, scratch_operands = 0 : i64, tpu.core_type = #tpu.core_type<tc>, window_params = [{transform_indices = @transform_0, window_bounds = array<i64: 1, 8, 324>}, {pipeline_mode = #tpu.pipeline_mode<synchronous>, transform_indices = @transform_1, window_bounds = array<i64: 8, 1>}, {pipeline_mode = #tpu.pipeline_mode<synchronous>, transform_indices = @transform_2, window_bounds = array<i64: 8, 1>}, {transform_indices = @transform_3, window_bounds = array<i64: 1, 8, 324>}]} {
    %c0 = arith.constant 0 : index
    %c0_0 = arith.constant 0 : index
    %c0_1 = arith.constant 0 : index
    %0 = vector.load %arg1[%c0, %c0_0, %c0_1] : memref<1x8x324xbf16, #tpu.memory_space<vmem>>, vector<1x8x324xbf16>
    %1 = vector.shape_cast %0 : vector<1x8x324xbf16> to vector<8x324xbf16>
    %2 = arith.extf %1 : vector<8x324xbf16> to vector<8x324xf32>
    %c0_2 = arith.constant 0 : index
    %c0_3 = arith.constant 0 : index
    %3 = vector.load %arg2[%c0_2, %c0_3] : memref<8x1xf32, #tpu.memory_space<vmem>>, vector<8x1xf32>
    %4 = vector.broadcast %3 : vector<8x1xf32> to vector<8x324xf32>
    %5 = arith.mulf %2, %4 : vector<8x324xf32>
    %c0_4 = arith.constant 0 : index
    %c0_5 = arith.constant 0 : index
    %6 = vector.load %arg3[%c0_4, %c0_5] : memref<8x1xf32, #tpu.memory_space<vmem>>, vector<8x1xf32>
    %7 = vector.broadcast %6 : vector<8x1xf32> to vector<8x324xf32>
    %8 = arith.addf %5, %7 : vector<8x324xf32>
    %c0_6 = arith.constant 0 : index
    %c0_7 = arith.constant 0 : index
    %c0_8 = arith.constant 0 : index
    %9 = vector.load %arg4[%c0_6, %c0_7, %c0_8] : memref<1x8x324xf32, #tpu.memory_space<vmem>>, vector<1x8x324xf32>
    %10 = vector.shape_cast %9 : vector<1x8x324xf32> to vector<8x324xf32>
    %11 = vector.shape_cast %8 : vector<8x324xf32> to vector<1x8x324xf32>
    tpu.vector_store %arg4[%c0_6, %c0_7, %c0_8], %11 {strides = array<i32>} : memref<1x8x324xf32, #tpu.memory_space<vmem>>, vector<1x8x324xf32>,
    return
  }
  func.func @transform_0(%arg0: i32) -> (i32, i32, i32) {
    %c0_i32 = arith.constant 0 : i32
    %c0_i32_0 = arith.constant 0 : i32
    %c0_i32_1 = arith.constant 0 : i32
    return %arg0, %c0_i32, %c0_i32_0 : i32, i32, i32
  }
  func.func @transform_1(%arg0: i32) -> (i32, i32) {
    %c0_i32 = arith.constant 0 : i32
    %c0_i32_0 = arith.constant 0 : i32
    %c0_i32_1 = arith.constant 0 : i32
    return %c0_i32, %c0_i32_0 : i32, i32
  }
  func.func @transform_2(%arg0: i32) -> (i32, i32) {
    %c0_i32 = arith.constant 0 : i32
    %c0_i32_0 = arith.constant 0 : i32
    %c0_i32_1 = arith.constant 0 : i32
    return %c0_i32, %c0_i32_0 : i32, i32
  }
  func.func @transform_3(%arg0: i32) -> (i32, i32, i32) {
    %c0_i32 = arith.constant 0 : i32
    %c0_i32_0 = arith.constant 0 : i32
    %c0_i32_1 = arith.constant 0 : i32
    return %arg0, %c0_i32, %c0_i32_0 : i32, i32, i32
  }
}

module attributes {stable_mosaic.version = 11 : i64} {
  func.func @_fused_conv_kernel(%arg0: i32, %arg1: memref<1x4x18x18xf32, #tpu.memory_space<vmem>>, %arg2: memref<3x4x4xf32, #tpu.memory_space<vmem>>, %arg3: memref<3x8x4xf32, #tpu.memory_space<vmem>>, %arg4: memref<1x8x324xbf16, #tpu.memory_space<vmem>>, %arg5: memref<1x8x1xf32, #tpu.memory_space<vmem>>, %arg6: memref<1x8x1xf32, #tpu.memory_space<vmem>>, %arg7: memref<4x20xf32, #tpu.memory_space<vmem>>) attributes {dimension_semantics = [#tpu.dimension_semantics<parallel>], iteration_bounds = array<i64: 2>, scalar_prefetch = 0 : i64, scratch_operands = 1 : i64, tpu.core_type = #tpu.core_type<tc>, window_params = [{transform_indices = @transform_0, window_bounds = array<i64: 1, 4, 18, 18>}, {pipeline_mode = #tpu.pipeline_mode<synchronous>, transform_indices = @transform_1, window_bounds = array<i64: 3, 4, 4>}, {pipeline_mode = #tpu.pipeline_mode<synchronous>, transform_indices = @transform_2, window_bounds = array<i64: 3, 8, 4>}, {transform_indices = @transform_3, window_bounds = array<i64: 1, 8, 324>}, {transform_indices = @transform_4, window_bounds = array<i64: 1, 8, 1>}, {transform_indices = @transform_5, window_bounds = array<i64: 1, 8, 1>}]} {
    %c0 = arith.constant 0 : index
    %c0_0 = arith.constant 0 : index
    %c0_1 = arith.constant 0 : index
    %0 = vector.load %arg2[%c0, %c0_0, %c0_1] : memref<3x4x4xf32, #tpu.memory_space<vmem>>, vector<3x4x4xf32>
    %c0_2 = arith.constant 0 : index
    %c0_3 = arith.constant 0 : index
    %c0_4 = arith.constant 0 : index
    %1 = vector.load %arg3[%c0_2, %c0_3, %c0_4] : memref<3x8x4xf32, #tpu.memory_space<vmem>>, vector<3x8x4xf32>
    %cst = arith.constant 0.000000e+00 : f32
    %2 = vector.broadcast %cst : f32 to vector<4x20xf32>
    %c0_5 = arith.constant 0 : index
    %c0_6 = arith.constant 0 : index
    %3 = vector.load %arg7[%c0_5, %c0_6] : memref<4x20xf32, #tpu.memory_space<vmem>>, vector<4x20xf32>
    tpu.vector_store %arg7[%c0_5, %c0_6], %2 {strides = array<i32>} : memref<4x20xf32, #tpu.memory_space<vmem>>, vector<4x20xf32>,
    %cst_7 = arith.constant 0.000000e+00 : f32
    %4 = vector.broadcast %cst_7 : f32 to vector<8x18xf32>
    %cst_8 = arith.constant 0.000000e+00 : f32
    %5 = vector.broadcast %cst_8 : f32 to vector<8x18xf32>
    %cst_9 = arith.constant 0.000000e+00 : bf16
    %6 = vector.broadcast %cst_9 : bf16 to vector<8x18xbf16>
    %c0_10 = arith.constant 0 : index
    %c0_11 = arith.constant 0 : index
    %c0_12 = arith.constant 0 : index
    %7 = vector.load %arg4[%c0_10, %c0_11, %c0_12] : memref<1x8x324xbf16, #tpu.memory_space<vmem>>, vector<1x8x18xbf16>
    %8 = vector.shape_cast %7 : vector<1x8x18xbf16> to vector<8x18xbf16>
    %9 = vector.shape_cast %6 : vector<8x18xbf16> to vector<1x8x18xbf16>
    tpu.vector_store %arg4[%c0_10, %c0_11, %c0_12], %9 {strides = array<i32>} : memref<1x8x324xbf16, #tpu.memory_space<vmem>>, vector<1x8x18xbf16>,
    %cst_13 = arith.constant 0.000000e+00 : f32
    %10 = vector.broadcast %cst_13 : f32 to vector<4x18xf32>
    %c0_14 = arith.constant 0 : index
    %c0_15 = arith.constant 0 : index
    %c0_16 = arith.constant 0 : index
    %c0_17 = arith.constant 0 : index
    %11 = vector.load %arg1[%c0_14, %c0_15, %c0_16, %c0_17] : memref<1x4x18x18xf32, #tpu.memory_space<vmem>>, vector<1x4x1x18xf32>
    %12 = vector.shape_cast %11 : vector<1x4x1x18xf32> to vector<4x18xf32>
    %cst_18 = arith.constant 0.000000e+00 : f32
    %13 = vector.broadcast %cst_18 : f32 to vector<4x18xf32>
    %14 = arith.maximumf %12, %13 : vector<4x18xf32>
    %15 = vector.extract_strided_slice %0 {offsets = [0, 0, 0], sizes = [1, 4, 4], strides = [1, 1, 1]} : vector<3x4x4xf32> to vector<1x4x4xf32>
    %16 = vector.shape_cast %15 : vector<1x4x4xf32> to vector<4x4xf32>
    %cst_19 = arith.constant dense<0.000000e+00> : vector<4x18xf32>
    %17 = tpu.matmul %16, %14, %cst_19 {dimension_numbers = #tpu.dot_dimension_numbers<[1], [0], [0], [1], [0, 0, 1, 1], [], []>} : vector<4x4xf32>, vector<4x18xf32>, vector<4x18xf32> -> vector<4x18xf32>
    %18 = arith.addf %10, %17 : vector<4x18xf32>
    %c0_20 = arith.constant 0 : index
    %c0_21 = arith.constant 0 : index
    %c1 = arith.constant 1 : index
    %c0_22 = arith.constant 0 : index
    %19 = vector.load %arg1[%c0_20, %c0_21, %c1, %c0_22] : memref<1x4x18x18xf32, #tpu.memory_space<vmem>>, vector<1x4x1x18xf32>
    %20 = vector.shape_cast %19 : vector<1x4x1x18xf32> to vector<4x18xf32>
    %cst_23 = arith.constant 0.000000e+00 : f32
    %21 = vector.broadcast %cst_23 : f32 to vector<4x18xf32>
    %22 = arith.maximumf %20, %21 : vector<4x18xf32>
    %23 = vector.extract_strided_slice %0 {offsets = [1, 0, 0], sizes = [1, 4, 4], strides = [1, 1, 1]} : vector<3x4x4xf32> to vector<1x4x4xf32>
    %24 = vector.shape_cast %23 : vector<1x4x4xf32> to vector<4x4xf32>
    %cst_24 = arith.constant dense<0.000000e+00> : vector<4x18xf32>
    %25 = tpu.matmul %24, %22, %cst_24 {dimension_numbers = #tpu.dot_dimension_numbers<[1], [0], [0], [1], [0, 0, 1, 1], [], []>} : vector<4x4xf32>, vector<4x18xf32>, vector<4x18xf32> -> vector<4x18xf32>
    %26 = arith.addf %18, %25 : vector<4x18xf32>
    %c0_25 = arith.constant 0 : index
    %c0_26 = arith.constant 0 : index
    %c2 = arith.constant 2 : index
    %c0_27 = arith.constant 0 : index
    %27 = vector.load %arg1[%c0_25, %c0_26, %c2, %c0_27] : memref<1x4x18x18xf32, #tpu.memory_space<vmem>>, vector<1x4x1x18xf32>
    %28 = vector.shape_cast %27 : vector<1x4x1x18xf32> to vector<4x18xf32>
    %cst_28 = arith.constant 0.000000e+00 : f32
    %29 = vector.broadcast %cst_28 : f32 to vector<4x18xf32>
    %30 = arith.maximumf %28, %29 : vector<4x18xf32>
    %31 = vector.extract_strided_slice %0 {offsets = [2, 0, 0], sizes = [1, 4, 4], strides = [1, 1, 1]} : vector<3x4x4xf32> to vector<1x4x4xf32>
    %32 = vector.shape_cast %31 : vector<1x4x4xf32> to vector<4x4xf32>
    %cst_29 = arith.constant dense<0.000000e+00> : vector<4x18xf32>
    %33 = tpu.matmul %32, %30, %cst_29 {dimension_numbers = #tpu.dot_dimension_numbers<[1], [0], [0], [1], [0, 0, 1, 1], [], []>} : vector<4x4xf32>, vector<4x18xf32>, vector<4x18xf32> -> vector<4x18xf32>
    %34 = arith.addf %26, %33 : vector<4x18xf32>
    %c0_30 = arith.constant 0 : index
    %c1_31 = arith.constant 1 : index
    %35 = vector.load %arg7[%c0_30, %c1_31] : memref<4x20xf32, #tpu.memory_space<vmem>>, vector<4x18xf32>
    tpu.vector_store %arg7[%c0_30, %c1_31], %34 {strides = array<i32>} : memref<4x20xf32, #tpu.memory_space<vmem>>, vector<4x18xf32>,
    %cst_32 = arith.constant 0.000000e+00 : f32
    %36 = vector.broadcast %cst_32 : f32 to vector<8x18xf32>
    %c0_33 = arith.constant 0 : index
    %c0_34 = arith.constant 0 : index
    %37 = vector.load %arg7[%c0_33, %c0_34] : memref<4x20xf32, #tpu.memory_space<vmem>>, vector<4x18xf32>
    %38 = vector.extract_strided_slice %1 {offsets = [0, 0, 0], sizes = [1, 8, 4], strides = [1, 1, 1]} : vector<3x8x4xf32> to vector<1x8x4xf32>
    %39 = vector.shape_cast %38 : vector<1x8x4xf32> to vector<8x4xf32>
    %cst_35 = arith.constant dense<0.000000e+00> : vector<8x18xf32>
    %40 = tpu.matmul %39, %37, %cst_35 {dimension_numbers = #tpu.dot_dimension_numbers<[1], [0], [0], [1], [0, 0, 1, 1], [], []>} : vector<8x4xf32>, vector<4x18xf32>, vector<8x18xf32> -> vector<8x18xf32>
    %41 = arith.addf %36, %40 : vector<8x18xf32>
    %c0_36 = arith.constant 0 : index
    %c1_37 = arith.constant 1 : index
    %42 = vector.load %arg7[%c0_36, %c1_37] : memref<4x20xf32, #tpu.memory_space<vmem>>, vector<4x18xf32>
    %43 = vector.extract_strided_slice %1 {offsets = [1, 0, 0], sizes = [1, 8, 4], strides = [1, 1, 1]} : vector<3x8x4xf32> to vector<1x8x4xf32>
    %44 = vector.shape_cast %43 : vector<1x8x4xf32> to vector<8x4xf32>
    %cst_38 = arith.constant dense<0.000000e+00> : vector<8x18xf32>
    %45 = tpu.matmul %44, %42, %cst_38 {dimension_numbers = #tpu.dot_dimension_numbers<[1], [0], [0], [1], [0, 0, 1, 1], [], []>} : vector<8x4xf32>, vector<4x18xf32>, vector<8x18xf32> -> vector<8x18xf32>
    %46 = arith.addf %41, %45 : vector<8x18xf32>
    %c0_39 = arith.constant 0 : index
    %c2_40 = arith.constant 2 : index
    %47 = vector.load %arg7[%c0_39, %c2_40] : memref<4x20xf32, #tpu.memory_space<vmem>>, vector<4x18xf32>
    %48 = vector.extract_strided_slice %1 {offsets = [2, 0, 0], sizes = [1, 8, 4], strides = [1, 1, 1]} : vector<3x8x4xf32> to vector<1x8x4xf32>
    %49 = vector.shape_cast %48 : vector<1x8x4xf32> to vector<8x4xf32>
    %cst_41 = arith.constant dense<0.000000e+00> : vector<8x18xf32>
    %50 = tpu.matmul %49, %47, %cst_41 {dimension_numbers = #tpu.dot_dimension_numbers<[1], [0], [0], [1], [0, 0, 1, 1], [], []>} : vector<8x4xf32>, vector<4x18xf32>, vector<8x18xf32> -> vector<8x18xf32>
    %51 = arith.addf %46, %50 : vector<8x18xf32>
    %52 = arith.addf %4, %51 : vector<8x18xf32>
    %53 = arith.mulf %51, %51 : vector<8x18xf32>
    %54 = arith.addf %5, %53 : vector<8x18xf32>
    %55 = arith.truncf %51 : vector<8x18xf32> to vector<8x18xbf16>
    %c0_42 = arith.constant 0 : index
    %c0_43 = arith.constant 0 : index
    %c18 = arith.constant 18 : index
    %56 = vector.load %arg4[%c0_42, %c0_43, %c18] : memref<1x8x324xbf16, #tpu.memory_space<vmem>>, vector<1x8x18xbf16>
    %57 = vector.shape_cast %56 : vector<1x8x18xbf16> to vector<8x18xbf16>
    %58 = vector.shape_cast %55 : vector<8x18xbf16> to vector<1x8x18xbf16>
    tpu.vector_store %arg4[%c0_42, %c0_43, %c18], %58 {strides = array<i32>} : memref<1x8x324xbf16, #tpu.memory_space<vmem>>, vector<1x8x18xbf16>,
    %cst_44 = arith.constant 0.000000e+00 : f32
    %59 = vector.broadcast %cst_44 : f32 to vector<4x18xf32>
    %c0_45 = arith.constant 0 : index
    %c0_46 = arith.constant 0 : index
    %c1_47 = arith.constant 1 : index
    %c0_48 = arith.constant 0 : index
    %60 = vector.load %arg1[%c0_45, %c0_46, %c1_47, %c0_48] : memref<1x4x18x18xf32, #tpu.memory_space<vmem>>, vector<1x4x1x18xf32>
    %61 = vector.shape_cast %60 : vector<1x4x1x18xf32> to vector<4x18xf32>
    %cst_49 = arith.constant 0.000000e+00 : f32
    %62 = vector.broadcast %cst_49 : f32 to vector<4x18xf32>
    %63 = arith.maximumf %61, %62 : vector<4x18xf32>
    %64 = vector.extract_strided_slice %0 {offsets = [0, 0, 0], sizes = [1, 4, 4], strides = [1, 1, 1]} : vector<3x4x4xf32> to vector<1x4x4xf32>
    %65 = vector.shape_cast %64 : vector<1x4x4xf32> to vector<4x4xf32>
    %cst_50 = arith.constant dense<0.000000e+00> : vector<4x18xf32>
    %66 = tpu.matmul %65, %63, %cst_50 {dimension_numbers = #tpu.dot_dimension_numbers<[1], [0], [0], [1], [0, 0, 1, 1], [], []>} : vector<4x4xf32>, vector<4x18xf32>, vector<4x18xf32> -> vector<4x18xf32>
    %67 = arith.addf %59, %66 : vector<4x18xf32>
    %c0_51 = arith.constant 0 : index
    %c0_52 = arith.constant 0 : index
    %c2_53 = arith.constant 2 : index
    %c0_54 = arith.constant 0 : index
    %68 = vector.load %arg1[%c0_51, %c0_52, %c2_53, %c0_54] : memref<1x4x18x18xf32, #tpu.memory_space<vmem>>, vector<1x4x1x18xf32>
    %69 = vector.shape_cast %68 : vector<1x4x1x18xf32> to vector<4x18xf32>
    %cst_55 = arith.constant 0.000000e+00 : f32
    %70 = vector.broadcast %cst_55 : f32 to vector<4x18xf32>
    %71 = arith.maximumf %69, %70 : vector<4x18xf32>
    %72 = vector.extract_strided_slice %0 {offsets = [1, 0, 0], sizes = [1, 4, 4], strides = [1, 1, 1]} : vector<3x4x4xf32> to vector<1x4x4xf32>
    %73 = vector.shape_cast %72 : vector<1x4x4xf32> to vector<4x4xf32>
    %cst_56 = arith.constant dense<0.000000e+00> : vector<4x18xf32>
    %74 = tpu.matmul %73, %71, %cst_56 {dimension_numbers = #tpu.dot_dimension_numbers<[1], [0], [0], [1], [0, 0, 1, 1], [], []>} : vector<4x4xf32>, vector<4x18xf32>, vector<4x18xf32> -> vector<4x18xf32>
    %75 = arith.addf %67, %74 : vector<4x18xf32>
    %c0_57 = arith.constant 0 : index
    %c0_58 = arith.constant 0 : index
    %c3 = arith.constant 3 : index
    %c0_59 = arith.constant 0 : index
    %76 = vector.load %arg1[%c0_57, %c0_58, %c3, %c0_59] : memref<1x4x18x18xf32, #tpu.memory_space<vmem>>, vector<1x4x1x18xf32>
    %77 = vector.shape_cast %76 : vector<1x4x1x18xf32> to vector<4x18xf32>
    %cst_60 = arith.constant 0.000000e+00 : f32
    %78 = vector.broadcast %cst_60 : f32 to vector<4x18xf32>
    %79 = arith.maximumf %77, %78 : vector<4x18xf32>
    %80 = vector.extract_strided_slice %0 {offsets = [2, 0, 0], sizes = [1, 4, 4], strides = [1, 1, 1]} : vector<3x4x4xf32> to vector<1x4x4xf32>
    %81 = vector.shape_cast %80 : vector<1x4x4xf32> to vector<4x4xf32>
    %cst_61 = arith.constant dense<0.000000e+00> : vector<4x18xf32>
    %82 = tpu.matmul %81, %79, %cst_61 {dimension_numbers = #tpu.dot_dimension_numbers<[1], [0], [0], [1], [0, 0, 1, 1], [], []>} : vector<4x4xf32>, vector<4x18xf32>, vector<4x18xf32> -> vector<4x18xf32>
    %83 = arith.addf %75, %82 : vector<4x18xf32>
    %c0_62 = arith.constant 0 : index
    %c1_63 = arith.constant 1 : index
    %84 = vector.load %arg7[%c0_62, %c1_63] : memref<4x20xf32, #tpu.memory_space<vmem>>, vector<4x18xf32>
    tpu.vector_store %arg7[%c0_62, %c1_63], %83 {strides = array<i32>} : memref<4x20xf32, #tpu.memory_space<vmem>>, vector<4x18xf32>,
    %cst_64 = arith.constant 0.000000e+00 : f32
    %85 = vector.broadcast %cst_64 : f32 to vector<8x18xf32>
    %c0_65 = arith.constant 0 : index
    %c0_66 = arith.constant 0 : index
    %86 = vector.load %arg7[%c0_65, %c0_66] : memref<4x20xf32, #tpu.memory_space<vmem>>, vector<4x18xf32>
    %87 = vector.extract_strided_slice %1 {offsets = [0, 0, 0], sizes = [1, 8, 4], strides = [1, 1, 1]} : vector<3x8x4xf32> to vector<1x8x4xf32>
    %88 = vector.shape_cast %87 : vector<1x8x4xf32> to vector<8x4xf32>
    %cst_67 = arith.constant dense<0.000000e+00> : vector<8x18xf32>
    %89 = tpu.matmul %88, %86, %cst_67 {dimension_numbers = #tpu.dot_dimension_numbers<[1], [0], [0], [1], [0, 0, 1, 1], [], []>} : vector<8x4xf32>, vector<4x18xf32>, vector<8x18xf32> -> vector<8x18xf32>
    %90 = arith.addf %85, %89 : vector<8x18xf32>
    %c0_68 = arith.constant 0 : index
    %c1_69 = arith.constant 1 : index
    %91 = vector.load %arg7[%c0_68, %c1_69] : memref<4x20xf32, #tpu.memory_space<vmem>>, vector<4x18xf32>
    %92 = vector.extract_strided_slice %1 {offsets = [1, 0, 0], sizes = [1, 8, 4], strides = [1, 1, 1]} : vector<3x8x4xf32> to vector<1x8x4xf32>
    %93 = vector.shape_cast %92 : vector<1x8x4xf32> to vector<8x4xf32>
    %cst_70 = arith.constant dense<0.000000e+00> : vector<8x18xf32>
    %94 = tpu.matmul %93, %91, %cst_70 {dimension_numbers = #tpu.dot_dimension_numbers<[1], [0], [0], [1], [0, 0, 1, 1], [], []>} : vector<8x4xf32>, vector<4x18xf32>, vector<8x18xf32> -> vector<8x18xf32>
    %95 = arith.addf %90, %94 : vector<8x18xf32>
    %c0_71 = arith.constant 0 : index
    %c2_72 = arith.constant 2 : index
    %96 = vector.load %arg7[%c0_71, %c2_72] : memref<4x20xf32, #tpu.memory_space<vmem>>, vector<4x18xf32>
    %97 = vector.extract_strided_slice %1 {offsets = [2, 0, 0], sizes = [1, 8, 4], strides = [1, 1, 1]} : vector<3x8x4xf32> to vector<1x8x4xf32>
    %98 = vector.shape_cast %97 : vector<1x8x4xf32> to vector<8x4xf32>
    %cst_73 = arith.constant dense<0.000000e+00> : vector<8x18xf32>
    %99 = tpu.matmul %98, %96, %cst_73 {dimension_numbers = #tpu.dot_dimension_numbers<[1], [0], [0], [1], [0, 0, 1, 1], [], []>} : vector<8x4xf32>, vector<4x18xf32>, vector<8x18xf32> -> vector<8x18xf32>
    %100 = arith.addf %95, %99 : vector<8x18xf32>
    %101 = arith.addf %52, %100 : vector<8x18xf32>
    %102 = arith.mulf %100, %100 : vector<8x18xf32>
    %103 = arith.addf %54, %102 : vector<8x18xf32>
    %104 = arith.truncf %100 : vector<8x18xf32> to vector<8x18xbf16>
    %c0_74 = arith.constant 0 : index
    %c0_75 = arith.constant 0 : index
    %c36 = arith.constant 36 : index
    %105 = vector.load %arg4[%c0_74, %c0_75, %c36] : memref<1x8x324xbf16, #tpu.memory_space<vmem>>, vector<1x8x18xbf16>
    %106 = vector.shape_cast %105 : vector<1x8x18xbf16> to vector<8x18xbf16>
    %107 = vector.shape_cast %104 : vector<8x18xbf16> to vector<1x8x18xbf16>
    tpu.vector_store %arg4[%c0_74, %c0_75, %c36], %107 {strides = array<i32>} : memref<1x8x324xbf16, #tpu.memory_space<vmem>>, vector<1x8x18xbf16>,
    %cst_76 = arith.constant 0.000000e+00 : f32
    %108 = vector.broadcast %cst_76 : f32 to vector<4x18xf32>
    %c0_77 = arith.constant 0 : index
    %c0_78 = arith.constant 0 : index
    %c2_79 = arith.constant 2 : index
    %c0_80 = arith.constant 0 : index
    %109 = vector.load %arg1[%c0_77, %c0_78, %c2_79, %c0_80] : memref<1x4x18x18xf32, #tpu.memory_space<vmem>>, vector<1x4x1x18xf32>
    %110 = vector.shape_cast %109 : vector<1x4x1x18xf32> to vector<4x18xf32>
    %cst_81 = arith.constant 0.000000e+00 : f32
    %111 = vector.broadcast %cst_81 : f32 to vector<4x18xf32>
    %112 = arith.maximumf %110, %111 : vector<4x18xf32>
    %113 = vector.extract_strided_slice %0 {offsets = [0, 0, 0], sizes = [1, 4, 4], strides = [1, 1, 1]} : vector<3x4x4xf32> to vector<1x4x4xf32>
    %114 = vector.shape_cast %113 : vector<1x4x4xf32> to vector<4x4xf32>
    %cst_82 = arith.constant dense<0.000000e+00> : vector<4x18xf32>
    %115 = tpu.matmul %114, %112, %cst_82 {dimension_numbers = #tpu.dot_dimension_numbers<[1], [0], [0], [1], [0, 0, 1, 1], [], []>} : vector<4x4xf32>, vector<4x18xf32>, vector<4x18xf32> -> vector<4x18xf32>
    %116 = arith.addf %108, %115 : vector<4x18xf32>
    %c0_83 = arith.constant 0 : index
    %c0_84 = arith.constant 0 : index
    %c3_85 = arith.constant 3 : index
    %c0_86 = arith.constant 0 : index
    %117 = vector.load %arg1[%c0_83, %c0_84, %c3_85, %c0_86] : memref<1x4x18x18xf32, #tpu.memory_space<vmem>>, vector<1x4x1x18xf32>
    %118 = vector.shape_cast %117 : vector<1x4x1x18xf32> to vector<4x18xf32>
    %cst_87 = arith.constant 0.000000e+00 : f32
    %119 = vector.broadcast %cst_87 : f32 to vector<4x18xf32>
    %120 = arith.maximumf %118, %119 : vector<4x18xf32>
    %121 = vector.extract_strided_slice %0 {offsets = [1, 0, 0], sizes = [1, 4, 4], strides = [1, 1, 1]} : vector<3x4x4xf32> to vector<1x4x4xf32>
    %122 = vector.shape_cast %121 : vector<1x4x4xf32> to vector<4x4xf32>
    %cst_88 = arith.constant dense<0.000000e+00> : vector<4x18xf32>
    %123 = tpu.matmul %122, %120, %cst_88 {dimension_numbers = #tpu.dot_dimension_numbers<[1], [0], [0], [1], [0, 0, 1, 1], [], []>} : vector<4x4xf32>, vector<4x18xf32>, vector<4x18xf32> -> vector<4x18xf32>
    %124 = arith.addf %116, %123 : vector<4x18xf32>
    %c0_89 = arith.constant 0 : index
    %c0_90 = arith.constant 0 : index
    %c4 = arith.constant 4 : index
    %c0_91 = arith.constant 0 : index
    %125 = vector.load %arg1[%c0_89, %c0_90, %c4, %c0_91] : memref<1x4x18x18xf32, #tpu.memory_space<vmem>>, vector<1x4x1x18xf32>
    %126 = vector.shape_cast %125 : vector<1x4x1x18xf32> to vector<4x18xf32>
    %cst_92 = arith.constant 0.000000e+00 : f32
    %127 = vector.broadcast %cst_92 : f32 to vector<4x18xf32>
    %128 = arith.maximumf %126, %127 : vector<4x18xf32>
    %129 = vector.extract_strided_slice %0 {offsets = [2, 0, 0], sizes = [1, 4, 4], strides = [1, 1, 1]} : vector<3x4x4xf32> to vector<1x4x4xf32>
    %130 = vector.shape_cast %129 : vector<1x4x4xf32> to vector<4x4xf32>
    %cst_93 = arith.constant dense<0.000000e+00> : vector<4x18xf32>
    %131 = tpu.matmul %130, %128, %cst_93 {dimension_numbers = #tpu.dot_dimension_numbers<[1], [0], [0], [1], [0, 0, 1, 1], [], []>} : vector<4x4xf32>, vector<4x18xf32>, vector<4x18xf32> -> vector<4x18xf32>
    %132 = arith.addf %124, %131 : vector<4x18xf32>
    %c0_94 = arith.constant 0 : index
    %c1_95 = arith.constant 1 : index
    %133 = vector.load %arg7[%c0_94, %c1_95] : memref<4x20xf32, #tpu.memory_space<vmem>>, vector<4x18xf32>
    tpu.vector_store %arg7[%c0_94, %c1_95], %132 {strides = array<i32>} : memref<4x20xf32, #tpu.memory_space<vmem>>, vector<4x18xf32>,
    %cst_96 = arith.constant 0.000000e+00 : f32
    %134 = vector.broadcast %cst_96 : f32 to vector<8x18xf32>
    %c0_97 = arith.constant 0 : index
    %c0_98 = arith.constant 0 : index
    %135 = vector.load %arg7[%c0_97, %c0_98] : memref<4x20xf32, #tpu.memory_space<vmem>>, vector<4x18xf32>
    %136 = vector.extract_strided_slice %1 {offsets = [0, 0, 0], sizes = [1, 8, 4], strides = [1, 1, 1]} : vector<3x8x4xf32> to vector<1x8x4xf32>
    %137 = vector.shape_cast %136 : vector<1x8x4xf32> to vector<8x4xf32>
    %cst_99 = arith.constant dense<0.000000e+00> : vector<8x18xf32>
    %138 = tpu.matmul %137, %135, %cst_99 {dimension_numbers = #tpu.dot_dimension_numbers<[1], [0], [0], [1], [0, 0, 1, 1], [], []>} : vector<8x4xf32>, vector<4x18xf32>, vector<8x18xf32> -> vector<8x18xf32>
    %139 = arith.addf %134, %138 : vector<8x18xf32>
    %c0_100 = arith.constant 0 : index
    %c1_101 = arith.constant 1 : index
    %140 = vector.load %arg7[%c0_100, %c1_101] : memref<4x20xf32, #tpu.memory_space<vmem>>, vector<4x18xf32>
    %141 = vector.extract_strided_slice %1 {offsets = [1, 0, 0], sizes = [1, 8, 4], strides = [1, 1, 1]} : vector<3x8x4xf32> to vector<1x8x4xf32>
    %142 = vector.shape_cast %141 : vector<1x8x4xf32> to vector<8x4xf32>
    %cst_102 = arith.constant dense<0.000000e+00> : vector<8x18xf32>
    %143 = tpu.matmul %142, %140, %cst_102 {dimension_numbers = #tpu.dot_dimension_numbers<[1], [0], [0], [1], [0, 0, 1, 1], [], []>} : vector<8x4xf32>, vector<4x18xf32>, vector<8x18xf32> -> vector<8x18xf32>
    %144 = arith.addf %139, %143 : vector<8x18xf32>
    %c0_103 = arith.constant 0 : index
    %c2_104 = arith.constant 2 : index
    %145 = vector.load %arg7[%c0_103, %c2_104] : memref<4x20xf32, #tpu.memory_space<vmem>>, vector<4x18xf32>
    %146 = vector.extract_strided_slice %1 {offsets = [2, 0, 0], sizes = [1, 8, 4], strides = [1, 1, 1]} : vector<3x8x4xf32> to vector<1x8x4xf32>
    %147 = vector.shape_cast %146 : vector<1x8x4xf32> to vector<8x4xf32>
    %cst_105 = arith.constant dense<0.000000e+00> : vector<8x18xf32>
    %148 = tpu.matmul %147, %145, %cst_105 {dimension_numbers = #tpu.dot_dimension_numbers<[1], [0], [0], [1], [0, 0, 1, 1], [], []>} : vector<8x4xf32>, vector<4x18xf32>, vector<8x18xf32> -> vector<8x18xf32>
    %149 = arith.addf %144, %148 : vector<8x18xf32>
    %150 = arith.addf %101, %149 : vector<8x18xf32>
    %151 = arith.mulf %149, %149 : vector<8x18xf32>
    %152 = arith.addf %103, %151 : vector<8x18xf32>
    %153 = arith.truncf %149 : vector<8x18xf32> to vector<8x18xbf16>
    %c0_106 = arith.constant 0 : index
    %c0_107 = arith.constant 0 : index
    %c54 = arith.constant 54 : index
    %154 = vector.load %arg4[%c0_106, %c0_107, %c54] : memref<1x8x324xbf16, #tpu.memory_space<vmem>>, vector<1x8x18xbf16>
    %155 = vector.shape_cast %154 : vector<1x8x18xbf16> to vector<8x18xbf16>
    %156 = vector.shape_cast %153 : vector<8x18xbf16> to vector<1x8x18xbf16>
    tpu.vector_store %arg4[%c0_106, %c0_107, %c54], %156 {strides = array<i32>} : memref<1x8x324xbf16, #tpu.memory_space<vmem>>, vector<1x8x18xbf16>,
    %cst_108 = arith.constant 0.000000e+00 : f32
    %157 = vector.broadcast %cst_108 : f32 to vector<4x18xf32>
    %c0_109 = arith.constant 0 : index
    %c0_110 = arith.constant 0 : index
    %c3_111 = arith.constant 3 : index
    %c0_112 = arith.constant 0 : index
    %158 = vector.load %arg1[%c0_109, %c0_110, %c3_111, %c0_112] : memref<1x4x18x18xf32, #tpu.memory_space<vmem>>, vector<1x4x1x18xf32>
    %159 = vector.shape_cast %158 : vector<1x4x1x18xf32> to vector<4x18xf32>
    %cst_113 = arith.constant 0.000000e+00 : f32
    %160 = vector.broadcast %cst_113 : f32 to vector<4x18xf32>
    %161 = arith.maximumf %159, %160 : vector<4x18xf32>
    %162 = vector.extract_strided_slice %0 {offsets = [0, 0, 0], sizes = [1, 4, 4], strides = [1, 1, 1]} : vector<3x4x4xf32> to vector<1x4x4xf32>
    %163 = vector.shape_cast %162 : vector<1x4x4xf32> to vector<4x4xf32>
    %cst_114 = arith.constant dense<0.000000e+00> : vector<4x18xf32>
    %164 = tpu.matmul %163, %161, %cst_114 {dimension_numbers = #tpu.dot_dimension_numbers<[1], [0], [0], [1], [0, 0, 1, 1], [], []>} : vector<4x4xf32>, vector<4x18xf32>, vector<4x18xf32> -> vector<4x18xf32>
    %165 = arith.addf %157, %164 : vector<4x18xf32>
    %c0_115 = arith.constant 0 : index
    %c0_116 = arith.constant 0 : index
    %c4_117 = arith.constant 4 : index
    %c0_118 = arith.constant 0 : index
    %166 = vector.load %arg1[%c0_115, %c0_116, %c4_117, %c0_118] : memref<1x4x18x18xf32, #tpu.memory_space<vmem>>, vector<1x4x1x18xf32>
    %167 = vector.shape_cast %166 : vector<1x4x1x18xf32> to vector<4x18xf32>
    %cst_119 = arith.constant 0.000000e+00 : f32
    %168 = vector.broadcast %cst_119 : f32 to vector<4x18xf32>
    %169 = arith.maximumf %167, %168 : vector<4x18xf32>
    %170 = vector.extract_strided_slice %0 {offsets = [1, 0, 0], sizes = [1, 4, 4], strides = [1, 1, 1]} : vector<3x4x4xf32> to vector<1x4x4xf32>
    %171 = vector.shape_cast %170 : vector<1x4x4xf32> to vector<4x4xf32>
    %cst_120 = arith.constant dense<0.000000e+00> : vector<4x18xf32>
    %172 = tpu.matmul %171, %169, %cst_120 {dimension_numbers = #tpu.dot_dimension_numbers<[1], [0], [0], [1], [0, 0, 1, 1], [], []>} : vector<4x4xf32>, vector<4x18xf32>, vector<4x18xf32> -> vector<4x18xf32>
    %173 = arith.addf %165, %172 : vector<4x18xf32>
    %c0_121 = arith.constant 0 : index
    %c0_122 = arith.constant 0 : index
    %c5 = arith.constant 5 : index
    %c0_123 = arith.constant 0 : index
    %174 = vector.load %arg1[%c0_121, %c0_122, %c5, %c0_123] : memref<1x4x18x18xf32, #tpu.memory_space<vmem>>, vector<1x4x1x18xf32>
    %175 = vector.shape_cast %174 : vector<1x4x1x18xf32> to vector<4x18xf32>
    %cst_124 = arith.constant 0.000000e+00 : f32
    %176 = vector.broadcast %cst_124 : f32 to vector<4x18xf32>
    %177 = arith.maximumf %175, %176 : vector<4x18xf32>
    %178 = vector.extract_strided_slice %0 {offsets = [2, 0, 0], sizes = [1, 4, 4], strides = [1, 1, 1]} : vector<3x4x4xf32> to vector<1x4x4xf32>
    %179 = vector.shape_cast %178 : vector<1x4x4xf32> to vector<4x4xf32>
    %cst_125 = arith.constant dense<0.000000e+00> : vector<4x18xf32>
    %180 = tpu.matmul %179, %177, %cst_125 {dimension_numbers = #tpu.dot_dimension_numbers<[1], [0], [0], [1], [0, 0, 1, 1], [], []>} : vector<4x4xf32>, vector<4x18xf32>, vector<4x18xf32> -> vector<4x18xf32>
    %181 = arith.addf %173, %180 : vector<4x18xf32>
    %c0_126 = arith.constant 0 : index
    %c1_127 = arith.constant 1 : index
    %182 = vector.load %arg7[%c0_126, %c1_127] : memref<4x20xf32, #tpu.memory_space<vmem>>, vector<4x18xf32>
    tpu.vector_store %arg7[%c0_126, %c1_127], %181 {strides = array<i32>} : memref<4x20xf32, #tpu.memory_space<vmem>>, vector<4x18xf32>,
    %cst_128 = arith.constant 0.000000e+00 : f32
    %183 = vector.broadcast %cst_128 : f32 to vector<8x18xf32>
    %c0_129 = arith.constant 0 : index
    %c0_130 = arith.constant 0 : index
    %184 = vector.load %arg7[%c0_129, %c0_130] : memref<4x20xf32, #tpu.memory_space<vmem>>, vector<4x18xf32>
    %185 = vector.extract_strided_slice %1 {offsets = [0, 0, 0], sizes = [1, 8, 4], strides = [1, 1, 1]} : vector<3x8x4xf32> to vector<1x8x4xf32>
    %186 = vector.shape_cast %185 : vector<1x8x4xf32> to vector<8x4xf32>
    %cst_131 = arith.constant dense<0.000000e+00> : vector<8x18xf32>
    %187 = tpu.matmul %186, %184, %cst_131 {dimension_numbers = #tpu.dot_dimension_numbers<[1], [0], [0], [1], [0, 0, 1, 1], [], []>} : vector<8x4xf32>, vector<4x18xf32>, vector<8x18xf32> -> vector<8x18xf32>
    %188 = arith.addf %183, %187 : vector<8x18xf32>
    %c0_132 = arith.constant 0 : index
    %c1_133 = arith.constant 1 : index
    %189 = vector.load %arg7[%c0_132, %c1_133] : memref<4x20xf32, #tpu.memory_space<vmem>>, vector<4x18xf32>
    %190 = vector.extract_strided_slice %1 {offsets = [1, 0, 0], sizes = [1, 8, 4], strides = [1, 1, 1]} : vector<3x8x4xf32> to vector<1x8x4xf32>
    %191 = vector.shape_cast %190 : vector<1x8x4xf32> to vector<8x4xf32>
    %cst_134 = arith.constant dense<0.000000e+00> : vector<8x18xf32>
    %192 = tpu.matmul %191, %189, %cst_134 {dimension_numbers = #tpu.dot_dimension_numbers<[1], [0], [0], [1], [0, 0, 1, 1], [], []>} : vector<8x4xf32>, vector<4x18xf32>, vector<8x18xf32> -> vector<8x18xf32>
    %193 = arith.addf %188, %192 : vector<8x18xf32>
    %c0_135 = arith.constant 0 : index
    %c2_136 = arith.constant 2 : index
    %194 = vector.load %arg7[%c0_135, %c2_136] : memref<4x20xf32, #tpu.memory_space<vmem>>, vector<4x18xf32>
    %195 = vector.extract_strided_slice %1 {offsets = [2, 0, 0], sizes = [1, 8, 4], strides = [1, 1, 1]} : vector<3x8x4xf32> to vector<1x8x4xf32>
    %196 = vector.shape_cast %195 : vector<1x8x4xf32> to vector<8x4xf32>
    %cst_137 = arith.constant dense<0.000000e+00> : vector<8x18xf32>
    %197 = tpu.matmul %196, %194, %cst_137 {dimension_numbers = #tpu.dot_dimension_numbers<[1], [0], [0], [1], [0, 0, 1, 1], [], []>} : vector<8x4xf32>, vector<4x18xf32>, vector<8x18xf32> -> vector<8x18xf32>
    %198 = arith.addf %193, %197 : vector<8x18xf32>
    %199 = arith.addf %150, %198 : vector<8x18xf32>
    %200 = arith.mulf %198, %198 : vector<8x18xf32>
    %201 = arith.addf %152, %200 : vector<8x18xf32>
    %202 = arith.truncf %198 : vector<8x18xf32> to vector<8x18xbf16>
    %c0_138 = arith.constant 0 : index
    %c0_139 = arith.constant 0 : index
    %c72 = arith.constant 72 : index
    %203 = vector.load %arg4[%c0_138, %c0_139, %c72] : memref<1x8x324xbf16, #tpu.memory_space<vmem>>, vector<1x8x18xbf16>
    %204 = vector.shape_cast %203 : vector<1x8x18xbf16> to vector<8x18xbf16>
    %205 = vector.shape_cast %202 : vector<8x18xbf16> to vector<1x8x18xbf16>
    tpu.vector_store %arg4[%c0_138, %c0_139, %c72], %205 {strides = array<i32>} : memref<1x8x324xbf16, #tpu.memory_space<vmem>>, vector<1x8x18xbf16>,
    %cst_140 = arith.constant 0.000000e+00 : f32
    %206 = vector.broadcast %cst_140 : f32 to vector<4x18xf32>
    %c0_141 = arith.constant 0 : index
    %c0_142 = arith.constant 0 : index
    %c4_143 = arith.constant 4 : index
    %c0_144 = arith.constant 0 : index
    %207 = vector.load %arg1[%c0_141, %c0_142, %c4_143, %c0_144] : memref<1x4x18x18xf32, #tpu.memory_space<vmem>>, vector<1x4x1x18xf32>
    %208 = vector.shape_cast %207 : vector<1x4x1x18xf32> to vector<4x18xf32>
    %cst_145 = arith.constant 0.000000e+00 : f32
    %209 = vector.broadcast %cst_145 : f32 to vector<4x18xf32>
    %210 = arith.maximumf %208, %209 : vector<4x18xf32>
    %211 = vector.extract_strided_slice %0 {offsets = [0, 0, 0], sizes = [1, 4, 4], strides = [1, 1, 1]} : vector<3x4x4xf32> to vector<1x4x4xf32>
    %212 = vector.shape_cast %211 : vector<1x4x4xf32> to vector<4x4xf32>
    %cst_146 = arith.constant dense<0.000000e+00> : vector<4x18xf32>
    %213 = tpu.matmul %212, %210, %cst_146 {dimension_numbers = #tpu.dot_dimension_numbers<[1], [0], [0], [1], [0, 0, 1, 1], [], []>} : vector<4x4xf32>, vector<4x18xf32>, vector<4x18xf32> -> vector<4x18xf32>
    %214 = arith.addf %206, %213 : vector<4x18xf32>
    %c0_147 = arith.constant 0 : index
    %c0_148 = arith.constant 0 : index
    %c5_149 = arith.constant 5 : index
    %c0_150 = arith.constant 0 : index
    %215 = vector.load %arg1[%c0_147, %c0_148, %c5_149, %c0_150] : memref<1x4x18x18xf32, #tpu.memory_space<vmem>>, vector<1x4x1x18xf32>
    %216 = vector.shape_cast %215 : vector<1x4x1x18xf32> to vector<4x18xf32>
    %cst_151 = arith.constant 0.000000e+00 : f32
    %217 = vector.broadcast %cst_151 : f32 to vector<4x18xf32>
    %218 = arith.maximumf %216, %217 : vector<4x18xf32>
    %219 = vector.extract_strided_slice %0 {offsets = [1, 0, 0], sizes = [1, 4, 4], strides = [1, 1, 1]} : vector<3x4x4xf32> to vector<1x4x4xf32>
    %220 = vector.shape_cast %219 : vector<1x4x4xf32> to vector<4x4xf32>
    %cst_152 = arith.constant dense<0.000000e+00> : vector<4x18xf32>
    %221 = tpu.matmul %220, %218, %cst_152 {dimension_numbers = #tpu.dot_dimension_numbers<[1], [0], [0], [1], [0, 0, 1, 1], [], []>} : vector<4x4xf32>, vector<4x18xf32>, vector<4x18xf32> -> vector<4x18xf32>
    %222 = arith.addf %214, %221 : vector<4x18xf32>
    %c0_153 = arith.constant 0 : index
    %c0_154 = arith.constant 0 : index
    %c6 = arith.constant 6 : index
    %c0_155 = arith.constant 0 : index
    %223 = vector.load %arg1[%c0_153, %c0_154, %c6, %c0_155] : memref<1x4x18x18xf32, #tpu.memory_space<vmem>>, vector<1x4x1x18xf32>
    %224 = vector.shape_cast %223 : vector<1x4x1x18xf32> to vector<4x18xf32>
    %cst_156 = arith.constant 0.000000e+00 : f32
    %225 = vector.broadcast %cst_156 : f32 to vector<4x18xf32>
    %226 = arith.maximumf %224, %225 : vector<4x18xf32>
    %227 = vector.extract_strided_slice %0 {offsets = [2, 0, 0], sizes = [1, 4, 4], strides = [1, 1, 1]} : vector<3x4x4xf32> to vector<1x4x4xf32>
    %228 = vector.shape_cast %227 : vector<1x4x4xf32> to vector<4x4xf32>
    %cst_157 = arith.constant dense<0.000000e+00> : vector<4x18xf32>
    %229 = tpu.matmul %228, %226, %cst_157 {dimension_numbers = #tpu.dot_dimension_numbers<[1], [0], [0], [1], [0, 0, 1, 1], [], []>} : vector<4x4xf32>, vector<4x18xf32>, vector<4x18xf32> -> vector<4x18xf32>
    %230 = arith.addf %222, %229 : vector<4x18xf32>
    %c0_158 = arith.constant 0 : index
    %c1_159 = arith.constant 1 : index
    %231 = vector.load %arg7[%c0_158, %c1_159] : memref<4x20xf32, #tpu.memory_space<vmem>>, vector<4x18xf32>
    tpu.vector_store %arg7[%c0_158, %c1_159], %230 {strides = array<i32>} : memref<4x20xf32, #tpu.memory_space<vmem>>, vector<4x18xf32>,
    %cst_160 = arith.constant 0.000000e+00 : f32
    %232 = vector.broadcast %cst_160 : f32 to vector<8x18xf32>
    %c0_161 = arith.constant 0 : index
    %c0_162 = arith.constant 0 : index
    %233 = vector.load %arg7[%c0_161, %c0_162] : memref<4x20xf32, #tpu.memory_space<vmem>>, vector<4x18xf32>
    %234 = vector.extract_strided_slice %1 {offsets = [0, 0, 0], sizes = [1, 8, 4], strides = [1, 1, 1]} : vector<3x8x4xf32> to vector<1x8x4xf32>
    %235 = vector.shape_cast %234 : vector<1x8x4xf32> to vector<8x4xf32>
    %cst_163 = arith.constant dense<0.000000e+00> : vector<8x18xf32>
    %236 = tpu.matmul %235, %233, %cst_163 {dimension_numbers = #tpu.dot_dimension_numbers<[1], [0], [0], [1], [0, 0, 1, 1], [], []>} : vector<8x4xf32>, vector<4x18xf32>, vector<8x18xf32> -> vector<8x18xf32>
    %237 = arith.addf %232, %236 : vector<8x18xf32>
    %c0_164 = arith.constant 0 : index
    %c1_165 = arith.constant 1 : index
    %238 = vector.load %arg7[%c0_164, %c1_165] : memref<4x20xf32, #tpu.memory_space<vmem>>, vector<4x18xf32>
    %239 = vector.extract_strided_slice %1 {offsets = [1, 0, 0], sizes = [1, 8, 4], strides = [1, 1, 1]} : vector<3x8x4xf32> to vector<1x8x4xf32>
    %240 = vector.shape_cast %239 : vector<1x8x4xf32> to vector<8x4xf32>
    %cst_166 = arith.constant dense<0.000000e+00> : vector<8x18xf32>
    %241 = tpu.matmul %240, %238, %cst_166 {dimension_numbers = #tpu.dot_dimension_numbers<[1], [0], [0], [1], [0, 0, 1, 1], [], []>} : vector<8x4xf32>, vector<4x18xf32>, vector<8x18xf32> -> vector<8x18xf32>
    %242 = arith.addf %237, %241 : vector<8x18xf32>
    %c0_167 = arith.constant 0 : index
    %c2_168 = arith.constant 2 : index
    %243 = vector.load %arg7[%c0_167, %c2_168] : memref<4x20xf32, #tpu.memory_space<vmem>>, vector<4x18xf32>
    %244 = vector.extract_strided_slice %1 {offsets = [2, 0, 0], sizes = [1, 8, 4], strides = [1, 1, 1]} : vector<3x8x4xf32> to vector<1x8x4xf32>
    %245 = vector.shape_cast %244 : vector<1x8x4xf32> to vector<8x4xf32>
    %cst_169 = arith.constant dense<0.000000e+00> : vector<8x18xf32>
    %246 = tpu.matmul %245, %243, %cst_169 {dimension_numbers = #tpu.dot_dimension_numbers<[1], [0], [0], [1], [0, 0, 1, 1], [], []>} : vector<8x4xf32>, vector<4x18xf32>, vector<8x18xf32> -> vector<8x18xf32>
    %247 = arith.addf %242, %246 : vector<8x18xf32>
    %248 = arith.addf %199, %247 : vector<8x18xf32>
    %249 = arith.mulf %247, %247 : vector<8x18xf32>
    %250 = arith.addf %201, %249 : vector<8x18xf32>
    %251 = arith.truncf %247 : vector<8x18xf32> to vector<8x18xbf16>
    %c0_170 = arith.constant 0 : index
    %c0_171 = arith.constant 0 : index
    %c90 = arith.constant 90 : index
    %252 = vector.load %arg4[%c0_170, %c0_171, %c90] : memref<1x8x324xbf16, #tpu.memory_space<vmem>>, vector<1x8x18xbf16>
    %253 = vector.shape_cast %252 : vector<1x8x18xbf16> to vector<8x18xbf16>
    %254 = vector.shape_cast %251 : vector<8x18xbf16> to vector<1x8x18xbf16>
    tpu.vector_store %arg4[%c0_170, %c0_171, %c90], %254 {strides = array<i32>} : memref<1x8x324xbf16, #tpu.memory_space<vmem>>, vector<1x8x18xbf16>,
    %cst_172 = arith.constant 0.000000e+00 : f32
    %255 = vector.broadcast %cst_172 : f32 to vector<4x18xf32>
    %c0_173 = arith.constant 0 : index
    %c0_174 = arith.constant 0 : index
    %c5_175 = arith.constant 5 : index
    %c0_176 = arith.constant 0 : index
    %256 = vector.load %arg1[%c0_173, %c0_174, %c5_175, %c0_176] : memref<1x4x18x18xf32, #tpu.memory_space<vmem>>, vector<1x4x1x18xf32>
    %257 = vector.shape_cast %256 : vector<1x4x1x18xf32> to vector<4x18xf32>
    %cst_177 = arith.constant 0.000000e+00 : f32
    %258 = vector.broadcast %cst_177 : f32 to vector<4x18xf32>
    %259 = arith.maximumf %257, %258 : vector<4x18xf32>
    %260 = vector.extract_strided_slice %0 {offsets = [0, 0, 0], sizes = [1, 4, 4], strides = [1, 1, 1]} : vector<3x4x4xf32> to vector<1x4x4xf32>
    %261 = vector.shape_cast %260 : vector<1x4x4xf32> to vector<4x4xf32>
    %cst_178 = arith.constant dense<0.000000e+00> : vector<4x18xf32>
    %262 = tpu.matmul %261, %259, %cst_178 {dimension_numbers = #tpu.dot_dimension_numbers<[1], [0], [0], [1], [0, 0, 1, 1], [], []>} : vector<4x4xf32>, vector<4x18xf32>, vector<4x18xf32> -> vector<4x18xf32>
    %263 = arith.addf %255, %262 : vector<4x18xf32>
    %c0_179 = arith.constant 0 : index
    %c0_180 = arith.constant 0 : index
    %c6_181 = arith.constant 6 : index
    %c0_182 = arith.constant 0 : index
    %264 = vector.load %arg1[%c0_179, %c0_180, %c6_181, %c0_182] : memref<1x4x18x18xf32, #tpu.memory_space<vmem>>, vector<1x4x1x18xf32>
    %265 = vector.shape_cast %264 : vector<1x4x1x18xf32> to vector<4x18xf32>
    %cst_183 = arith.constant 0.000000e+00 : f32
    %266 = vector.broadcast %cst_183 : f32 to vector<4x18xf32>
    %267 = arith.maximumf %265, %266 : vector<4x18xf32>
    %268 = vector.extract_strided_slice %0 {offsets = [1, 0, 0], sizes = [1, 4, 4], strides = [1, 1, 1]} : vector<3x4x4xf32> to vector<1x4x4xf32>
    %269 = vector.shape_cast %268 : vector<1x4x4xf32> to vector<4x4xf32>
    %cst_184 = arith.constant dense<0.000000e+00> : vector<4x18xf32>
    %270 = tpu.matmul %269, %267, %cst_184 {dimension_numbers = #tpu.dot_dimension_numbers<[1], [0], [0], [1], [0, 0, 1, 1], [], []>} : vector<4x4xf32>, vector<4x18xf32>, vector<4x18xf32> -> vector<4x18xf32>
    %271 = arith.addf %263, %270 : vector<4x18xf32>
    %c0_185 = arith.constant 0 : index
    %c0_186 = arith.constant 0 : index
    %c7 = arith.constant 7 : index
    %c0_187 = arith.constant 0 : index
    %272 = vector.load %arg1[%c0_185, %c0_186, %c7, %c0_187] : memref<1x4x18x18xf32, #tpu.memory_space<vmem>>, vector<1x4x1x18xf32>
    %273 = vector.shape_cast %272 : vector<1x4x1x18xf32> to vector<4x18xf32>
    %cst_188 = arith.constant 0.000000e+00 : f32
    %274 = vector.broadcast %cst_188 : f32 to vector<4x18xf32>
    %275 = arith.maximumf %273, %274 : vector<4x18xf32>
    %276 = vector.extract_strided_slice %0 {offsets = [2, 0, 0], sizes = [1, 4, 4], strides = [1, 1, 1]} : vector<3x4x4xf32> to vector<1x4x4xf32>
    %277 = vector.shape_cast %276 : vector<1x4x4xf32> to vector<4x4xf32>
    %cst_189 = arith.constant dense<0.000000e+00> : vector<4x18xf32>
    %278 = tpu.matmul %277, %275, %cst_189 {dimension_numbers = #tpu.dot_dimension_numbers<[1], [0], [0], [1], [0, 0, 1, 1], [], []>} : vector<4x4xf32>, vector<4x18xf32>, vector<4x18xf32> -> vector<4x18xf32>
    %279 = arith.addf %271, %278 : vector<4x18xf32>
    %c0_190 = arith.constant 0 : index
    %c1_191 = arith.constant 1 : index
    %280 = vector.load %arg7[%c0_190, %c1_191] : memref<4x20xf32, #tpu.memory_space<vmem>>, vector<4x18xf32>
    tpu.vector_store %arg7[%c0_190, %c1_191], %279 {strides = array<i32>} : memref<4x20xf32, #tpu.memory_space<vmem>>, vector<4x18xf32>,
    %cst_192 = arith.constant 0.000000e+00 : f32
    %281 = vector.broadcast %cst_192 : f32 to vector<8x18xf32>
    %c0_193 = arith.constant 0 : index
    %c0_194 = arith.constant 0 : index
    %282 = vector.load %arg7[%c0_193, %c0_194] : memref<4x20xf32, #tpu.memory_space<vmem>>, vector<4x18xf32>
    %283 = vector.extract_strided_slice %1 {offsets = [0, 0, 0], sizes = [1, 8, 4], strides = [1, 1, 1]} : vector<3x8x4xf32> to vector<1x8x4xf32>
    %284 = vector.shape_cast %283 : vector<1x8x4xf32> to vector<8x4xf32>
    %cst_195 = arith.constant dense<0.000000e+00> : vector<8x18xf32>
    %285 = tpu.matmul %284, %282, %cst_195 {dimension_numbers = #tpu.dot_dimension_numbers<[1], [0], [0], [1], [0, 0, 1, 1], [], []>} : vector<8x4xf32>, vector<4x18xf32>, vector<8x18xf32> -> vector<8x18xf32>
    %286 = arith.addf %281, %285 : vector<8x18xf32>
    %c0_196 = arith.constant 0 : index
    %c1_197 = arith.constant 1 : index
    %287 = vector.load %arg7[%c0_196, %c1_197] : memref<4x20xf32, #tpu.memory_space<vmem>>, vector<4x18xf32>
    %288 = vector.extract_strided_slice %1 {offsets = [1, 0, 0], sizes = [1, 8, 4], strides = [1, 1, 1]} : vector<3x8x4xf32> to vector<1x8x4xf32>
    %289 = vector.shape_cast %288 : vector<1x8x4xf32> to vector<8x4xf32>
    %cst_198 = arith.constant dense<0.000000e+00> : vector<8x18xf32>
    %290 = tpu.matmul %289, %287, %cst_198 {dimension_numbers = #tpu.dot_dimension_numbers<[1], [0], [0], [1], [0, 0, 1, 1], [], []>} : vector<8x4xf32>, vector<4x18xf32>, vector<8x18xf32> -> vector<8x18xf32>
    %291 = arith.addf %286, %290 : vector<8x18xf32>
    %c0_199 = arith.constant 0 : index
    %c2_200 = arith.constant 2 : index
    %292 = vector.load %arg7[%c0_199, %c2_200] : memref<4x20xf32, #tpu.memory_space<vmem>>, vector<4x18xf32>
    %293 = vector.extract_strided_slice %1 {offsets = [2, 0, 0], sizes = [1, 8, 4], strides = [1, 1, 1]} : vector<3x8x4xf32> to vector<1x8x4xf32>
    %294 = vector.shape_cast %293 : vector<1x8x4xf32> to vector<8x4xf32>
    %cst_201 = arith.constant dense<0.000000e+00> : vector<8x18xf32>
    %295 = tpu.matmul %294, %292, %cst_201 {dimension_numbers = #tpu.dot_dimension_numbers<[1], [0], [0], [1], [0, 0, 1, 1], [], []>} : vector<8x4xf32>, vector<4x18xf32>, vector<8x18xf32> -> vector<8x18xf32>
    %296 = arith.addf %291, %295 : vector<8x18xf32>
    %297 = arith.addf %248, %296 : vector<8x18xf32>
    %298 = arith.mulf %296, %296 : vector<8x18xf32>
    %299 = arith.addf %250, %298 : vector<8x18xf32>
    %300 = arith.truncf %296 : vector<8x18xf32> to vector<8x18xbf16>
    %c0_202 = arith.constant 0 : index
    %c0_203 = arith.constant 0 : index
    %c108 = arith.constant 108 : index
    %301 = vector.load %arg4[%c0_202, %c0_203, %c108] : memref<1x8x324xbf16, #tpu.memory_space<vmem>>, vector<1x8x18xbf16>
    %302 = vector.shape_cast %301 : vector<1x8x18xbf16> to vector<8x18xbf16>
    %303 = vector.shape_cast %300 : vector<8x18xbf16> to vector<1x8x18xbf16>
    tpu.vector_store %arg4[%c0_202, %c0_203, %c108], %303 {strides = array<i32>} : memref<1x8x324xbf16, #tpu.memory_space<vmem>>, vector<1x8x18xbf16>,
    %cst_204 = arith.constant 0.000000e+00 : f32
    %304 = vector.broadcast %cst_204 : f32 to vector<4x18xf32>
    %c0_205 = arith.constant 0 : index
    %c0_206 = arith.constant 0 : index
    %c6_207 = arith.constant 6 : index
    %c0_208 = arith.constant 0 : index
    %305 = vector.load %arg1[%c0_205, %c0_206, %c6_207, %c0_208] : memref<1x4x18x18xf32, #tpu.memory_space<vmem>>, vector<1x4x1x18xf32>
    %306 = vector.shape_cast %305 : vector<1x4x1x18xf32> to vector<4x18xf32>
    %cst_209 = arith.constant 0.000000e+00 : f32
    %307 = vector.broadcast %cst_209 : f32 to vector<4x18xf32>
    %308 = arith.maximumf %306, %307 : vector<4x18xf32>
    %309 = vector.extract_strided_slice %0 {offsets = [0, 0, 0], sizes = [1, 4, 4], strides = [1, 1, 1]} : vector<3x4x4xf32> to vector<1x4x4xf32>
    %310 = vector.shape_cast %309 : vector<1x4x4xf32> to vector<4x4xf32>
    %cst_210 = arith.constant dense<0.000000e+00> : vector<4x18xf32>
    %311 = tpu.matmul %310, %308, %cst_210 {dimension_numbers = #tpu.dot_dimension_numbers<[1], [0], [0], [1], [0, 0, 1, 1], [], []>} : vector<4x4xf32>, vector<4x18xf32>, vector<4x18xf32> -> vector<4x18xf32>
    %312 = arith.addf %304, %311 : vector<4x18xf32>
    %c0_211 = arith.constant 0 : index
    %c0_212 = arith.constant 0 : index
    %c7_213 = arith.constant 7 : index
    %c0_214 = arith.constant 0 : index
    %313 = vector.load %arg1[%c0_211, %c0_212, %c7_213, %c0_214] : memref<1x4x18x18xf32, #tpu.memory_space<vmem>>, vector<1x4x1x18xf32>
    %314 = vector.shape_cast %313 : vector<1x4x1x18xf32> to vector<4x18xf32>
    %cst_215 = arith.constant 0.000000e+00 : f32
    %315 = vector.broadcast %cst_215 : f32 to vector<4x18xf32>
    %316 = arith.maximumf %314, %315 : vector<4x18xf32>
    %317 = vector.extract_strided_slice %0 {offsets = [1, 0, 0], sizes = [1, 4, 4], strides = [1, 1, 1]} : vector<3x4x4xf32> to vector<1x4x4xf32>
    %318 = vector.shape_cast %317 : vector<1x4x4xf32> to vector<4x4xf32>
    %cst_216 = arith.constant dense<0.000000e+00> : vector<4x18xf32>
    %319 = tpu.matmul %318, %316, %cst_216 {dimension_numbers = #tpu.dot_dimension_numbers<[1], [0], [0], [1], [0, 0, 1, 1], [], []>} : vector<4x4xf32>, vector<4x18xf32>, vector<4x18xf32> -> vector<4x18xf32>
    %320 = arith.addf %312, %319 : vector<4x18xf32>
    %c0_217 = arith.constant 0 : index
    %c0_218 = arith.constant 0 : index
    %c8 = arith.constant 8 : index
    %c0_219 = arith.constant 0 : index
    %321 = vector.load %arg1[%c0_217, %c0_218, %c8, %c0_219] : memref<1x4x18x18xf32, #tpu.memory_space<vmem>>, vector<1x4x1x18xf32>
    %322 = vector.shape_cast %321 : vector<1x4x1x18xf32> to vector<4x18xf32>
    %cst_220 = arith.constant 0.000000e+00 : f32
    %323 = vector.broadcast %cst_220 : f32 to vector<4x18xf32>
    %324 = arith.maximumf %322, %323 : vector<4x18xf32>
    %325 = vector.extract_strided_slice %0 {offsets = [2, 0, 0], sizes = [1, 4, 4], strides = [1, 1, 1]} : vector<3x4x4xf32> to vector<1x4x4xf32>
    %326 = vector.shape_cast %325 : vector<1x4x4xf32> to vector<4x4xf32>
    %cst_221 = arith.constant dense<0.000000e+00> : vector<4x18xf32>
    %327 = tpu.matmul %326, %324, %cst_221 {dimension_numbers = #tpu.dot_dimension_numbers<[1], [0], [0], [1], [0, 0, 1, 1], [], []>} : vector<4x4xf32>, vector<4x18xf32>, vector<4x18xf32> -> vector<4x18xf32>
    %328 = arith.addf %320, %327 : vector<4x18xf32>
    %c0_222 = arith.constant 0 : index
    %c1_223 = arith.constant 1 : index
    %329 = vector.load %arg7[%c0_222, %c1_223] : memref<4x20xf32, #tpu.memory_space<vmem>>, vector<4x18xf32>
    tpu.vector_store %arg7[%c0_222, %c1_223], %328 {strides = array<i32>} : memref<4x20xf32, #tpu.memory_space<vmem>>, vector<4x18xf32>,
    %cst_224 = arith.constant 0.000000e+00 : f32
    %330 = vector.broadcast %cst_224 : f32 to vector<8x18xf32>
    %c0_225 = arith.constant 0 : index
    %c0_226 = arith.constant 0 : index
    %331 = vector.load %arg7[%c0_225, %c0_226] : memref<4x20xf32, #tpu.memory_space<vmem>>, vector<4x18xf32>
    %332 = vector.extract_strided_slice %1 {offsets = [0, 0, 0], sizes = [1, 8, 4], strides = [1, 1, 1]} : vector<3x8x4xf32> to vector<1x8x4xf32>
    %333 = vector.shape_cast %332 : vector<1x8x4xf32> to vector<8x4xf32>
    %cst_227 = arith.constant dense<0.000000e+00> : vector<8x18xf32>
    %334 = tpu.matmul %333, %331, %cst_227 {dimension_numbers = #tpu.dot_dimension_numbers<[1], [0], [0], [1], [0, 0, 1, 1], [], []>} : vector<8x4xf32>, vector<4x18xf32>, vector<8x18xf32> -> vector<8x18xf32>
    %335 = arith.addf %330, %334 : vector<8x18xf32>
    %c0_228 = arith.constant 0 : index
    %c1_229 = arith.constant 1 : index
    %336 = vector.load %arg7[%c0_228, %c1_229] : memref<4x20xf32, #tpu.memory_space<vmem>>, vector<4x18xf32>
    %337 = vector.extract_strided_slice %1 {offsets = [1, 0, 0], sizes = [1, 8, 4], strides = [1, 1, 1]} : vector<3x8x4xf32> to vector<1x8x4xf32>
    %338 = vector.shape_cast %337 : vector<1x8x4xf32> to vector<8x4xf32>
    %cst_230 = arith.constant dense<0.000000e+00> : vector<8x18xf32>
    %339 = tpu.matmul %338, %336, %cst_230 {dimension_numbers = #tpu.dot_dimension_numbers<[1], [0], [0], [1], [0, 0, 1, 1], [], []>} : vector<8x4xf32>, vector<4x18xf32>, vector<8x18xf32> -> vector<8x18xf32>
    %340 = arith.addf %335, %339 : vector<8x18xf32>
    %c0_231 = arith.constant 0 : index
    %c2_232 = arith.constant 2 : index
    %341 = vector.load %arg7[%c0_231, %c2_232] : memref<4x20xf32, #tpu.memory_space<vmem>>, vector<4x18xf32>
    %342 = vector.extract_strided_slice %1 {offsets = [2, 0, 0], sizes = [1, 8, 4], strides = [1, 1, 1]} : vector<3x8x4xf32> to vector<1x8x4xf32>
    %343 = vector.shape_cast %342 : vector<1x8x4xf32> to vector<8x4xf32>
    %cst_233 = arith.constant dense<0.000000e+00> : vector<8x18xf32>
    %344 = tpu.matmul %343, %341, %cst_233 {dimension_numbers = #tpu.dot_dimension_numbers<[1], [0], [0], [1], [0, 0, 1, 1], [], []>} : vector<8x4xf32>, vector<4x18xf32>, vector<8x18xf32> -> vector<8x18xf32>
    %345 = arith.addf %340, %344 : vector<8x18xf32>
    %346 = arith.addf %297, %345 : vector<8x18xf32>
    %347 = arith.mulf %345, %345 : vector<8x18xf32>
    %348 = arith.addf %299, %347 : vector<8x18xf32>
    %349 = arith.truncf %345 : vector<8x18xf32> to vector<8x18xbf16>
    %c0_234 = arith.constant 0 : index
    %c0_235 = arith.constant 0 : index
    %c126 = arith.constant 126 : index
    %350 = vector.load %arg4[%c0_234, %c0_235, %c126] : memref<1x8x324xbf16, #tpu.memory_space<vmem>>, vector<1x8x18xbf16>
    %351 = vector.shape_cast %350 : vector<1x8x18xbf16> to vector<8x18xbf16>
    %352 = vector.shape_cast %349 : vector<8x18xbf16> to vector<1x8x18xbf16>
    tpu.vector_store %arg4[%c0_234, %c0_235, %c126], %352 {strides = array<i32>} : memref<1x8x324xbf16, #tpu.memory_space<vmem>>, vector<1x8x18xbf16>,
    %cst_236 = arith.constant 0.000000e+00 : f32
    %353 = vector.broadcast %cst_236 : f32 to vector<4x18xf32>
    %c0_237 = arith.constant 0 : index
    %c0_238 = arith.constant 0 : index
    %c7_239 = arith.constant 7 : index
    %c0_240 = arith.constant 0 : index
    %354 = vector.load %arg1[%c0_237, %c0_238, %c7_239, %c0_240] : memref<1x4x18x18xf32, #tpu.memory_space<vmem>>, vector<1x4x1x18xf32>
    %355 = vector.shape_cast %354 : vector<1x4x1x18xf32> to vector<4x18xf32>
    %cst_241 = arith.constant 0.000000e+00 : f32
    %356 = vector.broadcast %cst_241 : f32 to vector<4x18xf32>
    %357 = arith.maximumf %355, %356 : vector<4x18xf32>
    %358 = vector.extract_strided_slice %0 {offsets = [0, 0, 0], sizes = [1, 4, 4], strides = [1, 1, 1]} : vector<3x4x4xf32> to vector<1x4x4xf32>
    %359 = vector.shape_cast %358 : vector<1x4x4xf32> to vector<4x4xf32>
    %cst_242 = arith.constant dense<0.000000e+00> : vector<4x18xf32>
    %360 = tpu.matmul %359, %357, %cst_242 {dimension_numbers = #tpu.dot_dimension_numbers<[1], [0], [0], [1], [0, 0, 1, 1], [], []>} : vector<4x4xf32>, vector<4x18xf32>, vector<4x18xf32> -> vector<4x18xf32>
    %361 = arith.addf %353, %360 : vector<4x18xf32>
    %c0_243 = arith.constant 0 : index
    %c0_244 = arith.constant 0 : index
    %c8_245 = arith.constant 8 : index
    %c0_246 = arith.constant 0 : index
    %362 = vector.load %arg1[%c0_243, %c0_244, %c8_245, %c0_246] : memref<1x4x18x18xf32, #tpu.memory_space<vmem>>, vector<1x4x1x18xf32>
    %363 = vector.shape_cast %362 : vector<1x4x1x18xf32> to vector<4x18xf32>
    %cst_247 = arith.constant 0.000000e+00 : f32
    %364 = vector.broadcast %cst_247 : f32 to vector<4x18xf32>
    %365 = arith.maximumf %363, %364 : vector<4x18xf32>
    %366 = vector.extract_strided_slice %0 {offsets = [1, 0, 0], sizes = [1, 4, 4], strides = [1, 1, 1]} : vector<3x4x4xf32> to vector<1x4x4xf32>
    %367 = vector.shape_cast %366 : vector<1x4x4xf32> to vector<4x4xf32>
    %cst_248 = arith.constant dense<0.000000e+00> : vector<4x18xf32>
    %368 = tpu.matmul %367, %365, %cst_248 {dimension_numbers = #tpu.dot_dimension_numbers<[1], [0], [0], [1], [0, 0, 1, 1], [], []>} : vector<4x4xf32>, vector<4x18xf32>, vector<4x18xf32> -> vector<4x18xf32>
    %369 = arith.addf %361, %368 : vector<4x18xf32>
    %c0_249 = arith.constant 0 : index
    %c0_250 = arith.constant 0 : index
    %c9 = arith.constant 9 : index
    %c0_251 = arith.constant 0 : index
    %370 = vector.load %arg1[%c0_249, %c0_250, %c9, %c0_251] : memref<1x4x18x18xf32, #tpu.memory_space<vmem>>, vector<1x4x1x18xf32>
    %371 = vector.shape_cast %370 : vector<1x4x1x18xf32> to vector<4x18xf32>
    %cst_252 = arith.constant 0.000000e+00 : f32
    %372 = vector.broadcast %cst_252 : f32 to vector<4x18xf32>
    %373 = arith.maximumf %371, %372 : vector<4x18xf32>
    %374 = vector.extract_strided_slice %0 {offsets = [2, 0, 0], sizes = [1, 4, 4], strides = [1, 1, 1]} : vector<3x4x4xf32> to vector<1x4x4xf32>
    %375 = vector.shape_cast %374 : vector<1x4x4xf32> to vector<4x4xf32>
    %cst_253 = arith.constant dense<0.000000e+00> : vector<4x18xf32>
    %376 = tpu.matmul %375, %373, %cst_253 {dimension_numbers = #tpu.dot_dimension_numbers<[1], [0], [0], [1], [0, 0, 1, 1], [], []>} : vector<4x4xf32>, vector<4x18xf32>, vector<4x18xf32> -> vector<4x18xf32>
    %377 = arith.addf %369, %376 : vector<4x18xf32>
    %c0_254 = arith.constant 0 : index
    %c1_255 = arith.constant 1 : index
    %378 = vector.load %arg7[%c0_254, %c1_255] : memref<4x20xf32, #tpu.memory_space<vmem>>, vector<4x18xf32>
    tpu.vector_store %arg7[%c0_254, %c1_255], %377 {strides = array<i32>} : memref<4x20xf32, #tpu.memory_space<vmem>>, vector<4x18xf32>,
    %cst_256 = arith.constant 0.000000e+00 : f32
    %379 = vector.broadcast %cst_256 : f32 to vector<8x18xf32>
    %c0_257 = arith.constant 0 : index
    %c0_258 = arith.constant 0 : index
    %380 = vector.load %arg7[%c0_257, %c0_258] : memref<4x20xf32, #tpu.memory_space<vmem>>, vector<4x18xf32>
    %381 = vector.extract_strided_slice %1 {offsets = [0, 0, 0], sizes = [1, 8, 4], strides = [1, 1, 1]} : vector<3x8x4xf32> to vector<1x8x4xf32>
    %382 = vector.shape_cast %381 : vector<1x8x4xf32> to vector<8x4xf32>
    %cst_259 = arith.constant dense<0.000000e+00> : vector<8x18xf32>
    %383 = tpu.matmul %382, %380, %cst_259 {dimension_numbers = #tpu.dot_dimension_numbers<[1], [0], [0], [1], [0, 0, 1, 1], [], []>} : vector<8x4xf32>, vector<4x18xf32>, vector<8x18xf32> -> vector<8x18xf32>
    %384 = arith.addf %379, %383 : vector<8x18xf32>
    %c0_260 = arith.constant 0 : index
    %c1_261 = arith.constant 1 : index
    %385 = vector.load %arg7[%c0_260, %c1_261] : memref<4x20xf32, #tpu.memory_space<vmem>>, vector<4x18xf32>
    %386 = vector.extract_strided_slice %1 {offsets = [1, 0, 0], sizes = [1, 8, 4], strides = [1, 1, 1]} : vector<3x8x4xf32> to vector<1x8x4xf32>
    %387 = vector.shape_cast %386 : vector<1x8x4xf32> to vector<8x4xf32>
    %cst_262 = arith.constant dense<0.000000e+00> : vector<8x18xf32>
    %388 = tpu.matmul %387, %385, %cst_262 {dimension_numbers = #tpu.dot_dimension_numbers<[1], [0], [0], [1], [0, 0, 1, 1], [], []>} : vector<8x4xf32>, vector<4x18xf32>, vector<8x18xf32> -> vector<8x18xf32>
    %389 = arith.addf %384, %388 : vector<8x18xf32>
    %c0_263 = arith.constant 0 : index
    %c2_264 = arith.constant 2 : index
    %390 = vector.load %arg7[%c0_263, %c2_264] : memref<4x20xf32, #tpu.memory_space<vmem>>, vector<4x18xf32>
    %391 = vector.extract_strided_slice %1 {offsets = [2, 0, 0], sizes = [1, 8, 4], strides = [1, 1, 1]} : vector<3x8x4xf32> to vector<1x8x4xf32>
    %392 = vector.shape_cast %391 : vector<1x8x4xf32> to vector<8x4xf32>
    %cst_265 = arith.constant dense<0.000000e+00> : vector<8x18xf32>
    %393 = tpu.matmul %392, %390, %cst_265 {dimension_numbers = #tpu.dot_dimension_numbers<[1], [0], [0], [1], [0, 0, 1, 1], [], []>} : vector<8x4xf32>, vector<4x18xf32>, vector<8x18xf32> -> vector<8x18xf32>
    %394 = arith.addf %389, %393 : vector<8x18xf32>
    %395 = arith.addf %346, %394 : vector<8x18xf32>
    %396 = arith.mulf %394, %394 : vector<8x18xf32>
    %397 = arith.addf %348, %396 : vector<8x18xf32>
    %398 = arith.truncf %394 : vector<8x18xf32> to vector<8x18xbf16>
    %c0_266 = arith.constant 0 : index
    %c0_267 = arith.constant 0 : index
    %c144 = arith.constant 144 : index
    %399 = vector.load %arg4[%c0_266, %c0_267, %c144] : memref<1x8x324xbf16, #tpu.memory_space<vmem>>, vector<1x8x18xbf16>
    %400 = vector.shape_cast %399 : vector<1x8x18xbf16> to vector<8x18xbf16>
    %401 = vector.shape_cast %398 : vector<8x18xbf16> to vector<1x8x18xbf16>
    tpu.vector_store %arg4[%c0_266, %c0_267, %c144], %401 {strides = array<i32>} : memref<1x8x324xbf16, #tpu.memory_space<vmem>>, vector<1x8x18xbf16>,
    %cst_268 = arith.constant 0.000000e+00 : f32
    %402 = vector.broadcast %cst_268 : f32 to vector<4x18xf32>
    %c0_269 = arith.constant 0 : index
    %c0_270 = arith.constant 0 : index
    %c8_271 = arith.constant 8 : index
    %c0_272 = arith.constant 0 : index
    %403 = vector.load %arg1[%c0_269, %c0_270, %c8_271, %c0_272] : memref<1x4x18x18xf32, #tpu.memory_space<vmem>>, vector<1x4x1x18xf32>
    %404 = vector.shape_cast %403 : vector<1x4x1x18xf32> to vector<4x18xf32>
    %cst_273 = arith.constant 0.000000e+00 : f32
    %405 = vector.broadcast %cst_273 : f32 to vector<4x18xf32>
    %406 = arith.maximumf %404, %405 : vector<4x18xf32>
    %407 = vector.extract_strided_slice %0 {offsets = [0, 0, 0], sizes = [1, 4, 4], strides = [1, 1, 1]} : vector<3x4x4xf32> to vector<1x4x4xf32>
    %408 = vector.shape_cast %407 : vector<1x4x4xf32> to vector<4x4xf32>
    %cst_274 = arith.constant dense<0.000000e+00> : vector<4x18xf32>
    %409 = tpu.matmul %408, %406, %cst_274 {dimension_numbers = #tpu.dot_dimension_numbers<[1], [0], [0], [1], [0, 0, 1, 1], [], []>} : vector<4x4xf32>, vector<4x18xf32>, vector<4x18xf32> -> vector<4x18xf32>
    %410 = arith.addf %402, %409 : vector<4x18xf32>
    %c0_275 = arith.constant 0 : index
    %c0_276 = arith.constant 0 : index
    %c9_277 = arith.constant 9 : index
    %c0_278 = arith.constant 0 : index
    %411 = vector.load %arg1[%c0_275, %c0_276, %c9_277, %c0_278] : memref<1x4x18x18xf32, #tpu.memory_space<vmem>>, vector<1x4x1x18xf32>
    %412 = vector.shape_cast %411 : vector<1x4x1x18xf32> to vector<4x18xf32>
    %cst_279 = arith.constant 0.000000e+00 : f32
    %413 = vector.broadcast %cst_279 : f32 to vector<4x18xf32>
    %414 = arith.maximumf %412, %413 : vector<4x18xf32>
    %415 = vector.extract_strided_slice %0 {offsets = [1, 0, 0], sizes = [1, 4, 4], strides = [1, 1, 1]} : vector<3x4x4xf32> to vector<1x4x4xf32>
    %416 = vector.shape_cast %415 : vector<1x4x4xf32> to vector<4x4xf32>
    %cst_280 = arith.constant dense<0.000000e+00> : vector<4x18xf32>
    %417 = tpu.matmul %416, %414, %cst_280 {dimension_numbers = #tpu.dot_dimension_numbers<[1], [0], [0], [1], [0, 0, 1, 1], [], []>} : vector<4x4xf32>, vector<4x18xf32>, vector<4x18xf32> -> vector<4x18xf32>
    %418 = arith.addf %410, %417 : vector<4x18xf32>
    %c0_281 = arith.constant 0 : index
    %c0_282 = arith.constant 0 : index
    %c10 = arith.constant 10 : index
    %c0_283 = arith.constant 0 : index
    %419 = vector.load %arg1[%c0_281, %c0_282, %c10, %c0_283] : memref<1x4x18x18xf32, #tpu.memory_space<vmem>>, vector<1x4x1x18xf32>
    %420 = vector.shape_cast %419 : vector<1x4x1x18xf32> to vector<4x18xf32>
    %cst_284 = arith.constant 0.000000e+00 : f32
    %421 = vector.broadcast %cst_284 : f32 to vector<4x18xf32>
    %422 = arith.maximumf %420, %421 : vector<4x18xf32>
    %423 = vector.extract_strided_slice %0 {offsets = [2, 0, 0], sizes = [1, 4, 4], strides = [1, 1, 1]} : vector<3x4x4xf32> to vector<1x4x4xf32>
    %424 = vector.shape_cast %423 : vector<1x4x4xf32> to vector<4x4xf32>
    %cst_285 = arith.constant dense<0.000000e+00> : vector<4x18xf32>
    %425 = tpu.matmul %424, %422, %cst_285 {dimension_numbers = #tpu.dot_dimension_numbers<[1], [0], [0], [1], [0, 0, 1, 1], [], []>} : vector<4x4xf32>, vector<4x18xf32>, vector<4x18xf32> -> vector<4x18xf32>
    %426 = arith.addf %418, %425 : vector<4x18xf32>
    %c0_286 = arith.constant 0 : index
    %c1_287 = arith.constant 1 : index
    %427 = vector.load %arg7[%c0_286, %c1_287] : memref<4x20xf32, #tpu.memory_space<vmem>>, vector<4x18xf32>
    tpu.vector_store %arg7[%c0_286, %c1_287], %426 {strides = array<i32>} : memref<4x20xf32, #tpu.memory_space<vmem>>, vector<4x18xf32>,
    %cst_288 = arith.constant 0.000000e+00 : f32
    %428 = vector.broadcast %cst_288 : f32 to vector<8x18xf32>
    %c0_289 = arith.constant 0 : index
    %c0_290 = arith.constant 0 : index
    %429 = vector.load %arg7[%c0_289, %c0_290] : memref<4x20xf32, #tpu.memory_space<vmem>>, vector<4x18xf32>
    %430 = vector.extract_strided_slice %1 {offsets = [0, 0, 0], sizes = [1, 8, 4], strides = [1, 1, 1]} : vector<3x8x4xf32> to vector<1x8x4xf32>
    %431 = vector.shape_cast %430 : vector<1x8x4xf32> to vector<8x4xf32>
    %cst_291 = arith.constant dense<0.000000e+00> : vector<8x18xf32>
    %432 = tpu.matmul %431, %429, %cst_291 {dimension_numbers = #tpu.dot_dimension_numbers<[1], [0], [0], [1], [0, 0, 1, 1], [], []>} : vector<8x4xf32>, vector<4x18xf32>, vector<8x18xf32> -> vector<8x18xf32>
    %433 = arith.addf %428, %432 : vector<8x18xf32>
    %c0_292 = arith.constant 0 : index
    %c1_293 = arith.constant 1 : index
    %434 = vector.load %arg7[%c0_292, %c1_293] : memref<4x20xf32, #tpu.memory_space<vmem>>, vector<4x18xf32>
    %435 = vector.extract_strided_slice %1 {offsets = [1, 0, 0], sizes = [1, 8, 4], strides = [1, 1, 1]} : vector<3x8x4xf32> to vector<1x8x4xf32>
    %436 = vector.shape_cast %435 : vector<1x8x4xf32> to vector<8x4xf32>
    %cst_294 = arith.constant dense<0.000000e+00> : vector<8x18xf32>
    %437 = tpu.matmul %436, %434, %cst_294 {dimension_numbers = #tpu.dot_dimension_numbers<[1], [0], [0], [1], [0, 0, 1, 1], [], []>} : vector<8x4xf32>, vector<4x18xf32>, vector<8x18xf32> -> vector<8x18xf32>
    %438 = arith.addf %433, %437 : vector<8x18xf32>
    %c0_295 = arith.constant 0 : index
    %c2_296 = arith.constant 2 : index
    %439 = vector.load %arg7[%c0_295, %c2_296] : memref<4x20xf32, #tpu.memory_space<vmem>>, vector<4x18xf32>
    %440 = vector.extract_strided_slice %1 {offsets = [2, 0, 0], sizes = [1, 8, 4], strides = [1, 1, 1]} : vector<3x8x4xf32> to vector<1x8x4xf32>
    %441 = vector.shape_cast %440 : vector<1x8x4xf32> to vector<8x4xf32>
    %cst_297 = arith.constant dense<0.000000e+00> : vector<8x18xf32>
    %442 = tpu.matmul %441, %439, %cst_297 {dimension_numbers = #tpu.dot_dimension_numbers<[1], [0], [0], [1], [0, 0, 1, 1], [], []>} : vector<8x4xf32>, vector<4x18xf32>, vector<8x18xf32> -> vector<8x18xf32>
    %443 = arith.addf %438, %442 : vector<8x18xf32>
    %444 = arith.addf %395, %443 : vector<8x18xf32>
    %445 = arith.mulf %443, %443 : vector<8x18xf32>
    %446 = arith.addf %397, %445 : vector<8x18xf32>
    %447 = arith.truncf %443 : vector<8x18xf32> to vector<8x18xbf16>
    %c0_298 = arith.constant 0 : index
    %c0_299 = arith.constant 0 : index
    %c162 = arith.constant 162 : index
    %448 = vector.load %arg4[%c0_298, %c0_299, %c162] : memref<1x8x324xbf16, #tpu.memory_space<vmem>>, vector<1x8x18xbf16>
    %449 = vector.shape_cast %448 : vector<1x8x18xbf16> to vector<8x18xbf16>
    %450 = vector.shape_cast %447 : vector<8x18xbf16> to vector<1x8x18xbf16>
    tpu.vector_store %arg4[%c0_298, %c0_299, %c162], %450 {strides = array<i32>} : memref<1x8x324xbf16, #tpu.memory_space<vmem>>, vector<1x8x18xbf16>,
    %cst_300 = arith.constant 0.000000e+00 : f32
    %451 = vector.broadcast %cst_300 : f32 to vector<4x18xf32>
    %c0_301 = arith.constant 0 : index
    %c0_302 = arith.constant 0 : index
    %c9_303 = arith.constant 9 : index
    %c0_304 = arith.constant 0 : index
    %452 = vector.load %arg1[%c0_301, %c0_302, %c9_303, %c0_304] : memref<1x4x18x18xf32, #tpu.memory_space<vmem>>, vector<1x4x1x18xf32>
    %453 = vector.shape_cast %452 : vector<1x4x1x18xf32> to vector<4x18xf32>
    %cst_305 = arith.constant 0.000000e+00 : f32
    %454 = vector.broadcast %cst_305 : f32 to vector<4x18xf32>
    %455 = arith.maximumf %453, %454 : vector<4x18xf32>
    %456 = vector.extract_strided_slice %0 {offsets = [0, 0, 0], sizes = [1, 4, 4], strides = [1, 1, 1]} : vector<3x4x4xf32> to vector<1x4x4xf32>
    %457 = vector.shape_cast %456 : vector<1x4x4xf32> to vector<4x4xf32>
    %cst_306 = arith.constant dense<0.000000e+00> : vector<4x18xf32>
    %458 = tpu.matmul %457, %455, %cst_306 {dimension_numbers = #tpu.dot_dimension_numbers<[1], [0], [0], [1], [0, 0, 1, 1], [], []>} : vector<4x4xf32>, vector<4x18xf32>, vector<4x18xf32> -> vector<4x18xf32>
    %459 = arith.addf %451, %458 : vector<4x18xf32>
    %c0_307 = arith.constant 0 : index
    %c0_308 = arith.constant 0 : index
    %c10_309 = arith.constant 10 : index
    %c0_310 = arith.constant 0 : index
    %460 = vector.load %arg1[%c0_307, %c0_308, %c10_309, %c0_310] : memref<1x4x18x18xf32, #tpu.memory_space<vmem>>, vector<1x4x1x18xf32>
    %461 = vector.shape_cast %460 : vector<1x4x1x18xf32> to vector<4x18xf32>
    %cst_311 = arith.constant 0.000000e+00 : f32
    %462 = vector.broadcast %cst_311 : f32 to vector<4x18xf32>
    %463 = arith.maximumf %461, %462 : vector<4x18xf32>
    %464 = vector.extract_strided_slice %0 {offsets = [1, 0, 0], sizes = [1, 4, 4], strides = [1, 1, 1]} : vector<3x4x4xf32> to vector<1x4x4xf32>
    %465 = vector.shape_cast %464 : vector<1x4x4xf32> to vector<4x4xf32>
    %cst_312 = arith.constant dense<0.000000e+00> : vector<4x18xf32>
    %466 = tpu.matmul %465, %463, %cst_312 {dimension_numbers = #tpu.dot_dimension_numbers<[1], [0], [0], [1], [0, 0, 1, 1], [], []>} : vector<4x4xf32>, vector<4x18xf32>, vector<4x18xf32> -> vector<4x18xf32>
    %467 = arith.addf %459, %466 : vector<4x18xf32>
    %c0_313 = arith.constant 0 : index
    %c0_314 = arith.constant 0 : index
    %c11 = arith.constant 11 : index
    %c0_315 = arith.constant 0 : index
    %468 = vector.load %arg1[%c0_313, %c0_314, %c11, %c0_315] : memref<1x4x18x18xf32, #tpu.memory_space<vmem>>, vector<1x4x1x18xf32>
    %469 = vector.shape_cast %468 : vector<1x4x1x18xf32> to vector<4x18xf32>
    %cst_316 = arith.constant 0.000000e+00 : f32
    %470 = vector.broadcast %cst_316 : f32 to vector<4x18xf32>
    %471 = arith.maximumf %469, %470 : vector<4x18xf32>
    %472 = vector.extract_strided_slice %0 {offsets = [2, 0, 0], sizes = [1, 4, 4], strides = [1, 1, 1]} : vector<3x4x4xf32> to vector<1x4x4xf32>
    %473 = vector.shape_cast %472 : vector<1x4x4xf32> to vector<4x4xf32>
    %cst_317 = arith.constant dense<0.000000e+00> : vector<4x18xf32>
    %474 = tpu.matmul %473, %471, %cst_317 {dimension_numbers = #tpu.dot_dimension_numbers<[1], [0], [0], [1], [0, 0, 1, 1], [], []>} : vector<4x4xf32>, vector<4x18xf32>, vector<4x18xf32> -> vector<4x18xf32>
    %475 = arith.addf %467, %474 : vector<4x18xf32>
    %c0_318 = arith.constant 0 : index
    %c1_319 = arith.constant 1 : index
    %476 = vector.load %arg7[%c0_318, %c1_319] : memref<4x20xf32, #tpu.memory_space<vmem>>, vector<4x18xf32>
    tpu.vector_store %arg7[%c0_318, %c1_319], %475 {strides = array<i32>} : memref<4x20xf32, #tpu.memory_space<vmem>>, vector<4x18xf32>,
    %cst_320 = arith.constant 0.000000e+00 : f32
    %477 = vector.broadcast %cst_320 : f32 to vector<8x18xf32>
    %c0_321 = arith.constant 0 : index
    %c0_322 = arith.constant 0 : index
    %478 = vector.load %arg7[%c0_321, %c0_322] : memref<4x20xf32, #tpu.memory_space<vmem>>, vector<4x18xf32>
    %479 = vector.extract_strided_slice %1 {offsets = [0, 0, 0], sizes = [1, 8, 4], strides = [1, 1, 1]} : vector<3x8x4xf32> to vector<1x8x4xf32>
    %480 = vector.shape_cast %479 : vector<1x8x4xf32> to vector<8x4xf32>
    %cst_323 = arith.constant dense<0.000000e+00> : vector<8x18xf32>
    %481 = tpu.matmul %480, %478, %cst_323 {dimension_numbers = #tpu.dot_dimension_numbers<[1], [0], [0], [1], [0, 0, 1, 1], [], []>} : vector<8x4xf32>, vector<4x18xf32>, vector<8x18xf32> -> vector<8x18xf32>
    %482 = arith.addf %477, %481 : vector<8x18xf32>
    %c0_324 = arith.constant 0 : index
    %c1_325 = arith.constant 1 : index
    %483 = vector.load %arg7[%c0_324, %c1_325] : memref<4x20xf32, #tpu.memory_space<vmem>>, vector<4x18xf32>
    %484 = vector.extract_strided_slice %1 {offsets = [1, 0, 0], sizes = [1, 8, 4], strides = [1, 1, 1]} : vector<3x8x4xf32> to vector<1x8x4xf32>
    %485 = vector.shape_cast %484 : vector<1x8x4xf32> to vector<8x4xf32>
    %cst_326 = arith.constant dense<0.000000e+00> : vector<8x18xf32>
    %486 = tpu.matmul %485, %483, %cst_326 {dimension_numbers = #tpu.dot_dimension_numbers<[1], [0], [0], [1], [0, 0, 1, 1], [], []>} : vector<8x4xf32>, vector<4x18xf32>, vector<8x18xf32> -> vector<8x18xf32>
    %487 = arith.addf %482, %486 : vector<8x18xf32>
    %c0_327 = arith.constant 0 : index
    %c2_328 = arith.constant 2 : index
    %488 = vector.load %arg7[%c0_327, %c2_328] : memref<4x20xf32, #tpu.memory_space<vmem>>, vector<4x18xf32>
    %489 = vector.extract_strided_slice %1 {offsets = [2, 0, 0], sizes = [1, 8, 4], strides = [1, 1, 1]} : vector<3x8x4xf32> to vector<1x8x4xf32>
    %490 = vector.shape_cast %489 : vector<1x8x4xf32> to vector<8x4xf32>
    %cst_329 = arith.constant dense<0.000000e+00> : vector<8x18xf32>
    %491 = tpu.matmul %490, %488, %cst_329 {dimension_numbers = #tpu.dot_dimension_numbers<[1], [0], [0], [1], [0, 0, 1, 1], [], []>} : vector<8x4xf32>, vector<4x18xf32>, vector<8x18xf32> -> vector<8x18xf32>
    %492 = arith.addf %487, %491 : vector<8x18xf32>
    %493 = arith.addf %444, %492 : vector<8x18xf32>
    %494 = arith.mulf %492, %492 : vector<8x18xf32>
    %495 = arith.addf %446, %494 : vector<8x18xf32>
    %496 = arith.truncf %492 : vector<8x18xf32> to vector<8x18xbf16>
    %c0_330 = arith.constant 0 : index
    %c0_331 = arith.constant 0 : index
    %c180 = arith.constant 180 : index
    %497 = vector.load %arg4[%c0_330, %c0_331, %c180] : memref<1x8x324xbf16, #tpu.memory_space<vmem>>, vector<1x8x18xbf16>
    %498 = vector.shape_cast %497 : vector<1x8x18xbf16> to vector<8x18xbf16>
    %499 = vector.shape_cast %496 : vector<8x18xbf16> to vector<1x8x18xbf16>
    tpu.vector_store %arg4[%c0_330, %c0_331, %c180], %499 {strides = array<i32>} : memref<1x8x324xbf16, #tpu.memory_space<vmem>>, vector<1x8x18xbf16>,
    %cst_332 = arith.constant 0.000000e+00 : f32
    %500 = vector.broadcast %cst_332 : f32 to vector<4x18xf32>
    %c0_333 = arith.constant 0 : index
    %c0_334 = arith.constant 0 : index
    %c10_335 = arith.constant 10 : index
    %c0_336 = arith.constant 0 : index
    %501 = vector.load %arg1[%c0_333, %c0_334, %c10_335, %c0_336] : memref<1x4x18x18xf32, #tpu.memory_space<vmem>>, vector<1x4x1x18xf32>
    %502 = vector.shape_cast %501 : vector<1x4x1x18xf32> to vector<4x18xf32>
    %cst_337 = arith.constant 0.000000e+00 : f32
    %503 = vector.broadcast %cst_337 : f32 to vector<4x18xf32>
    %504 = arith.maximumf %502, %503 : vector<4x18xf32>
    %505 = vector.extract_strided_slice %0 {offsets = [0, 0, 0], sizes = [1, 4, 4], strides = [1, 1, 1]} : vector<3x4x4xf32> to vector<1x4x4xf32>
    %506 = vector.shape_cast %505 : vector<1x4x4xf32> to vector<4x4xf32>
    %cst_338 = arith.constant dense<0.000000e+00> : vector<4x18xf32>
    %507 = tpu.matmul %506, %504, %cst_338 {dimension_numbers = #tpu.dot_dimension_numbers<[1], [0], [0], [1], [0, 0, 1, 1], [], []>} : vector<4x4xf32>, vector<4x18xf32>, vector<4x18xf32> -> vector<4x18xf32>
    %508 = arith.addf %500, %507 : vector<4x18xf32>
    %c0_339 = arith.constant 0 : index
    %c0_340 = arith.constant 0 : index
    %c11_341 = arith.constant 11 : index
    %c0_342 = arith.constant 0 : index
    %509 = vector.load %arg1[%c0_339, %c0_340, %c11_341, %c0_342] : memref<1x4x18x18xf32, #tpu.memory_space<vmem>>, vector<1x4x1x18xf32>
    %510 = vector.shape_cast %509 : vector<1x4x1x18xf32> to vector<4x18xf32>
    %cst_343 = arith.constant 0.000000e+00 : f32
    %511 = vector.broadcast %cst_343 : f32 to vector<4x18xf32>
    %512 = arith.maximumf %510, %511 : vector<4x18xf32>
    %513 = vector.extract_strided_slice %0 {offsets = [1, 0, 0], sizes = [1, 4, 4], strides = [1, 1, 1]} : vector<3x4x4xf32> to vector<1x4x4xf32>
    %514 = vector.shape_cast %513 : vector<1x4x4xf32> to vector<4x4xf32>
    %cst_344 = arith.constant dense<0.000000e+00> : vector<4x18xf32>
    %515 = tpu.matmul %514, %512, %cst_344 {dimension_numbers = #tpu.dot_dimension_numbers<[1], [0], [0], [1], [0, 0, 1, 1], [], []>} : vector<4x4xf32>, vector<4x18xf32>, vector<4x18xf32> -> vector<4x18xf32>
    %516 = arith.addf %508, %515 : vector<4x18xf32>
    %c0_345 = arith.constant 0 : index
    %c0_346 = arith.constant 0 : index
    %c12 = arith.constant 12 : index
    %c0_347 = arith.constant 0 : index
    %517 = vector.load %arg1[%c0_345, %c0_346, %c12, %c0_347] : memref<1x4x18x18xf32, #tpu.memory_space<vmem>>, vector<1x4x1x18xf32>
    %518 = vector.shape_cast %517 : vector<1x4x1x18xf32> to vector<4x18xf32>
    %cst_348 = arith.constant 0.000000e+00 : f32
    %519 = vector.broadcast %cst_348 : f32 to vector<4x18xf32>
    %520 = arith.maximumf %518, %519 : vector<4x18xf32>
    %521 = vector.extract_strided_slice %0 {offsets = [2, 0, 0], sizes = [1, 4, 4], strides = [1, 1, 1]} : vector<3x4x4xf32> to vector<1x4x4xf32>
    %522 = vector.shape_cast %521 : vector<1x4x4xf32> to vector<4x4xf32>
    %cst_349 = arith.constant dense<0.000000e+00> : vector<4x18xf32>
    %523 = tpu.matmul %522, %520, %cst_349 {dimension_numbers = #tpu.dot_dimension_numbers<[1], [0], [0], [1], [0, 0, 1, 1], [], []>} : vector<4x4xf32>, vector<4x18xf32>, vector<4x18xf32> -> vector<4x18xf32>
    %524 = arith.addf %516, %523 : vector<4x18xf32>
    %c0_350 = arith.constant 0 : index
    %c1_351 = arith.constant 1 : index
    %525 = vector.load %arg7[%c0_350, %c1_351] : memref<4x20xf32, #tpu.memory_space<vmem>>, vector<4x18xf32>
    tpu.vector_store %arg7[%c0_350, %c1_351], %524 {strides = array<i32>} : memref<4x20xf32, #tpu.memory_space<vmem>>, vector<4x18xf32>,
    %cst_352 = arith.constant 0.000000e+00 : f32
    %526 = vector.broadcast %cst_352 : f32 to vector<8x18xf32>
    %c0_353 = arith.constant 0 : index
    %c0_354 = arith.constant 0 : index
    %527 = vector.load %arg7[%c0_353, %c0_354] : memref<4x20xf32, #tpu.memory_space<vmem>>, vector<4x18xf32>
    %528 = vector.extract_strided_slice %1 {offsets = [0, 0, 0], sizes = [1, 8, 4], strides = [1, 1, 1]} : vector<3x8x4xf32> to vector<1x8x4xf32>
    %529 = vector.shape_cast %528 : vector<1x8x4xf32> to vector<8x4xf32>
    %cst_355 = arith.constant dense<0.000000e+00> : vector<8x18xf32>
    %530 = tpu.matmul %529, %527, %cst_355 {dimension_numbers = #tpu.dot_dimension_numbers<[1], [0], [0], [1], [0, 0, 1, 1], [], []>} : vector<8x4xf32>, vector<4x18xf32>, vector<8x18xf32> -> vector<8x18xf32>
    %531 = arith.addf %526, %530 : vector<8x18xf32>
    %c0_356 = arith.constant 0 : index
    %c1_357 = arith.constant 1 : index
    %532 = vector.load %arg7[%c0_356, %c1_357] : memref<4x20xf32, #tpu.memory_space<vmem>>, vector<4x18xf32>
    %533 = vector.extract_strided_slice %1 {offsets = [1, 0, 0], sizes = [1, 8, 4], strides = [1, 1, 1]} : vector<3x8x4xf32> to vector<1x8x4xf32>
    %534 = vector.shape_cast %533 : vector<1x8x4xf32> to vector<8x4xf32>
    %cst_358 = arith.constant dense<0.000000e+00> : vector<8x18xf32>
    %535 = tpu.matmul %534, %532, %cst_358 {dimension_numbers = #tpu.dot_dimension_numbers<[1], [0], [0], [1], [0, 0, 1, 1], [], []>} : vector<8x4xf32>, vector<4x18xf32>, vector<8x18xf32> -> vector<8x18xf32>
    %536 = arith.addf %531, %535 : vector<8x18xf32>
    %c0_359 = arith.constant 0 : index
    %c2_360 = arith.constant 2 : index
    %537 = vector.load %arg7[%c0_359, %c2_360] : memref<4x20xf32, #tpu.memory_space<vmem>>, vector<4x18xf32>
    %538 = vector.extract_strided_slice %1 {offsets = [2, 0, 0], sizes = [1, 8, 4], strides = [1, 1, 1]} : vector<3x8x4xf32> to vector<1x8x4xf32>
    %539 = vector.shape_cast %538 : vector<1x8x4xf32> to vector<8x4xf32>
    %cst_361 = arith.constant dense<0.000000e+00> : vector<8x18xf32>
    %540 = tpu.matmul %539, %537, %cst_361 {dimension_numbers = #tpu.dot_dimension_numbers<[1], [0], [0], [1], [0, 0, 1, 1], [], []>} : vector<8x4xf32>, vector<4x18xf32>, vector<8x18xf32> -> vector<8x18xf32>
    %541 = arith.addf %536, %540 : vector<8x18xf32>
    %542 = arith.addf %493, %541 : vector<8x18xf32>
    %543 = arith.mulf %541, %541 : vector<8x18xf32>
    %544 = arith.addf %495, %543 : vector<8x18xf32>
    %545 = arith.truncf %541 : vector<8x18xf32> to vector<8x18xbf16>
    %c0_362 = arith.constant 0 : index
    %c0_363 = arith.constant 0 : index
    %c198 = arith.constant 198 : index
    %546 = vector.load %arg4[%c0_362, %c0_363, %c198] : memref<1x8x324xbf16, #tpu.memory_space<vmem>>, vector<1x8x18xbf16>
    %547 = vector.shape_cast %546 : vector<1x8x18xbf16> to vector<8x18xbf16>
    %548 = vector.shape_cast %545 : vector<8x18xbf16> to vector<1x8x18xbf16>
    tpu.vector_store %arg4[%c0_362, %c0_363, %c198], %548 {strides = array<i32>} : memref<1x8x324xbf16, #tpu.memory_space<vmem>>, vector<1x8x18xbf16>,
    %cst_364 = arith.constant 0.000000e+00 : f32
    %549 = vector.broadcast %cst_364 : f32 to vector<4x18xf32>
    %c0_365 = arith.constant 0 : index
    %c0_366 = arith.constant 0 : index
    %c11_367 = arith.constant 11 : index
    %c0_368 = arith.constant 0 : index
    %550 = vector.load %arg1[%c0_365, %c0_366, %c11_367, %c0_368] : memref<1x4x18x18xf32, #tpu.memory_space<vmem>>, vector<1x4x1x18xf32>
    %551 = vector.shape_cast %550 : vector<1x4x1x18xf32> to vector<4x18xf32>
    %cst_369 = arith.constant 0.000000e+00 : f32
    %552 = vector.broadcast %cst_369 : f32 to vector<4x18xf32>
    %553 = arith.maximumf %551, %552 : vector<4x18xf32>
    %554 = vector.extract_strided_slice %0 {offsets = [0, 0, 0], sizes = [1, 4, 4], strides = [1, 1, 1]} : vector<3x4x4xf32> to vector<1x4x4xf32>
    %555 = vector.shape_cast %554 : vector<1x4x4xf32> to vector<4x4xf32>
    %cst_370 = arith.constant dense<0.000000e+00> : vector<4x18xf32>
    %556 = tpu.matmul %555, %553, %cst_370 {dimension_numbers = #tpu.dot_dimension_numbers<[1], [0], [0], [1], [0, 0, 1, 1], [], []>} : vector<4x4xf32>, vector<4x18xf32>, vector<4x18xf32> -> vector<4x18xf32>
    %557 = arith.addf %549, %556 : vector<4x18xf32>
    %c0_371 = arith.constant 0 : index
    %c0_372 = arith.constant 0 : index
    %c12_373 = arith.constant 12 : index
    %c0_374 = arith.constant 0 : index
    %558 = vector.load %arg1[%c0_371, %c0_372, %c12_373, %c0_374] : memref<1x4x18x18xf32, #tpu.memory_space<vmem>>, vector<1x4x1x18xf32>
    %559 = vector.shape_cast %558 : vector<1x4x1x18xf32> to vector<4x18xf32>
    %cst_375 = arith.constant 0.000000e+00 : f32
    %560 = vector.broadcast %cst_375 : f32 to vector<4x18xf32>
    %561 = arith.maximumf %559, %560 : vector<4x18xf32>
    %562 = vector.extract_strided_slice %0 {offsets = [1, 0, 0], sizes = [1, 4, 4], strides = [1, 1, 1]} : vector<3x4x4xf32> to vector<1x4x4xf32>
    %563 = vector.shape_cast %562 : vector<1x4x4xf32> to vector<4x4xf32>
    %cst_376 = arith.constant dense<0.000000e+00> : vector<4x18xf32>
    %564 = tpu.matmul %563, %561, %cst_376 {dimension_numbers = #tpu.dot_dimension_numbers<[1], [0], [0], [1], [0, 0, 1, 1], [], []>} : vector<4x4xf32>, vector<4x18xf32>, vector<4x18xf32> -> vector<4x18xf32>
    %565 = arith.addf %557, %564 : vector<4x18xf32>
    %c0_377 = arith.constant 0 : index
    %c0_378 = arith.constant 0 : index
    %c13 = arith.constant 13 : index
    %c0_379 = arith.constant 0 : index
    %566 = vector.load %arg1[%c0_377, %c0_378, %c13, %c0_379] : memref<1x4x18x18xf32, #tpu.memory_space<vmem>>, vector<1x4x1x18xf32>
    %567 = vector.shape_cast %566 : vector<1x4x1x18xf32> to vector<4x18xf32>
    %cst_380 = arith.constant 0.000000e+00 : f32
    %568 = vector.broadcast %cst_380 : f32 to vector<4x18xf32>
    %569 = arith.maximumf %567, %568 : vector<4x18xf32>
    %570 = vector.extract_strided_slice %0 {offsets = [2, 0, 0], sizes = [1, 4, 4], strides = [1, 1, 1]} : vector<3x4x4xf32> to vector<1x4x4xf32>
    %571 = vector.shape_cast %570 : vector<1x4x4xf32> to vector<4x4xf32>
    %cst_381 = arith.constant dense<0.000000e+00> : vector<4x18xf32>
    %572 = tpu.matmul %571, %569, %cst_381 {dimension_numbers = #tpu.dot_dimension_numbers<[1], [0], [0], [1], [0, 0, 1, 1], [], []>} : vector<4x4xf32>, vector<4x18xf32>, vector<4x18xf32> -> vector<4x18xf32>
    %573 = arith.addf %565, %572 : vector<4x18xf32>
    %c0_382 = arith.constant 0 : index
    %c1_383 = arith.constant 1 : index
    %574 = vector.load %arg7[%c0_382, %c1_383] : memref<4x20xf32, #tpu.memory_space<vmem>>, vector<4x18xf32>
    tpu.vector_store %arg7[%c0_382, %c1_383], %573 {strides = array<i32>} : memref<4x20xf32, #tpu.memory_space<vmem>>, vector<4x18xf32>,
    %cst_384 = arith.constant 0.000000e+00 : f32
    %575 = vector.broadcast %cst_384 : f32 to vector<8x18xf32>
    %c0_385 = arith.constant 0 : index
    %c0_386 = arith.constant 0 : index
    %576 = vector.load %arg7[%c0_385, %c0_386] : memref<4x20xf32, #tpu.memory_space<vmem>>, vector<4x18xf32>
    %577 = vector.extract_strided_slice %1 {offsets = [0, 0, 0], sizes = [1, 8, 4], strides = [1, 1, 1]} : vector<3x8x4xf32> to vector<1x8x4xf32>
    %578 = vector.shape_cast %577 : vector<1x8x4xf32> to vector<8x4xf32>
    %cst_387 = arith.constant dense<0.000000e+00> : vector<8x18xf32>
    %579 = tpu.matmul %578, %576, %cst_387 {dimension_numbers = #tpu.dot_dimension_numbers<[1], [0], [0], [1], [0, 0, 1, 1], [], []>} : vector<8x4xf32>, vector<4x18xf32>, vector<8x18xf32> -> vector<8x18xf32>
    %580 = arith.addf %575, %579 : vector<8x18xf32>
    %c0_388 = arith.constant 0 : index
    %c1_389 = arith.constant 1 : index
    %581 = vector.load %arg7[%c0_388, %c1_389] : memref<4x20xf32, #tpu.memory_space<vmem>>, vector<4x18xf32>
    %582 = vector.extract_strided_slice %1 {offsets = [1, 0, 0], sizes = [1, 8, 4], strides = [1, 1, 1]} : vector<3x8x4xf32> to vector<1x8x4xf32>
    %583 = vector.shape_cast %582 : vector<1x8x4xf32> to vector<8x4xf32>
    %cst_390 = arith.constant dense<0.000000e+00> : vector<8x18xf32>
    %584 = tpu.matmul %583, %581, %cst_390 {dimension_numbers = #tpu.dot_dimension_numbers<[1], [0], [0], [1], [0, 0, 1, 1], [], []>} : vector<8x4xf32>, vector<4x18xf32>, vector<8x18xf32> -> vector<8x18xf32>
    %585 = arith.addf %580, %584 : vector<8x18xf32>
    %c0_391 = arith.constant 0 : index
    %c2_392 = arith.constant 2 : index
    %586 = vector.load %arg7[%c0_391, %c2_392] : memref<4x20xf32, #tpu.memory_space<vmem>>, vector<4x18xf32>
    %587 = vector.extract_strided_slice %1 {offsets = [2, 0, 0], sizes = [1, 8, 4], strides = [1, 1, 1]} : vector<3x8x4xf32> to vector<1x8x4xf32>
    %588 = vector.shape_cast %587 : vector<1x8x4xf32> to vector<8x4xf32>
    %cst_393 = arith.constant dense<0.000000e+00> : vector<8x18xf32>
    %589 = tpu.matmul %588, %586, %cst_393 {dimension_numbers = #tpu.dot_dimension_numbers<[1], [0], [0], [1], [0, 0, 1, 1], [], []>} : vector<8x4xf32>, vector<4x18xf32>, vector<8x18xf32> -> vector<8x18xf32>
    %590 = arith.addf %585, %589 : vector<8x18xf32>
    %591 = arith.addf %542, %590 : vector<8x18xf32>
    %592 = arith.mulf %590, %590 : vector<8x18xf32>
    %593 = arith.addf %544, %592 : vector<8x18xf32>
    %594 = arith.truncf %590 : vector<8x18xf32> to vector<8x18xbf16>
    %c0_394 = arith.constant 0 : index
    %c0_395 = arith.constant 0 : index
    %c216 = arith.constant 216 : index
    %595 = vector.load %arg4[%c0_394, %c0_395, %c216] : memref<1x8x324xbf16, #tpu.memory_space<vmem>>, vector<1x8x18xbf16>
    %596 = vector.shape_cast %595 : vector<1x8x18xbf16> to vector<8x18xbf16>
    %597 = vector.shape_cast %594 : vector<8x18xbf16> to vector<1x8x18xbf16>
    tpu.vector_store %arg4[%c0_394, %c0_395, %c216], %597 {strides = array<i32>} : memref<1x8x324xbf16, #tpu.memory_space<vmem>>, vector<1x8x18xbf16>,
    %cst_396 = arith.constant 0.000000e+00 : f32
    %598 = vector.broadcast %cst_396 : f32 to vector<4x18xf32>
    %c0_397 = arith.constant 0 : index
    %c0_398 = arith.constant 0 : index
    %c12_399 = arith.constant 12 : index
    %c0_400 = arith.constant 0 : index
    %599 = vector.load %arg1[%c0_397, %c0_398, %c12_399, %c0_400] : memref<1x4x18x18xf32, #tpu.memory_space<vmem>>, vector<1x4x1x18xf32>
    %600 = vector.shape_cast %599 : vector<1x4x1x18xf32> to vector<4x18xf32>
    %cst_401 = arith.constant 0.000000e+00 : f32
    %601 = vector.broadcast %cst_401 : f32 to vector<4x18xf32>
    %602 = arith.maximumf %600, %601 : vector<4x18xf32>
    %603 = vector.extract_strided_slice %0 {offsets = [0, 0, 0], sizes = [1, 4, 4], strides = [1, 1, 1]} : vector<3x4x4xf32> to vector<1x4x4xf32>
    %604 = vector.shape_cast %603 : vector<1x4x4xf32> to vector<4x4xf32>
    %cst_402 = arith.constant dense<0.000000e+00> : vector<4x18xf32>
    %605 = tpu.matmul %604, %602, %cst_402 {dimension_numbers = #tpu.dot_dimension_numbers<[1], [0], [0], [1], [0, 0, 1, 1], [], []>} : vector<4x4xf32>, vector<4x18xf32>, vector<4x18xf32> -> vector<4x18xf32>
    %606 = arith.addf %598, %605 : vector<4x18xf32>
    %c0_403 = arith.constant 0 : index
    %c0_404 = arith.constant 0 : index
    %c13_405 = arith.constant 13 : index
    %c0_406 = arith.constant 0 : index
    %607 = vector.load %arg1[%c0_403, %c0_404, %c13_405, %c0_406] : memref<1x4x18x18xf32, #tpu.memory_space<vmem>>, vector<1x4x1x18xf32>
    %608 = vector.shape_cast %607 : vector<1x4x1x18xf32> to vector<4x18xf32>
    %cst_407 = arith.constant 0.000000e+00 : f32
    %609 = vector.broadcast %cst_407 : f32 to vector<4x18xf32>
    %610 = arith.maximumf %608, %609 : vector<4x18xf32>
    %611 = vector.extract_strided_slice %0 {offsets = [1, 0, 0], sizes = [1, 4, 4], strides = [1, 1, 1]} : vector<3x4x4xf32> to vector<1x4x4xf32>
    %612 = vector.shape_cast %611 : vector<1x4x4xf32> to vector<4x4xf32>
    %cst_408 = arith.constant dense<0.000000e+00> : vector<4x18xf32>
    %613 = tpu.matmul %612, %610, %cst_408 {dimension_numbers = #tpu.dot_dimension_numbers<[1], [0], [0], [1], [0, 0, 1, 1], [], []>} : vector<4x4xf32>, vector<4x18xf32>, vector<4x18xf32> -> vector<4x18xf32>
    %614 = arith.addf %606, %613 : vector<4x18xf32>
    %c0_409 = arith.constant 0 : index
    %c0_410 = arith.constant 0 : index
    %c14 = arith.constant 14 : index
    %c0_411 = arith.constant 0 : index
    %615 = vector.load %arg1[%c0_409, %c0_410, %c14, %c0_411] : memref<1x4x18x18xf32, #tpu.memory_space<vmem>>, vector<1x4x1x18xf32>
    %616 = vector.shape_cast %615 : vector<1x4x1x18xf32> to vector<4x18xf32>
    %cst_412 = arith.constant 0.000000e+00 : f32
    %617 = vector.broadcast %cst_412 : f32 to vector<4x18xf32>
    %618 = arith.maximumf %616, %617 : vector<4x18xf32>
    %619 = vector.extract_strided_slice %0 {offsets = [2, 0, 0], sizes = [1, 4, 4], strides = [1, 1, 1]} : vector<3x4x4xf32> to vector<1x4x4xf32>
    %620 = vector.shape_cast %619 : vector<1x4x4xf32> to vector<4x4xf32>
    %cst_413 = arith.constant dense<0.000000e+00> : vector<4x18xf32>
    %621 = tpu.matmul %620, %618, %cst_413 {dimension_numbers = #tpu.dot_dimension_numbers<[1], [0], [0], [1], [0, 0, 1, 1], [], []>} : vector<4x4xf32>, vector<4x18xf32>, vector<4x18xf32> -> vector<4x18xf32>
    %622 = arith.addf %614, %621 : vector<4x18xf32>
    %c0_414 = arith.constant 0 : index
    %c1_415 = arith.constant 1 : index
    %623 = vector.load %arg7[%c0_414, %c1_415] : memref<4x20xf32, #tpu.memory_space<vmem>>, vector<4x18xf32>
    tpu.vector_store %arg7[%c0_414, %c1_415], %622 {strides = array<i32>} : memref<4x20xf32, #tpu.memory_space<vmem>>, vector<4x18xf32>,
    %cst_416 = arith.constant 0.000000e+00 : f32
    %624 = vector.broadcast %cst_416 : f32 to vector<8x18xf32>
    %c0_417 = arith.constant 0 : index
    %c0_418 = arith.constant 0 : index
    %625 = vector.load %arg7[%c0_417, %c0_418] : memref<4x20xf32, #tpu.memory_space<vmem>>, vector<4x18xf32>
    %626 = vector.extract_strided_slice %1 {offsets = [0, 0, 0], sizes = [1, 8, 4], strides = [1, 1, 1]} : vector<3x8x4xf32> to vector<1x8x4xf32>
    %627 = vector.shape_cast %626 : vector<1x8x4xf32> to vector<8x4xf32>
    %cst_419 = arith.constant dense<0.000000e+00> : vector<8x18xf32>
    %628 = tpu.matmul %627, %625, %cst_419 {dimension_numbers = #tpu.dot_dimension_numbers<[1], [0], [0], [1], [0, 0, 1, 1], [], []>} : vector<8x4xf32>, vector<4x18xf32>, vector<8x18xf32> -> vector<8x18xf32>
    %629 = arith.addf %624, %628 : vector<8x18xf32>
    %c0_420 = arith.constant 0 : index
    %c1_421 = arith.constant 1 : index
    %630 = vector.load %arg7[%c0_420, %c1_421] : memref<4x20xf32, #tpu.memory_space<vmem>>, vector<4x18xf32>
    %631 = vector.extract_strided_slice %1 {offsets = [1, 0, 0], sizes = [1, 8, 4], strides = [1, 1, 1]} : vector<3x8x4xf32> to vector<1x8x4xf32>
    %632 = vector.shape_cast %631 : vector<1x8x4xf32> to vector<8x4xf32>
    %cst_422 = arith.constant dense<0.000000e+00> : vector<8x18xf32>
    %633 = tpu.matmul %632, %630, %cst_422 {dimension_numbers = #tpu.dot_dimension_numbers<[1], [0], [0], [1], [0, 0, 1, 1], [], []>} : vector<8x4xf32>, vector<4x18xf32>, vector<8x18xf32> -> vector<8x18xf32>
    %634 = arith.addf %629, %633 : vector<8x18xf32>
    %c0_423 = arith.constant 0 : index
    %c2_424 = arith.constant 2 : index
    %635 = vector.load %arg7[%c0_423, %c2_424] : memref<4x20xf32, #tpu.memory_space<vmem>>, vector<4x18xf32>
    %636 = vector.extract_strided_slice %1 {offsets = [2, 0, 0], sizes = [1, 8, 4], strides = [1, 1, 1]} : vector<3x8x4xf32> to vector<1x8x4xf32>
    %637 = vector.shape_cast %636 : vector<1x8x4xf32> to vector<8x4xf32>
    %cst_425 = arith.constant dense<0.000000e+00> : vector<8x18xf32>
    %638 = tpu.matmul %637, %635, %cst_425 {dimension_numbers = #tpu.dot_dimension_numbers<[1], [0], [0], [1], [0, 0, 1, 1], [], []>} : vector<8x4xf32>, vector<4x18xf32>, vector<8x18xf32> -> vector<8x18xf32>
    %639 = arith.addf %634, %638 : vector<8x18xf32>
    %640 = arith.addf %591, %639 : vector<8x18xf32>
    %641 = arith.mulf %639, %639 : vector<8x18xf32>
    %642 = arith.addf %593, %641 : vector<8x18xf32>
    %643 = arith.truncf %639 : vector<8x18xf32> to vector<8x18xbf16>
    %c0_426 = arith.constant 0 : index
    %c0_427 = arith.constant 0 : index
    %c234 = arith.constant 234 : index
    %644 = vector.load %arg4[%c0_426, %c0_427, %c234] : memref<1x8x324xbf16, #tpu.memory_space<vmem>>, vector<1x8x18xbf16>
    %645 = vector.shape_cast %644 : vector<1x8x18xbf16> to vector<8x18xbf16>
    %646 = vector.shape_cast %643 : vector<8x18xbf16> to vector<1x8x18xbf16>
    tpu.vector_store %arg4[%c0_426, %c0_427, %c234], %646 {strides = array<i32>} : memref<1x8x324xbf16, #tpu.memory_space<vmem>>, vector<1x8x18xbf16>,
    %cst_428 = arith.constant 0.000000e+00 : f32
    %647 = vector.broadcast %cst_428 : f32 to vector<4x18xf32>
    %c0_429 = arith.constant 0 : index
    %c0_430 = arith.constant 0 : index
    %c13_431 = arith.constant 13 : index
    %c0_432 = arith.constant 0 : index
    %648 = vector.load %arg1[%c0_429, %c0_430, %c13_431, %c0_432] : memref<1x4x18x18xf32, #tpu.memory_space<vmem>>, vector<1x4x1x18xf32>
    %649 = vector.shape_cast %648 : vector<1x4x1x18xf32> to vector<4x18xf32>
    %cst_433 = arith.constant 0.000000e+00 : f32
    %650 = vector.broadcast %cst_433 : f32 to vector<4x18xf32>
    %651 = arith.maximumf %649, %650 : vector<4x18xf32>
    %652 = vector.extract_strided_slice %0 {offsets = [0, 0, 0], sizes = [1, 4, 4], strides = [1, 1, 1]} : vector<3x4x4xf32> to vector<1x4x4xf32>
    %653 = vector.shape_cast %652 : vector<1x4x4xf32> to vector<4x4xf32>
    %cst_434 = arith.constant dense<0.000000e+00> : vector<4x18xf32>
    %654 = tpu.matmul %653, %651, %cst_434 {dimension_numbers = #tpu.dot_dimension_numbers<[1], [0], [0], [1], [0, 0, 1, 1], [], []>} : vector<4x4xf32>, vector<4x18xf32>, vector<4x18xf32> -> vector<4x18xf32>
    %655 = arith.addf %647, %654 : vector<4x18xf32>
    %c0_435 = arith.constant 0 : index
    %c0_436 = arith.constant 0 : index
    %c14_437 = arith.constant 14 : index
    %c0_438 = arith.constant 0 : index
    %656 = vector.load %arg1[%c0_435, %c0_436, %c14_437, %c0_438] : memref<1x4x18x18xf32, #tpu.memory_space<vmem>>, vector<1x4x1x18xf32>
    %657 = vector.shape_cast %656 : vector<1x4x1x18xf32> to vector<4x18xf32>
    %cst_439 = arith.constant 0.000000e+00 : f32
    %658 = vector.broadcast %cst_439 : f32 to vector<4x18xf32>
    %659 = arith.maximumf %657, %658 : vector<4x18xf32>
    %660 = vector.extract_strided_slice %0 {offsets = [1, 0, 0], sizes = [1, 4, 4], strides = [1, 1, 1]} : vector<3x4x4xf32> to vector<1x4x4xf32>
    %661 = vector.shape_cast %660 : vector<1x4x4xf32> to vector<4x4xf32>
    %cst_440 = arith.constant dense<0.000000e+00> : vector<4x18xf32>
    %662 = tpu.matmul %661, %659, %cst_440 {dimension_numbers = #tpu.dot_dimension_numbers<[1], [0], [0], [1], [0, 0, 1, 1], [], []>} : vector<4x4xf32>, vector<4x18xf32>, vector<4x18xf32> -> vector<4x18xf32>
    %663 = arith.addf %655, %662 : vector<4x18xf32>
    %c0_441 = arith.constant 0 : index
    %c0_442 = arith.constant 0 : index
    %c15 = arith.constant 15 : index
    %c0_443 = arith.constant 0 : index
    %664 = vector.load %arg1[%c0_441, %c0_442, %c15, %c0_443] : memref<1x4x18x18xf32, #tpu.memory_space<vmem>>, vector<1x4x1x18xf32>
    %665 = vector.shape_cast %664 : vector<1x4x1x18xf32> to vector<4x18xf32>
    %cst_444 = arith.constant 0.000000e+00 : f32
    %666 = vector.broadcast %cst_444 : f32 to vector<4x18xf32>
    %667 = arith.maximumf %665, %666 : vector<4x18xf32>
    %668 = vector.extract_strided_slice %0 {offsets = [2, 0, 0], sizes = [1, 4, 4], strides = [1, 1, 1]} : vector<3x4x4xf32> to vector<1x4x4xf32>
    %669 = vector.shape_cast %668 : vector<1x4x4xf32> to vector<4x4xf32>
    %cst_445 = arith.constant dense<0.000000e+00> : vector<4x18xf32>
    %670 = tpu.matmul %669, %667, %cst_445 {dimension_numbers = #tpu.dot_dimension_numbers<[1], [0], [0], [1], [0, 0, 1, 1], [], []>} : vector<4x4xf32>, vector<4x18xf32>, vector<4x18xf32> -> vector<4x18xf32>
    %671 = arith.addf %663, %670 : vector<4x18xf32>
    %c0_446 = arith.constant 0 : index
    %c1_447 = arith.constant 1 : index
    %672 = vector.load %arg7[%c0_446, %c1_447] : memref<4x20xf32, #tpu.memory_space<vmem>>, vector<4x18xf32>
    tpu.vector_store %arg7[%c0_446, %c1_447], %671 {strides = array<i32>} : memref<4x20xf32, #tpu.memory_space<vmem>>, vector<4x18xf32>,
    %cst_448 = arith.constant 0.000000e+00 : f32
    %673 = vector.broadcast %cst_448 : f32 to vector<8x18xf32>
    %c0_449 = arith.constant 0 : index
    %c0_450 = arith.constant 0 : index
    %674 = vector.load %arg7[%c0_449, %c0_450] : memref<4x20xf32, #tpu.memory_space<vmem>>, vector<4x18xf32>
    %675 = vector.extract_strided_slice %1 {offsets = [0, 0, 0], sizes = [1, 8, 4], strides = [1, 1, 1]} : vector<3x8x4xf32> to vector<1x8x4xf32>
    %676 = vector.shape_cast %675 : vector<1x8x4xf32> to vector<8x4xf32>
    %cst_451 = arith.constant dense<0.000000e+00> : vector<8x18xf32>
    %677 = tpu.matmul %676, %674, %cst_451 {dimension_numbers = #tpu.dot_dimension_numbers<[1], [0], [0], [1], [0, 0, 1, 1], [], []>} : vector<8x4xf32>, vector<4x18xf32>, vector<8x18xf32> -> vector<8x18xf32>
    %678 = arith.addf %673, %677 : vector<8x18xf32>
    %c0_452 = arith.constant 0 : index
    %c1_453 = arith.constant 1 : index
    %679 = vector.load %arg7[%c0_452, %c1_453] : memref<4x20xf32, #tpu.memory_space<vmem>>, vector<4x18xf32>
    %680 = vector.extract_strided_slice %1 {offsets = [1, 0, 0], sizes = [1, 8, 4], strides = [1, 1, 1]} : vector<3x8x4xf32> to vector<1x8x4xf32>
    %681 = vector.shape_cast %680 : vector<1x8x4xf32> to vector<8x4xf32>
    %cst_454 = arith.constant dense<0.000000e+00> : vector<8x18xf32>
    %682 = tpu.matmul %681, %679, %cst_454 {dimension_numbers = #tpu.dot_dimension_numbers<[1], [0], [0], [1], [0, 0, 1, 1], [], []>} : vector<8x4xf32>, vector<4x18xf32>, vector<8x18xf32> -> vector<8x18xf32>
    %683 = arith.addf %678, %682 : vector<8x18xf32>
    %c0_455 = arith.constant 0 : index
    %c2_456 = arith.constant 2 : index
    %684 = vector.load %arg7[%c0_455, %c2_456] : memref<4x20xf32, #tpu.memory_space<vmem>>, vector<4x18xf32>
    %685 = vector.extract_strided_slice %1 {offsets = [2, 0, 0], sizes = [1, 8, 4], strides = [1, 1, 1]} : vector<3x8x4xf32> to vector<1x8x4xf32>
    %686 = vector.shape_cast %685 : vector<1x8x4xf32> to vector<8x4xf32>
    %cst_457 = arith.constant dense<0.000000e+00> : vector<8x18xf32>
    %687 = tpu.matmul %686, %684, %cst_457 {dimension_numbers = #tpu.dot_dimension_numbers<[1], [0], [0], [1], [0, 0, 1, 1], [], []>} : vector<8x4xf32>, vector<4x18xf32>, vector<8x18xf32> -> vector<8x18xf32>
    %688 = arith.addf %683, %687 : vector<8x18xf32>
    %689 = arith.addf %640, %688 : vector<8x18xf32>
    %690 = arith.mulf %688, %688 : vector<8x18xf32>
    %691 = arith.addf %642, %690 : vector<8x18xf32>
    %692 = arith.truncf %688 : vector<8x18xf32> to vector<8x18xbf16>
    %c0_458 = arith.constant 0 : index
    %c0_459 = arith.constant 0 : index
    %c252 = arith.constant 252 : index
    %693 = vector.load %arg4[%c0_458, %c0_459, %c252] : memref<1x8x324xbf16, #tpu.memory_space<vmem>>, vector<1x8x18xbf16>
    %694 = vector.shape_cast %693 : vector<1x8x18xbf16> to vector<8x18xbf16>
    %695 = vector.shape_cast %692 : vector<8x18xbf16> to vector<1x8x18xbf16>
    tpu.vector_store %arg4[%c0_458, %c0_459, %c252], %695 {strides = array<i32>} : memref<1x8x324xbf16, #tpu.memory_space<vmem>>, vector<1x8x18xbf16>,
    %cst_460 = arith.constant 0.000000e+00 : f32
    %696 = vector.broadcast %cst_460 : f32 to vector<4x18xf32>
    %c0_461 = arith.constant 0 : index
    %c0_462 = arith.constant 0 : index
    %c14_463 = arith.constant 14 : index
    %c0_464 = arith.constant 0 : index
    %697 = vector.load %arg1[%c0_461, %c0_462, %c14_463, %c0_464] : memref<1x4x18x18xf32, #tpu.memory_space<vmem>>, vector<1x4x1x18xf32>
    %698 = vector.shape_cast %697 : vector<1x4x1x18xf32> to vector<4x18xf32>
    %cst_465 = arith.constant 0.000000e+00 : f32
    %699 = vector.broadcast %cst_465 : f32 to vector<4x18xf32>
    %700 = arith.maximumf %698, %699 : vector<4x18xf32>
    %701 = vector.extract_strided_slice %0 {offsets = [0, 0, 0], sizes = [1, 4, 4], strides = [1, 1, 1]} : vector<3x4x4xf32> to vector<1x4x4xf32>
    %702 = vector.shape_cast %701 : vector<1x4x4xf32> to vector<4x4xf32>
    %cst_466 = arith.constant dense<0.000000e+00> : vector<4x18xf32>
    %703 = tpu.matmul %702, %700, %cst_466 {dimension_numbers = #tpu.dot_dimension_numbers<[1], [0], [0], [1], [0, 0, 1, 1], [], []>} : vector<4x4xf32>, vector<4x18xf32>, vector<4x18xf32> -> vector<4x18xf32>
    %704 = arith.addf %696, %703 : vector<4x18xf32>
    %c0_467 = arith.constant 0 : index
    %c0_468 = arith.constant 0 : index
    %c15_469 = arith.constant 15 : index
    %c0_470 = arith.constant 0 : index
    %705 = vector.load %arg1[%c0_467, %c0_468, %c15_469, %c0_470] : memref<1x4x18x18xf32, #tpu.memory_space<vmem>>, vector<1x4x1x18xf32>
    %706 = vector.shape_cast %705 : vector<1x4x1x18xf32> to vector<4x18xf32>
    %cst_471 = arith.constant 0.000000e+00 : f32
    %707 = vector.broadcast %cst_471 : f32 to vector<4x18xf32>
    %708 = arith.maximumf %706, %707 : vector<4x18xf32>
    %709 = vector.extract_strided_slice %0 {offsets = [1, 0, 0], sizes = [1, 4, 4], strides = [1, 1, 1]} : vector<3x4x4xf32> to vector<1x4x4xf32>
    %710 = vector.shape_cast %709 : vector<1x4x4xf32> to vector<4x4xf32>
    %cst_472 = arith.constant dense<0.000000e+00> : vector<4x18xf32>
    %711 = tpu.matmul %710, %708, %cst_472 {dimension_numbers = #tpu.dot_dimension_numbers<[1], [0], [0], [1], [0, 0, 1, 1], [], []>} : vector<4x4xf32>, vector<4x18xf32>, vector<4x18xf32> -> vector<4x18xf32>
    %712 = arith.addf %704, %711 : vector<4x18xf32>
    %c0_473 = arith.constant 0 : index
    %c0_474 = arith.constant 0 : index
    %c16 = arith.constant 16 : index
    %c0_475 = arith.constant 0 : index
    %713 = vector.load %arg1[%c0_473, %c0_474, %c16, %c0_475] : memref<1x4x18x18xf32, #tpu.memory_space<vmem>>, vector<1x4x1x18xf32>
    %714 = vector.shape_cast %713 : vector<1x4x1x18xf32> to vector<4x18xf32>
    %cst_476 = arith.constant 0.000000e+00 : f32
    %715 = vector.broadcast %cst_476 : f32 to vector<4x18xf32>
    %716 = arith.maximumf %714, %715 : vector<4x18xf32>
    %717 = vector.extract_strided_slice %0 {offsets = [2, 0, 0], sizes = [1, 4, 4], strides = [1, 1, 1]} : vector<3x4x4xf32> to vector<1x4x4xf32>
    %718 = vector.shape_cast %717 : vector<1x4x4xf32> to vector<4x4xf32>
    %cst_477 = arith.constant dense<0.000000e+00> : vector<4x18xf32>
    %719 = tpu.matmul %718, %716, %cst_477 {dimension_numbers = #tpu.dot_dimension_numbers<[1], [0], [0], [1], [0, 0, 1, 1], [], []>} : vector<4x4xf32>, vector<4x18xf32>, vector<4x18xf32> -> vector<4x18xf32>
    %720 = arith.addf %712, %719 : vector<4x18xf32>
    %c0_478 = arith.constant 0 : index
    %c1_479 = arith.constant 1 : index
    %721 = vector.load %arg7[%c0_478, %c1_479] : memref<4x20xf32, #tpu.memory_space<vmem>>, vector<4x18xf32>
    tpu.vector_store %arg7[%c0_478, %c1_479], %720 {strides = array<i32>} : memref<4x20xf32, #tpu.memory_space<vmem>>, vector<4x18xf32>,
    %cst_480 = arith.constant 0.000000e+00 : f32
    %722 = vector.broadcast %cst_480 : f32 to vector<8x18xf32>
    %c0_481 = arith.constant 0 : index
    %c0_482 = arith.constant 0 : index
    %723 = vector.load %arg7[%c0_481, %c0_482] : memref<4x20xf32, #tpu.memory_space<vmem>>, vector<4x18xf32>
    %724 = vector.extract_strided_slice %1 {offsets = [0, 0, 0], sizes = [1, 8, 4], strides = [1, 1, 1]} : vector<3x8x4xf32> to vector<1x8x4xf32>
    %725 = vector.shape_cast %724 : vector<1x8x4xf32> to vector<8x4xf32>
    %cst_483 = arith.constant dense<0.000000e+00> : vector<8x18xf32>
    %726 = tpu.matmul %725, %723, %cst_483 {dimension_numbers = #tpu.dot_dimension_numbers<[1], [0], [0], [1], [0, 0, 1, 1], [], []>} : vector<8x4xf32>, vector<4x18xf32>, vector<8x18xf32> -> vector<8x18xf32>
    %727 = arith.addf %722, %726 : vector<8x18xf32>
    %c0_484 = arith.constant 0 : index
    %c1_485 = arith.constant 1 : index
    %728 = vector.load %arg7[%c0_484, %c1_485] : memref<4x20xf32, #tpu.memory_space<vmem>>, vector<4x18xf32>
    %729 = vector.extract_strided_slice %1 {offsets = [1, 0, 0], sizes = [1, 8, 4], strides = [1, 1, 1]} : vector<3x8x4xf32> to vector<1x8x4xf32>
    %730 = vector.shape_cast %729 : vector<1x8x4xf32> to vector<8x4xf32>
    %cst_486 = arith.constant dense<0.000000e+00> : vector<8x18xf32>
    %731 = tpu.matmul %730, %728, %cst_486 {dimension_numbers = #tpu.dot_dimension_numbers<[1], [0], [0], [1], [0, 0, 1, 1], [], []>} : vector<8x4xf32>, vector<4x18xf32>, vector<8x18xf32> -> vector<8x18xf32>
    %732 = arith.addf %727, %731 : vector<8x18xf32>
    %c0_487 = arith.constant 0 : index
    %c2_488 = arith.constant 2 : index
    %733 = vector.load %arg7[%c0_487, %c2_488] : memref<4x20xf32, #tpu.memory_space<vmem>>, vector<4x18xf32>
    %734 = vector.extract_strided_slice %1 {offsets = [2, 0, 0], sizes = [1, 8, 4], strides = [1, 1, 1]} : vector<3x8x4xf32> to vector<1x8x4xf32>
    %735 = vector.shape_cast %734 : vector<1x8x4xf32> to vector<8x4xf32>
    %cst_489 = arith.constant dense<0.000000e+00> : vector<8x18xf32>
    %736 = tpu.matmul %735, %733, %cst_489 {dimension_numbers = #tpu.dot_dimension_numbers<[1], [0], [0], [1], [0, 0, 1, 1], [], []>} : vector<8x4xf32>, vector<4x18xf32>, vector<8x18xf32> -> vector<8x18xf32>
    %737 = arith.addf %732, %736 : vector<8x18xf32>
    %738 = arith.addf %689, %737 : vector<8x18xf32>
    %739 = arith.mulf %737, %737 : vector<8x18xf32>
    %740 = arith.addf %691, %739 : vector<8x18xf32>
    %741 = arith.truncf %737 : vector<8x18xf32> to vector<8x18xbf16>
    %c0_490 = arith.constant 0 : index
    %c0_491 = arith.constant 0 : index
    %c270 = arith.constant 270 : index
    %742 = vector.load %arg4[%c0_490, %c0_491, %c270] : memref<1x8x324xbf16, #tpu.memory_space<vmem>>, vector<1x8x18xbf16>
    %743 = vector.shape_cast %742 : vector<1x8x18xbf16> to vector<8x18xbf16>
    %744 = vector.shape_cast %741 : vector<8x18xbf16> to vector<1x8x18xbf16>
    tpu.vector_store %arg4[%c0_490, %c0_491, %c270], %744 {strides = array<i32>} : memref<1x8x324xbf16, #tpu.memory_space<vmem>>, vector<1x8x18xbf16>,
    %cst_492 = arith.constant 0.000000e+00 : f32
    %745 = vector.broadcast %cst_492 : f32 to vector<4x18xf32>
    %c0_493 = arith.constant 0 : index
    %c0_494 = arith.constant 0 : index
    %c15_495 = arith.constant 15 : index
    %c0_496 = arith.constant 0 : index
    %746 = vector.load %arg1[%c0_493, %c0_494, %c15_495, %c0_496] : memref<1x4x18x18xf32, #tpu.memory_space<vmem>>, vector<1x4x1x18xf32>
    %747 = vector.shape_cast %746 : vector<1x4x1x18xf32> to vector<4x18xf32>
    %cst_497 = arith.constant 0.000000e+00 : f32
    %748 = vector.broadcast %cst_497 : f32 to vector<4x18xf32>
    %749 = arith.maximumf %747, %748 : vector<4x18xf32>
    %750 = vector.extract_strided_slice %0 {offsets = [0, 0, 0], sizes = [1, 4, 4], strides = [1, 1, 1]} : vector<3x4x4xf32> to vector<1x4x4xf32>
    %751 = vector.shape_cast %750 : vector<1x4x4xf32> to vector<4x4xf32>
    %cst_498 = arith.constant dense<0.000000e+00> : vector<4x18xf32>
    %752 = tpu.matmul %751, %749, %cst_498 {dimension_numbers = #tpu.dot_dimension_numbers<[1], [0], [0], [1], [0, 0, 1, 1], [], []>} : vector<4x4xf32>, vector<4x18xf32>, vector<4x18xf32> -> vector<4x18xf32>
    %753 = arith.addf %745, %752 : vector<4x18xf32>
    %c0_499 = arith.constant 0 : index
    %c0_500 = arith.constant 0 : index
    %c16_501 = arith.constant 16 : index
    %c0_502 = arith.constant 0 : index
    %754 = vector.load %arg1[%c0_499, %c0_500, %c16_501, %c0_502] : memref<1x4x18x18xf32, #tpu.memory_space<vmem>>, vector<1x4x1x18xf32>
    %755 = vector.shape_cast %754 : vector<1x4x1x18xf32> to vector<4x18xf32>
    %cst_503 = arith.constant 0.000000e+00 : f32
    %756 = vector.broadcast %cst_503 : f32 to vector<4x18xf32>
    %757 = arith.maximumf %755, %756 : vector<4x18xf32>
    %758 = vector.extract_strided_slice %0 {offsets = [1, 0, 0], sizes = [1, 4, 4], strides = [1, 1, 1]} : vector<3x4x4xf32> to vector<1x4x4xf32>
    %759 = vector.shape_cast %758 : vector<1x4x4xf32> to vector<4x4xf32>
    %cst_504 = arith.constant dense<0.000000e+00> : vector<4x18xf32>
    %760 = tpu.matmul %759, %757, %cst_504 {dimension_numbers = #tpu.dot_dimension_numbers<[1], [0], [0], [1], [0, 0, 1, 1], [], []>} : vector<4x4xf32>, vector<4x18xf32>, vector<4x18xf32> -> vector<4x18xf32>
    %761 = arith.addf %753, %760 : vector<4x18xf32>
    %c0_505 = arith.constant 0 : index
    %c0_506 = arith.constant 0 : index
    %c17 = arith.constant 17 : index
    %c0_507 = arith.constant 0 : index
    %762 = vector.load %arg1[%c0_505, %c0_506, %c17, %c0_507] : memref<1x4x18x18xf32, #tpu.memory_space<vmem>>, vector<1x4x1x18xf32>
    %763 = vector.shape_cast %762 : vector<1x4x1x18xf32> to vector<4x18xf32>
    %cst_508 = arith.constant 0.000000e+00 : f32
    %764 = vector.broadcast %cst_508 : f32 to vector<4x18xf32>
    %765 = arith.maximumf %763, %764 : vector<4x18xf32>
    %766 = vector.extract_strided_slice %0 {offsets = [2, 0, 0], sizes = [1, 4, 4], strides = [1, 1, 1]} : vector<3x4x4xf32> to vector<1x4x4xf32>
    %767 = vector.shape_cast %766 : vector<1x4x4xf32> to vector<4x4xf32>
    %cst_509 = arith.constant dense<0.000000e+00> : vector<4x18xf32>
    %768 = tpu.matmul %767, %765, %cst_509 {dimension_numbers = #tpu.dot_dimension_numbers<[1], [0], [0], [1], [0, 0, 1, 1], [], []>} : vector<4x4xf32>, vector<4x18xf32>, vector<4x18xf32> -> vector<4x18xf32>
    %769 = arith.addf %761, %768 : vector<4x18xf32>
    %c0_510 = arith.constant 0 : index
    %c1_511 = arith.constant 1 : index
    %770 = vector.load %arg7[%c0_510, %c1_511] : memref<4x20xf32, #tpu.memory_space<vmem>>, vector<4x18xf32>
    tpu.vector_store %arg7[%c0_510, %c1_511], %769 {strides = array<i32>} : memref<4x20xf32, #tpu.memory_space<vmem>>, vector<4x18xf32>,
    %cst_512 = arith.constant 0.000000e+00 : f32
    %771 = vector.broadcast %cst_512 : f32 to vector<8x18xf32>
    %c0_513 = arith.constant 0 : index
    %c0_514 = arith.constant 0 : index
    %772 = vector.load %arg7[%c0_513, %c0_514] : memref<4x20xf32, #tpu.memory_space<vmem>>, vector<4x18xf32>
    %773 = vector.extract_strided_slice %1 {offsets = [0, 0, 0], sizes = [1, 8, 4], strides = [1, 1, 1]} : vector<3x8x4xf32> to vector<1x8x4xf32>
    %774 = vector.shape_cast %773 : vector<1x8x4xf32> to vector<8x4xf32>
    %cst_515 = arith.constant dense<0.000000e+00> : vector<8x18xf32>
    %775 = tpu.matmul %774, %772, %cst_515 {dimension_numbers = #tpu.dot_dimension_numbers<[1], [0], [0], [1], [0, 0, 1, 1], [], []>} : vector<8x4xf32>, vector<4x18xf32>, vector<8x18xf32> -> vector<8x18xf32>
    %776 = arith.addf %771, %775 : vector<8x18xf32>
    %c0_516 = arith.constant 0 : index
    %c1_517 = arith.constant 1 : index
    %777 = vector.load %arg7[%c0_516, %c1_517] : memref<4x20xf32, #tpu.memory_space<vmem>>, vector<4x18xf32>
    %778 = vector.extract_strided_slice %1 {offsets = [1, 0, 0], sizes = [1, 8, 4], strides = [1, 1, 1]} : vector<3x8x4xf32> to vector<1x8x4xf32>
    %779 = vector.shape_cast %778 : vector<1x8x4xf32> to vector<8x4xf32>
    %cst_518 = arith.constant dense<0.000000e+00> : vector<8x18xf32>
    %780 = tpu.matmul %779, %777, %cst_518 {dimension_numbers = #tpu.dot_dimension_numbers<[1], [0], [0], [1], [0, 0, 1, 1], [], []>} : vector<8x4xf32>, vector<4x18xf32>, vector<8x18xf32> -> vector<8x18xf32>
    %781 = arith.addf %776, %780 : vector<8x18xf32>
    %c0_519 = arith.constant 0 : index
    %c2_520 = arith.constant 2 : index
    %782 = vector.load %arg7[%c0_519, %c2_520] : memref<4x20xf32, #tpu.memory_space<vmem>>, vector<4x18xf32>
    %783 = vector.extract_strided_slice %1 {offsets = [2, 0, 0], sizes = [1, 8, 4], strides = [1, 1, 1]} : vector<3x8x4xf32> to vector<1x8x4xf32>
    %784 = vector.shape_cast %783 : vector<1x8x4xf32> to vector<8x4xf32>
    %cst_521 = arith.constant dense<0.000000e+00> : vector<8x18xf32>
    %785 = tpu.matmul %784, %782, %cst_521 {dimension_numbers = #tpu.dot_dimension_numbers<[1], [0], [0], [1], [0, 0, 1, 1], [], []>} : vector<8x4xf32>, vector<4x18xf32>, vector<8x18xf32> -> vector<8x18xf32>
    %786 = arith.addf %781, %785 : vector<8x18xf32>
    %787 = arith.addf %738, %786 : vector<8x18xf32>
    %788 = arith.mulf %786, %786 : vector<8x18xf32>
    %789 = arith.addf %740, %788 : vector<8x18xf32>
    %790 = arith.truncf %786 : vector<8x18xf32> to vector<8x18xbf16>
    %c0_522 = arith.constant 0 : index
    %c0_523 = arith.constant 0 : index
    %c288 = arith.constant 288 : index
    %791 = vector.load %arg4[%c0_522, %c0_523, %c288] : memref<1x8x324xbf16, #tpu.memory_space<vmem>>, vector<1x8x18xbf16>
    %792 = vector.shape_cast %791 : vector<1x8x18xbf16> to vector<8x18xbf16>
    %793 = vector.shape_cast %790 : vector<8x18xbf16> to vector<1x8x18xbf16>
    tpu.vector_store %arg4[%c0_522, %c0_523, %c288], %793 {strides = array<i32>} : memref<1x8x324xbf16, #tpu.memory_space<vmem>>, vector<1x8x18xbf16>,
    %cst_524 = arith.constant 0.000000e+00 : bf16
    %794 = vector.broadcast %cst_524 : bf16 to vector<8x18xbf16>
    %c0_525 = arith.constant 0 : index
    %c0_526 = arith.constant 0 : index
    %c306 = arith.constant 306 : index
    %795 = vector.load %arg4[%c0_525, %c0_526, %c306] : memref<1x8x324xbf16, #tpu.memory_space<vmem>>, vector<1x8x18xbf16>
    %796 = vector.shape_cast %795 : vector<1x8x18xbf16> to vector<8x18xbf16>
    %797 = vector.shape_cast %794 : vector<8x18xbf16> to vector<1x8x18xbf16>
    tpu.vector_store %arg4[%c0_525, %c0_526, %c306], %797 {strides = array<i32>} : memref<1x8x324xbf16, #tpu.memory_space<vmem>>, vector<1x8x18xbf16>,
    %cst_527 = arith.constant dense<0.000000e+00> : vector<8xf32>
    %798 = vector.multi_reduction <add>, %787, %cst_527 [1] : vector<8x18xf32> to vector<8xf32>
    %799 = vector.shape_cast %798 : vector<8xf32> to vector<8x1xf32>
    %c0_528 = arith.constant 0 : index
    %c0_529 = arith.constant 0 : index
    %c0_530 = arith.constant 0 : index
    %800 = vector.load %arg5[%c0_528, %c0_529, %c0_530] : memref<1x8x1xf32, #tpu.memory_space<vmem>>, vector<1x8x1xf32>
    %801 = vector.shape_cast %800 : vector<1x8x1xf32> to vector<8x1xf32>
    %802 = vector.shape_cast %799 : vector<8x1xf32> to vector<1x8x1xf32>
    tpu.vector_store %arg5[%c0_528, %c0_529, %c0_530], %802 {strides = array<i32>} : memref<1x8x1xf32, #tpu.memory_space<vmem>>, vector<1x8x1xf32>,
    %cst_531 = arith.constant dense<0.000000e+00> : vector<8xf32>
    %803 = vector.multi_reduction <add>, %789, %cst_531 [1] : vector<8x18xf32> to vector<8xf32>
    %804 = vector.shape_cast %803 : vector<8xf32> to vector<8x1xf32>
    %c0_532 = arith.constant 0 : index
    %c0_533 = arith.constant 0 : index
    %c0_534 = arith.constant 0 : index
    %805 = vector.load %arg6[%c0_532, %c0_533, %c0_534] : memref<1x8x1xf32, #tpu.memory_space<vmem>>, vector<1x8x1xf32>
    %806 = vector.shape_cast %805 : vector<1x8x1xf32> to vector<8x1xf32>
    %807 = vector.shape_cast %804 : vector<8x1xf32> to vector<1x8x1xf32>
    tpu.vector_store %arg6[%c0_532, %c0_533, %c0_534], %807 {strides = array<i32>} : memref<1x8x1xf32, #tpu.memory_space<vmem>>, vector<1x8x1xf32>,
    return
  }
  func.func @transform_0(%arg0: i32) -> (i32, i32, i32, i32) {
    %c0_i32 = arith.constant 0 : i32
    %c0_i32_0 = arith.constant 0 : i32
    %c0_i32_1 = arith.constant 0 : i32
    %c0_i32_2 = arith.constant 0 : i32
    return %arg0, %c0_i32, %c0_i32_0, %c0_i32_1 : i32, i32, i32, i32
  }
  func.func @transform_1(%arg0: i32) -> (i32, i32, i32) {
    %c0_i32 = arith.constant 0 : i32
    %c0_i32_0 = arith.constant 0 : i32
    %c0_i32_1 = arith.constant 0 : i32
    %c0_i32_2 = arith.constant 0 : i32
    return %c0_i32, %c0_i32_0, %c0_i32_1 : i32, i32, i32
  }
  func.func @transform_2(%arg0: i32) -> (i32, i32, i32) {
    %c0_i32 = arith.constant 0 : i32
    %c0_i32_0 = arith.constant 0 : i32
    %c0_i32_1 = arith.constant 0 : i32
    %c0_i32_2 = arith.constant 0 : i32
    return %c0_i32, %c0_i32_0, %c0_i32_1 : i32, i32, i32
  }
  func.func @transform_3(%arg0: i32) -> (i32, i32, i32) {
    %c0_i32 = arith.constant 0 : i32
    %c0_i32_0 = arith.constant 0 : i32
    %c0_i32_1 = arith.constant 0 : i32
    return %arg0, %c0_i32, %c0_i32_0 : i32, i32, i32
  }
  func.func @transform_4(%arg0: i32) -> (i32, i32, i32) {
    %c0_i32 = arith.constant 0 : i32
    %c0_i32_0 = arith.constant 0 : i32
    %c0_i32_1 = arith.constant 0 : i32
    return %arg0, %c0_i32, %c0_i32_0 : i32, i32, i32
  }
  func.func @transform_5(%arg0: i32) -> (i32, i32, i32) {
    %c0_i32 = arith.constant 0 : i32
    %c0_i32_0 = arith.constant 0 : i32
    %c0_i32_1 = arith.constant 0 : i32
    return %arg0, %c0_i32, %c0_i32_0 : i32, i32, i32
  }
}

</mosaic_0001>

<llo_original>
// kernel: fac_conv_forward.3
$region0: #{fac_conv_forward.3}
  #allocation0 [shape = 'u32[]', space=smem, size = 0x4, offset = 0x4, fixed_abs, tag = 'smem constant byte address 0x4 - core index']
  #allocation1 [shape = 'u32[144,128]{1,0:T(1,128)}', space=vmem, size = 0x12000, scoped, tag = 'internal scratch']
  %s0 = inlined_call_operand.vmem [shape: bf16[2,8,324], index: 0, kind: input, shape index: {}]
  %s1 = inlined_call_operand.vmem [shape: f32[8,1], index: 1, kind: input, shape index: {}]
  %s2 = inlined_call_operand.vmem [shape: f32[8,1], index: 2, kind: input, shape index: {}]
  %s3 = inlined_call_operand.vmem [shape: f32[2,8,324], index: 3, kind: output, shape index: {}]
  %s4 = sld [smem:[#allocation0]]
  $region45: #{fac_conv_forward.3} parent=0
    _
  %s6 = ssub.s32 1, %s4
  %s7 = scalar_select 0, %s6, %s4
  loop: start=0, step=1, limit=4
  $region2: #{fac_conv_forward.3} parent=0 // loop_pre_header
    _
  $region3: #{fac_conv_forward.3} parent=0 // loop_header
    %s9 = sphi 0, %s13
    %p10 = scmp.ge.s32.totalorder %s9, 4
    %s19 = sphi 0, %s21
    %s22 = sphi 0, %s19
    %s23 = sphi 0, %s22
    %s39 = sphi 0, %s23
    %s43 = sphi 0, %s43
    %s45 = sphi 0, %s43
    %s46 = sphi 0, %s45
    %s60 = sphi 0, %s46
    %s64 = sphi 0, %s64
    %s66 = sphi 0, %s64
    %s67 = sphi 0, %s66
    %s81 = sphi 0, %s67
    %s87 = sphi 0, %s89
    %s90 = sphi 0, %s87
    %s91 = sphi 0, %s90
    %s107 = sphi 0, %s91
  $region4: #{fac_conv_forward.3} parent=0 // loop_header_branch
    %12 = sbr.rel (%p10) target = $region8
  $region5: #{fac_conv_forward.3} parent=0 // loop_body
    %s14 = ssub.s32 %s9, 1
    %s15 = ssub.s32 %s9, 2
    %s16 = sadd.s32 %s9, 1
    %s17 = ssub.s32 %s9, %s16
    %p18 = scmp.eq.s32.totalorder %s17, 0
    %s20 = sadd.s32 %s19, 1
    %s21 = scalar_select %p18, %s19, %s20
    %p24 = pneg %p18
    %p25 = scmp.eq.s32.totalorder %s9, 1
    %p26 = por %p24, %p25
    %p27 = scmp.ne.s32.totalorder %s19, %s22
    %p28 = scmp.eq.s32.totalorder %s9, 0
    %p29 = por %p27, %p28
    %p30 = scmp.ne.s32.totalorder %s19, %s22
    %p31 = scmp.eq.s32.totalorder %s14, 1
    %p32 = por %p30, %p31
    %p33 = scmp.ne.s32.totalorder %s22, %s23
    %p34 = scmp.eq.s32.totalorder %s14, 0
    %p35 = por %p33, %p34
    %p36 = scmp.ne.s32.totalorder %s22, %s23
    %p37 = scmp.eq.s32.totalorder %s15, 1
    %p38 = por %p36, %p37
    %p40 = scmp.ne.s32.totalorder %s23, %s39
    %p41 = scmp.eq.s32.totalorder %s15, 0
    %p42 = por %p40, %p41
    %s44 = sadd.s32 %s43, 1
    %p47 = scmp.eq.s32.totalorder %s9, 1
    %p48 = scmp.ne.s32.totalorder %s43, %s45
    %p49 = scmp.eq.s32.totalorder %s9, 0
    %p50 = por %p48, %p49
    %p51 = scmp.ne.s32.totalorder %s43, %s45
    %p52 = scmp.eq.s32.totalorder %s14, 1
    %p53 = por %p51, %p52
    %p54 = scmp.ne.s32.totalorder %s45, %s46
    %p55 = scmp.eq.s32.totalorder %s14, 0
    %p56 = por %p54, %p55
    %p57 = scmp.ne.s32.totalorder %s45, %s46
    %p58 = scmp.eq.s32.totalorder %s15, 1
    %p59 = por %p57, %p58
    %p61 = scmp.ne.s32.totalorder %s46, %s60
    %p62 = scmp.eq.s32.totalorder %s15, 0
    %p63 = por %p61, %p62
    %s65 = sadd.s32 %s64, 1
    %p68 = scmp.eq.s32.totalorder %s9, 1
    %p69 = scmp.ne.s32.totalorder %s64, %s66
    %p70 = scmp.eq.s32.totalorder %s9, 0
    %p71 = por %p69, %p70
    %p72 = scmp.ne.s32.totalorder %s64, %s66
    %p73 = scmp.eq.s32.totalorder %s14, 1
    %p74 = por %p72, %p73
    %p75 = scmp.ne.s32.totalorder %s66, %s67
    %p76 = scmp.eq.s32.totalorder %s14, 0
    %p77 = por %p75, %p76
    %p78 = scmp.ne.s32.totalorder %s66, %s67
    %p79 = scmp.eq.s32.totalorder %s15, 1
    %p80 = por %p78, %p79
    %p82 = scmp.ne.s32.totalorder %s67, %s81
    %p83 = scmp.eq.s32.totalorder %s15, 0
    %p84 = por %p82, %p83
    %s85 = ssub.s32 %s9, %s16
    %p86 = scmp.eq.s32.totalorder %s85, 0
    %s88 = sadd.s32 %s87, 1
    %s89 = scalar_select %p86, %s87, %s88
    %p92 = pneg %p86
    %p93 = scmp.eq.s32.totalorder %s9, 1
    %p94 = por %p92, %p93
    %p95 = scmp.ne.s32.totalorder %s87, %s90
    %p96 = scmp.eq.s32.totalorder %s9, 0
    %p97 = por %p95, %p96
    %p98 = scmp.ne.s32.totalorder %s87, %s90
    %p99 = scmp.eq.s32.totalorder %s14, 1
    %p100 = por %p98, %p99
    %p101 = scmp.ne.s32.totalorder %s90, %s91
    %p102 = scmp.eq.s32.totalorder %s14, 0
    %p103 = por %p101, %p102
    %p104 = scmp.ne.s32.totalorder %s90, %s91
    %p105 = scmp.eq.s32.totalorder %s15, 1
    %p106 = por %p104, %p105
    %p108 = scmp.ne.s32.totalorder %s91, %s107
    %p109 = scmp.eq.s32.totalorder %s15, 0
    %p110 = por %p108, %p109
    %p111 = scmp.le.s32.totalorder 1, %s9
    %p112 = scmp.lt.s32.totalorder %s9, 3
    %p113 = pnand %p111, %p112
    %p114 = pneg %p113
    // Predicated region
    $region9: #{fac_conv_forward.3} parent=5 // pred_check
      _
    $region10: #{fac_conv_forward.3} parent=5 // pred_check_branch
      %116 = sbr.rel (%p113) target = $region12
    $region11: #{fac_conv_forward.3} parent=5 // pred_region
      %s117 = ssub.s32 %s9, 1
      // Predicated region
      $region13: #{fac_conv_forward.3} parent=11 // pred_check
        %p118 = pneg %p56
      $region14: #{fac_conv_forward.3} parent=11 // pred_check_branch
        %120 = sbr.rel (%p118) target = $region16
      $region15: #{fac_conv_forward.3} parent=11 // pred_region
        _
      $region16: #{fac_conv_forward.3} parent=11 // pred_fallthru
        _
      // Predicated region
      $region17: #{fac_conv_forward.3} parent=11 // pred_check
        %p121 = pneg %p77
      $region18: #{fac_conv_forward.3} parent=11 // pred_check_branch
        %123 = sbr.rel (%p121) target = $region20
      $region19: #{fac_conv_forward.3} parent=11 // pred_region
        _
      $region20: #{fac_conv_forward.3} parent=11 // pred_fallthru
        _
    $region12: #{fac_conv_forward.3} parent=5 // pred_fallthru
      _
    %p124 = scmp.lt.s32.totalorder %s9, 2
    // Predicated region
    $region21: #{fac_conv_forward.3} parent=5 // pred_check
      %p125 = pneg %p124
    $region22: #{fac_conv_forward.3} parent=5 // pred_check_branch
      %127 = sbr.rel (%p125) target = $region24
    $region23: #{fac_conv_forward.3} parent=5 // pred_region
      // Predicated region
      $region25: #{fac_conv_forward.3} parent=23 // pred_check
        %p128 = pneg %p29
      $region26: #{fac_conv_forward.3} parent=23 // pred_check_branch
        %130 = sbr.rel (%p128) target = $region28
      $region27: #{fac_conv_forward.3} parent=23 // pred_region
        %p131 = scmp.lt.s32.totalorder %s9, 1
        %s132 = scalar_select %p131, %s9, 1
        %s133 = smul.addr %s132, 3
        %s134 = smul.addr %s133, 4
        %s135 = scalar_lea.vmem %s0, %s134
      $region28: #{fac_conv_forward.3} parent=23 // pred_fallthru
        _
    $region24: #{fac_conv_forward.3} parent=5 // pred_fallthru
      _
    %p136 = scmp.le.s32.totalorder 1, %s9
    %p137 = scmp.lt.s32.totalorder %s9, 3
    %p138 = pnand %p136, %p137
    %p139 = pneg %p138
    // Predicated region
    $region29: #{fac_conv_forward.3} parent=5 // pred_check
      _
    $region30: #{fac_conv_forward.3} parent=5 // pred_check_branch
      %141 = sbr.rel (%p138) target = $region32
    $region31: #{fac_conv_forward.3} parent=5 // pred_region
      %s142 = ssub.s32 %s9, 1
      %p143 = scmp.lt.s32.totalorder %s14, 1
      %s144 = scalar_select %p143, %s14, 1
      %s145 = smul.addr %s144, 3
      %s146 = smul.addr %s145, 4
      %s147 = scalar_lea.vmem %s0, %s146
      %p148 = pneg %p35
      %p149 = pneg %p32
      %p150 = pneg %p56
      %p151 = pneg %p53
      %p152 = pneg %p77
      %p153 = pneg %p74
      %p154 = pneg %p103
      %p155 = pneg %p100
      %p156 = scmp.lt.s32.totalorder %s14, 1
      %s157 = scalar_select %p156, %s14, 1
      %s158 = smul.addr %s157, 3
      %s159 = smul.addr %s158, 8
      %s160 = scalar_lea.vmem %s3, %s159
      %p161 = scmp.lt.s32.totalorder %s14, 1
      %s162 = scalar_select %p161, %s14, 1
      %s163 = smul.addr %s162, 3
      %s164 = smul.addr %s163, 4
      %s165 = scalar_lea.vmem %s0, %s164
      %p166 = scmp.lt.s32.totalorder %s14, 1
      %s167 = scalar_select %p166, %s14, 1
      %s168 = smul.addr %s167, 3
      %s169 = smul.addr %s168, 8
      %s170 = scalar_lea.vmem %s3, %s169
      %v171 = vld [vmem:[%s165] sm:$0xff]
      %v172 = vld [vmem:[%s165 + $0x8] sm:$0xf]
      %v173 = vunpack.c.l.bf16 %v171
      %v174 = vunpack.c.h.bf16 %v171
      %v175 = vunpack.c.l.bf16 %v172
      %v176 = vld [vmem:[%s1] sm:$0xff]
      %178 = vset.pattern.permute.xlu0 0
      %179 = vperm.xlu0 %178, %v176
      %v180 = vpop.permute.xlu0 %179
      %v182 = vmul.f32 %v173, %v180
      %v183 = vmul.f32 %v174, %v180
      %v184 = vmul.f32 %v175, %v180
      %v185 = vld [vmem:[%s2] sm:$0xff]
      %187 = vset.pattern.permute.xlu0 0
      %188 = vperm.xlu0 %187, %v185
      %v189 = vpop.permute.xlu0 %188
      %v191 = vadd.f32 %v182, %v189
      %v192 = vadd.f32 %v183, %v189
      %v193 = vadd.f32 %v184, %v189
      %194 = vst [vmem:[%s170] sm:$0xff] %v191
      %195 = vst [vmem:[%s170 + $0x8] sm:$0xff] %v192
      %vm196 = vcmask 556032
      %197 = vst.msk [vmem:[%s170 + $0x10] sm:$0xff] %vm196, %v193
      %p198 = scmp.lt.s32.totalorder %s14, 1
      %s199 = scalar_select %p198, %s14, 1
      %s200 = smul.addr %s199, 3
      %s201 = smul.addr %s200, 8
      %s202 = scalar_lea.vmem %s3, %s201
      // Predicated region
      $region33: #{fac_conv_forward.3} parent=31 // pred_check
        %p203 = pneg %p100
      $region34: #{fac_conv_forward.3} parent=31 // pred_check_branch
        %205 = sbr.rel (%p203) target = $region36
      $region35: #{fac_conv_forward.3} parent=31 // pred_region
        _
      $region36: #{fac_conv_forward.3} parent=31 // pred_fallthru
        _
    $region32: #{fac_conv_forward.3} parent=5 // pred_fallthru
      _
    %p206 = scmp.le.s32.totalorder 2, %s9
    // Predicated region
    $region37: #{fac_conv_forward.3} parent=5 // pred_check
      %p207 = pneg %p206
    $region38: #{fac_conv_forward.3} parent=5 // pred_check_branch
      %209 = sbr.rel (%p207) target = $region40
    $region39: #{fac_conv_forward.3} parent=5 // pred_region
      %s210 = ssub.s32 %s9, 2
      // Predicated region
      $region41: #{fac_conv_forward.3} parent=39 // pred_check
        %p211 = pneg %p106
      $region42: #{fac_conv_forward.3} parent=39 // pred_check_branch
        %213 = sbr.rel (%p211) target = $region44
      $region43: #{fac_conv_forward.3} parent=39 // pred_region
        %p214 = scmp.lt.s32.totalorder %s15, 1
        %s215 = scalar_select %p214, %s15, 1
        %s216 = smul.addr %s215, 3
        %s217 = smul.addr %s216, 8
        %s218 = scalar_lea.vmem %s3, %s217
      $region44: #{fac_conv_forward.3} parent=39 // pred_fallthru
        _
    $region40: #{fac_conv_forward.3} parent=5 // pred_fallthru
      _
  $region6: #{fac_conv_forward.3} parent=0 // loop_footer
    %s13 = sadd.s32 1, %s9
  $region7: #{fac_conv_forward.3} parent=0 // loop_footer_branch
    %8 = sbr.rel target = $region3
  $region8: #{fac_conv_forward.3} parent=0 // loop_exit
    _

// kernel: fac_conv_forward.2
$region0: #{fac_conv_forward.2}
  #allocation0 [shape = 'u32[]', space=smem, size = 0x4, offset = 0x4, fixed_abs, tag = 'smem constant byte address 0x4 - core index']
  #allocation1 [shape = 'u32[144,128]{1,0:T(1,128)}', space=vmem, size = 0x12000, scoped, tag = 'internal scratch']
  #allocation2 [shape = 'f32[4,20]{1,0:T(4,128)}', space=vmem, size = 0x800, scoped, tag = 'scratch operand']
  %s0 = inlined_call_operand.vmem [shape: f32[2,4,18,18], index: 0, kind: input, shape index: {}]
  %s1 = inlined_call_operand.vmem [shape: f32[3,4,4], index: 1, kind: input, shape index: {}]
  %s2 = inlined_call_operand.vmem [shape: f32[3,8,4], index: 2, kind: input, shape index: {}]
  %s3 = inlined_call_operand.vmem [shape: bf16[2,8,324], index: 3, kind: output, shape index: {0}]
  %s4 = inlined_call_operand.vmem [shape: f32[2,8,1], index: 4, kind: output, shape index: {1}]
  %s5 = inlined_call_operand.vmem [shape: f32[2,8,1], index: 5, kind: output, shape index: {2}]
  %6 = xla_tuple %s3, %s4, %s5
  %s7 = sld [smem:[#allocation0]]
  $region61: #{fac_conv_forward.2} parent=0
    _
  %s9 = ssub.s32 1, %s7
  %s10 = scalar_select 0, %s9, %s7
  loop: start=0, step=1, limit=4
  $region2: #{fac_conv_forward.2} parent=0 // loop_pre_header
    _
  $region3: #{fac_conv_forward.2} parent=0 // loop_header
    %s12 = sphi 0, %s16
    %p13 = scmp.ge.s32.totalorder %s12, 4
    %s22 = sphi 0, %s24
    %s25 = sphi 0, %s22
    %s26 = sphi 0, %s25
    %s42 = sphi 0, %s26
    %s46 = sphi 0, %s46
    %s48 = sphi 0, %s46
    %s49 = sphi 0, %s48
    %s63 = sphi 0, %s49
    %s67 = sphi 0, %s67
    %s69 = sphi 0, %s67
    %s70 = sphi 0, %s69
    %s84 = sphi 0, %s70
    %s90 = sphi 0, %s92
    %s93 = sphi 0, %s90
    %s94 = sphi 0, %s93
    %s110 = sphi 0, %s94
    %s116 = sphi 0, %s118
    %s119 = sphi 0, %s116
    %s120 = sphi 0, %s119
    %s136 = sphi 0, %s120
    %s142 = sphi 0, %s144
    %s145 = sphi 0, %s142
    %s146 = sphi 0, %s145
    %s162 = sphi 0, %s146
  $region4: #{fac_conv_forward.2} parent=0 // loop_header_branch
    %15 = sbr.rel (%p13) target = $region8
  $region5: #{fac_conv_forward.2} parent=0 // loop_body
    %s17 = ssub.s32 %s12, 1
    %s18 = ssub.s32 %s12, 2
    %s19 = sadd.s32 %s12, 1
    %s20 = ssub.s32 %s12, %s19
    %p21 = scmp.eq.s32.totalorder %s20, 0
    %s23 = sadd.s32 %s22, 1
    %s24 = scalar_select %p21, %s22, %s23
    %p27 = pneg %p21
    %p28 = scmp.eq.s32.totalorder %s12, 1
    %p29 = por %p27, %p28
    %p30 = scmp.ne.s32.totalorder %s22, %s25
    %p31 = scmp.eq.s32.totalorder %s12, 0
    %p32 = por %p30, %p31
    %p33 = scmp.ne.s32.totalorder %s22, %s25
    %p34 = scmp.eq.s32.totalorder %s17, 1
    %p35 = por %p33, %p34
    %p36 = scmp.ne.s32.totalorder %s25, %s26
    %p37 = scmp.eq.s32.totalorder %s17, 0
    %p38 = por %p36, %p37
    %p39 = scmp.ne.s32.totalorder %s25, %s26
    %p40 = scmp.eq.s32.totalorder %s18, 1
    %p41 = por %p39, %p40
    %p43 = scmp.ne.s32.totalorder %s26, %s42
    %p44 = scmp.eq.s32.totalorder %s18, 0
    %p45 = por %p43, %p44
    %s47 = sadd.s32 %s46, 1
    %p50 = scmp.eq.s32.totalorder %s12, 1
    %p51 = scmp.ne.s32.totalorder %s46, %s48
    %p52 = scmp.eq.s32.totalorder %s12, 0
    %p53 = por %p51, %p52
    %p54 = scmp.ne.s32.totalorder %s46, %s48
    %p55 = scmp.eq.s32.totalorder %s17, 1
    %p56 = por %p54, %p55
    %p57 = scmp.ne.s32.totalorder %s48, %s49
    %p58 = scmp.eq.s32.totalorder %s17, 0
    %p59 = por %p57, %p58
    %p60 = scmp.ne.s32.totalorder %s48, %s49
    %p61 = scmp.eq.s32.totalorder %s18, 1
    %p62 = por %p60, %p61
    %p64 = scmp.ne.s32.totalorder %s49, %s63
    %p65 = scmp.eq.s32.totalorder %s18, 0
    %p66 = por %p64, %p65
    %s68 = sadd.s32 %s67, 1
    %p71 = scmp.eq.s32.totalorder %s12, 1
    %p72 = scmp.ne.s32.totalorder %s67, %s69
    %p73 = scmp.eq.s32.totalorder %s12, 0
    %p74 = por %p72, %p73
    %p75 = scmp.ne.s32.totalorder %s67, %s69
    %p76 = scmp.eq.s32.totalorder %s17, 1
    %p77 = por %p75, %p76
    %p78 = scmp.ne.s32.totalorder %s69, %s70
    %p79 = scmp.eq.s32.totalorder %s17, 0
    %p80 = por %p78, %p79
    %p81 = scmp.ne.s32.totalorder %s69, %s70
    %p82 = scmp.eq.s32.totalorder %s18, 1
    %p83 = por %p81, %p82
    %p85 = scmp.ne.s32.totalorder %s70, %s84
    %p86 = scmp.eq.s32.totalorder %s18, 0
    %p87 = por %p85, %p86
    %s88 = ssub.s32 %s12, %s19
    %p89 = scmp.eq.s32.totalorder %s88, 0
    %s91 = sadd.s32 %s90, 1
    %s92 = scalar_select %p89, %s90, %s91
    %p95 = pneg %p89
    %p96 = scmp.eq.s32.totalorder %s12, 1
    %p97 = por %p95, %p96
    %p98 = scmp.ne.s32.totalorder %s90, %s93
    %p99 = scmp.eq.s32.totalorder %s12, 0
    %p100 = por %p98, %p99
    %p101 = scmp.ne.s32.totalorder %s90, %s93
    %p102 = scmp.eq.s32.totalorder %s17, 1
    %p103 = por %p101, %p102
    %p104 = scmp.ne.s32.totalorder %s93, %s94
    %p105 = scmp.eq.s32.totalorder %s17, 0
    %p106 = por %p104, %p105
    %p107 = scmp.ne.s32.totalorder %s93, %s94
    %p108 = scmp.eq.s32.totalorder %s18, 1
    %p109 = por %p107, %p108
    %p111 = scmp.ne.s32.totalorder %s94, %s110
    %p112 = scmp.eq.s32.totalorder %s18, 0
    %p113 = por %p111, %p112
    %s114 = ssub.s32 %s12, %s19
    %p115 = scmp.eq.s32.totalorder %s114, 0
    %s117 = sadd.s32 %s116, 1
    %s118 = scalar_select %p115, %s116, %s117
    %p121 = pneg %p115
    %p122 = scmp.eq.s32.totalorder %s12, 1
    %p123 = por %p121, %p122
    %p124 = scmp.ne.s32.totalorder %s116, %s119
    %p125 = scmp.eq.s32.totalorder %s12, 0
    %p126 = por %p124, %p125
    %p127 = scmp.ne.s32.totalorder %s116, %s119
    %p128 = scmp.eq.s32.totalorder %s17, 1
    %p129 = por %p127, %p128
    %p130 = scmp.ne.s32.totalorder %s119, %s120
    %p131 = scmp.eq.s32.totalorder %s17, 0
    %p132 = por %p130, %p131
    %p133 = scmp.ne.s32.totalorder %s119, %s120
    %p134 = scmp.eq.s32.totalorder %s18, 1
    %p135 = por %p133, %p134
    %p137 = scmp.ne.s32.totalorder %s120, %s136
    %p138 = scmp.eq.s32.totalorder %s18, 0
    %p139 = por %p137, %p138
    %s140 = ssub.s32 %s12, %s19
    %p141 = scmp.eq.s32.totalorder %s140, 0
    %s143 = sadd.s32 %s142, 1
    %s144 = scalar_select %p141, %s142, %s143
    %p147 = pneg %p141
    %p148 = scmp.eq.s32.totalorder %s12, 1
    %p149 = por %p147, %p148
    %p150 = scmp.ne.s32.totalorder %s142, %s145
    %p151 = scmp.eq.s32.totalorder %s12, 0
    %p152 = por %p150, %p151
    %p153 = scmp.ne.s32.totalorder %s142, %s145
    %p154 = scmp.eq.s32.totalorder %s17, 1
    %p155 = por %p153, %p154
    %p156 = scmp.ne.s32.totalorder %s145, %s146
    %p157 = scmp.eq.s32.totalorder %s17, 0
    %p158 = por %p156, %p157
    %p159 = scmp.ne.s32.totalorder %s145, %s146
    %p160 = scmp.eq.s32.totalorder %s18, 1
    %p161 = por %p159, %p160
    %p163 = scmp.ne.s32.totalorder %s146, %s162
    %p164 = scmp.eq.s32.totalorder %s18, 0
    %p165 = por %p163, %p164
    %p166 = scmp.le.s32.totalorder 1, %s12
    %p167 = scmp.lt.s32.totalorder %s12, 3
    %p168 = pnand %p166, %p167
    %p169 = pneg %p168
    // Predicated region
    $region9: #{fac_conv_forward.2} parent=5 // pred_check
      _
    $region10: #{fac_conv_forward.2} parent=5 // pred_check_branch
      %171 = sbr.rel (%p168) target = $region12
    $region11: #{fac_conv_forward.2} parent=5 // pred_region
      %s172 = ssub.s32 %s12, 1
      // Predicated region
      $region13: #{fac_conv_forward.2} parent=11 // pred_check
        %p173 = pneg %p59
      $region14: #{fac_conv_forward.2} parent=11 // pred_check_branch
        %175 = sbr.rel (%p173) target = $region16
      $region15: #{fac_conv_forward.2} parent=11 // pred_region
        _
      $region16: #{fac_conv_forward.2} parent=11 // pred_fallthru
        _
      // Predicated region
      $region17: #{fac_conv_forward.2} parent=11 // pred_check
        %p176 = pneg %p80
      $region18: #{fac_conv_forward.2} parent=11 // pred_check_branch
        %178 = sbr.rel (%p176) target = $region20
      $region19: #{fac_conv_forward.2} parent=11 // pred_region
        _
      $region20: #{fac_conv_forward.2} parent=11 // pred_fallthru
        _
    $region12: #{fac_conv_forward.2} parent=5 // pred_fallthru
      _
    %p179 = scmp.lt.s32.totalorder %s12, 2
    // Predicated region
    $region21: #{fac_conv_forward.2} parent=5 // pred_check
      %p180 = pneg %p179
    $region22: #{fac_conv_forward.2} parent=5 // pred_check_branch
      %182 = sbr.rel (%p180) target = $region24
    $region23: #{fac_conv_forward.2} parent=5 // pred_region
      // Predicated region
      $region25: #{fac_conv_forward.2} parent=23 // pred_check
        %p183 = pneg %p32
      $region26: #{fac_conv_forward.2} parent=23 // pred_check_branch
        %185 = sbr.rel (%p183) target = $region28
      $region27: #{fac_conv_forward.2} parent=23 // pred_region
        %p186 = scmp.lt.s32.totalorder %s12, 1
        %s187 = scalar_select %p186, %s12, 1
        %s188 = smul.addr %s187, 12
        %s189 = smul.addr %s188, 8
        %s190 = scalar_lea.vmem %s0, %s189
      $region28: #{fac_conv_forward.2} parent=23 // pred_fallthru
        _
    $region24: #{fac_conv_forward.2} parent=5 // pred_fallthru
      _
    %p191 = scmp.le.s32.totalorder 1, %s12
    %p192 = scmp.lt.s32.totalorder %s12, 3
    %p193 = pnand %p191, %p192
    %p194 = pneg %p193
    // Predicated region
    $region29: #{fac_conv_forward.2} parent=5 // pred_check
      _
    $region30: #{fac_conv_forward.2} parent=5 // pred_check_branch
      %196 = sbr.rel (%p193) target = $region32
    $region31: #{fac_conv_forward.2} parent=5 // pred_region
      %s197 = ssub.s32 %s12, 1
      %p198 = scmp.lt.s32.totalorder %s17, 1
      %s199 = scalar_select %p198, %s17, 1
      %s200 = smul.addr %s199, 12
      %s201 = smul.addr %s200, 8
      %s202 = scalar_lea.vmem %s0, %s201
      %p203 = pneg %p38
      %p204 = pneg %p35
      %p205 = pneg %p59
      %p206 = pneg %p56
      %p207 = pneg %p80
      %p208 = pneg %p77
      %p209 = pneg %p106
      %p210 = pneg %p103
      %p211 = scmp.lt.s32.totalorder %s17, 1
      %s212 = scalar_select %p211, %s17, 1
      %s213 = smul.addr %s212, 3
      %s214 = smul.addr %s213, 4
      %s215 = scalar_lea.vmem %s3, %s214
      %p216 = pneg %p132
      %p217 = pneg %p129
      %p218 = scmp.lt.s32.totalorder %s17, 1
      %s219 = scalar_select %p218, %s17, 1
      %s220 = smul.addr %s219, 8
      %s221 = scalar_lea.vmem %s4, %s220
      %p222 = pneg %p158
      %p223 = pneg %p155
      %p224 = scmp.lt.s32.totalorder %s17, 1
      %s225 = scalar_select %p224, %s17, 1
      %s226 = smul.addr %s225, 8
      %s227 = scalar_lea.vmem %s5, %s226
      %p228 = scmp.lt.s32.totalorder %s17, 1
      %s229 = scalar_select %p228, %s17, 1
      %s230 = smul.addr %s229, 12
      %s231 = smul.addr %s230, 8
      %s232 = scalar_lea.vmem %s0, %s231
      %p233 = scmp.lt.s32.totalorder %s17, 1
      %s234 = scalar_select %p233, %s17, 1
      %s235 = smul.addr %s234, 3
      %s236 = smul.addr %s235, 4
      %s237 = scalar_lea.vmem %s3, %s236
      %p238 = scmp.lt.s32.totalorder %s17, 1
      %s239 = scalar_select %p238, %s17, 1
      %s240 = smul.addr %s239, 8
      %s241 = scalar_lea.vmem %s4, %s240
      %p242 = scmp.lt.s32.totalorder %s17, 1
      %s243 = scalar_select %p242, %s17, 1
      %s244 = smul.addr %s243, 8
      %s245 = scalar_lea.vmem %s5, %s244
      %v247 = vld [vmem:[%s1] sm:$0xf]
      %v248 = vld [vmem:[%s1 + $0x4] sm:$0xf]
      %v249 = vld [vmem:[%s1 + $0x8] sm:$0xf]
      %v250 = vld [vmem:[%s2] sm:$0xff]
      %v251 = vld [vmem:[%s2 + $0x8] sm:$0xff]
      %v252 = vld [vmem:[%s2 + $0x10] sm:$0xff]
      %vm253 = vcmask 158720
      %254 = vst.msk [vmem:[#allocation2] sm:$0xf] %vm253, 0.0
      %vm255 = vcmask 142336
      %256 = vst.msk [vmem:[%s237] sm:$0xf] %vm255, 0
      %v257 = vld [vmem:[%s232] sm:$0x1]
      %v258 = vld [vmem:[%s232 + $0x18] sm:$0x1]
      %v259 = vld [vmem:[%s232 + $0x30] sm:$0x1]
      %v260 = vld [vmem:[%s232 + $0x48] sm:$0x1]
      %v261 = vmax.f32 %v257, 0.0
      %v262 = vmax.f32 %v258, 0.0
      %v263 = vmax.f32 %v259, 0.0
      %v264 = vmax.f32 %v260, 0.0
      %v265 = vld [vmem:[%s232 + $0x1] sm:$0x1]
      %v266 = vld [vmem:[%s232 + $0x19] sm:$0x1]
      %v267 = vld [vmem:[%s232 + $0x31] sm:$0x1]
      %v268 = vld [vmem:[%s232 + $0x49] sm:$0x1]
      %v269 = vmax.f32 %v265, 0.0
      %v270 = vmax.f32 %v266, 0.0
      %v271 = vmax.f32 %v267, 0.0
      %v272 = vmax.f32 %v268, 0.0
      %v277 = vrot.slane %v270, 7
      %vm278 = vcmask 1041409
      %v279 = vsel %vm278, %v277, %v269
      %v280 = vrot.slane %v271, 6
      %vm281 = vcmask 1042434
      %v282 = vsel %vm281, %v280, %v279
      %v283 = vrot.slane %v272, 5
      %vm284 = vcmask 1043459
      %v285 = vsel %vm284, %v283, %v282
      %vm286 = vcmask 31744
      %v288 = vsel %vm286, %v248, 0
      %vm290 = vcmask 1043456
      %v291 = vsel %vm290, %v285, 0
      %293 = vmatprep.subr.mxu0 0.0
      %294 = vmatpush1.msra.mxu0 %v291
      %295 = vmatprep.subr.mxu0 0.0
      %296 = vmatpush1.msra.mxu0 0.0
      %297 = vmatprep.subr.mxu0 0.0
      %298 = vmatpush1.msra.mxu0 0.0
      %299 = vmatprep.subr.mxu0 0.0
      %300 = vmatpush1.msra.mxu0 0.0
      %301 = vmatprep.subr.mxu0 0.0
      %302 = vmatpush1.msra.mxu0 0.0
      %303 = vmatprep.subr.mxu0 0.0
      %304 = vmatpush1.msra.mxu0 0.0
      %305 = vmatprep.subr.mxu0 0.0
      %306 = vmatpush1.msra.mxu0 0.0
      %307 = vmatprep.subr.mxu0 0.0
      %308 = vmatpush1.msra.mxu0 0.0
      %309 = vmatprep.subr.mxu0 0.0
      %310 = vmatpush1.msra.mxu0 0.0
      %311 = vmatprep.subr.mxu0 0.0
      %312 = vmatpush1.msra.mxu0 0.0
      %313 = vmatprep.subr.mxu0 0.0
      %314 = vmatpush1.msra.mxu0 0.0
      %315 = vmatprep.subr.mxu0 0.0
      %316 = vmatpush1.msra.mxu0 0.0
      %317 = vmatprep.subr.mxu0 0.0
      %318 = vmatpush1.msra.mxu0 0.0
      %319 = vmatprep.subr.mxu0 0.0
      %320 = vmatpush1.msra.mxu0 0.0
      %321 = vmatprep.subr.mxu0 0.0
      %322 = vmatpush1.msra.mxu0 0.0
      %323 = vmatprep.subr.mxu0 0.0
      %324 = vmatpush1.msra.mxu0 0.0
      %325 = vmatprep.subr.mxu0 0.0
      %326 = vmatpush1.msra.mxu0 0.0
      %327 = vmatprep.subr.mxu0 0.0
      %328 = vmatpush1.msra.mxu0 0.0
      %329 = vmatprep.subr.mxu0 0.0
      %330 = vmatpush1.msra.mxu0 0.0
      %331 = vmatprep.subr.mxu0 0.0
      %332 = vmatpush1.msra.mxu0 0.0
      %333 = vmatprep.subr.mxu0 0.0
      %334 = vmatpush1.msra.mxu0 0.0
      %335 = vmatprep.subr.mxu0 0.0
      %336 = vmatpush1.msra.mxu0 0.0
      %337 = vmatprep.subr.mxu0 0.0
      %338 = vmatpush1.msra.mxu0 0.0
      %339 = vmatprep.subr.mxu0 0.0
      %340 = vmatpush1.msra.mxu0 0.0
      %341 = vmatprep.subr.mxu0 0.0
      %342 = vmatpush1.msra.mxu0 0.0
      %343 = vmatprep.subr.mxu0 0.0
      %344 = vmatpush1.msra.mxu0 0.0
      %345 = vmatprep.subr.mxu0 0.0
      %346 = vmatpush1.msra.mxu0 0.0
      %347 = vmatprep.subr.mxu0 0.0
      %348 = vmatpush1.msra.mxu0 0.0
      %349 = vmatprep.subr.mxu0 0.0
      %350 = vmatpush1.msra.mxu0 0.0
      %351 = vmatprep.subr.mxu0 0.0
      %352 = vmatpush1.msra.mxu0 0.0
      %353 = vmatprep.subr.mxu0 0.0
      %354 = vmatpush1.msra.mxu0 0.0
      %355 = vmatprep.subr.mxu0 0.0
      %356 = vmatpush1.msra.mxu0 0.0
      %357 = vmatprep.mubr.f32.mxu0 0.0
      %358 = vmatmul.mubr.f32.gmra.mrb[0].mxu0 %v288
      %v359 = vpop.f32.mrb[0].mxu0
      %v360 = vadd.f32 0.0, %v359
      %v361 = vpop.f32.mrb[0].mxu0
      %362 = vdwg.mxu0
      %v367 = vrot.slane %v262, 7
      %v368 = vsel %vm278, %v367, %v261
      %v369 = vrot.slane %v263, 6
      %v370 = vsel %vm281, %v369, %v368
      %v371 = vrot.slane %v264, 5
      %v372 = vsel %vm284, %v371, %v370
      %v374 = vsel %vm286, %v247, 0
      %v376 = vsel %vm290, %v372, 0
      %378 = vmatprep.subr.mxu0 0.0
      %379 = vmatpush1.msra.mxu0 %v376
      %380 = vmatprep.subr.mxu0 0.0
      %381 = vmatpush1.msra.mxu0 0.0
      %382 = vmatprep.subr.mxu0 0.0
      %383 = vmatpush1.msra.mxu0 0.0
      %384 = vmatprep.subr.mxu0 0.0
      %385 = vmatpush1.msra.mxu0 0.0
      %386 = vmatprep.subr.mxu0 0.0
      %387 = vmatpush1.msra.mxu0 0.0
      %388 = vmatprep.subr.mxu0 0.0
      %389 = vmatpush1.msra.mxu0 0.0
      %390 = vmatprep.subr.mxu0 0.0
      %391 = vmatpush1.msra.mxu0 0.0
      %392 = vmatprep.subr.mxu0 0.0
      %393 = vmatpush1.msra.mxu0 0.0
      %394 = vmatprep.subr.mxu0 0.0
      %395 = vmatpush1.msra.mxu0 0.0
      %396 = vmatprep.subr.mxu0 0.0
      %397 = vmatpush1.msra.mxu0 0.0
      %398 = vmatprep.subr.mxu0 0.0
      %399 = vmatpush1.msra.mxu0 0.0
      %400 = vmatprep.subr.mxu0 0.0
      %401 = vmatpush1.msra.mxu0 0.0
      %402 = vmatprep.subr.mxu0 0.0
      %403 = vmatpush1.msra.mxu0 0.0
      %404 = vmatprep.subr.mxu0 0.0
      %405 = vmatpush1.msra.mxu0 0.0
      %406 = vmatprep.subr.mxu0 0.0
      %407 = vmatpush1.msra.mxu0 0.0
      %408 = vmatprep.subr.mxu0 0.0
      %409 = vmatpush1.msra.mxu0 0.0
      %410 = vmatprep.subr.mxu0 0.0
      %411 = vmatpush1.msra.mxu0 0.0
      %412 = vmatprep.subr.mxu0 0.0
      %413 = vmatpush1.msra.mxu0 0.0
      %414 = vmatprep.subr.mxu0 0.0
      %415 = vmatpush1.msra.mxu0 0.0
      %416 = vmatprep.subr.mxu0 0.0
      %417 = vmatpush1.msra.mxu0 0.0
      %418 = vmatprep.subr.mxu0 0.0
      %419 = vmatpush1.msra.mxu0 0.0
      %420 = vmatprep.subr.mxu0 0.0
      %421 = vmatpush1.msra.mxu0 0.0
      %422 = vmatprep.subr.mxu0 0.0
      %423 = vmatpush1.msra.mxu0 0.0
      %424 = vmatprep.subr.mxu0 0.0
      %425 = vmatpush1.msra.mxu0 0.0
      %426 = vmatprep.subr.mxu0 0.0
      %427 = vmatpush1.msra.mxu0 0.0
      %428 = vmatprep.subr.mxu0 0.0
      %429 = vmatpush1.msra.mxu0 0.0
      %430 = vmatprep.subr.mxu0 0.0
      %431 = vmatpush1.msra.mxu0 0.0
      %432 = vmatprep.subr.mxu0 0.0
      %433 = vmatpush1.msra.mxu0 0.0
      %434 = vmatprep.subr.mxu0 0.0
      %435 = vmatpush1.msra.mxu0 0.0
      %436 = vmatprep.subr.mxu0 0.0
      %437 = vmatpush1.msra.mxu0 0.0
      %438 = vmatprep.subr.mxu0 0.0
      %439 = vmatpush1.msra.mxu0 0.0
      %440 = vmatprep.subr.mxu0 0.0
      %441 = vmatpush1.msra.mxu0 0.0
      %442 = vmatprep.mubr.f32.mxu0 0.0
      %443 = vmatmul.mubr.f32.gmra.mrb[0].mxu0 %v374
      %v444 = vpop.f32.mrb[0].mxu0
      %v445 = vadd.f32 %v360, %v444
      %v446 = vpop.f32.mrb[0].mxu0
      %447 = vdwg.mxu0
      %v448 = vld [vmem:[%s232 + $0x2] sm:$0x1]
      %v449 = vld [vmem:[%s232 + $0x1a] sm:$0x1]
      %v450 = vld [vmem:[%s232 + $0x32] sm:$0x1]
      %v451 = vld [vmem:[%s232 + $0x4a] sm:$0x1]
      %v452 = vmax.f32 %v448, 0.0
      %v453 = vmax.f32 %v449, 0.0
      %v454 = vmax.f32 %v450, 0.0
      %v455 = vmax.f32 %v451, 0.0
      %v460 = vrot.slane %v453, 7
      %v461 = vsel %vm278, %v460, %v452
      %v462 = vrot.slane %v454, 6
      %v463 = vsel %vm281, %v462, %v461
      %v464 = vrot.slane %v455, 5
      %v465 = vsel %vm284, %v464, %v463
      %v467 = vsel %vm286, %v249, 0
      %v469 = vsel %vm290, %v465, 0
      %471 = vmatprep.subr.mxu0 0.0
      %472 = vmatpush1.msra.mxu0 %v469
      %473 = vmatprep.subr.mxu0 0.0
      %474 = vmatpush1.msra.mxu0 0.0
      %475 = vmatprep.subr.mxu0 0.0
      %476 = vmatpush1.msra.mxu0 0.0
      %477 = vmatprep.subr.mxu0 0.0
      %478 = vmatpush1.msra.mxu0 0.0
      %479 = vmatprep.subr.mxu0 0.0
      %480 = vmatpush1.msra.mxu0 0.0
      %481 = vmatprep.subr.mxu0 0.0
      %482 = vmatpush1.msra.mxu0 0.0
      %483 = vmatprep.subr.mxu0 0.0
      %484 = vmatpush1.msra.mxu0 0.0
      %485 = vmatprep.subr.mxu0 0.0
      %486 = vmatpush1.msra.mxu0 0.0
      %487 = vmatprep.subr.mxu0 0.0
      %488 = vmatpush1.msra.mxu0 0.0
      %489 = vmatprep.subr.mxu0 0.0
      %490 = vmatpush1.msra.mxu0 0.0
      %491 = vmatprep.subr.mxu0 0.0
      %492 = vmatpush1.msra.mxu0 0.0
      %493 = vmatprep.subr.mxu0 0.0
      %494 = vmatpush1.msra.mxu0 0.0
      %495 = vmatprep.subr.mxu0 0.0
      %496 = vmatpush1.msra.mxu0 0.0
      %497 = vmatprep.subr.mxu0 0.0
      %498 = vmatpush1.msra.mxu0 0.0
      %499 = vmatprep.subr.mxu0 0.0
      %500 = vmatpush1.msra.mxu0 0.0
      %501 = vmatprep.subr.mxu0 0.0
      %502 = vmatpush1.msra.mxu0 0.0
      %503 = vmatprep.subr.mxu0 0.0
      %504 = vmatpush1.msra.mxu0 0.0
      %505 = vmatprep.subr.mxu0 0.0
      %506 = vmatpush1.msra.mxu0 0.0
      %507 = vmatprep.subr.mxu0 0.0
      %508 = vmatpush1.msra.mxu0 0.0
      %509 = vmatprep.subr.mxu0 0.0
      %510 = vmatpush1.msra.mxu0 0.0
      %511 = vmatprep.subr.mxu0 0.0
      %512 = vmatpush1.msra.mxu0 0.0
      %513 = vmatprep.subr.mxu0 0.0
      %514 = vmatpush1.msra.mxu0 0.0
      %515 = vmatprep.subr.mxu0 0.0
      %516 = vmatpush1.msra.mxu0 0.0
      %517 = vmatprep.subr.mxu0 0.0
      %518 = vmatpush1.msra.mxu0 0.0
      %519 = vmatprep.subr.mxu0 0.0
      %520 = vmatpush1.msra.mxu0 0.0
      %521 = vmatprep.subr.mxu0 0.0
      %522 = vmatpush1.msra.mxu0 0.0
      %523 = vmatprep.subr.mxu0 0.0
      %524 = vmatpush1.msra.mxu0 0.0
      %525 = vmatprep.subr.mxu0 0.0
      %526 = vmatpush1.msra.mxu0 0.0
      %527 = vmatprep.subr.mxu0 0.0
      %528 = vmatpush1.msra.mxu0 0.0
      %529 = vmatprep.subr.mxu0 0.0
      %530 = vmatpush1.msra.mxu0 0.0
      %531 = vmatprep.subr.mxu0 0.0
      %532 = vmatpush1.msra.mxu0 0.0
      %533 = vmatprep.subr.mxu0 0.0
      %534 = vmatpush1.msra.mxu0 0.0
      %535 = vmatprep.mubr.f32.mxu0 0.0
      %536 = vmatmul.mubr.f32.gmra.mrb[0].mxu0 %v467
      %v537 = vpop.f32.mrb[0].mxu0
      %v538 = vadd.f32 0.0, %v537
      %v539 = vpop.f32.mrb[0].mxu0
      %540 = vdwg.mxu0
      %v541 = vadd.f32 %v445, %v538
      %543 = vrot.lane.b32.xlu0 %v541, 1
      %v544 = vpop.permute.xlu0 %543
      %vm546 = vcmask 150536
      %547 = vst.msk [vmem:[#allocation2] sm:$0xf] %vm546, %v544
      %v548 = vld [vmem:[#allocation2] sm:$0xf]
      %550 = vrot.lane.b32.xlu0 %v548, 127
      %v551 = vpop.permute.xlu0 %550
      %v553 = vsel %vm286, %v251, 0
      %v555 = vsel %vm290, %v551, 0
      %557 = vmatprep.subr.mxu0 0.0
      %558 = vmatpush1.msra.mxu0 %v555
      %559 = vmatprep.subr.mxu0 0.0
      %560 = vmatpush1.msra.mxu0 0.0
      %561 = vmatprep.subr.mxu0 0.0
      %562 = vmatpush1.msra.mxu0 0.0
      %563 = vmatprep.subr.mxu0 0.0
      %564 = vmatpush1.msra.mxu0 0.0
      %565 = vmatprep.subr.mxu0 0.0
      %566 = vmatpush1.msra.mxu0 0.0
      %567 = vmatprep.subr.mxu0 0.0
      %568 = vmatpush1.msra.mxu0 0.0
      %569 = vmatprep.subr.mxu0 0.0
      %570 = vmatpush1.msra.mxu0 0.0
      %571 = vmatprep.subr.mxu0 0.0
      %572 = vmatpush1.msra.mxu0 0.0
      %573 = vmatprep.subr.mxu0 0.0
      %574 = vmatpush1.msra.mxu0 0.0
      %575 = vmatprep.subr.mxu0 0.0
      %576 = vmatpush1.msra.mxu0 0.0
      %577 = vmatprep.subr.mxu0 0.0
      %578 = vmatpush1.msra.mxu0 0.0
      %579 = vmatprep.subr.mxu0 0.0
      %580 = vmatpush1.msra.mxu0 0.0
      %581 = vmatprep.subr.mxu0 0.0
      %582 = vmatpush1.msra.mxu0 0.0
      %583 = vmatprep.subr.mxu0 0.0
      %584 = vmatpush1.msra.mxu0 0.0
      %585 = vmatprep.subr.mxu0 0.0
      %586 = vmatpush1.msra.mxu0 0.0
      %587 = vmatprep.subr.mxu0 0.0
      %588 = vmatpush1.msra.mxu0 0.0
      %589 = vmatprep.subr.mxu0 0.0
      %590 = vmatpush1.msra.mxu0 0.0
      %591 = vmatprep.subr.mxu0 0.0
      %592 = vmatpush1.msra.mxu0 0.0
      %593 = vmatprep.subr.mxu0 0.0
      %594 = vmatpush1.msra.mxu0 0.0
      %595 = vmatprep.subr.mxu0 0.0
      %596 = vmatpush1.msra.mxu0 0.0
      %597 = vmatprep.subr.mxu0 0.0
      %598 = vmatpush1.msra.mxu0 0.0
      %599 = vmatprep.subr.mxu0 0.0
      %600 = vmatpush1.msra.mxu0 0.0
      %601 = vmatprep.subr.mxu0 0.0
      %602 = vmatpush1.msra.mxu0 0.0
      %603 = vmatprep.subr.mxu0 0.0
      %604 = vmatpush1.msra.mxu0 0.0
      %605 = vmatprep.subr.mxu0 0.0
      %606 = vmatpush1.msra.mxu0 0.0
      %607 = vmatprep.subr.mxu0 0.0
      %608 = vmatpush1.msra.mxu0 0.0
      %609 = vmatprep.subr.mxu0 0.0
      %610 = vmatpush1.msra.mxu0 0.0
      %611 = vmatprep.subr.mxu0 0.0
      %612 = vmatpush1.msra.mxu0 0.0
      %613 = vmatprep.subr.mxu0 0.0
      %614 = vmatpush1.msra.mxu0 0.0
      %615 = vmatprep.subr.mxu0 0.0
      %616 = vmatpush1.msra.mxu0 0.0
      %617 = vmatprep.subr.mxu0 0.0
      %618 = vmatpush1.msra.mxu0 0.0
      %619 = vmatprep.subr.mxu0 0.0
      %620 = vmatpush1.msra.mxu0 0.0
      %621 = vmatprep.mubr.f32.mxu0 0.0
      %622 = vmatmul.mubr.f32.gmra.mrb[0].mxu0 %v553
      %v623 = vpop.f32.mrb[0].mxu0
      %v624 = vadd.f32 0.0, %v623
      %v625 = vpop.f32.mrb[0].mxu0
      %626 = vdwg.mxu0
      %v628 = vsel %vm286, %v250, 0
      %v630 = vsel %vm290, %v548, 0
      %632 = vmatprep.subr.mxu0 0.0
      %633 = vmatpush1.msra.mxu0 %v630
      %634 = vmatprep.subr.mxu0 0.0
      %635 = vmatpush1.msra.mxu0 0.0
      %636 = vmatprep.subr.mxu0 0.0
      %637 = vmatpush1.msra.mxu0 0.0
      %638 = vmatprep.subr.mxu0 0.0
      %639 = vmatpush1.msra.mxu0 0.0
      %640 = vmatprep.subr.mxu0 0.0
      %641 = vmatpush1.msra.mxu0 0.0
      %642 = vmatprep.subr.mxu0 0.0
      %643 = vmatpush1.msra.mxu0 0.0
      %644 = vmatprep.subr.mxu0 0.0
      %645 = vmatpush1.msra.mxu0 0.0
      %646 = vmatprep.subr.mxu0 0.0
      %647 = vmatpush1.msra.mxu0 0.0
      %648 = vmatprep.subr.mxu0 0.0
      %649 = vmatpush1.msra.mxu0 0.0
      %650 = vmatprep.subr.mxu0 0.0
      %651 = vmatpush1.msra.mxu0 0.0
      %652 = vmatprep.subr.mxu0 0.0
      %653 = vmatpush1.msra.mxu0 0.0
      %654 = vmatprep.subr.mxu0 0.0
      %655 = vmatpush1.msra.mxu0 0.0
      %656 = vmatprep.subr.mxu0 0.0
      %657 = vmatpush1.msra.mxu0 0.0
      %658 = vmatprep.subr.mxu0 0.0
      %659 = vmatpush1.msra.mxu0 0.0
      %660 = vmatprep.subr.mxu0 0.0
      %661 = vmatpush1.msra.mxu0 0.0
      %662 = vmatprep.subr.mxu0 0.0
      %663 = vmatpush1.msra.mxu0 0.0
      %664 = vmatprep.subr.mxu0 0.0
      %665 = vmatpush1.msra.mxu0 0.0
      %666 = vmatprep.subr.mxu0 0.0
      %667 = vmatpush1.msra.mxu0 0.0
      %668 = vmatprep.subr.mxu0 0.0
      %669 = vmatpush1.msra.mxu0 0.0
      %670 = vmatprep.subr.mxu0 0.0
      %671 = vmatpush1.msra.mxu0 0.0
      %672 = vmatprep.subr.mxu0 0.0
      %673 = vmatpush1.msra.mxu0 0.0
      %674 = vmatprep.subr.mxu0 0.0
      %675 = vmatpush1.msra.mxu0 0.0
      %676 = vmatprep.subr.mxu0 0.0
      %677 = vmatpush1.msra.mxu0 0.0
      %678 = vmatprep.subr.mxu0 0.0
      %679 = vmatpush1.msra.mxu0 0.0
      %680 = vmatprep.subr.mxu0 0.0
      %681 = vmatpush1.msra.mxu0 0.0
      %682 = vmatprep.subr.mxu0 0.0
      %683 = vmatpush1.msra.mxu0 0.0
      %684 = vmatprep.subr.mxu0 0.0
      %685 = vmatpush1.msra.mxu0 0.0
      %686 = vmatprep.subr.mxu0 0.0
      %687 = vmatpush1.msra.mxu0 0.0
      %688 = vmatprep.subr.mxu0 0.0
      %689 = vmatpush1.msra.mxu0 0.0
      %690 = vmatprep.subr.mxu0 0.0
      %691 = vmatpush1.msra.mxu0 0.0
      %692 = vmatprep.subr.mxu0 0.0
      %693 = vmatpush1.msra.mxu0 0.0
      %694 = vmatprep.subr.mxu0 0.0
      %695 = vmatpush1.msra.mxu0 0.0
      %696 = vmatprep.mubr.f32.mxu0 0.0
      %697 = vmatmul.mubr.f32.gmra.mrb[0].mxu0 %v628
      %v698 = vpop.f32.mrb[0].mxu0
      %v699 = vadd.f32 %v624, %v698
      %v700 = vpop.f32.mrb[0].mxu0
      %701 = vdwg.mxu0
      %702 = vrot.lane.b32.xlu0 %v548, 126
      %v703 = vpop.permute.xlu0 %702
      %v705 = vsel %vm286, %v252, 0
      %v707 = vsel %vm290, %v703, 0
      %709 = vmatprep.subr.mxu0 0.0
      %710 = vmatpush1.msra.mxu0 %v707
      %711 = vmatprep.subr.mxu0 0.0
      %712 = vmatpush1.msra.mxu0 0.0
      %713 = vmatprep.subr.mxu0 0.0
      %714 = vmatpush1.msra.mxu0 0.0
      %715 = vmatprep.subr.mxu0 0.0
      %716 = vmatpush1.msra.mxu0 0.0
      %717 = vmatprep.subr.mxu0 0.0
      %718 = vmatpush1.msra.mxu0 0.0
      %719 = vmatprep.subr.mxu0 0.0
      %720 = vmatpush1.msra.mxu0 0.0
      %721 = vmatprep.subr.mxu0 0.0
      %722 = vmatpush1.msra.mxu0 0.0
      %723 = vmatprep.subr.mxu0 0.0
      %724 = vmatpush1.msra.mxu0 0.0
      %725 = vmatprep.subr.mxu0 0.0
      %726 = vmatpush1.msra.mxu0 0.0
      %727 = vmatprep.subr.mxu0 0.0
      %728 = vmatpush1.msra.mxu0 0.0
      %729 = vmatprep.subr.mxu0 0.0
      %730 = vmatpush1.msra.mxu0 0.0
      %731 = vmatprep.subr.mxu0 0.0
      %732 = vmatpush1.msra.mxu0 0.0
      %733 = vmatprep.subr.mxu0 0.0
      %734 = vmatpush1.msra.mxu0 0.0
      %735 = vmatprep.subr.mxu0 0.0
      %736 = vmatpush1.msra.mxu0 0.0
      %737 = vmatprep.subr.mxu0 0.0
      %738 = vmatpush1.msra.mxu0 0.0
      %739 = vmatprep.subr.mxu0 0.0
      %740 = vmatpush1.msra.mxu0 0.0
      %741 = vmatprep.subr.mxu0 0.0
      %742 = vmatpush1.msra.mxu0 0.0
      %743 = vmatprep.subr.mxu0 0.0
      %744 = vmatpush1.msra.mxu0 0.0
      %745 = vmatprep.subr.mxu0 0.0
      %746 = vmatpush1.msra.mxu0 0.0
      %747 = vmatprep.subr.mxu0 0.0
      %748 = vmatpush1.msra.mxu0 0.0
      %749 = vmatprep.subr.mxu0 0.0
      %750 = vmatpush1.msra.mxu0 0.0
      %751 = vmatprep.subr.mxu0 0.0
      %752 = vmatpush1.msra.mxu0 0.0
      %753 = vmatprep.subr.mxu0 0.0
      %754 = vmatpush1.msra.mxu0 0.0
      %755 = vmatprep.subr.mxu0 0.0
      %756 = vmatpush1.msra.mxu0 0.0
      %757 = vmatprep.subr.mxu0 0.0
      %758 = vmatpush1.msra.mxu0 0.0
      %759 = vmatprep.subr.mxu0 0.0
      %760 = vmatpush1.msra.mxu0 0.0
      %761 = vmatprep.subr.mxu0 0.0
      %762 = vmatpush1.msra.mxu0 0.0
      %763 = vmatprep.subr.mxu0 0.0
      %764 = vmatpush1.msra.mxu0 0.0
      %765 = vmatprep.subr.mxu0 0.0
      %766 = vmatpush1.msra.mxu0 0.0
      %767 = vmatprep.subr.mxu0 0.0
      %768 = vmatpush1.msra.mxu0 0.0
      %769 = vmatprep.subr.mxu0 0.0
      %770 = vmatpush1.msra.mxu0 0.0
      %771 = vmatprep.subr.mxu0 0.0
      %772 = vmatpush1.msra.mxu0 0.0
      %773 = vmatprep.mubr.f32.mxu0 0.0
      %774 = vmatmul.mubr.f32.gmra.mrb[0].mxu0 %v705
      %v775 = vpop.f32.mrb[0].mxu0
      %v776 = vadd.f32 0.0, %v775
      %v777 = vpop.f32.mrb[0].mxu0
      %778 = vdwg.mxu0
      %v779 = vadd.f32 %v699, %v776
      %v780 = vadd.f32 %v779, 0.0
      %v781 = vmul.f32 %v779, %v779
      %v782 = vadd.f32 %v781, 0.0
      %v783 = vpack.c.bf16 %v779, %v779
      %v785 = vunpack.c.l.b16 %v783
      %v786 = vpack.c.b16 %v785, %v785
      %787 = vrot.lane.b32.xlu0 %v786, 18
      %v788 = vpop.permute.xlu0 %787
      %vm790 = vcmask 289936
      %791 = vst.msk [vmem:[%s237] sm:$0xf] %vm790, %v788
      %v792 = vld [vmem:[%s232 + $0x1] sm:$0x1]
      %v793 = vld [vmem:[%s232 + $0x19] sm:$0x1]
      %v794 = vld [vmem:[%s232 + $0x31] sm:$0x1]
      %v795 = vld [vmem:[%s232 + $0x49] sm:$0x1]
      %v796 = vmax.f32 %v792, 0.0
      %v797 = vmax.f32 %v793, 0.0
      %v798 = vmax.f32 %v794, 0.0
      %v799 = vmax.f32 %v795, 0.0
      %v800 = vld [vmem:[%s232 + $0x2] sm:$0x1]
      %v801 = vld [vmem:[%s232 + $0x1a] sm:$0x1]
      %v802 = vld [vmem:[%s232 + $0x32] sm:$0x1]
      %v803 = vld [vmem:[%s232 + $0x4a] sm:$0x1]
      %v804 = vmax.f32 %v800, 0.0
      %v805 = vmax.f32 %v801, 0.0
      %v806 = vmax.f32 %v802, 0.0
      %v807 = vmax.f32 %v803, 0.0
      %v812 = vrot.slane %v805, 7
      %v813 = vsel %vm278, %v812, %v804
      %v814 = vrot.slane %v806, 6
      %v815 = vsel %vm281, %v814, %v813
      %v816 = vrot.slane %v807, 5
      %v817 = vsel %vm284, %v816, %v815
      %v818 = vsel %vm290, %v817, 0
      %820 = vmatprep.subr.mxu0 0.0
      %821 = vmatpush1.msra.mxu0 %v818
      %822 = vmatprep.subr.mxu0 0.0
      %823 = vmatpush1.msra.mxu0 0.0
      %824 = vmatprep.subr.mxu0 0.0
      %825 = vmatpush1.msra.mxu0 0.0
      %826 = vmatprep.subr.mxu0 0.0
      %827 = vmatpush1.msra.mxu0 0.0
      %828 = vmatprep.subr.mxu0 0.0
      %829 = vmatpush1.msra.mxu0 0.0
      %830 = vmatprep.subr.mxu0 0.0
      %831 = vmatpush1.msra.mxu0 0.0
      %832 = vmatprep.subr.mxu0 0.0
      %833 = vmatpush1.msra.mxu0 0.0
      %834 = vmatprep.subr.mxu0 0.0
      %835 = vmatpush1.msra.mxu0 0.0
      %836 = vmatprep.subr.mxu0 0.0
      %837 = vmatpush1.msra.mxu0 0.0
      %838 = vmatprep.subr.mxu0 0.0
      %839 = vmatpush1.msra.mxu0 0.0
      %840 = vmatprep.subr.mxu0 0.0
      %841 = vmatpush1.msra.mxu0 0.0
      %842 = vmatprep.subr.mxu0 0.0
      %843 = vmatpush1.msra.mxu0 0.0
      %844 = vmatprep.subr.mxu0 0.0
      %845 = vmatpush1.msra.mxu0 0.0
      %846 = vmatprep.subr.mxu0 0.0
      %847 = vmatpush1.msra.mxu0 0.0
      %848 = vmatprep.subr.mxu0 0.0
      %849 = vmatpush1.msra.mxu0 0.0
      %850 = vmatprep.subr.mxu0 0.0
      %851 = vmatpush1.msra.mxu0 0.0
      %852 = vmatprep.subr.mxu0 0.0
      %853 = vmatpush1.msra.mxu0 0.0
      %854 = vmatprep.subr.mxu0 0.0
      %855 = vmatpush1.msra.mxu0 0.0
      %856 = vmatprep.subr.mxu0 0.0
      %857 = vmatpush1.msra.mxu0 0.0
      %858 = vmatprep.subr.mxu0 0.0
      %859 = vmatpush1.msra.mxu0 0.0
      %860 = vmatprep.subr.mxu0 0.0
      %861 = vmatpush1.msra.mxu0 0.0
      %862 = vmatprep.subr.mxu0 0.0
      %863 = vmatpush1.msra.mxu0 0.0
      %864 = vmatprep.subr.mxu0 0.0
      %865 = vmatpush1.msra.mxu0 0.0
      %866 = vmatprep.subr.mxu0 0.0
      %867 = vmatpush1.msra.mxu0 0.0
      %868 = vmatprep.subr.mxu0 0.0
      %869 = vmatpush1.msra.mxu0 0.0
      %870 = vmatprep.subr.mxu0 0.0
      %871 = vmatpush1.msra.mxu0 0.0
      %872 = vmatprep.subr.mxu0 0.0
      %873 = vmatpush1.msra.mxu0 0.0
      %874 = vmatprep.subr.mxu0 0.0
      %875 = vmatpush1.msra.mxu0 0.0
      %876 = vmatprep.subr.mxu0 0.0
      %877 = vmatpush1.msra.mxu0 0.0
      %878 = vmatprep.subr.mxu0 0.0
      %879 = vmatpush1.msra.mxu0 0.0
      %880 = vmatprep.subr.mxu0 0.0
      %881 = vmatpush1.msra.mxu0 0.0
      %882 = vmatprep.subr.mxu0 0.0
      %883 = vmatpush1.msra.mxu0 0.0
      %884 = vmatprep.mubr.f32.mxu0 0.0
      %885 = vmatmul.mubr.f32.gmra.mrb[0].mxu0 %v288
      %v886 = vpop.f32.mrb[0].mxu0
      %v887 = vadd.f32 0.0, %v886
      %v888 = vpop.f32.mrb[0].mxu0
      %889 = vdwg.mxu0
      %v894 = vrot.slane %v797, 7
      %v895 = vsel %vm278, %v894, %v796
      %v896 = vrot.slane %v798, 6
      %v897 = vsel %vm281, %v896, %v895
      %v898 = vrot.slane %v799, 5
      %v899 = vsel %vm284, %v898, %v897
      %v900 = vsel %vm290, %v899, 0
      %902 = vmatprep.subr.mxu0 0.0
      %903 = vmatpush1.msra.mxu0 %v900
      %904 = vmatprep.subr.mxu0 0.0
      %905 = vmatpush1.msra.mxu0 0.0
      %906 = vmatprep.subr.mxu0 0.0
      %907 = vmatpush1.msra.mxu0 0.0
      %908 = vmatprep.subr.mxu0 0.0
      %909 = vmatpush1.msra.mxu0 0.0
      %910 = vmatprep.subr.mxu0 0.0
      %911 = vmatpush1.msra.mxu0 0.0
      %912 = vmatprep.subr.mxu0 0.0
      %913 = vmatpush1.msra.mxu0 0.0
      %914 = vmatprep.subr.mxu0 0.0
      %915 = vmatpush1.msra.mxu0 0.0
      %916 = vmatprep.subr.mxu0 0.0
      %917 = vmatpush1.msra.mxu0 0.0
      %918 = vmatprep.subr.mxu0 0.0
      %919 = vmatpush1.msra.mxu0 0.0
      %920 = vmatprep.subr.mxu0 0.0
      %921 = vmatpush1.msra.mxu0 0.0
      %922 = vmatprep.subr.mxu0 0.0
      %923 = vmatpush1.msra.mxu0 0.0
      %924 = vmatprep.subr.mxu0 0.0
      %925 = vmatpush1.msra.mxu0 0.0
      %926 = vmatprep.subr.mxu0 0.0
      %927 = vmatpush1.msra.mxu0 0.0
      %928 = vmatprep.subr.mxu0 0.0
      %929 = vmatpush1.msra.mxu0 0.0
      %930 = vmatprep.subr.mxu0 0.0
      %931 = vmatpush1.msra.mxu0 0.0
      %932 = vmatprep.subr.mxu0 0.0
      %933 = vmatpush1.msra.mxu0 0.0
      %934 = vmatprep.subr.mxu0 0.0
      %935 = vmatpush1.msra.mxu0 0.0
      %936 = vmatprep.subr.mxu0 0.0
      %937 = vmatpush1.msra.mxu0 0.0
      %938 = vmatprep.subr.mxu0 0.0
      %939 = vmatpush1.msra.mxu0 0.0
      %940 = vmatprep.subr.mxu0 0.0
      %941 = vmatpush1.msra.mxu0 0.0
      %942 = vmatprep.subr.mxu0 0.0
      %943 = vmatpush1.msra.mxu0 0.0
      %944 = vmatprep.subr.mxu0 0.0
      %945 = vmatpush1.msra.mxu0 0.0
      %946 = vmatprep.subr.mxu0 0.0
      %947 = vmatpush1.msra.mxu0 0.0
      %948 = vmatprep.subr.mxu0 0.0
      %949 = vmatpush1.msra.mxu0 0.0
      %950 = vmatprep.subr.mxu0 0.0
      %951 = vmatpush1.msra.mxu0 0.0
      %952 = vmatprep.subr.mxu0 0.0
      %953 = vmatpush1.msra.mxu0 0.0
      %954 = vmatprep.subr.mxu0 0.0
      %955 = vmatpush1.msra.mxu0 0.0
      %956 = vmatprep.subr.mxu0 0.0
      %957 = vmatpush1.msra.mxu0 0.0
      %958 = vmatprep.subr.mxu0 0.0
      %959 = vmatpush1.msra.mxu0 0.0
      %960 = vmatprep.subr.mxu0 0.0
      %961 = vmatpush1.msra.mxu0 0.0
      %962 = vmatprep.subr.mxu0 0.0
      %963 = vmatpush1.msra.mxu0 0.0
      %964 = vmatprep.subr.mxu0 0.0
      %965 = vmatpush1.msra.mxu0 0.0
      %966 = vmatprep.mubr.f32.mxu0 0.0
      %967 = vmatmul.mubr.f32.gmra.mrb[0].mxu0 %v374
      %v968 = vpop.f32.mrb[0].mxu0
      %v969 = vadd.f32 %v887, %v968
      %v970 = vpop.f32.mrb[0].mxu0
      %971 = vdwg.mxu0
      %v972 = vld [vmem:[%s232 + $0x3] sm:$0x1]
      %v973 = vld [vmem:[%s232 + $0x1b] sm:$0x1]
      %v974 = vld [vmem:[%s232 + $0x33] sm:$0x1]
      %v975 = vld [vmem:[%s232 + $0x4b] sm:$0x1]
      %v976 = vmax.f32 %v972, 0.0
      %v977 = vmax.f32 %v973, 0.0
      %v978 = vmax.f32 %v974, 0.0
      %v979 = vmax.f32 %v975, 0.0
      %v984 = vrot.slane %v977, 7
      %v985 = vsel %vm278, %v984, %v976
      %v986 = vrot.slane %v978, 6
      %v987 = vsel %vm281, %v986, %v985
      %v988 = vrot.slane %v979, 5
      %v989 = vsel %vm284, %v988, %v987
      %v990 = vsel %vm290, %v989, 0
      %992 = vmatprep.subr.mxu0 0.0
      %993 = vmatpush1.msra.mxu0 %v990
      %994 = vmatprep.subr.mxu0 0.0
      %995 = vmatpush1.msra.mxu0 0.0
      %996 = vmatprep.subr.mxu0 0.0
      %997 = vmatpush1.msra.mxu0 0.0
      %998 = vmatprep.subr.mxu0 0.0
      %999 = vmatpush1.msra.mxu0 0.0
      %1000 = vmatprep.subr.mxu0 0.0
      %1001 = vmatpush1.msra.mxu0 0.0
      %1002 = vmatprep.subr.mxu0 0.0
      %1003 = vmatpush1.msra.mxu0 0.0
      %1004 = vmatprep.subr.mxu0 0.0
      %1005 = vmatpush1.msra.mxu0 0.0
      %1006 = vmatprep.subr.mxu0 0.0
      %1007 = vmatpush1.msra.mxu0 0.0
      %1008 = vmatprep.subr.mxu0 0.0
      %1009 = vmatpush1.msra.mxu0 0.0
      %1010 = vmatprep.subr.mxu0 0.0
      %1011 = vmatpush1.msra.mxu0 0.0
      %1012 = vmatprep.subr.mxu0 0.0
      %1013 = vmatpush1.msra.mxu0 0.0
      %1014 = vmatprep.subr.mxu0 0.0
      %1015 = vmatpush1.msra.mxu0 0.0
      %1016 = vmatprep.subr.mxu0 0.0
      %1017 = vmatpush1.msra.mxu0 0.0
      %1018 = vmatprep.subr.mxu0 0.0
      %1019 = vmatpush1.msra.mxu0 0.0
      %1020 = vmatprep.subr.mxu0 0.0
      %1021 = vmatpush1.msra.mxu0 0.0
      %1022 = vmatprep.subr.mxu0 0.0
      %1023 = vmatpush1.msra.mxu0 0.0
      %1024 = vmatprep.subr.mxu0 0.0
      %1025 = vmatpush1.msra.mxu0 0.0
      %1026 = vmatprep.subr.mxu0 0.0
      %1027 = vmatpush1.msra.mxu0 0.0
      %1028 = vmatprep.subr.mxu0 0.0
      %1029 = vmatpush1.msra.mxu0 0.0
      %1030 = vmatprep.subr.mxu0 0.0
      %1031 = vmatpush1.msra.mxu0 0.0
      %1032 = vmatprep.subr.mxu0 0.0
      %1033 = vmatpush1.msra.mxu0 0.0
      %1034 = vmatprep.subr.mxu0 0.0
      %1035 = vmatpush1.msra.mxu0 0.0
      %1036 = vmatprep.subr.mxu0 0.0
      %1037 = vmatpush1.msra.mxu0 0.0
      %1038 = vmatprep.subr.mxu0 0.0
      %1039 = vmatpush1.msra.mxu0 0.0
      %1040 = vmatprep.subr.mxu0 0.0
      %1041 = vmatpush1.msra.mxu0 0.0
      %1042 = vmatprep.subr.mxu0 0.0
      %1043 = vmatpush1.msra.mxu0 0.0
      %1044 = vmatprep.subr.mxu0 0.0
      %1045 = vmatpush1.msra.mxu0 0.0
      %1046 = vmatprep.subr.mxu0 0.0
      %1047 = vmatpush1.msra.mxu0 0.0
      %1048 = vmatprep.subr.mxu0 0.0
      %1049 = vmatpush1.msra.mxu0 0.0
      %1050 = vmatprep.subr.mxu0 0.0
      %1051 = vmatpush1.msra.mxu0 0.0
      %1052 = vmatprep.subr.mxu0 0.0
      %1053 = vmatpush1.msra.mxu0 0.0
      %1054 = vmatprep.subr.mxu0 0.0
      %1055 = vmatpush1.msra.mxu0 0.0
      %1056 = vmatprep.mubr.f32.mxu0 0.0
      %1057 = vmatmul.mubr.f32.gmra.mrb[0].mxu0 %v467
      %v1058 = vpop.f32.mrb[0].mxu0
      %v1059 = vadd.f32 0.0, %v1058
      %v1060 = vpop.f32.mrb[0].mxu0
      %1061 = vdwg.mxu0
      %v1062 = vadd.f32 %v969, %v1059
      %1064 = vrot.lane.b32.xlu0 %v1062, 1
      %v1065 = vpop.permute.xlu0 %1064
      %1067 = vst.msk [vmem:[#allocation2] sm:$0xf] %vm546, %v1065
      %v1068 = vld [vmem:[#allocation2] sm:$0xf]
      %1070 = vrot.lane.b32.xlu0 %v1068, 127
      %v1071 = vpop.permute.xlu0 %1070
      %v1072 = vsel %vm290, %v1071, 0
      %1074 = vmatprep.subr.mxu0 0.0
      %1075 = vmatpush1.msra.mxu0 %v1072
      %1076 = vmatprep.subr.mxu0 0.0
      %1077 = vmatpush1.msra.mxu0 0.0
      %1078 = vmatprep.subr.mxu0 0.0
      %1079 = vmatpush1.msra.mxu0 0.0
      %1080 = vmatprep.subr.mxu0 0.0
      %1081 = vmatpush1.msra.mxu0 0.0
      %1082 = vmatprep.subr.mxu0 0.0
      %1083 = vmatpush1.msra.mxu0 0.0
      %1084 = vmatprep.subr.mxu0 0.0
      %1085 = vmatpush1.msra.mxu0 0.0
      %1086 = vmatprep.subr.mxu0 0.0
      %1087 = vmatpush1.msra.mxu0 0.0
      %1088 = vmatprep.subr.mxu0 0.0
      %1089 = vmatpush1.msra.mxu0 0.0
      %1090 = vmatprep.subr.mxu0 0.0
      %1091 = vmatpush1.msra.mxu0 0.0
      %1092 = vmatprep.subr.mxu0 0.0
      %1093 = vmatpush1.msra.mxu0 0.0
      %1094 = vmatprep.subr.mxu0 0.0
      %1095 = vmatpush1.msra.mxu0 0.0
      %1096 = vmatprep.subr.mxu0 0.0
      %1097 = vmatpush1.msra.mxu0 0.0
      %1098 = vmatprep.subr.mxu0 0.0
      %1099 = vmatpush1.msra.mxu0 0.0
      %1100 = vmatprep.subr.mxu0 0.0
      %1101 = vmatpush1.msra.mxu0 0.0
      %1102 = vmatprep.subr.mxu0 0.0
      %1103 = vmatpush1.msra.mxu0 0.0
      %1104 = vmatprep.subr.mxu0 0.0
      %1105 = vmatpush1.msra.mxu0 0.0
      %1106 = vmatprep.subr.mxu0 0.0
      %1107 = vmatpush1.msra.mxu0 0.0
      %1108 = vmatprep.subr.mxu0 0.0
      %1109 = vmatpush1.msra.mxu0 0.0
      %1110 = vmatprep.subr.mxu0 0.0
      %1111 = vmatpush1.msra.mxu0 0.0
      %1112 = vmatprep.subr.mxu0 0.0
      %1113 = vmatpush1.msra.mxu0 0.0
      %1114 = vmatprep.subr.mxu0 0.0
      %1115 = vmatpush1.msra.mxu0 0.0
      %1116 = vmatprep.subr.mxu0 0.0
      %1117 = vmatpush1.msra.mxu0 0.0
      %1118 = vmatprep.subr.mxu0 0.0
      %1119 = vmatpush1.msra.mxu0 0.0
      %1120 = vmatprep.subr.mxu0 0.0
      %1121 = vmatpush1.msra.mxu0 0.0
      %1122 = vmatprep.subr.mxu0 0.0
      %1123 = vmatpush1.msra.mxu0 0.0
      %1124 = vmatprep.subr.mxu0 0.0
      %1125 = vmatpush1.msra.mxu0 0.0
      %1126 = vmatprep.subr.mxu0 0.0
      %1127 = vmatpush1.msra.mxu0 0.0
      %1128 = vmatprep.subr.mxu0 0.0
      %1129 = vmatpush1.msra.mxu0 0.0
      %1130 = vmatprep.subr.mxu0 0.0
      %1131 = vmatpush1.msra.mxu0 0.0
      %1132 = vmatprep.subr.mxu0 0.0
      %1133 = vmatpush1.msra.mxu0 0.0
      %1134 = vmatprep.subr.mxu0 0.0
      %1135 = vmatpush1.msra.mxu0 0.0
      %1136 = vmatprep.subr.mxu0 0.0
      %1137 = vmatpush1.msra.mxu0 0.0
      %1138 = vmatprep.mubr.f32.mxu0 0.0
      %1139 = vmatmul.mubr.f32.gmra.mrb[0].mxu0 %v553
      %v1140 = vpop.f32.mrb[0].mxu0
      %v1141 = vadd.f32 0.0, %v1140
      %v1142 = vpop.f32.mrb[0].mxu0
      %1143 = vdwg.mxu0
      %v1144 = vsel %vm290, %v1068, 0
      %1146 = vmatprep.subr.mxu0 0.0
      %1147 = vmatpush1.msra.mxu0 %v1144
      %1148 = vmatprep.subr.mxu0 0.0
      %1149 = vmatpush1.msra.mxu0 0.0
      %1150 = vmatprep.subr.mxu0 0.0
      %1151 = vmatpush1.msra.mxu0 0.0
      %1152 = vmatprep.subr.mxu0 0.0
      %1153 = vmatpush1.msra.mxu0 0.0
      %1154 = vmatprep.subr.mxu0 0.0
      %1155 = vmatpush1.msra.mxu0 0.0
      %1156 = vmatprep.subr.mxu0 0.0
      %1157 = vmatpush1.msra.mxu0 0.0
      %1158 = vmatprep.subr.mxu0 0.0
      %1159 = vmatpush1.msra.mxu0 0.0
      %1160 = vmatprep.subr.mxu0 0.0
      %1161 = vmatpush1.msra.mxu0 0.0
      %1162 = vmatprep.subr.mxu0 0.0
      %1163 = vmatpush1.msra.mxu0 0.0
      %1164 = vmatprep.subr.mxu0 0.0
      %1165 = vmatpush1.msra.mxu0 0.0
      %1166 = vmatprep.subr.mxu0 0.0
      %1167 = vmatpush1.msra.mxu0 0.0
      %1168 = vmatprep.subr.mxu0 0.0
      %1169 = vmatpush1.msra.mxu0 0.0
      %1170 = vmatprep.subr.mxu0 0.0
      %1171 = vmatpush1.msra.mxu0 0.0
      %1172 = vmatprep.subr.mxu0 0.0
      %1173 = vmatpush1.msra.mxu0 0.0
      %1174 = vmatprep.subr.mxu0 0.0
      %1175 = vmatpush1.msra.mxu0 0.0
      %1176 = vmatprep.subr.mxu0 0.0
      %1177 = vmatpush1.msra.mxu0 0.0
      %1178 = vmatprep.subr.mxu0 0.0
      %1179 = vmatpush1.msra.mxu0 0.0
      %1180 = vmatprep.subr.mxu0 0.0
      %1181 = vmatpush1.msra.mxu0 0.0
      %1182 = vmatprep.subr.mxu0 0.0
      %1183 = vmatpush1.msra.mxu0 0.0
      %1184 = vmatprep.subr.mxu0 0.0
      %1185 = vmatpush1.msra.mxu0 0.0
      %1186 = vmatprep.subr.mxu0 0.0
      %1187 = vmatpush1.msra.mxu0 0.0
      %1188 = vmatprep.subr.mxu0 0.0
      %1189 = vmatpush1.msra.mxu0 0.0
      %1190 = vmatprep.subr.mxu0 0.0
      %1191 = vmatpush1.msra.mxu0 0.0
      %1192 = vmatprep.subr.mxu0 0.0
      %1193 = vmatpush1.msra.mxu0 0.0
      %1194 = vmatprep.subr.mxu0 0.0
      %1195 = vmatpush1.msra.mxu0 0.0
      %1196 = vmatprep.subr.mxu0 0.0
      %1197 = vmatpush1.msra.mxu0 0.0
      %1198 = vmatprep.subr.mxu0 0.0
      %1199 = vmatpush1.msra.mxu0 0.0
      %1200 = vmatprep.subr.mxu0 0.0
      %1201 = vmatpush1.msra.mxu0 0.0
      %1202 = vmatprep.subr.mxu0 0.0
      %1203 = vmatpush1.msra.mxu0 0.0
      %1204 = vmatprep.subr.mxu0 0.0
      %1205 = vmatpush1.msra.mxu0 0.0
      %1206 = vmatprep.subr.mxu0 0.0
      %1207 = vmatpush1.msra.mxu0 0.0
      %1208 = vmatprep.subr.mxu0 0.0
      %1209 = vmatpush1.msra.mxu0 0.0
      %1210 = vmatprep.mubr.f32.mxu0 0.0
      %1211 = vmatmul.mubr.f32.gmra.mrb[0].mxu0 %v628
      %v1212 = vpop.f32.mrb[0].mxu0
      %v1213 = vadd.f32 %v1141, %v1212
      %v1214 = vpop.f32.mrb[0].mxu0
      %1215 = vdwg.mxu0
      %1216 = vrot.lane.b32.xlu0 %v1068, 126
      %v1217 = vpop.permute.xlu0 %1216
      %v1218 = vsel %vm290, %v1217, 0
      %1220 = vmatprep.subr.mxu0 0.0
      %1221 = vmatpush1.msra.mxu0 %v1218
      %1222 = vmatprep.subr.mxu0 0.0
      %1223 = vmatpush1.msra.mxu0 0.0
      %1224 = vmatprep.subr.mxu0 0.0
      %1225 = vmatpush1.msra.mxu0 0.0
      %1226 = vmatprep.subr.mxu0 0.0
      %1227 = vmatpush1.msra.mxu0 0.0
      %1228 = vmatprep.subr.mxu0 0.0
      %1229 = vmatpush1.msra.mxu0 0.0
      %1230 = vmatprep.subr.mxu0 0.0
      %1231 = vmatpush1.msra.mxu0 0.0
      %1232 = vmatprep.subr.mxu0 0.0
      %1233 = vmatpush1.msra.mxu0 0.0
      %1234 = vmatprep.subr.mxu0 0.0
      %1235 = vmatpush1.msra.mxu0 0.0
      %1236 = vmatprep.subr.mxu0 0.0
      %1237 = vmatpush1.msra.mxu0 0.0
      %1238 = vmatprep.subr.mxu0 0.0
      %1239 = vmatpush1.msra.mxu0 0.0
      %1240 = vmatprep.subr.mxu0 0.0
      %1241 = vmatpush1.msra.mxu0 0.0
      %1242 = vmatprep.subr.mxu0 0.0
      %1243 = vmatpush1.msra.mxu0 0.0
      %1244 = vmatprep.subr.mxu0 0.0
      %1245 = vmatpush1.msra.mxu0 0.0
      %1246 = vmatprep.subr.mxu0 0.0
      %1247 = vmatpush1.msra.mxu0 0.0
      %1248 = vmatprep.subr.mxu0 0.0
      %1249 = vmatpush1.msra.mxu0 0.0
      %1250 = vmatprep.subr.mxu0 0.0
      %1251 = vmatpush1.msra.mxu0 0.0
      %1252 = vmatprep.subr.mxu0 0.0
      %1253 = vmatpush1.msra.mxu0 0.0
      %1254 = vmatprep.subr.mxu0 0.0
      %1255 = vmatpush1.msra.mxu0 0.0
      %1256 = vmatprep.subr.mxu0 0.0
      %1257 = vmatpush1.msra.mxu0 0.0
      %1258 = vmatprep.subr.mxu0 0.0
      %1259 = vmatpush1.msra.mxu0 0.0
      %1260 = vmatprep.subr.mxu0 0.0
      %1261 = vmatpush1.msra.mxu0 0.0
      %1262 = vmatprep.subr.mxu0 0.0
      %1263 = vmatpush1.msra.mxu0 0.0
      %1264 = vmatprep.subr.mxu0 0.0
      %1265 = vmatpush1.msra.mxu0 0.0
      %1266 = vmatprep.subr.mxu0 0.0
      %1267 = vmatpush1.msra.mxu0 0.0
      %1268 = vmatprep.subr.mxu0 0.0
      %1269 = vmatpush1.msra.mxu0 0.0
      %1270 = vmatprep.subr.mxu0 0.0
      %1271 = vmatpush1.msra.mxu0 0.0
      %1272 = vmatprep.subr.mxu0 0.0
      %1273 = vmatpush1.msra.mxu0 0.0
      %1274 = vmatprep.subr.mxu0 0.0
      %1275 = vmatpush1.msra.mxu0 0.0
      %1276 = vmatprep.subr.mxu0 0.0
      %1277 = vmatpush1.msra.mxu0 0.0
      %1278 = vmatprep.subr.mxu0 0.0
      %1279 = vmatpush1.msra.mxu0 0.0
      %1280 = vmatprep.subr.mxu0 0.0
      %1281 = vmatpush1.msra.mxu0 0.0
      %1282 = vmatprep.subr.mxu0 0.0
      %1283 = vmatpush1.msra.mxu0 0.0
      %1284 = vmatprep.mubr.f32.mxu0 0.0
      %1285 = vmatmul.mubr.f32.gmra.mrb[0].mxu0 %v705
      %v1286 = vpop.f32.mrb[0].mxu0
      %v1287 = vadd.f32 0.0, %v1286
      %v1288 = vpop.f32.mrb[0].mxu0
      %1289 = vdwg.mxu0
      %v1290 = vadd.f32 %v1213, %v1287
      %v1291 = vadd.f32 %v780, %v1290
      %v1292 = vmul.f32 %v1290, %v1290
      %v1293 = vadd.f32 %v782, %v1292
      %v1294 = vpack.c.bf16 %v1290, %v1290
      %v1296 = vunpack.c.l.b16 %v1294
      %v1297 = vpack.c.b16 %v1296, %v1296
      %1298 = vrot.lane.b32.xlu0 %v1297, 36
      %v1299 = vpop.permute.xlu0 %1298
      %vm1301 = vcmask 437536
      %1302 = vst.msk [vmem:[%s237] sm:$0xf] %vm1301, %v1299
      %v1303 = vld [vmem:[%s232 + $0x2] sm:$0x1]
      %v1304 = vld [vmem:[%s232 + $0x1a] sm:$0x1]
      %v1305 = vld [vmem:[%s232 + $0x32] sm:$0x1]
      %v1306 = vld [vmem:[%s232 + $0x4a] sm:$0x1]
      %v1307 = vmax.f32 %v1303, 0.0
      %v1308 = vmax.f32 %v1304, 0.0
      %v1309 = vmax.f32 %v1305, 0.0
      %v1310 = vmax.f32 %v1306, 0.0
      %v1311 = vld [vmem:[%s232 + $0x3] sm:$0x1]
      %v1312 = vld [vmem:[%s232 + $0x1b] sm:$0x1]
      %v1313 = vld [vmem:[%s232 + $0x33] sm:$0x1]
      %v1314 = vld [vmem:[%s232 + $0x4b] sm:$0x1]
      %v1315 = vmax.f32 %v1311, 0.0
      %v1316 = vmax.f32 %v1312, 0.0
      %v1317 = vmax.f32 %v1313, 0.0
      %v1318 = vmax.f32 %v1314, 0.0
      %v1323 = vrot.slane %v1316, 7
      %v1324 = vsel %vm278, %v1323, %v1315
      %v1325 = vrot.slane %v1317, 6
      %v1326 = vsel %vm281, %v1325, %v1324
      %v1327 = vrot.slane %v1318, 5
      %v1328 = vsel %vm284, %v1327, %v1326
      %v1329 = vsel %vm290, %v1328, 0
      %1331 = vmatprep.subr.mxu0 0.0
      %1332 = vmatpush1.msra.mxu0 %v1329
      %1333 = vmatprep.subr.mxu0 0.0
      %1334 = vmatpush1.msra.mxu0 0.0
      %1335 = vmatprep.subr.mxu0 0.0
      %1336 = vmatpush1.msra.mxu0 0.0
      %1337 = vmatprep.subr.mxu0 0.0
      %1338 = vmatpush1.msra.mxu0 0.0
      %1339 = vmatprep.subr.mxu0 0.0
      %1340 = vmatpush1.msra.mxu0 0.0
      %1341 = vmatprep.subr.mxu0 0.0
      %1342 = vmatpush1.msra.mxu0 0.0
      %1343 = vmatprep.subr.mxu0 0.0
      %1344 = vmatpush1.msra.mxu0 0.0
      %1345 = vmatprep.subr.mxu0 0.0
      %1346 = vmatpush1.msra.mxu0 0.0
      %1347 = vmatprep.subr.mxu0 0.0
      %1348 = vmatpush1.msra.mxu0 0.0
      %1349 = vmatprep.subr.mxu0 0.0
      %1350 = vmatpush1.msra.mxu0 0.0
      %1351 = vmatprep.subr.mxu0 0.0
      %1352 = vmatpush1.msra.mxu0 0.0
      %1353 = vmatprep.subr.mxu0 0.0
      %1354 = vmatpush1.msra.mxu0 0.0
      %1355 = vmatprep.subr.mxu0 0.0
      %1356 = vmatpush1.msra.mxu0 0.0
      %1357 = vmatprep.subr.mxu0 0.0
      %1358 = vmatpush1.msra.mxu0 0.0
      %1359 = vmatprep.subr.mxu0 0.0
      %1360 = vmatpush1.msra.mxu0 0.0
      %1361 = vmatprep.subr.mxu0 0.0
      %1362 = vmatpush1.msra.mxu0 0.0
      %1363 = vmatprep.subr.mxu0 0.0
      %1364 = vmatpush1.msra.mxu0 0.0
      %1365 = vmatprep.subr.mxu0 0.0
      %1366 = vmatpush1.msra.mxu0 0.0
      %1367 = vmatprep.subr.mxu0 0.0
      %1368 = vmatpush1.msra.mxu0 0.0
      %1369 = vmatprep.subr.mxu0 0.0
      %1370 = vmatpush1.msra.mxu0 0.0
      %1371 = vmatprep.subr.mxu0 0.0
      %1372 = vmatpush1.msra.mxu0 0.0
      %1373 = vmatprep.subr.mxu0 0.0
      %1374 = vmatpush1.msra.mxu0 0.0
      %1375 = vmatprep.subr.mxu0 0.0
      %1376 = vmatpush1.msra.mxu0 0.0
      %1377 = vmatprep.subr.mxu0 0.0
      %1378 = vmatpush1.msra.mxu0 0.0
      %1379 = vmatprep.subr.mxu0 0.0
      %1380 = vmatpush1.msra.mxu0 0.0
      %1381 = vmatprep.subr.mxu0 0.0
      %1382 = vmatpush1.msra.mxu0 0.0
      %1383 = vmatprep.subr.mxu0 0.0
      %1384 = vmatpush1.msra.mxu0 0.0
      %1385 = vmatprep.subr.mxu0 0.0
      %1386 = vmatpush1.msra.mxu0 0.0
      %1387 = vmatprep.subr.mxu0 0.0
      %1388 = vmatpush1.msra.mxu0 0.0
      %1389 = vmatprep.subr.mxu0 0.0
      %1390 = vmatpush1.msra.mxu0 0.0
      %1391 = vmatprep.subr.mxu0 0.0
      %1392 = vmatpush1.msra.mxu0 0.0
      %1393 = vmatprep.subr.mxu0 0.0
      %1394 = vmatpush1.msra.mxu0 0.0
      %1395 = vmatprep.mubr.f32.mxu0 0.0
      %1396 = vmatmul.mubr.f32.gmra.mrb[0].mxu0 %v288
      %v1397 = vpop.f32.mrb[0].mxu0
      %v1398 = vadd.f32 0.0, %v1397
      %v1399 = vpop.f32.mrb[0].mxu0
      %1400 = vdwg.mxu0
      %v1405 = vrot.slane %v1308, 7
      %v1406 = vsel %vm278, %v1405, %v1307
      %v1407 = vrot.slane %v1309, 6
      %v1408 = vsel %vm281, %v1407, %v1406
      %v1409 = vrot.slane %v1310, 5
      %v1410 = vsel %vm284, %v1409, %v1408
      %v1411 = vsel %vm290, %v1410, 0
      %1413 = vmatprep.subr.mxu0 0.0
      %1414 = vmatpush1.msra.mxu0 %v1411
      %1415 = vmatprep.subr.mxu0 0.0
      %1416 = vmatpush1.msra.mxu0 0.0
      %1417 = vmatprep.subr.mxu0 0.0
      %1418 = vmatpush1.msra.mxu0 0.0
      %1419 = vmatprep.subr.mxu0 0.0
      %1420 = vmatpush1.msra.mxu0 0.0
      %1421 = vmatprep.subr.mxu0 0.0
      %1422 = vmatpush1.msra.mxu0 0.0
      %1423 = vmatprep.subr.mxu0 0.0
      %1424 = vmatpush1.msra.mxu0 0.0
      %1425 = vmatprep.subr.mxu0 0.0
      %1426 = vmatpush1.msra.mxu0 0.0
      %1427 = vmatprep.subr.mxu0 0.0
      %1428 = vmatpush1.msra.mxu0 0.0
      %1429 = vmatprep.subr.mxu0 0.0
      %1430 = vmatpush1.msra.mxu0 0.0
      %1431 = vmatprep.subr.mxu0 0.0
      %1432 = vmatpush1.msra.mxu0 0.0
      %1433 = vmatprep.subr.mxu0 0.0
      %1434 = vmatpush1.msra.mxu0 0.0
      %1435 = vmatprep.subr.mxu0 0.0
      %1436 = vmatpush1.msra.mxu0 0.0
      %1437 = vmatprep.subr.mxu0 0.0
      %1438 = vmatpush1.msra.mxu0 0.0
      %1439 = vmatprep.subr.mxu0 0.0
      %1440 = vmatpush1.msra.mxu0 0.0
      %1441 = vmatprep.subr.mxu0 0.0
      %1442 = vmatpush1.msra.mxu0 0.0
      %1443 = vmatprep.subr.mxu0 0.0
      %1444 = vmatpush1.msra.mxu0 0.0
      %1445 = vmatprep.subr.mxu0 0.0
      %1446 = vmatpush1.msra.mxu0 0.0
      %1447 = vmatprep.subr.mxu0 0.0
      %1448 = vmatpush1.msra.mxu0 0.0
      %1449 = vmatprep.subr.mxu0 0.0
      %1450 = vmatpush1.msra.mxu0 0.0
      %1451 = vmatprep.subr.mxu0 0.0
      %1452 = vmatpush1.msra.mxu0 0.0
      %1453 = vmatprep.subr.mxu0 0.0
      %1454 = vmatpush1.msra.mxu0 0.0
      %1455 = vmatprep.subr.mxu0 0.0
      %1456 = vmatpush1.msra.mxu0 0.0
      %1457 = vmatprep.subr.mxu0 0.0
      %1458 = vmatpush1.msra.mxu0 0.0
      %1459 = vmatprep.subr.mxu0 0.0
      %1460 = vmatpush1.msra.mxu0 0.0
      %1461 = vmatprep.subr.mxu0 0.0
      %1462 = vmatpush1.msra.mxu0 0.0
      %1463 = vmatprep.subr.mxu0 0.0
      %1464 = vmatpush1.msra.mxu0 0.0
      %1465 = vmatprep.subr.mxu0 0.0
      %1466 = vmatpush1.msra.mxu0 0.0
      %1467 = vmatprep.subr.mxu0 0.0
      %1468 = vmatpush1.msra.mxu0 0.0
      %1469 = vmatprep.subr.mxu0 0.0
      %1470 = vmatpush1.msra.mxu0 0.0
      %1471 = vmatprep.subr.mxu0 0.0
      %1472 = vmatpush1.msra.mxu0 0.0
      %1473 = vmatprep.subr.mxu0 0.0
      %1474 = vmatpush1.msra.mxu0 0.0
      %1475 = vmatprep.subr.mxu0 0.0
      %1476 = vmatpush1.msra.mxu0 0.0
      %1477 = vmatprep.mubr.f32.mxu0 0.0
      %1478 = vmatmul.mubr.f32.gmra.mrb[0].mxu0 %v374
      %v1479 = vpop.f32.mrb[0].mxu0
      %v1480 = vadd.f32 %v1398, %v1479
      %v1481 = vpop.f32.mrb[0].mxu0
      %1482 = vdwg.mxu0
      %v1483 = vld [vmem:[%s232 + $0x4] sm:$0x1]
      %v1484 = vld [vmem:[%s232 + $0x1c] sm:$0x1]
      %v1485 = vld [vmem:[%s232 + $0x34] sm:$0x1]
      %v1486 = vld [vmem:[%s232 + $0x4c] sm:$0x1]
      %v1487 = vmax.f32 %v1483, 0.0
      %v1488 = vmax.f32 %v1484, 0.0
      %v1489 = vmax.f32 %v1485, 0.0
      %v1490 = vmax.f32 %v1486, 0.0
      %v1495 = vrot.slane %v1488, 7
      %v1496 = vsel %vm278, %v1495, %v1487
      %v1497 = vrot.slane %v1489, 6
      %v1498 = vsel %vm281, %v1497, %v1496
      %v1499 = vrot.slane %v1490, 5
      %v1500 = vsel %vm284, %v1499, %v1498
      %v1501 = vsel %vm290, %v1500, 0
      %1503 = vmatprep.subr.mxu0 0.0
      %1504 = vmatpush1.msra.mxu0 %v1501
      %1505 = vmatprep.subr.mxu0 0.0
      %1506 = vmatpush1.msra.mxu0 0.0
      %1507 = vmatprep.subr.mxu0 0.0
      %1508 = vmatpush1.msra.mxu0 0.0
      %1509 = vmatprep.subr.mxu0 0.0
      %1510 = vmatpush1.msra.mxu0 0.0
      %1511 = vmatprep.subr.mxu0 0.0
      %1512 = vmatpush1.msra.mxu0 0.0
      %1513 = vmatprep.subr.mxu0 0.0
      %1514 = vmatpush1.msra.mxu0 0.0
      %1515 = vmatprep.subr.mxu0 0.0
      %1516 = vmatpush1.msra.mxu0 0.0
      %1517 = vmatprep.subr.mxu0 0.0
      %1518 = vmatpush1.msra.mxu0 0.0
      %1519 = vmatprep.subr.mxu0 0.0
      %1520 = vmatpush1.msra.mxu0 0.0
      %1521 = vmatprep.subr.mxu0 0.0
      %1522 = vmatpush1.msra.mxu0 0.0
      %1523 = vmatprep.subr.mxu0 0.0
      %1524 = vmatpush1.msra.mxu0 0.0
      %1525 = vmatprep.subr.mxu0 0.0
      %1526 = vmatpush1.msra.mxu0 0.0
      %1527 = vmatprep.subr.mxu0 0.0
      %1528 = vmatpush1.msra.mxu0 0.0
      %1529 = vmatprep.subr.mxu0 0.0
      %1530 = vmatpush1.msra.mxu0 0.0
      %1531 = vmatprep.subr.mxu0 0.0
      %1532 = vmatpush1.msra.mxu0 0.0
      %1533 = vmatprep.subr.mxu0 0.0
      %1534 = vmatpush1.msra.mxu0 0.0
      %1535 = vmatprep.subr.mxu0 0.0
      %1536 = vmatpush1.msra.mxu0 0.0
      %1537 = vmatprep.subr.mxu0 0.0
      %1538 = vmatpush1.msra.mxu0 0.0
      %1539 = vmatprep.subr.mxu0 0.0
      %1540 = vmatpush1.msra.mxu0 0.0
      %1541 = vmatprep.subr.mxu0 0.0
      %1542 = vmatpush1.msra.mxu0 0.0
      %1543 = vmatprep.subr.mxu0 0.0
      %1544 = vmatpush1.msra.mxu0 0.0
      %1545 = vmatprep.subr.mxu0 0.0
      %1546 = vmatpush1.msra.mxu0 0.0
      %1547 = vmatprep.subr.mxu0 0.0
      %1548 = vmatpush1.msra.mxu0 0.0
      %1549 = vmatprep.subr.mxu0 0.0
      %1550 = vmatpush1.msra.mxu0 0.0
      %1551 = vmatprep.subr.mxu0 0.0
      %1552 = vmatpush1.msra.mxu0 0.0
      %1553 = vmatprep.subr.mxu0 0.0
      %1554 = vmatpush1.msra.mxu0 0.0
      %1555 = vmatprep.subr.mxu0 0.0
      %1556 = vmatpush1.msra.mxu0 0.0
      %1557 = vmatprep.subr.mxu0 0.0
      %1558 = vmatpush1.msra.mxu0 0.0
      %1559 = vmatprep.subr.mxu0 0.0
      %1560 = vmatpush1.msra.mxu0 0.0
      %1561 = vmatprep.subr.mxu0 0.0
      %1562 = vmatpush1.msra.mxu0 0.0
      %1563 = vmatprep.subr.mxu0 0.0
      %1564 = vmatpush1.msra.mxu0 0.0
      %1565 = vmatprep.subr.mxu0 0.0
      %1566 = vmatpush1.msra.mxu0 0.0
      %1567 = vmatprep.mubr.f32.mxu0 0.0
      %1568 = vmatmul.mubr.f32.gmra.mrb[0].mxu0 %v467
      %v1569 = vpop.f32.mrb[0].mxu0
      %v1570 = vadd.f32 0.0, %v1569
      %v1571 = vpop.f32.mrb[0].mxu0
      %1572 = vdwg.mxu0
      %v1573 = vadd.f32 %v1480, %v1570
      %1575 = vrot.lane.b32.xlu0 %v1573, 1
      %v1576 = vpop.permute.xlu0 %1575
      %1578 = vst.msk [vmem:[#allocation2] sm:$0xf] %vm546, %v1576
      %v1579 = vld [vmem:[#allocation2] sm:$0xf]
      %1581 = vrot.lane.b32.xlu0 %v1579, 127
      %v1582 = vpop.permute.xlu0 %1581
      %v1583 = vsel %vm290, %v1582, 0
      %1585 = vmatprep.subr.mxu0 0.0
      %1586 = vmatpush1.msra.mxu0 %v1583
      %1587 = vmatprep.subr.mxu0 0.0
      %1588 = vmatpush1.msra.mxu0 0.0
      %1589 = vmatprep.subr.mxu0 0.0
      %1590 = vmatpush1.msra.mxu0 0.0
      %1591 = vmatprep.subr.mxu0 0.0
      %1592 = vmatpush1.msra.mxu0 0.0
      %1593 = vmatprep.subr.mxu0 0.0
      %1594 = vmatpush1.msra.mxu0 0.0
      %1595 = vmatprep.subr.mxu0 0.0
      %1596 = vmatpush1.msra.mxu0 0.0
      %1597 = vmatprep.subr.mxu0 0.0
      %1598 = vmatpush1.msra.mxu0 0.0
      %1599 = vmatprep.subr.mxu0 0.0
      %1600 = vmatpush1.msra.mxu0 0.0
      %1601 = vmatprep.subr.mxu0 0.0
      %1602 = vmatpush1.msra.mxu0 0.0
      %1603 = vmatprep.subr.mxu0 0.0
      %1604 = vmatpush1.msra.mxu0 0.0
      %1605 = vmatprep.subr.mxu0 0.0
      %1606 = vmatpush1.msra.mxu0 0.0
      %1607 = vmatprep.subr.mxu0 0.0
      %1608 = vmatpush1.msra.mxu0 0.0
      %1609 = vmatprep.subr.mxu0 0.0
      %1610 = vmatpush1.msra.mxu0 0.0
      %1611 = vmatprep.subr.mxu0 0.0
      %1612 = vmatpush1.msra.mxu0 0.0
      %1613 = vmatprep.subr.mxu0 0.0
      %1614 = vmatpush1.msra.mxu0 0.0
      %1615 = vmatprep.subr.mxu0 0.0
      %1616 = vmatpush1.msra.mxu0 0.0
      %1617 = vmatprep.subr.mxu0 0.0
      %1618 = vmatpush1.msra.mxu0 0.0
      %1619 = vmatprep.subr.mxu0 0.0
      %1620 = vmatpush1.msra.mxu0 0.0
      %1621 = vmatprep.subr.mxu0 0.0
      %1622 = vmatpush1.msra.mxu0 0.0
      %1623 = vmatprep.subr.mxu0 0.0
      %1624 = vmatpush1.msra.mxu0 0.0
      %1625 = vmatprep.subr.mxu0 0.0
      %1626 = vmatpush1.msra.mxu0 0.0
      %1627 = vmatprep.subr.mxu0 0.0
      %1628 = vmatpush1.msra.mxu0 0.0
      %1629 = vmatprep.subr.mxu0 0.0
      %1630 = vmatpush1.msra.mxu0 0.0
      %1631 = vmatprep.subr.mxu0 0.0
      %1632 = vmatpush1.msra.mxu0 0.0
      %1633 = vmatprep.subr.mxu0 0.0
      %1634 = vmatpush1.msra.mxu0 0.0
      %1635 = vmatprep.subr.mxu0 0.0
      %1636 = vmatpush1.msra.mxu0 0.0
      %1637 = vmatprep.subr.mxu0 0.0
      %1638 = vmatpush1.msra.mxu0 0.0
      %1639 = vmatprep.subr.mxu0 0.0
      %1640 = vmatpush1.msra.mxu0 0.0
      %1641 = vmatprep.subr.mxu0 0.0
      %1642 = vmatpush1.msra.mxu0 0.0
      %1643 = vmatprep.subr.mxu0 0.0
      %1644 = vmatpush1.msra.mxu0 0.0
      %1645 = vmatprep.subr.mxu0 0.0
      %1646 = vmatpush1.msra.mxu0 0.0
      %1647 = vmatprep.subr.mxu0 0.0
      %1648 = vmatpush1.msra.mxu0 0.0
      %1649 = vmatprep.mubr.f32.mxu0 0.0
      %1650 = vmatmul.mubr.f32.gmra.mrb[0].mxu0 %v553
      %v1651 = vpop.f32.mrb[0].mxu0
      %v1652 = vadd.f32 0.0, %v1651
      %v1653 = vpop.f32.mrb[0].mxu0
      %1654 = vdwg.mxu0
      %v1655 = vsel %vm290, %v1579, 0
      %1657 = vmatprep.subr.mxu0 0.0
      %1658 = vmatpush1.msra.mxu0 %v1655
      %1659 = vmatprep.subr.mxu0 0.0
      %1660 = vmatpush1.msra.mxu0 0.0
      %1661 = vmatprep.subr.mxu0 0.0
      %1662 = vmatpush1.msra.mxu0 0.0
      %1663 = vmatprep.subr.mxu0 0.0
      %1664 = vmatpush1.msra.mxu0 0.0
      %1665 = vmatprep.subr.mxu0 0.0
      %1666 = vmatpush1.msra.mxu0 0.0
      %1667 = vmatprep.subr.mxu0 0.0
      %1668 = vmatpush1.msra.mxu0 0.0
      %1669 = vmatprep.subr.mxu0 0.0
      %1670 = vmatpush1.msra.mxu0 0.0
      %1671 = vmatprep.subr.mxu0 0.0
      %1672 = vmatpush1.msra.mxu0 0.0
      %1673 = vmatprep.subr.mxu0 0.0
      %1674 = vmatpush1.msra.mxu0 0.0
      %1675 = vmatprep.subr.mxu0 0.0
      %1676 = vmatpush1.msra.mxu0 0.0
      %1677 = vmatprep.subr.mxu0 0.0
      %1678 = vmatpush1.msra.mxu0 0.0
      %1679 = vmatprep.subr.mxu0 0.0
      %1680 = vmatpush1.msra.mxu0 0.0
      %1681 = vmatprep.subr.mxu0 0.0
      %1682 = vmatpush1.msra.mxu0 0.0
      %1683 = vmatprep.subr.mxu0 0.0
      %1684 = vmatpush1.msra.mxu0 0.0
      %1685 = vmatprep.subr.mxu0 0.0
      %1686 = vmatpush1.msra.mxu0 0.0
      %1687 = vmatprep.subr.mxu0 0.0
      %1688 = vmatpush1.msra.mxu0 0.0
      %1689 = vmatprep.subr.mxu0 0.0
      %1690 = vmatpush1.msra.mxu0 0.0
      %1691 = vmatprep.subr.mxu0 0.0
      %1692 = vmatpush1.msra.mxu0 0.0
      %1693 = vmatprep.subr.mxu0 0.0
      %1694 = vmatpush1.msra.mxu0 0.0
      %1695 = vmatprep.subr.mxu0 0.0
      %1696 = vmatpush1.msra.mxu0 0.0
      %1697 = vmatprep.subr.mxu0 0.0
      %1698 = vmatpush1.msra.mxu0 0.0
      %1699 = vmatprep.subr.mxu0 0.0
      %1700 = vmatpush1.msra.mxu0 0.0
      %1701 = vmatprep.subr.mxu0 0.0
      %1702 = vmatpush1.msra.mxu0 0.0
      %1703 = vmatprep.subr.mxu0 0.0
      %1704 = vmatpush1.msra.mxu0 0.0
      %1705 = vmatprep.subr.mxu0 0.0
      %1706 = vmatpush1.msra.mxu0 0.0
      %1707 = vmatprep.subr.mxu0 0.0
      %1708 = vmatpush1.msra.mxu0 0.0
      %1709 = vmatprep.subr.mxu0 0.0
      %1710 = vmatpush1.msra.mxu0 0.0
      %1711 = vmatprep.subr.mxu0 0.0
      %1712 = vmatpush1.msra.mxu0 0.0
      %1713 = vmatprep.subr.mxu0 0.0
      %1714 = vmatpush1.msra.mxu0 0.0
      %1715 = vmatprep.subr.mxu0 0.0
      %1716 = vmatpush1.msra.mxu0 0.0
      %1717 = vmatprep.subr.mxu0 0.0
      %1718 = vmatpush1.msra.mxu0 0.0
      %1719 = vmatprep.subr.mxu0 0.0
      %1720 = vmatpush1.msra.mxu0 0.0
      %1721 = vmatprep.mubr.f32.mxu0 0.0
      %1722 = vmatmul.mubr.f32.gmra.mrb[0].mxu0 %v628
      %v1723 = vpop.f32.mrb[0].mxu0
      %v1724 = vadd.f32 %v1652, %v1723
      %v1725 = vpop.f32.mrb[0].mxu0
      %1726 = vdwg.mxu0
      %1727 = vrot.lane.b32.xlu0 %v1579, 126
      %v1728 = vpop.permute.xlu0 %1727
      %v1729 = vsel %vm290, %v1728, 0
      %1731 = vmatprep.subr.mxu0 0.0
      %1732 = vmatpush1.msra.mxu0 %v1729
      %1733 = vmatprep.subr.mxu0 0.0
      %1734 = vmatpush1.msra.mxu0 0.0
      %1735 = vmatprep.subr.mxu0 0.0
      %1736 = vmatpush1.msra.mxu0 0.0
      %1737 = vmatprep.subr.mxu0 0.0
      %1738 = vmatpush1.msra.mxu0 0.0
      %1739 = vmatprep.subr.mxu0 0.0
      %1740 = vmatpush1.msra.mxu0 0.0
      %1741 = vmatprep.subr.mxu0 0.0
      %1742 = vmatpush1.msra.mxu0 0.0
      %1743 = vmatprep.subr.mxu0 0.0
      %1744 = vmatpush1.msra.mxu0 0.0
      %1745 = vmatprep.subr.mxu0 0.0
      %1746 = vmatpush1.msra.mxu0 0.0
      %1747 = vmatprep.subr.mxu0 0.0
      %1748 = vmatpush1.msra.mxu0 0.0
      %1749 = vmatprep.subr.mxu0 0.0
      %1750 = vmatpush1.msra.mxu0 0.0
      %1751 = vmatprep.subr.mxu0 0.0
      %1752 = vmatpush1.msra.mxu0 0.0
      %1753 = vmatprep.subr.mxu0 0.0
      %1754 = vmatpush1.msra.mxu0 0.0
      %1755 = vmatprep.subr.mxu0 0.0
      %1756 = vmatpush1.msra.mxu0 0.0
      %1757 = vmatprep.subr.mxu0 0.0
      %1758 = vmatpush1.msra.mxu0 0.0
      %1759 = vmatprep.subr.mxu0 0.0
      %1760 = vmatpush1.msra.mxu0 0.0
      %1761 = vmatprep.subr.mxu0 0.0
      %1762 = vmatpush1.msra.mxu0 0.0
      %1763 = vmatprep.subr.mxu0 0.0
      %1764 = vmatpush1.msra.mxu0 0.0
      %1765 = vmatprep.subr.mxu0 0.0
      %1766 = vmatpush1.msra.mxu0 0.0
      %1767 = vmatprep.subr.mxu0 0.0
      %1768 = vmatpush1.msra.mxu0 0.0
      %1769 = vmatprep.subr.mxu0 0.0
      %1770 = vmatpush1.msra.mxu0 0.0
      %1771 = vmatprep.subr.mxu0 0.0
      %1772 = vmatpush1.msra.mxu0 0.0
      %1773 = vmatprep.subr.mxu0 0.0
      %1774 = vmatpush1.msra.mxu0 0.0
      %1775 = vmatprep.subr.mxu0 0.0
      %1776 = vmatpush1.msra.mxu0 0.0
      %1777 = vmatprep.subr.mxu0 0.0
      %1778 = vmatpush1.msra.mxu0 0.0
      %1779 = vmatprep.subr.mxu0 0.0
      %1780 = vmatpush1.msra.mxu0 0.0
      %1781 = vmatprep.subr.mxu0 0.0
      %1782 = vmatpush1.msra.mxu0 0.0
      %1783 = vmatprep.subr.mxu0 0.0
      %1784 = vmatpush1.msra.mxu0 0.0
      %1785 = vmatprep.subr.mxu0 0.0
      %1786 = vmatpush1.msra.mxu0 0.0
      %1787 = vmatprep.subr.mxu0 0.0
      %1788 = vmatpush1.msra.mxu0 0.0
      %1789 = vmatprep.subr.mxu0 0.0
      %1790 = vmatpush1.msra.mxu0 0.0
      %1791 = vmatprep.subr.mxu0 0.0
      %1792 = vmatpush1.msra.mxu0 0.0
      %1793 = vmatprep.subr.mxu0 0.0
      %1794 = vmatpush1.msra.mxu0 0.0
      %1795 = vmatprep.mubr.f32.mxu0 0.0
      %1796 = vmatmul.mubr.f32.gmra.mrb[0].mxu0 %v705
      %v1797 = vpop.f32.mrb[0].mxu0
      %v1798 = vadd.f32 0.0, %v1797
      %v1799 = vpop.f32.mrb[0].mxu0
      %1800 = vdwg.mxu0
      %v1801 = vadd.f32 %v1724, %v1798
      %v1802 = vadd.f32 %v1291, %v1801
      %v1803 = vmul.f32 %v1801, %v1801
      %v1804 = vadd.f32 %v1293, %v1803
      %v1805 = vpack.c.bf16 %v1801, %v1801
      %v1807 = vunpack.c.l.b16 %v1805
      %v1808 = vpack.c.b16 %v1807, %v1807
      %1809 = vrot.lane.b32.xlu0 %v1808, 54
      %v1810 = vpop.permute.xlu0 %1809
      %vm1812 = vcmask 585136
      %1813 = vst.msk [vmem:[%s237] sm:$0xf] %vm1812, %v1810
      %v1814 = vld [vmem:[%s232 + $0x3] sm:$0x1]
      %v1815 = vld [vmem:[%s232 + $0x1b] sm:$0x1]
      %v1816 = vld [vmem:[%s232 + $0x33] sm:$0x1]
      %v1817 = vld [vmem:[%s232 + $0x4b] sm:$0x1]
      %v1818 = vmax.f32 %v1814, 0.0
      %v1819 = vmax.f32 %v1815, 0.0
      %v1820 = vmax.f32 %v1816, 0.0
      %v1821 = vmax.f32 %v1817, 0.0
      %v1822 = vld [vmem:[%s232 + $0x4] sm:$0x1]
      %v1823 = vld [vmem:[%s232 + $0x1c] sm:$0x1]
      %v1824 = vld [vmem:[%s232 + $0x34] sm:$0x1]
      %v1825 = vld [vmem:[%s232 + $0x4c] sm:$0x1]
      %v1826 = vmax.f32 %v1822, 0.0
      %v1827 = vmax.f32 %v1823, 0.0
      %v1828 = vmax.f32 %v1824, 0.0
      %v1829 = vmax.f32 %v1825, 0.0
      %v1834 = vrot.slane %v1827, 7
      %v1835 = vsel %vm278, %v1834, %v1826
      %v1836 = vrot.slane %v1828, 6
      %v1837 = vsel %vm281, %v1836, %v1835
      %v1838 = vrot.slane %v1829, 5
      %v1839 = vsel %vm284, %v1838, %v1837
      %v1840 = vsel %vm290, %v1839, 0
      %1842 = vmatprep.subr.mxu0 0.0
      %1843 = vmatpush1.msra.mxu0 %v1840
      %1844 = vmatprep.subr.mxu0 0.0
      %1845 = vmatpush1.msra.mxu0 0.0
      %1846 = vmatprep.subr.mxu0 0.0
      %1847 = vmatpush1.msra.mxu0 0.0
      %1848 = vmatprep.subr.mxu0 0.0
      %1849 = vmatpush1.msra.mxu0 0.0
      %1850 = vmatprep.subr.mxu0 0.0
      %1851 = vmatpush1.msra.mxu0 0.0
      %1852 = vmatprep.subr.mxu0 0.0
      %1853 = vmatpush1.msra.mxu0 0.0
      %1854 = vmatprep.subr.mxu0 0.0
      %1855 = vmatpush1.msra.mxu0 0.0
      %1856 = vmatprep.subr.mxu0 0.0
      %1857 = vmatpush1.msra.mxu0 0.0
      %1858 = vmatprep.subr.mxu0 0.0
      %1859 = vmatpush1.msra.mxu0 0.0
      %1860 = vmatprep.subr.mxu0 0.0
      %1861 = vmatpush1.msra.mxu0 0.0
      %1862 = vmatprep.subr.mxu0 0.0
      %1863 = vmatpush1.msra.mxu0 0.0
      %1864 = vmatprep.subr.mxu0 0.0
      %1865 = vmatpush1.msra.mxu0 0.0
      %1866 = vmatprep.subr.mxu0 0.0
      %1867 = vmatpush1.msra.mxu0 0.0
      %1868 = vmatprep.subr.mxu0 0.0
      %1869 = vmatpush1.msra.mxu0 0.0
      %1870 = vmatprep.subr.mxu0 0.0
      %1871 = vmatpush1.msra.mxu0 0.0
      %1872 = vmatprep.subr.mxu0 0.0
      %1873 = vmatpush1.msra.mxu0 0.0
      %1874 = vmatprep.subr.mxu0 0.0
      %1875 = vmatpush1.msra.mxu0 0.0
      %1876 = vmatprep.subr.mxu0 0.0
      %1877 = vmatpush1.msra.mxu0 0.0
      %1878 = vmatprep.subr.mxu0 0.0
      %1879 = vmatpush1.msra.mxu0 0.0
      %1880 = vmatprep.subr.mxu0 0.0
      %1881 = vmatpush1.msra.mxu0 0.0
      %1882 = vmatprep.subr.mxu0 0.0
      %1883 = vmatpush1.msra.mxu0 0.0
      %1884 = vmatprep.subr.mxu0 0.0
      %1885 = vmatpush1.msra.mxu0 0.0
      %1886 = vmatprep.subr.mxu0 0.0
      %1887 = vmatpush1.msra.mxu0 0.0
      %1888 = vmatprep.subr.mxu0 0.0
      %1889 = vmatpush1.msra.mxu0 0.0
      %1890 = vmatprep.subr.mxu0 0.0
      %1891 = vmatpush1.msra.mxu0 0.0
      %1892 = vmatprep.subr.mxu0 0.0
      %1893 = vmatpush1.msra.mxu0 0.0
      %1894 = vmatprep.subr.mxu0 0.0
      %1895 = vmatpush1.msra.mxu0 0.0
      %1896 = vmatprep.subr.mxu0 0.0
      %1897 = vmatpush1.msra.mxu0 0.0
      %1898 = vmatprep.subr.mxu0 0.0
      %1899 = vmatpush1.msra.mxu0 0.0
      %1900 = vmatprep.subr.mxu0 0.0
      %1901 = vmatpush1.msra.mxu0 0.0
      %1902 = vmatprep.subr.mxu0 0.0
      %1903 = vmatpush1.msra.mxu0 0.0
      %1904 = vmatprep.subr.mxu0 0.0
      %1905 = vmatpush1.msra.mxu0 0.0
      %1906 = vmatprep.mubr.f32.mxu0 0.0
      %1907 = vmatmul.mubr.f32.gmra.mrb[0].mxu0 %v288
      %v1908 = vpop.f32.mrb[0].mxu0
      %v1909 = vadd.f32 0.0, %v1908
      %v1910 = vpop.f32.mrb[0].mxu0
      %1911 = vdwg.mxu0
      %v1916 = vrot.slane %v1819, 7
      %v1917 = vsel %vm278, %v1916, %v1818
      %v1918 = vrot.slane %v1820, 6
      %v1919 = vsel %vm281, %v1918, %v1917
      %v1920 = vrot.slane %v1821, 5
      %v1921 = vsel %vm284, %v1920, %v1919
      %v1922 = vsel %vm290, %v1921, 0
      %1924 = vmatprep.subr.mxu0 0.0
      %1925 = vmatpush1.msra.mxu0 %v1922
      %1926 = vmatprep.subr.mxu0 0.0
      %1927 = vmatpush1.msra.mxu0 0.0
      %1928 = vmatprep.subr.mxu0 0.0
      %1929 = vmatpush1.msra.mxu0 0.0
      %1930 = vmatprep.subr.mxu0 0.0
      %1931 = vmatpush1.msra.mxu0 0.0
      %1932 = vmatprep.subr.mxu0 0.0
      %1933 = vmatpush1.msra.mxu0 0.0
      %1934 = vmatprep.subr.mxu0 0.0
      %1935 = vmatpush1.msra.mxu0 0.0
      %1936 = vmatprep.subr.mxu0 0.0
      %1937 = vmatpush1.msra.mxu0 0.0
      %1938 = vmatprep.subr.mxu0 0.0
      %1939 = vmatpush1.msra.mxu0 0.0
      %1940 = vmatprep.subr.mxu0 0.0
      %1941 = vmatpush1.msra.mxu0 0.0
      %1942 = vmatprep.subr.mxu0 0.0
      %1943 = vmatpush1.msra.mxu0 0.0
      %1944 = vmatprep.subr.mxu0 0.0
      %1945 = vmatpush1.msra.mxu0 0.0
      %1946 = vmatprep.subr.mxu0 0.0
      %1947 = vmatpush1.msra.mxu0 0.0
      %1948 = vmatprep.subr.mxu0 0.0
      %1949 = vmatpush1.msra.mxu0 0.0
      %1950 = vmatprep.subr.mxu0 0.0
      %1951 = vmatpush1.msra.mxu0 0.0
      %1952 = vmatprep.subr.mxu0 0.0
      %1953 = vmatpush1.msra.mxu0 0.0
      %1954 = vmatprep.subr.mxu0 0.0
      %1955 = vmatpush1.msra.mxu0 0.0
      %1956 = vmatprep.subr.mxu0 0.0
      %1957 = vmatpush1.msra.mxu0 0.0
      %1958 = vmatprep.subr.mxu0 0.0
      %1959 = vmatpush1.msra.mxu0 0.0
      %1960 = vmatprep.subr.mxu0 0.0
      %1961 = vmatpush1.msra.mxu0 0.0
      %1962 = vmatprep.subr.mxu0 0.0
      %1963 = vmatpush1.msra.mxu0 0.0
      %1964 = vmatprep.subr.mxu0 0.0
      %1965 = vmatpush1.msra.mxu0 0.0
      %1966 = vmatprep.subr.mxu0 0.0
      %1967 = vmatpush1.msra.mxu0 0.0
      %1968 = vmatprep.subr.mxu0 0.0
      %1969 = vmatpush1.msra.mxu0 0.0
      %1970 = vmatprep.subr.mxu0 0.0
      %1971 = vmatpush1.msra.mxu0 0.0
      %1972 = vmatprep.subr.mxu0 0.0
      %1973 = vmatpush1.msra.mxu0 0.0
      %1974 = vmatprep.subr.mxu0 0.0
      %1975 = vmatpush1.msra.mxu0 0.0
      %1976 = vmatprep.subr.mxu0 0.0
      %1977 = vmatpush1.msra.mxu0 0.0
      %1978 = vmatprep.subr.mxu0 0.0
      %1979 = vmatpush1.msra.mxu0 0.0
      %1980 = vmatprep.subr.mxu0 0.0
      %1981 = vmatpush1.msra.mxu0 0.0
      %1982 = vmatprep.subr.mxu0 0.0
      %1983 = vmatpush1.msra.mxu0 0.0
      %1984 = vmatprep.subr.mxu0 0.0
      %1985 = vmatpush1.msra.mxu0 0.0
      %1986 = vmatprep.subr.mxu0 0.0
      %1987 = vmatpush1.msra.mxu0 0.0
      %1988 = vmatprep.mubr.f32.mxu0 0.0
      %1989 = vmatmul.mubr.f32.gmra.mrb[0].mxu0 %v374
      %v1990 = vpop.f32.mrb[0].mxu0
      %v1991 = vadd.f32 %v1909, %v1990
      %v1992 = vpop.f32.mrb[0].mxu0
      %1993 = vdwg.mxu0
      %v1994 = vld [vmem:[%s232 + $0x5] sm:$0x1]
      %v1995 = vld [vmem:[%s232 + $0x1d] sm:$0x1]
      %v1996 = vld [vmem:[%s232 + $0x35] sm:$0x1]
      %v1997 = vld [vmem:[%s232 + $0x4d] sm:$0x1]
      %v1998 = vmax.f32 %v1994, 0.0
      %v1999 = vmax.f32 %v1995, 0.0
      %v2000 = vmax.f32 %v1996, 0.0
      %v2001 = vmax.f32 %v1997, 0.0
      %v2006 = vrot.slane %v1999, 7
      %v2007 = vsel %vm278, %v2006, %v1998
      %v2008 = vrot.slane %v2000, 6
      %v2009 = vsel %vm281, %v2008, %v2007
      %v2010 = vrot.slane %v2001, 5
      %v2011 = vsel %vm284, %v2010, %v2009
      %v2012 = vsel %vm290, %v2011, 0
      %2014 = vmatprep.subr.mxu0 0.0
      %2015 = vmatpush1.msra.mxu0 %v2012
      %2016 = vmatprep.subr.mxu0 0.0
      %2017 = vmatpush1.msra.mxu0 0.0
      %2018 = vmatprep.subr.mxu0 0.0
      %2019 = vmatpush1.msra.mxu0 0.0
      %2020 = vmatprep.subr.mxu0 0.0
      %2021 = vmatpush1.msra.mxu0 0.0
      %2022 = vmatprep.subr.mxu0 0.0
      %2023 = vmatpush1.msra.mxu0 0.0
      %2024 = vmatprep.subr.mxu0 0.0
      %2025 = vmatpush1.msra.mxu0 0.0
      %2026 = vmatprep.subr.mxu0 0.0
      %2027 = vmatpush1.msra.mxu0 0.0
      %2028 = vmatprep.subr.mxu0 0.0
      %2029 = vmatpush1.msra.mxu0 0.0
      %2030 = vmatprep.subr.mxu0 0.0
      %2031 = vmatpush1.msra.mxu0 0.0
      %2032 = vmatprep.subr.mxu0 0.0
      %2033 = vmatpush1.msra.mxu0 0.0
      %2034 = vmatprep.subr.mxu0 0.0
      %2035 = vmatpush1.msra.mxu0 0.0
      %2036 = vmatprep.subr.mxu0 0.0
      %2037 = vmatpush1.msra.mxu0 0.0
      %2038 = vmatprep.subr.mxu0 0.0
      %2039 = vmatpush1.msra.mxu0 0.0
      %2040 = vmatprep.subr.mxu0 0.0
      %2041 = vmatpush1.msra.mxu0 0.0
      %2042 = vmatprep.subr.mxu0 0.0
      %2043 = vmatpush1.msra.mxu0 0.0
      %2044 = vmatprep.subr.mxu0 0.0
      %2045 = vmatpush1.msra.mxu0 0.0
      %2046 = vmatprep.subr.mxu0 0.0
      %2047 = vmatpush1.msra.mxu0 0.0
      %2048 = vmatprep.subr.mxu0 0.0
      %2049 = vmatpush1.msra.mxu0 0.0
      %2050 = vmatprep.subr.mxu0 0.0
      %2051 = vmatpush1.msra.mxu0 0.0
      %2052 = vmatprep.subr.mxu0 0.0
      %2053 = vmatpush1.msra.mxu0 0.0
      %2054 = vmatprep.subr.mxu0 0.0
      %2055 = vmatpush1.msra.mxu0 0.0
      %2056 = vmatprep.subr.mxu0 0.0
      %2057 = vmatpush1.msra.mxu0 0.0
      %2058 = vmatprep.subr.mxu0 0.0
      %2059 = vmatpush1.msra.mxu0 0.0
      %2060 = vmatprep.subr.mxu0 0.0
      %2061 = vmatpush1.msra.mxu0 0.0
      %2062 = vmatprep.subr.mxu0 0.0
      %2063 = vmatpush1.msra.mxu0 0.0
      %2064 = vmatprep.subr.mxu0 0.0
      %2065 = vmatpush1.msra.mxu0 0.0
      %2066 = vmatprep.subr.mxu0 0.0
      %2067 = vmatpush1.msra.mxu0 0.0
      %2068 = vmatprep.subr.mxu0 0.0
      %2069 = vmatpush1.msra.mxu0 0.0
      %2070 = vmatprep.subr.mxu0 0.0
      %2071 = vmatpush1.msra.mxu0 0.0
      %2072 = vmatprep.subr.mxu0 0.0
      %2073 = vmatpush1.msra.mxu0 0.0
      %2074 = vmatprep.subr.mxu0 0.0
      %2075 = vmatpush1.msra.mxu0 0.0
      %2076 = vmatprep.subr.mxu0 0.0
      %2077 = vmatpush1.msra.mxu0 0.0
      %2078 = vmatprep.mubr.f32.mxu0 0.0
      %2079 = vmatmul.mubr.f32.gmra.mrb[0].mxu0 %v467
      %v2080 = vpop.f32.mrb[0].mxu0
      %v2081 = vadd.f32 0.0, %v2080
      %v2082 = vpop.f32.mrb[0].mxu0
      %2083 = vdwg.mxu0
      %v2084 = vadd.f32 %v1991, %v2081
      %2086 = vrot.lane.b32.xlu0 %v2084, 1
      %v2087 = vpop.permute.xlu0 %2086
      %2089 = vst.msk [vmem:[#allocation2] sm:$0xf] %vm546, %v2087
      %v2090 = vld [vmem:[#allocation2] sm:$0xf]
      %2092 = vrot.lane.b32.xlu0 %v2090, 127
      %v2093 = vpop.permute.xlu0 %2092
      %v2094 = vsel %vm290, %v2093, 0
      %2096 = vmatprep.subr.mxu0 0.0
      %2097 = vmatpush1.msra.mxu0 %v2094
      %2098 = vmatprep.subr.mxu0 0.0
      %2099 = vmatpush1.msra.mxu0 0.0
      %2100 = vmatprep.subr.mxu0 0.0
      %2101 = vmatpush1.msra.mxu0 0.0
      %2102 = vmatprep.subr.mxu0 0.0
      %2103 = vmatpush1.msra.mxu0 0.0
      %2104 = vmatprep.subr.mxu0 0.0
      %2105 = vmatpush1.msra.mxu0 0.0
      %2106 = vmatprep.subr.mxu0 0.0
      %2107 = vmatpush1.msra.mxu0 0.0
      %2108 = vmatprep.subr.mxu0 0.0
      %2109 = vmatpush1.msra.mxu0 0.0
      %2110 = vmatprep.subr.mxu0 0.0
      %2111 = vmatpush1.msra.mxu0 0.0
      %2112 = vmatprep.subr.mxu0 0.0
      %2113 = vmatpush1.msra.mxu0 0.0
      %2114 = vmatprep.subr.mxu0 0.0
      %2115 = vmatpush1.msra.mxu0 0.0
      %2116 = vmatprep.subr.mxu0 0.0
      %2117 = vmatpush1.msra.mxu0 0.0
      %2118 = vmatprep.subr.mxu0 0.0
      %2119 = vmatpush1.msra.mxu0 0.0
      %2120 = vmatprep.subr.mxu0 0.0
      %2121 = vmatpush1.msra.mxu0 0.0
      %2122 = vmatprep.subr.mxu0 0.0
      %2123 = vmatpush1.msra.mxu0 0.0
      %2124 = vmatprep.subr.mxu0 0.0
      %2125 = vmatpush1.msra.mxu0 0.0
      %2126 = vmatprep.subr.mxu0 0.0
      %2127 = vmatpush1.msra.mxu0 0.0
      %2128 = vmatprep.subr.mxu0 0.0
      %2129 = vmatpush1.msra.mxu0 0.0
      %2130 = vmatprep.subr.mxu0 0.0
      %2131 = vmatpush1.msra.mxu0 0.0
      %2132 = vmatprep.subr.mxu0 0.0
      %2133 = vmatpush1.msra.mxu0 0.0
      %2134 = vmatprep.subr.mxu0 0.0
      %2135 = vmatpush1.msra.mxu0 0.0
      %2136 = vmatprep.subr.mxu0 0.0
      %2137 = vmatpush1.msra.mxu0 0.0
      %2138 = vmatprep.subr.mxu0 0.0
      %2139 = vmatpush1.msra.mxu0 0.0
      %2140 = vmatprep.subr.mxu0 0.0
      %2141 = vmatpush1.msra.mxu0 0.0
      %2142 = vmatprep.subr.mxu0 0.0
      %2143 = vmatpush1.msra.mxu0 0.0
      %2144 = vmatprep.subr.mxu0 0.0
      %2145 = vmatpush1.msra.mxu0 0.0
      %2146 = vmatprep.subr.mxu0 0.0
      %2147 = vmatpush1.msra.mxu0 0.0
      %2148 = vmatprep.subr.mxu0 0.0
      %2149 = vmatpush1.msra.mxu0 0.0
      %2150 = vmatprep.subr.mxu0 0.0
      %2151 = vmatpush1.msra.mxu0 0.0
      %2152 = vmatprep.subr.mxu0 0.0
      %2153 = vmatpush1.msra.mxu0 0.0
      %2154 = vmatprep.subr.mxu0 0.0
      %2155 = vmatpush1.msra.mxu0 0.0
      %2156 = vmatprep.subr.mxu0 0.0
      %2157 = vmatpush1.msra.mxu0 0.0
      %2158 = vmatprep.subr.mxu0 0.0
      %2159 = vmatpush1.msra.mxu0 0.0
      %2160 = vmatprep.mubr.f32.mxu0 0.0
      %2161 = vmatmul.mubr.f32.gmra.mrb[0].mxu0 %v553
      %v2162 = vpop.f32.mrb[0].mxu0
      %v2163 = vadd.f32 0.0, %v2162
      %v2164 = vpop.f32.mrb[0].mxu0
      %2165 = vdwg.mxu0
      %v2166 = vsel %vm290, %v2090, 0
      %2168 = vmatprep.subr.mxu0 0.0
      %2169 = vmatpush1.msra.mxu0 %v2166
      %2170 = vmatprep.subr.mxu0 0.0
      %2171 = vmatpush1.msra.mxu0 0.0
      %2172 = vmatprep.subr.mxu0 0.0
      %2173 = vmatpush1.msra.mxu0 0.0
      %2174 = vmatprep.subr.mxu0 0.0
      %2175 = vmatpush1.msra.mxu0 0.0
      %2176 = vmatprep.subr.mxu0 0.0
      %2177 = vmatpush1.msra.mxu0 0.0
      %2178 = vmatprep.subr.mxu0 0.0
      %2179 = vmatpush1.msra.mxu0 0.0
      %2180 = vmatprep.subr.mxu0 0.0
      %2181 = vmatpush1.msra.mxu0 0.0
      %2182 = vmatprep.subr.mxu0 0.0
      %2183 = vmatpush1.msra.mxu0 0.0
      %2184 = vmatprep.subr.mxu0 0.0
      %2185 = vmatpush1.msra.mxu0 0.0
      %2186 = vmatprep.subr.mxu0 0.0
      %2187 = vmatpush1.msra.mxu0 0.0
      %2188 = vmatprep.subr.mxu0 0.0
      %2189 = vmatpush1.msra.mxu0 0.0
      %2190 = vmatprep.subr.mxu0 0.0
      %2191 = vmatpush1.msra.mxu0 0.0
      %2192 = vmatprep.subr.mxu0 0.0
      %2193 = vmatpush1.msra.mxu0 0.0
      %2194 = vmatprep.subr.mxu0 0.0
      %2195 = vmatpush1.msra.mxu0 0.0
      %2196 = vmatprep.subr.mxu0 0.0
      %2197 = vmatpush1.msra.mxu0 0.0
      %2198 = vmatprep.subr.mxu0 0.0
      %2199 = vmatpush1.msra.mxu0 0.0
      %2200 = vmatprep.subr.mxu0 0.0
      %2201 = vmatpush1.msra.mxu0 0.0
      %2202 = vmatprep.subr.mxu0 0.0
      %2203 = vmatpush1.msra.mxu0 0.0
      %2204 = vmatprep.subr.mxu0 0.0
      %2205 = vmatpush1.msra.mxu0 0.0
      %2206 = vmatprep.subr.mxu0 0.0
      %2207 = vmatpush1.msra.mxu0 0.0
      %2208 = vmatprep.subr.mxu0 0.0
      %2209 = vmatpush1.msra.mxu0 0.0
      %2210 = vmatprep.subr.mxu0 0.0
      %2211 = vmatpush1.msra.mxu0 0.0
      %2212 = vmatprep.subr.mxu0 0.0
      %2213 = vmatpush1.msra.mxu0 0.0
      %2214 = vmatprep.subr.mxu0 0.0
      %2215 = vmatpush1.msra.mxu0 0.0
      %2216 = vmatprep.subr.mxu0 0.0
      %2217 = vmatpush1.msra.mxu0 0.0
      %2218 = vmatprep.subr.mxu0 0.0
      %2219 = vmatpush1.msra.mxu0 0.0
      %2220 = vmatprep.subr.mxu0 0.0
      %2221 = vmatpush1.msra.mxu0 0.0
      %2222 = vmatprep.subr.mxu0 0.0
      %2223 = vmatpush1.msra.mxu0 0.0
      %2224 = vmatprep.subr.mxu0 0.0
      %2225 = vmatpush1.msra.mxu0 0.0
      %2226 = vmatprep.subr.mxu0 0.0
      %2227 = vmatpush1.msra.mxu0 0.0
      %2228 = vmatprep.subr.mxu0 0.0
      %2229 = vmatpush1.msra.mxu0 0.0
      %2230 = vmatprep.subr.mxu0 0.0
      %2231 = vmatpush1.msra.mxu0 0.0
      %2232 = vmatprep.mubr.f32.mxu0 0.0
      %2233 = vmatmul.mubr.f32.gmra.mrb[0].mxu0 %v628
      %v2234 = vpop.f32.mrb[0].mxu0
      %v2235 = vadd.f32 %v2163, %v2234
      %v2236 = vpop.f32.mrb[0].mxu0
      %2237 = vdwg.mxu0
      %2238 = vrot.lane.b32.xlu0 %v2090, 126
      %v2239 = vpop.permute.xlu0 %2238
      %v2240 = vsel %vm290, %v2239, 0
      %2242 = vmatprep.subr.mxu0 0.0
      %2243 = vmatpush1.msra.mxu0 %v2240
      %2244 = vmatprep.subr.mxu0 0.0
      %2245 = vmatpush1.msra.mxu0 0.0
      %2246 = vmatprep.subr.mxu0 0.0
      %2247 = vmatpush1.msra.mxu0 0.0
      %2248 = vmatprep.subr.mxu0 0.0
      %2249 = vmatpush1.msra.mxu0 0.0
      %2250 = vmatprep.subr.mxu0 0.0
      %2251 = vmatpush1.msra.mxu0 0.0
      %2252 = vmatprep.subr.mxu0 0.0
      %2253 = vmatpush1.msra.mxu0 0.0
      %2254 = vmatprep.subr.mxu0 0.0
      %2255 = vmatpush1.msra.mxu0 0.0
      %2256 = vmatprep.subr.mxu0 0.0
      %2257 = vmatpush1.msra.mxu0 0.0
      %2258 = vmatprep.subr.mxu0 0.0
      %2259 = vmatpush1.msra.mxu0 0.0
      %2260 = vmatprep.subr.mxu0 0.0
      %2261 = vmatpush1.msra.mxu0 0.0
      %2262 = vmatprep.subr.mxu0 0.0
      %2263 = vmatpush1.msra.mxu0 0.0
      %2264 = vmatprep.subr.mxu0 0.0
      %2265 = vmatpush1.msra.mxu0 0.0
      %2266 = vmatprep.subr.mxu0 0.0
      %2267 = vmatpush1.msra.mxu0 0.0
      %2268 = vmatprep.subr.mxu0 0.0
      %2269 = vmatpush1.msra.mxu0 0.0
      %2270 = vmatprep.subr.mxu0 0.0
      %2271 = vmatpush1.msra.mxu0 0.0
      %2272 = vmatprep.subr.mxu0 0.0
      %2273 = vmatpush1.msra.mxu0 0.0
      %2274 = vmatprep.subr.mxu0 0.0
      %2275 = vmatpush1.msra.mxu0 0.0
      %2276 = vmatprep.subr.mxu0 0.0
      %2277 = vmatpush1.msra.mxu0 0.0
      %2278 = vmatprep.subr.mxu0 0.0
      %2279 = vmatpush1.msra.mxu0 0.0
      %2280 = vmatprep.subr.mxu0 0.0
      %2281 = vmatpush1.msra.mxu0 0.0
      %2282 = vmatprep.subr.mxu0 0.0
      %2283 = vmatpush1.msra.mxu0 0.0
      %2284 = vmatprep.subr.mxu0 0.0
      %2285 = vmatpush1.msra.mxu0 0.0
      %2286 = vmatprep.subr.mxu0 0.0
      %2287 = vmatpush1.msra.mxu0 0.0
      %2288 = vmatprep.subr.mxu0 0.0
      %2289 = vmatpush1.msra.mxu0 0.0
      %2290 = vmatprep.subr.mxu0 0.0
      %2291 = vmatpush1.msra.mxu0 0.0
      %2292 = vmatprep.subr.mxu0 0.0
      %2293 = vmatpush1.msra.mxu0 0.0
      %2294 = vmatprep.subr.mxu0 0.0
      %2295 = vmatpush1.msra.mxu0 0.0
      %2296 = vmatprep.subr.mxu0 0.0
      %2297 = vmatpush1.msra.mxu0 0.0
      %2298 = vmatprep.subr.mxu0 0.0
      %2299 = vmatpush1.msra.mxu0 0.0
      %2300 = vmatprep.subr.mxu0 0.0
      %2301 = vmatpush1.msra.mxu0 0.0
      %2302 = vmatprep.subr.mxu0 0.0
      %2303 = vmatpush1.msra.mxu0 0.0
      %2304 = vmatprep.subr.mxu0 0.0
      %2305 = vmatpush1.msra.mxu0 0.0
      %2306 = vmatprep.mubr.f32.mxu0 0.0
      %2307 = vmatmul.mubr.f32.gmra.mrb[0].mxu0 %v705
      %v2308 = vpop.f32.mrb[0].mxu0
      %v2309 = vadd.f32 0.0, %v2308
      %v2310 = vpop.f32.mrb[0].mxu0
      %2311 = vdwg.mxu0
      %v2312 = vadd.f32 %v2235, %v2309
      %v2313 = vadd.f32 %v1802, %v2312
      %v2314 = vmul.f32 %v2312, %v2312
      %v2315 = vadd.f32 %v1804, %v2314
      %v2316 = vpack.c.bf16 %v2312, %v2312
      %v2318 = vunpack.c.l.b16 %v2316
      %v2319 = vpack.c.b16 %v2318, %v2318
      %2320 = vrot.lane.b32.xlu0 %v2319, 72
      %v2321 = vpop.permute.xlu0 %2320
      %vm2323 = vcmask 732736
      %2324 = vst.msk [vmem:[%s237] sm:$0xf] %vm2323, %v2321
      %v2325 = vld [vmem:[%s232 + $0x4] sm:$0x1]
      %v2326 = vld [vmem:[%s232 + $0x1c] sm:$0x1]
      %v2327 = vld [vmem:[%s232 + $0x34] sm:$0x1]
      %v2328 = vld [vmem:[%s232 + $0x4c] sm:$0x1]
      %v2329 = vmax.f32 %v2325, 0.0
      %v2330 = vmax.f32 %v2326, 0.0
      %v2331 = vmax.f32 %v2327, 0.0
      %v2332 = vmax.f32 %v2328, 0.0
      %v2333 = vld [vmem:[%s232 + $0x5] sm:$0x1]
      %v2334 = vld [vmem:[%s232 + $0x1d] sm:$0x1]
      %v2335 = vld [vmem:[%s232 + $0x35] sm:$0x1]
      %v2336 = vld [vmem:[%s232 + $0x4d] sm:$0x1]
      %v2337 = vmax.f32 %v2333, 0.0
      %v2338 = vmax.f32 %v2334, 0.0
      %v2339 = vmax.f32 %v2335, 0.0
      %v2340 = vmax.f32 %v2336, 0.0
      %v2345 = vrot.slane %v2338, 7
      %v2346 = vsel %vm278, %v2345, %v2337
      %v2347 = vrot.slane %v2339, 6
      %v2348 = vsel %vm281, %v2347, %v2346
      %v2349 = vrot.slane %v2340, 5
      %v2350 = vsel %vm284, %v2349, %v2348
      %v2351 = vsel %vm290, %v2350, 0
      %2353 = vmatprep.subr.mxu0 0.0
      %2354 = vmatpush1.msra.mxu0 %v2351
      %2355 = vmatprep.subr.mxu0 0.0
      %2356 = vmatpush1.msra.mxu0 0.0
      %2357 = vmatprep.subr.mxu0 0.0
      %2358 = vmatpush1.msra.mxu0 0.0
      %2359 = vmatprep.subr.mxu0 0.0
      %2360 = vmatpush1.msra.mxu0 0.0
      %2361 = vmatprep.subr.mxu0 0.0
      %2362 = vmatpush1.msra.mxu0 0.0
      %2363 = vmatprep.subr.mxu0 0.0
      %2364 = vmatpush1.msra.mxu0 0.0
      %2365 = vmatprep.subr.mxu0 0.0
      %2366 = vmatpush1.msra.mxu0 0.0
      %2367 = vmatprep.subr.mxu0 0.0
      %2368 = vmatpush1.msra.mxu0 0.0
      %2369 = vmatprep.subr.mxu0 0.0
      %2370 = vmatpush1.msra.mxu0 0.0
      %2371 = vmatprep.subr.mxu0 0.0
      %2372 = vmatpush1.msra.mxu0 0.0
      %2373 = vmatprep.subr.mxu0 0.0
      %2374 = vmatpush1.msra.mxu0 0.0
      %2375 = vmatprep.subr.mxu0 0.0
      %2376 = vmatpush1.msra.mxu0 0.0
      %2377 = vmatprep.subr.mxu0 0.0
      %2378 = vmatpush1.msra.mxu0 0.0
      %2379 = vmatprep.subr.mxu0 0.0
      %2380 = vmatpush1.msra.mxu0 0.0
      %2381 = vmatprep.subr.mxu0 0.0
      %2382 = vmatpush1.msra.mxu0 0.0
      %2383 = vmatprep.subr.mxu0 0.0
      %2384 = vmatpush1.msra.mxu0 0.0
      %2385 = vmatprep.subr.mxu0 0.0
      %2386 = vmatpush1.msra.mxu0 0.0
      %2387 = vmatprep.subr.mxu0 0.0
      %2388 = vmatpush1.msra.mxu0 0.0
      %2389 = vmatprep.subr.mxu0 0.0
      %2390 = vmatpush1.msra.mxu0 0.0
      %2391 = vmatprep.subr.mxu0 0.0
      %2392 = vmatpush1.msra.mxu0 0.0
      %2393 = vmatprep.subr.mxu0 0.0
      %2394 = vmatpush1.msra.mxu0 0.0
      %2395 = vmatprep.subr.mxu0 0.0
      %2396 = vmatpush1.msra.mxu0 0.0
      %2397 = vmatprep.subr.mxu0 0.0
      %2398 = vmatpush1.msra.mxu0 0.0
      %2399 = vmatprep.subr.mxu0 0.0
      %2400 = vmatpush1.msra.mxu0 0.0
      %2401 = vmatprep.subr.mxu0 0.0
      %2402 = vmatpush1.msra.mxu0 0.0
      %2403 = vmatprep.subr.mxu0 0.0
      %2404 = vmatpush1.msra.mxu0 0.0
      %2405 = vmatprep.subr.mxu0 0.0
      %2406 = vmatpush1.msra.mxu0 0.0
      %2407 = vmatprep.subr.mxu0 0.0
      %2408 = vmatpush1.msra.mxu0 0.0
      %2409 = vmatprep.subr.mxu0 0.0
      %2410 = vmatpush1.msra.mxu0 0.0
      %2411 = vmatprep.subr.mxu0 0.0
      %2412 = vmatpush1.msra.mxu0 0.0
      %2413 = vmatprep.subr.mxu0 0.0
      %2414 = vmatpush1.msra.mxu0 0.0
      %2415 = vmatprep.subr.mxu0 0.0
      %2416 = vmatpush1.msra.mxu0 0.0
      %2417 = vmatprep.mubr.f32.mxu0 0.0
      %2418 = vmatmul.mubr.f32.gmra.mrb[0].mxu0 %v288
      %v2419 = vpop.f32.mrb[0].mxu0
      %v2420 = vadd.f32 0.0, %v2419
      %v2421 = vpop.f32.mrb[0].mxu0
      %2422 = vdwg.mxu0
      %v2427 = vrot.slane %v2330, 7
      %v2428 = vsel %vm278, %v2427, %v2329
      %v2429 = vrot.slane %v2331, 6
      %v2430 = vsel %vm281, %v2429, %v2428
      %v2431 = vrot.slane %v2332, 5
      %v2432 = vsel %vm284, %v2431, %v2430
      %v2433 = vsel %vm290, %v2432, 0
      %2435 = vmatprep.subr.mxu0 0.0
      %2436 = vmatpush1.msra.mxu0 %v2433
      %2437 = vmatprep.subr.mxu0 0.0
      %2438 = vmatpush1.msra.mxu0 0.0
      %2439 = vmatprep.subr.mxu0 0.0
      %2440 = vmatpush1.msra.mxu0 0.0
      %2441 = vmatprep.subr.mxu0 0.0
      %2442 = vmatpush1.msra.mxu0 0.0
      %2443 = vmatprep.subr.mxu0 0.0
      %2444 = vmatpush1.msra.mxu0 0.0
      %2445 = vmatprep.subr.mxu0 0.0
      %2446 = vmatpush1.msra.mxu0 0.0
      %2447 = vmatprep.subr.mxu0 0.0
      %2448 = vmatpush1.msra.mxu0 0.0
      %2449 = vmatprep.subr.mxu0 0.0
      %2450 = vmatpush1.msra.mxu0 0.0
      %2451 = vmatprep.subr.mxu0 0.0
      %2452 = vmatpush1.msra.mxu0 0.0
      %2453 = vmatprep.subr.mxu0 0.0
      %2454 = vmatpush1.msra.mxu0 0.0
      %2455 = vmatprep.subr.mxu0 0.0
      %2456 = vmatpush1.msra.mxu0 0.0
      %2457 = vmatprep.subr.mxu0 0.0
      %2458 = vmatpush1.msra.mxu0 0.0
      %2459 = vmatprep.subr.mxu0 0.0
      %2460 = vmatpush1.msra.mxu0 0.0
      %2461 = vmatprep.subr.mxu0 0.0
      %2462 = vmatpush1.msra.mxu0 0.0
      %2463 = vmatprep.subr.mxu0 0.0
      %2464 = vmatpush1.msra.mxu0 0.0
      %2465 = vmatprep.subr.mxu0 0.0
      %2466 = vmatpush1.msra.mxu0 0.0
      %2467 = vmatprep.subr.mxu0 0.0
      %2468 = vmatpush1.msra.mxu0 0.0
      %2469 = vmatprep.subr.mxu0 0.0
      %2470 = vmatpush1.msra.mxu0 0.0
      %2471 = vmatprep.subr.mxu0 0.0
      %2472 = vmatpush1.msra.mxu0 0.0
      %2473 = vmatprep.subr.mxu0 0.0
      %2474 = vmatpush1.msra.mxu0 0.0
      %2475 = vmatprep.subr.mxu0 0.0
      %2476 = vmatpush1.msra.mxu0 0.0
      %2477 = vmatprep.subr.mxu0 0.0
      %2478 = vmatpush1.msra.mxu0 0.0
      %2479 = vmatprep.subr.mxu0 0.0
      %2480 = vmatpush1.msra.mxu0 0.0
      %2481 = vmatprep.subr.mxu0 0.0
      %2482 = vmatpush1.msra.mxu0 0.0
      %2483 = vmatprep.subr.mxu0 0.0
      %2484 = vmatpush1.msra.mxu0 0.0
      %2485 = vmatprep.subr.mxu0 0.0
      %2486 = vmatpush1.msra.mxu0 0.0
      %2487 = vmatprep.subr.mxu0 0.0
      %2488 = vmatpush1.msra.mxu0 0.0
      %2489 = vmatprep.subr.mxu0 0.0
      %2490 = vmatpush1.msra.mxu0 0.0
      %2491 = vmatprep.subr.mxu0 0.0
      %2492 = vmatpush1.msra.mxu0 0.0
      %2493 = vmatprep.subr.mxu0 0.0
      %2494 = vmatpush1.msra.mxu0 0.0
      %2495 = vmatprep.subr.mxu0 0.0
      %2496 = vmatpush1.msra.mxu0 0.0
      %2497 = vmatprep.subr.mxu0 0.0
      %2498 = vmatpush1.msra.mxu0 0.0
      %2499 = vmatprep.mubr.f32.mxu0 0.0
      %2500 = vmatmul.mubr.f32.gmra.mrb[0].mxu0 %v374
      %v2501 = vpop.f32.mrb[0].mxu0
      %v2502 = vadd.f32 %v2420, %v2501
      %v2503 = vpop.f32.mrb[0].mxu0
      %2504 = vdwg.mxu0
      %v2505 = vld [vmem:[%s232 + $0x6] sm:$0x1]
      %v2506 = vld [vmem:[%s232 + $0x1e] sm:$0x1]
      %v2507 = vld [vmem:[%s232 + $0x36] sm:$0x1]
      %v2508 = vld [vmem:[%s232 + $0x4e] sm:$0x1]
      %v2509 = vmax.f32 %v2505, 0.0
      %v2510 = vmax.f32 %v2506, 0.0
      %v2511 = vmax.f32 %v2507, 0.0
      %v2512 = vmax.f32 %v2508, 0.0
      %v2517 = vrot.slane %v2510, 7
      %v2518 = vsel %vm278, %v2517, %v2509
      %v2519 = vrot.slane %v2511, 6
      %v2520 = vsel %vm281, %v2519, %v2518
      %v2521 = vrot.slane %v2512, 5
      %v2522 = vsel %vm284, %v2521, %v2520
      %v2523 = vsel %vm290, %v2522, 0
      %2525 = vmatprep.subr.mxu0 0.0
      %2526 = vmatpush1.msra.mxu0 %v2523
      %2527 = vmatprep.subr.mxu0 0.0
      %2528 = vmatpush1.msra.mxu0 0.0
      %2529 = vmatprep.subr.mxu0 0.0
      %2530 = vmatpush1.msra.mxu0 0.0
      %2531 = vmatprep.subr.mxu0 0.0
      %2532 = vmatpush1.msra.mxu0 0.0
      %2533 = vmatprep.subr.mxu0 0.0
      %2534 = vmatpush1.msra.mxu0 0.0
      %2535 = vmatprep.subr.mxu0 0.0
      %2536 = vmatpush1.msra.mxu0 0.0
      %2537 = vmatprep.subr.mxu0 0.0
      %2538 = vmatpush1.msra.mxu0 0.0
      %2539 = vmatprep.subr.mxu0 0.0
      %2540 = vmatpush1.msra.mxu0 0.0
      %2541 = vmatprep.subr.mxu0 0.0
      %2542 = vmatpush1.msra.mxu0 0.0
      %2543 = vmatprep.subr.mxu0 0.0
      %2544 = vmatpush1.msra.mxu0 0.0
      %2545 = vmatprep.subr.mxu0 0.0
      %2546 = vmatpush1.msra.mxu0 0.0
      %2547 = vmatprep.subr.mxu0 0.0
      %2548 = vmatpush1.msra.mxu0 0.0
      %2549 = vmatprep.subr.mxu0 0.0
      %2550 = vmatpush1.msra.mxu0 0.0
      %2551 = vmatprep.subr.mxu0 0.0
      %2552 = vmatpush1.msra.mxu0 0.0
      %2553 = vmatprep.subr.mxu0 0.0
      %2554 = vmatpush1.msra.mxu0 0.0
      %2555 = vmatprep.subr.mxu0 0.0
      %2556 = vmatpush1.msra.mxu0 0.0
      %2557 = vmatprep.subr.mxu0 0.0
      %2558 = vmatpush1.msra.mxu0 0.0
      %2559 = vmatprep.subr.mxu0 0.0
      %2560 = vmatpush1.msra.mxu0 0.0
      %2561 = vmatprep.subr.mxu0 0.0
      %2562 = vmatpush1.msra.mxu0 0.0
      %2563 = vmatprep.subr.mxu0 0.0
      %2564 = vmatpush1.msra.mxu0 0.0
      %2565 = vmatprep.subr.mxu0 0.0
      %2566 = vmatpush1.msra.mxu0 0.0
      %2567 = vmatprep.subr.mxu0 0.0
      %2568 = vmatpush1.msra.mxu0 0.0
      %2569 = vmatprep.subr.mxu0 0.0
      %2570 = vmatpush1.msra.mxu0 0.0
      %2571 = vmatprep.subr.mxu0 0.0
      %2572 = vmatpush1.msra.mxu0 0.0
      %2573 = vmatprep.subr.mxu0 0.0
      %2574 = vmatpush1.msra.mxu0 0.0
      %2575 = vmatprep.subr.mxu0 0.0
      %2576 = vmatpush1.msra.mxu0 0.0
      %2577 = vmatprep.subr.mxu0 0.0
      %2578 = vmatpush1.msra.mxu0 0.0
      %2579 = vmatprep.subr.mxu0 0.0
      %2580 = vmatpush1.msra.mxu0 0.0
      %2581 = vmatprep.subr.mxu0 0.0
      %2582 = vmatpush1.msra.mxu0 0.0
      %2583 = vmatprep.subr.mxu0 0.0
      %2584 = vmatpush1.msra.mxu0 0.0
      %2585 = vmatprep.subr.mxu0 0.0
      %2586 = vmatpush1.msra.mxu0 0.0
      %2587 = vmatprep.subr.mxu0 0.0
      %2588 = vmatpush1.msra.mxu0 0.0
      %2589 = vmatprep.mubr.f32.mxu0 0.0
      %2590 = vmatmul.mubr.f32.gmra.mrb[0].mxu0 %v467
      %v2591 = vpop.f32.mrb[0].mxu0
      %v2592 = vadd.f32 0.0, %v2591
      %v2593 = vpop.f32.mrb[0].mxu0
      %2594 = vdwg.mxu0
      %v2595 = vadd.f32 %v2502, %v2592
      %2597 = vrot.lane.b32.xlu0 %v2595, 1
      %v2598 = vpop.permute.xlu0 %2597
      %2600 = vst.msk [vmem:[#allocation2] sm:$0xf] %vm546, %v2598
      %v2601 = vld [vmem:[#allocation2] sm:$0xf]
      %2603 = vrot.lane.b32.xlu0 %v2601, 127
      %v2604 = vpop.permute.xlu0 %2603
      %v2605 = vsel %vm290, %v2604, 0
      %2607 = vmatprep.subr.mxu0 0.0
      %2608 = vmatpush1.msra.mxu0 %v2605
      %2609 = vmatprep.subr.mxu0 0.0
      %2610 = vmatpush1.msra.mxu0 0.0
      %2611 = vmatprep.subr.mxu0 0.0
      %2612 = vmatpush1.msra.mxu0 0.0
      %2613 = vmatprep.subr.mxu0 0.0
      %2614 = vmatpush1.msra.mxu0 0.0
      %2615 = vmatprep.subr.mxu0 0.0
      %2616 = vmatpush1.msra.mxu0 0.0
      %2617 = vmatprep.subr.mxu0 0.0
      %2618 = vmatpush1.msra.mxu0 0.0
      %2619 = vmatprep.subr.mxu0 0.0
      %2620 = vmatpush1.msra.mxu0 0.0
      %2621 = vmatprep.subr.mxu0 0.0
      %2622 = vmatpush1.msra.mxu0 0.0
      %2623 = vmatprep.subr.mxu0 0.0
      %2624 = vmatpush1.msra.mxu0 0.0
      %2625 = vmatprep.subr.mxu0 0.0
      %2626 = vmatpush1.msra.mxu0 0.0
      %2627 = vmatprep.subr.mxu0 0.0
      %2628 = vmatpush1.msra.mxu0 0.0
      %2629 = vmatprep.subr.mxu0 0.0
      %2630 = vmatpush1.msra.mxu0 0.0
      %2631 = vmatprep.subr.mxu0 0.0
      %2632 = vmatpush1.msra.mxu0 0.0
      %2633 = vmatprep.subr.mxu0 0.0
      %2634 = vmatpush1.msra.mxu0 0.0
      %2635 = vmatprep.subr.mxu0 0.0
      %2636 = vmatpush1.msra.mxu0 0.0
      %2637 = vmatprep.subr.mxu0 0.0
      %2638 = vmatpush1.msra.mxu0 0.0
      %2639 = vmatprep.subr.mxu0 0.0
      %2640 = vmatpush1.msra.mxu0 0.0
      %2641 = vmatprep.subr.mxu0 0.0
      %2642 = vmatpush1.msra.mxu0 0.0
      %2643 = vmatprep.subr.mxu0 0.0
      %2644 = vmatpush1.msra.mxu0 0.0
      %2645 = vmatprep.subr.mxu0 0.0
      %2646 = vmatpush1.msra.mxu0 0.0
      %2647 = vmatprep.subr.mxu0 0.0
      %2648 = vmatpush1.msra.mxu0 0.0
      %2649 = vmatprep.subr.mxu0 0.0
      %2650 = vmatpush1.msra.mxu0 0.0
      %2651 = vmatprep.subr.mxu0 0.0
      %2652 = vmatpush1.msra.mxu0 0.0
      %2653 = vmatprep.subr.mxu0 0.0
      %2654 = vmatpush1.msra.mxu0 0.0
      %2655 = vmatprep.subr.mxu0 0.0
      %2656 = vmatpush1.msra.mxu0 0.0
      %2657 = vmatprep.subr.mxu0 0.0
      %2658 = vmatpush1.msra.mxu0 0.0
      %2659 = vmatprep.subr.mxu0 0.0
      %2660 = vmatpush1.msra.mxu0 0.0
      %2661 = vmatprep.subr.mxu0 0.0
      %2662 = vmatpush1.msra.mxu0 0.0
      %2663 = vmatprep.subr.mxu0 0.0
      %2664 = vmatpush1.msra.mxu0 0.0
      %2665 = vmatprep.subr.mxu0 0.0
      %2666 = vmatpush1.msra.mxu0 0.0
      %2667 = vmatprep.subr.mxu0 0.0
      %2668 = vmatpush1.msra.mxu0 0.0
      %2669 = vmatprep.subr.mxu0 0.0
      %2670 = vmatpush1.msra.mxu0 0.0
      %2671 = vmatprep.mubr.f32.mxu0 0.0
      %2672 = vmatmul.mubr.f32.gmra.mrb[0].mxu0 %v553
      %v2673 = vpop.f32.mrb[0].mxu0
      %v2674 = vadd.f32 0.0, %v2673
      %v2675 = vpop.f32.mrb[0].mxu0
      %2676 = vdwg.mxu0
      %v2677 = vsel %vm290, %v2601, 0
      %2679 = vmatprep.subr.mxu0 0.0
      %2680 = vmatpush1.msra.mxu0 %v2677
      %2681 = vmatprep.subr.mxu0 0.0
      %2682 = vmatpush1.msra.mxu0 0.0
      %2683 = vmatprep.subr.mxu0 0.0
      %2684 = vmatpush1.msra.mxu0 0.0
      %2685 = vmatprep.subr.mxu0 0.0
      %2686 = vmatpush1.msra.mxu0 0.0
      %2687 = vmatprep.subr.mxu0 0.0
      %2688 = vmatpush1.msra.mxu0 0.0
      %2689 = vmatprep.subr.mxu0 0.0
      %2690 = vmatpush1.msra.mxu0 0.0
      %2691 = vmatprep.subr.mxu0 0.0
      %2692 = vmatpush1.msra.mxu0 0.0
      %2693 = vmatprep.subr.mxu0 0.0
      %2694 = vmatpush1.msra.mxu0 0.0
      %2695 = vmatprep.subr.mxu0 0.0
      %2696 = vmatpush1.msra.mxu0 0.0
      %2697 = vmatprep.subr.mxu0 0.0
      %2698 = vmatpush1.msra.mxu0 0.0
      %2699 = vmatprep.subr.mxu0 0.0
      %2700 = vmatpush1.msra.mxu0 0.0
      %2701 = vmatprep.subr.mxu0 0.0
      %2702 = vmatpush1.msra.mxu0 0.0
      %2703 = vmatprep.subr.mxu0 0.0
      %2704 = vmatpush1.msra.mxu0 0.0
      %2705 = vmatprep.subr.mxu0 0.0
      %2706 = vmatpush1.msra.mxu0 0.0
      %2707 = vmatprep.subr.mxu0 0.0
      %2708 = vmatpush1.msra.mxu0 0.0
      %2709 = vmatprep.subr.mxu0 0.0
      %2710 = vmatpush1.msra.mxu0 0.0
      %2711 = vmatprep.subr.mxu0 0.0
      %2712 = vmatpush1.msra.mxu0 0.0
      %2713 = vmatprep.subr.mxu0 0.0
      %2714 = vmatpush1.msra.mxu0 0.0
      %2715 = vmatprep.subr.mxu0 0.0
      %2716 = vmatpush1.msra.mxu0 0.0
      %2717 = vmatprep.subr.mxu0 0.0
      %2718 = vmatpush1.msra.mxu0 0.0
      %2719 = vmatprep.subr.mxu0 0.0
      %2720 = vmatpush1.msra.mxu0 0.0
      %2721 = vmatprep.subr.mxu0 0.0
      %2722 = vmatpush1.msra.mxu0 0.0
      %2723 = vmatprep.subr.mxu0 0.0
      %2724 = vmatpush1.msra.mxu0 0.0
      %2725 = vmatprep.subr.mxu0 0.0
      %2726 = vmatpush1.msra.mxu0 0.0
      %2727 = vmatprep.subr.mxu0 0.0
      %2728 = vmatpush1.msra.mxu0 0.0
      %2729 = vmatprep.subr.mxu0 0.0
      %2730 = vmatpush1.msra.mxu0 0.0
      %2731 = vmatprep.subr.mxu0 0.0
      %2732 = vmatpush1.msra.mxu0 0.0
      %2733 = vmatprep.subr.mxu0 0.0
      %2734 = vmatpush1.msra.mxu0 0.0
      %2735 = vmatprep.subr.mxu0 0.0
      %2736 = vmatpush1.msra.mxu0 0.0
      %2737 = vmatprep.subr.mxu0 0.0
      %2738 = vmatpush1.msra.mxu0 0.0
      %2739 = vmatprep.subr.mxu0 0.0
      %2740 = vmatpush1.msra.mxu0 0.0
      %2741 = vmatprep.subr.mxu0 0.0
      %2742 = vmatpush1.msra.mxu0 0.0
      %2743 = vmatprep.mubr.f32.mxu0 0.0
      %2744 = vmatmul.mubr.f32.gmra.mrb[0].mxu0 %v628
      %v2745 = vpop.f32.mrb[0].mxu0
      %v2746 = vadd.f32 %v2674, %v2745
      %v2747 = vpop.f32.mrb[0].mxu0
      %2748 = vdwg.mxu0
      %2749 = vrot.lane.b32.xlu0 %v2601, 126
      %v2750 = vpop.permute.xlu0 %2749
      %v2751 = vsel %vm290, %v2750, 0
      %2753 = vmatprep.subr.mxu0 0.0
      %2754 = vmatpush1.msra.mxu0 %v2751
      %2755 = vmatprep.subr.mxu0 0.0
      %2756 = vmatpush1.msra.mxu0 0.0
      %2757 = vmatprep.subr.mxu0 0.0
      %2758 = vmatpush1.msra.mxu0 0.0
      %2759 = vmatprep.subr.mxu0 0.0
      %2760 = vmatpush1.msra.mxu0 0.0
      %2761 = vmatprep.subr.mxu0 0.0
      %2762 = vmatpush1.msra.mxu0 0.0
      %2763 = vmatprep.subr.mxu0 0.0
      %2764 = vmatpush1.msra.mxu0 0.0
      %2765 = vmatprep.subr.mxu0 0.0
      %2766 = vmatpush1.msra.mxu0 0.0
      %2767 = vmatprep.subr.mxu0 0.0
      %2768 = vmatpush1.msra.mxu0 0.0
      %2769 = vmatprep.subr.mxu0 0.0
      %2770 = vmatpush1.msra.mxu0 0.0
      %2771 = vmatprep.subr.mxu0 0.0
      %2772 = vmatpush1.msra.mxu0 0.0
      %2773 = vmatprep.subr.mxu0 0.0
      %2774 = vmatpush1.msra.mxu0 0.0
      %2775 = vmatprep.subr.mxu0 0.0
      %2776 = vmatpush1.msra.mxu0 0.0
      %2777 = vmatprep.subr.mxu0 0.0
      %2778 = vmatpush1.msra.mxu0 0.0
      %2779 = vmatprep.subr.mxu0 0.0
      %2780 = vmatpush1.msra.mxu0 0.0
      %2781 = vmatprep.subr.mxu0 0.0
      %2782 = vmatpush1.msra.mxu0 0.0
      %2783 = vmatprep.subr.mxu0 0.0
      %2784 = vmatpush1.msra.mxu0 0.0
      %2785 = vmatprep.subr.mxu0 0.0
      %2786 = vmatpush1.msra.mxu0 0.0
      %2787 = vmatprep.subr.mxu0 0.0
      %2788 = vmatpush1.msra.mxu0 0.0
      %2789 = vmatprep.subr.mxu0 0.0
      %2790 = vmatpush1.msra.mxu0 0.0
      %2791 = vmatprep.subr.mxu0 0.0
      %2792 = vmatpush1.msra.mxu0 0.0
      %2793 = vmatprep.subr.mxu0 0.0
      %2794 = vmatpush1.msra.mxu0 0.0
      %2795 = vmatprep.subr.mxu0 0.0
      %2796 = vmatpush1.msra.mxu0 0.0
      %2797 = vmatprep.subr.mxu0 0.0
      %2798 = vmatpush1.msra.mxu0 0.0
      %2799 = vmatprep.subr.mxu0 0.0
      %2800 = vmatpush1.msra.mxu0 0.0
      %2801 = vmatprep.subr.mxu0 0.0
      %2802 = vmatpush1.msra.mxu0 0.0
      %2803 = vmatprep.subr.mxu0 0.0
      %2804 = vmatpush1.msra.mxu0 0.0
      %2805 = vmatprep.subr.mxu0 0.0
      %2806 = vmatpush1.msra.mxu0 0.0
      %2807 = vmatprep.subr.mxu0 0.0
      %2808 = vmatpush1.msra.mxu0 0.0
      %2809 = vmatprep.subr.mxu0 0.0
      %2810 = vmatpush1.msra.mxu0 0.0
      %2811 = vmatprep.subr.mxu0 0.0
      %2812 = vmatpush1.msra.mxu0 0.0
      %2813 = vmatprep.subr.mxu0 0.0
      %2814 = vmatpush1.msra.mxu0 0.0
      %2815 = vmatprep.subr.mxu0 0.0
      %2816 = vmatpush1.msra.mxu0 0.0
      %2817 = vmatprep.mubr.f32.mxu0 0.0
      %2818 = vmatmul.mubr.f32.gmra.mrb[0].mxu0 %v705
      %v2819 = vpop.f32.mrb[0].mxu0
      %v2820 = vadd.f32 0.0, %v2819
      %v2821 = vpop.f32.mrb[0].mxu0
      %2822 = vdwg.mxu0
      %v2823 = vadd.f32 %v2746, %v2820
      %v2824 = vadd.f32 %v2313, %v2823
      %v2825 = vmul.f32 %v2823, %v2823
      %v2826 = vadd.f32 %v2315, %v2825
      %v2827 = vpack.c.bf16 %v2823, %v2823
      %v2829 = vunpack.c.l.b16 %v2827
      %v2830 = vpack.c.b16 %v2829, %v2829
      %2831 = vrot.lane.b32.xlu0 %v2830, 90
      %v2832 = vpop.permute.xlu0 %2831
      %vm2834 = vcmask 880336
      %2835 = vst.msk [vmem:[%s237] sm:$0xf] %vm2834, %v2832
      %v2836 = vld [vmem:[%s232 + $0x5] sm:$0x1]
      %v2837 = vld [vmem:[%s232 + $0x1d] sm:$0x1]
      %v2838 = vld [vmem:[%s232 + $0x35] sm:$0x1]
      %v2839 = vld [vmem:[%s232 + $0x4d] sm:$0x1]
      %v2840 = vmax.f32 %v2836, 0.0
      %v2841 = vmax.f32 %v2837, 0.0
      %v2842 = vmax.f32 %v2838, 0.0
      %v2843 = vmax.f32 %v2839, 0.0
      %v2844 = vld [vmem:[%s232 + $0x6] sm:$0x1]
      %v2845 = vld [vmem:[%s232 + $0x1e] sm:$0x1]
      %v2846 = vld [vmem:[%s232 + $0x36] sm:$0x1]
      %v2847 = vld [vmem:[%s232 + $0x4e] sm:$0x1]
      %v2848 = vmax.f32 %v2844, 0.0
      %v2849 = vmax.f32 %v2845, 0.0
      %v2850 = vmax.f32 %v2846, 0.0
      %v2851 = vmax.f32 %v2847, 0.0
      %v2856 = vrot.slane %v2849, 7
      %v2857 = vsel %vm278, %v2856, %v2848
      %v2858 = vrot.slane %v2850, 6
      %v2859 = vsel %vm281, %v2858, %v2857
      %v2860 = vrot.slane %v2851, 5
      %v2861 = vsel %vm284, %v2860, %v2859
      %v2862 = vsel %vm290, %v2861, 0
      %2864 = vmatprep.subr.mxu0 0.0
      %2865 = vmatpush1.msra.mxu0 %v2862
      %2866 = vmatprep.subr.mxu0 0.0
      %2867 = vmatpush1.msra.mxu0 0.0
      %2868 = vmatprep.subr.mxu0 0.0
      %2869 = vmatpush1.msra.mxu0 0.0
      %2870 = vmatprep.subr.mxu0 0.0
      %2871 = vmatpush1.msra.mxu0 0.0
      %2872 = vmatprep.subr.mxu0 0.0
      %2873 = vmatpush1.msra.mxu0 0.0
      %2874 = vmatprep.subr.mxu0 0.0
      %2875 = vmatpush1.msra.mxu0 0.0
      %2876 = vmatprep.subr.mxu0 0.0
      %2877 = vmatpush1.msra.mxu0 0.0
      %2878 = vmatprep.subr.mxu0 0.0
      %2879 = vmatpush1.msra.mxu0 0.0
      %2880 = vmatprep.subr.mxu0 0.0
      %2881 = vmatpush1.msra.mxu0 0.0
      %2882 = vmatprep.subr.mxu0 0.0
      %2883 = vmatpush1.msra.mxu0 0.0
      %2884 = vmatprep.subr.mxu0 0.0
      %2885 = vmatpush1.msra.mxu0 0.0
      %2886 = vmatprep.subr.mxu0 0.0
      %2887 = vmatpush1.msra.mxu0 0.0
      %2888 = vmatprep.subr.mxu0 0.0
      %2889 = vmatpush1.msra.mxu0 0.0
      %2890 = vmatprep.subr.mxu0 0.0
      %2891 = vmatpush1.msra.mxu0 0.0
      %2892 = vmatprep.subr.mxu0 0.0
      %2893 = vmatpush1.msra.mxu0 0.0
      %2894 = vmatprep.subr.mxu0 0.0
      %2895 = vmatpush1.msra.mxu0 0.0
      %2896 = vmatprep.subr.mxu0 0.0
      %2897 = vmatpush1.msra.mxu0 0.0
      %2898 = vmatprep.subr.mxu0 0.0
      %2899 = vmatpush1.msra.mxu0 0.0
      %2900 = vmatprep.subr.mxu0 0.0
      %2901 = vmatpush1.msra.mxu0 0.0
      %2902 = vmatprep.subr.mxu0 0.0
      %2903 = vmatpush1.msra.mxu0 0.0
      %2904 = vmatprep.subr.mxu0 0.0
      %2905 = vmatpush1.msra.mxu0 0.0
      %2906 = vmatprep.subr.mxu0 0.0
      %2907 = vmatpush1.msra.mxu0 0.0
      %2908 = vmatprep.subr.mxu0 0.0
      %2909 = vmatpush1.msra.mxu0 0.0
      %2910 = vmatprep.subr.mxu0 0.0
      %2911 = vmatpush1.msra.mxu0 0.0
      %2912 = vmatprep.subr.mxu0 0.0
      %2913 = vmatpush1.msra.mxu0 0.0
      %2914 = vmatprep.subr.mxu0 0.0
      %2915 = vmatpush1.msra.mxu0 0.0
      %2916 = vmatprep.subr.mxu0 0.0
      %2917 = vmatpush1.msra.mxu0 0.0
      %2918 = vmatprep.subr.mxu0 0.0
      %2919 = vmatpush1.msra.mxu0 0.0
      %2920 = vmatprep.subr.mxu0 0.0
      %2921 = vmatpush1.msra.mxu0 0.0
      %2922 = vmatprep.subr.mxu0 0.0
      %2923 = vmatpush1.msra.mxu0 0.0
      %2924 = vmatprep.subr.mxu0 0.0
      %2925 = vmatpush1.msra.mxu0 0.0
      %2926 = vmatprep.subr.mxu0 0.0
      %2927 = vmatpush1.msra.mxu0 0.0
      %2928 = vmatprep.mubr.f32.mxu0 0.0
      %2929 = vmatmul.mubr.f32.gmra.mrb[0].mxu0 %v288
      %v2930 = vpop.f32.mrb[0].mxu0
      %v2931 = vadd.f32 0.0, %v2930
      %v2932 = vpop.f32.mrb[0].mxu0
      %2933 = vdwg.mxu0
      %v2938 = vrot.slane %v2841, 7
      %v2939 = vsel %vm278, %v2938, %v2840
      %v2940 = vrot.slane %v2842, 6
      %v2941 = vsel %vm281, %v2940, %v2939
      %v2942 = vrot.slane %v2843, 5
      %v2943 = vsel %vm284, %v2942, %v2941
      %v2944 = vsel %vm290, %v2943, 0
      %2946 = vmatprep.subr.mxu0 0.0
      %2947 = vmatpush1.msra.mxu0 %v2944
      %2948 = vmatprep.subr.mxu0 0.0
      %2949 = vmatpush1.msra.mxu0 0.0
      %2950 = vmatprep.subr.mxu0 0.0
      %2951 = vmatpush1.msra.mxu0 0.0
      %2952 = vmatprep.subr.mxu0 0.0
      %2953 = vmatpush1.msra.mxu0 0.0
      %2954 = vmatprep.subr.mxu0 0.0
      %2955 = vmatpush1.msra.mxu0 0.0
      %2956 = vmatprep.subr.mxu0 0.0
      %2957 = vmatpush1.msra.mxu0 0.0
      %2958 = vmatprep.subr.mxu0 0.0
      %2959 = vmatpush1.msra.mxu0 0.0
      %2960 = vmatprep.subr.mxu0 0.0
      %2961 = vmatpush1.msra.mxu0 0.0
      %2962 = vmatprep.subr.mxu0 0.0
      %2963 = vmatpush1.msra.mxu0 0.0
      %2964 = vmatprep.subr.mxu0 0.0
      %2965 = vmatpush1.msra.mxu0 0.0
      %2966 = vmatprep.subr.mxu0 0.0
      %2967 = vmatpush1.msra.mxu0 0.0
      %2968 = vmatprep.subr.mxu0 0.0
      %2969 = vmatpush1.msra.mxu0 0.0
      %2970 = vmatprep.subr.mxu0 0.0
      %2971 = vmatpush1.msra.mxu0 0.0
      %2972 = vmatprep.subr.mxu0 0.0
      %2973 = vmatpush1.msra.mxu0 0.0
      %2974 = vmatprep.subr.mxu0 0.0
      %2975 = vmatpush1.msra.mxu0 0.0
      %2976 = vmatprep.subr.mxu0 0.0
      %2977 = vmatpush1.msra.mxu0 0.0
      %2978 = vmatprep.subr.mxu0 0.0
      %2979 = vmatpush1.msra.mxu0 0.0
      %2980 = vmatprep.subr.mxu0 0.0
      %2981 = vmatpush1.msra.mxu0 0.0
      %2982 = vmatprep.subr.mxu0 0.0
      %2983 = vmatpush1.msra.mxu0 0.0
      %2984 = vmatprep.subr.mxu0 0.0
      %2985 = vmatpush1.msra.mxu0 0.0
      %2986 = vmatprep.subr.mxu0 0.0
      %2987 = vmatpush1.msra.mxu0 0.0
      %2988 = vmatprep.subr.mxu0 0.0
      %2989 = vmatpush1.msra.mxu0 0.0
      %2990 = vmatprep.subr.mxu0 0.0
      %2991 = vmatpush1.msra.mxu0 0.0
      %2992 = vmatprep.subr.mxu0 0.0
      %2993 = vmatpush1.msra.mxu0 0.0
      %2994 = vmatprep.subr.mxu0 0.0
      %2995 = vmatpush1.msra.mxu0 0.0
      %2996 = vmatprep.subr.mxu0 0.0
      %2997 = vmatpush1.msra.mxu0 0.0
      %2998 = vmatprep.subr.mxu0 0.0
      %2999 = vmatpush1.msra.mxu0 0.0
      %3000 = vmatprep.subr.mxu0 0.0
      %3001 = vmatpush1.msra.mxu0 0.0
      %3002 = vmatprep.subr.mxu0 0.0
      %3003 = vmatpush1.msra.mxu0 0.0
      %3004 = vmatprep.subr.mxu0 0.0
      %3005 = vmatpush1.msra.mxu0 0.0
      %3006 = vmatprep.subr.mxu0 0.0
      %3007 = vmatpush1.msra.mxu0 0.0
      %3008 = vmatprep.subr.mxu0 0.0
      %3009 = vmatpush1.msra.mxu0 0.0
      %3010 = vmatprep.mubr.f32.mxu0 0.0
      %3011 = vmatmul.mubr.f32.gmra.mrb[0].mxu0 %v374
      %v3012 = vpop.f32.mrb[0].mxu0
      %v3013 = vadd.f32 %v2931, %v3012
      %v3014 = vpop.f32.mrb[0].mxu0
      %3015 = vdwg.mxu0
      %v3016 = vld [vmem:[%s232 + $0x7] sm:$0x1]
      %v3017 = vld [vmem:[%s232 + $0x1f] sm:$0x1]
      %v3018 = vld [vmem:[%s232 + $0x37] sm:$0x1]
      %v3019 = vld [vmem:[%s232 + $0x4f] sm:$0x1]
      %v3020 = vmax.f32 %v3016, 0.0
      %v3021 = vmax.f32 %v3017, 0.0
      %v3022 = vmax.f32 %v3018, 0.0
      %v3023 = vmax.f32 %v3019, 0.0
      %v3028 = vrot.slane %v3021, 7
      %v3029 = vsel %vm278, %v3028, %v3020
      %v3030 = vrot.slane %v3022, 6
      %v3031 = vsel %vm281, %v3030, %v3029
      %v3032 = vrot.slane %v3023, 5
      %v3033 = vsel %vm284, %v3032, %v3031
      %v3034 = vsel %vm290, %v3033, 0
      %3036 = vmatprep.subr.mxu0 0.0
      %3037 = vmatpush1.msra.mxu0 %v3034
      %3038 = vmatprep.subr.mxu0 0.0
      %3039 = vmatpush1.msra.mxu0 0.0
      %3040 = vmatprep.subr.mxu0 0.0
      %3041 = vmatpush1.msra.mxu0 0.0
      %3042 = vmatprep.subr.mxu0 0.0
      %3043 = vmatpush1.msra.mxu0 0.0
      %3044 = vmatprep.subr.mxu0 0.0
      %3045 = vmatpush1.msra.mxu0 0.0
      %3046 = vmatprep.subr.mxu0 0.0
      %3047 = vmatpush1.msra.mxu0 0.0
      %3048 = vmatprep.subr.mxu0 0.0
      %3049 = vmatpush1.msra.mxu0 0.0
      %3050 = vmatprep.subr.mxu0 0.0
      %3051 = vmatpush1.msra.mxu0 0.0
      %3052 = vmatprep.subr.mxu0 0.0
      %3053 = vmatpush1.msra.mxu0 0.0
      %3054 = vmatprep.subr.mxu0 0.0
      %3055 = vmatpush1.msra.mxu0 0.0
      %3056 = vmatprep.subr.mxu0 0.0
      %3057 = vmatpush1.msra.mxu0 0.0
      %3058 = vmatprep.subr.mxu0 0.0
      %3059 = vmatpush1.msra.mxu0 0.0
      %3060 = vmatprep.subr.mxu0 0.0
      %3061 = vmatpush1.msra.mxu0 0.0
      %3062 = vmatprep.subr.mxu0 0.0
      %3063 = vmatpush1.msra.mxu0 0.0
      %3064 = vmatprep.subr.mxu0 0.0
      %3065 = vmatpush1.msra.mxu0 0.0
      %3066 = vmatprep.subr.mxu0 0.0
      %3067 = vmatpush1.msra.mxu0 0.0
      %3068 = vmatprep.subr.mxu0 0.0
      %3069 = vmatpush1.msra.mxu0 0.0
      %3070 = vmatprep.subr.mxu0 0.0
      %3071 = vmatpush1.msra.mxu0 0.0
      %3072 = vmatprep.subr.mxu0 0.0
      %3073 = vmatpush1.msra.mxu0 0.0
      %3074 = vmatprep.subr.mxu0 0.0
      %3075 = vmatpush1.msra.mxu0 0.0
      %3076 = vmatprep.subr.mxu0 0.0
      %3077 = vmatpush1.msra.mxu0 0.0
      %3078 = vmatprep.subr.mxu0 0.0
      %3079 = vmatpush1.msra.mxu0 0.0
      %3080 = vmatprep.subr.mxu0 0.0
      %3081 = vmatpush1.msra.mxu0 0.0
      %3082 = vmatprep.subr.mxu0 0.0
      %3083 = vmatpush1.msra.mxu0 0.0
      %3084 = vmatprep.subr.mxu0 0.0
      %3085 = vmatpush1.msra.mxu0 0.0
      %3086 = vmatprep.subr.mxu0 0.0
      %3087 = vmatpush1.msra.mxu0 0.0
      %3088 = vmatprep.subr.mxu0 0.0
      %3089 = vmatpush1.msra.mxu0 0.0
      %3090 = vmatprep.subr.mxu0 0.0
      %3091 = vmatpush1.msra.mxu0 0.0
      %3092 = vmatprep.subr.mxu0 0.0
      %3093 = vmatpush1.msra.mxu0 0.0
      %3094 = vmatprep.subr.mxu0 0.0
      %3095 = vmatpush1.msra.mxu0 0.0
      %3096 = vmatprep.subr.mxu0 0.0
      %3097 = vmatpush1.msra.mxu0 0.0
      %3098 = vmatprep.subr.mxu0 0.0
      %3099 = vmatpush1.msra.mxu0 0.0
      %3100 = vmatprep.mubr.f32.mxu0 0.0
      %3101 = vmatmul.mubr.f32.gmra.mrb[0].mxu0 %v467
      %v3102 = vpop.f32.mrb[0].mxu0
      %v3103 = vadd.f32 0.0, %v3102
      %v3104 = vpop.f32.mrb[0].mxu0
      %3105 = vdwg.mxu0
      %v3106 = vadd.f32 %v3013, %v3103
      %3108 = vrot.lane.b32.xlu0 %v3106, 1
      %v3109 = vpop.permute.xlu0 %3108
      %3111 = vst.msk [vmem:[#allocation2] sm:$0xf] %vm546, %v3109
      %v3112 = vld [vmem:[#allocation2] sm:$0xf]
      %3114 = vrot.lane.b32.xlu0 %v3112, 127
      %v3115 = vpop.permute.xlu0 %3114
      %v3116 = vsel %vm290, %v3115, 0
      %3118 = vmatprep.subr.mxu0 0.0
      %3119 = vmatpush1.msra.mxu0 %v3116
      %3120 = vmatprep.subr.mxu0 0.0
      %3121 = vmatpush1.msra.mxu0 0.0
      %3122 = vmatprep.subr.mxu0 0.0
      %3123 = vmatpush1.msra.mxu0 0.0
      %3124 = vmatprep.subr.mxu0 0.0
      %3125 = vmatpush1.msra.mxu0 0.0
      %3126 = vmatprep.subr.mxu0 0.0
      %3127 = vmatpush1.msra.mxu0 0.0
      %3128 = vmatprep.subr.mxu0 0.0
      %3129 = vmatpush1.msra.mxu0 0.0
      %3130 = vmatprep.subr.mxu0 0.0
      %3131 = vmatpush1.msra.mxu0 0.0
      %3132 = vmatprep.subr.mxu0 0.0
      %3133 = vmatpush1.msra.mxu0 0.0
      %3134 = vmatprep.subr.mxu0 0.0
      %3135 = vmatpush1.msra.mxu0 0.0
      %3136 = vmatprep.subr.mxu0 0.0
      %3137 = vmatpush1.msra.mxu0 0.0
      %3138 = vmatprep.subr.mxu0 0.0
      %3139 = vmatpush1.msra.mxu0 0.0
      %3140 = vmatprep.subr.mxu0 0.0
      %3141 = vmatpush1.msra.mxu0 0.0
      %3142 = vmatprep.subr.mxu0 0.0
      %3143 = vmatpush1.msra.mxu0 0.0
      %3144 = vmatprep.subr.mxu0 0.0
      %3145 = vmatpush1.msra.mxu0 0.0
      %3146 = vmatprep.subr.mxu0 0.0
      %3147 = vmatpush1.msra.mxu0 0.0
      %3148 = vmatprep.subr.mxu0 0.0
      %3149 = vmatpush1.msra.mxu0 0.0
      %3150 = vmatprep.subr.mxu0 0.0
      %3151 = vmatpush1.msra.mxu0 0.0
      %3152 = vmatprep.subr.mxu0 0.0
      %3153 = vmatpush1.msra.mxu0 0.0
      %3154 = vmatprep.subr.mxu0 0.0
      %3155 = vmatpush1.msra.mxu0 0.0
      %3156 = vmatprep.subr.mxu0 0.0
      %3157 = vmatpush1.msra.mxu0 0.0
      %3158 = vmatprep.subr.mxu0 0.0
      %3159 = vmatpush1.msra.mxu0 0.0
      %3160 = vmatprep.subr.mxu0 0.0
      %3161 = vmatpush1.msra.mxu0 0.0
      %3162 = vmatprep.subr.mxu0 0.0
      %3163 = vmatpush1.msra.mxu0 0.0
      %3164 = vmatprep.subr.mxu0 0.0
      %3165 = vmatpush1.msra.mxu0 0.0
      %3166 = vmatprep.subr.mxu0 0.0
      %3167 = vmatpush1.msra.mxu0 0.0
      %3168 = vmatprep.subr.mxu0 0.0
      %3169 = vmatpush1.msra.mxu0 0.0
      %3170 = vmatprep.subr.mxu0 0.0
      %3171 = vmatpush1.msra.mxu0 0.0
      %3172 = vmatprep.subr.mxu0 0.0
      %3173 = vmatpush1.msra.mxu0 0.0
      %3174 = vmatprep.subr.mxu0 0.0
      %3175 = vmatpush1.msra.mxu0 0.0
      %3176 = vmatprep.subr.mxu0 0.0
      %3177 = vmatpush1.msra.mxu0 0.0
      %3178 = vmatprep.subr.mxu0 0.0
      %3179 = vmatpush1.msra.mxu0 0.0
      %3180 = vmatprep.subr.mxu0 0.0
      %3181 = vmatpush1.msra.mxu0 0.0
      %3182 = vmatprep.mubr.f32.mxu0 0.0
      %3183 = vmatmul.mubr.f32.gmra.mrb[0].mxu0 %v553
      %v3184 = vpop.f32.mrb[0].mxu0
      %v3185 = vadd.f32 0.0, %v3184
      %v3186 = vpop.f32.mrb[0].mxu0
      %3187 = vdwg.mxu0
      %v3188 = vsel %vm290, %v3112, 0
      %3190 = vmatprep.subr.mxu0 0.0
      %3191 = vmatpush1.msra.mxu0 %v3188
      %3192 = vmatprep.subr.mxu0 0.0
      %3193 = vmatpush1.msra.mxu0 0.0
      %3194 = vmatprep.subr.mxu0 0.0
      %3195 = vmatpush1.msra.mxu0 0.0
      %3196 = vmatprep.subr.mxu0 0.0
      %3197 = vmatpush1.msra.mxu0 0.0
      %3198 = vmatprep.subr.mxu0 0.0
      %3199 = vmatpush1.msra.mxu0 0.0
      %3200 = vmatprep.subr.mxu0 0.0
      %3201 = vmatpush1.msra.mxu0 0.0
      %3202 = vmatprep.subr.mxu0 0.0
      %3203 = vmatpush1.msra.mxu0 0.0
      %3204 = vmatprep.subr.mxu0 0.0
      %3205 = vmatpush1.msra.mxu0 0.0
      %3206 = vmatprep.subr.mxu0 0.0
      %3207 = vmatpush1.msra.mxu0 0.0
      %3208 = vmatprep.subr.mxu0 0.0
      %3209 = vmatpush1.msra.mxu0 0.0
      %3210 = vmatprep.subr.mxu0 0.0
      %3211 = vmatpush1.msra.mxu0 0.0
      %3212 = vmatprep.subr.mxu0 0.0
      %3213 = vmatpush1.msra.mxu0 0.0
      %3214 = vmatprep.subr.mxu0 0.0
      %3215 = vmatpush1.msra.mxu0 0.0
      %3216 = vmatprep.subr.mxu0 0.0
      %3217 = vmatpush1.msra.mxu0 0.0
      %3218 = vmatprep.subr.mxu0 0.0
      %3219 = vmatpush1.msra.mxu0 0.0
      %3220 = vmatprep.subr.mxu0 0.0
      %3221 = vmatpush1.msra.mxu0 0.0
      %3222 = vmatprep.subr.mxu0 0.0
      %3223 = vmatpush1.msra.mxu0 0.0
      %3224 = vmatprep.subr.mxu0 0.0
      %3225 = vmatpush1.msra.mxu0 0.0
      %3226 = vmatprep.subr.mxu0 0.0
      %3227 = vmatpush1.msra.mxu0 0.0
      %3228 = vmatprep.subr.mxu0 0.0
      %3229 = vmatpush1.msra.mxu0 0.0
      %3230 = vmatprep.subr.mxu0 0.0
      %3231 = vmatpush1.msra.mxu0 0.0
      %3232 = vmatprep.subr.mxu0 0.0
      %3233 = vmatpush1.msra.mxu0 0.0
      %3234 = vmatprep.subr.mxu0 0.0
      %3235 = vmatpush1.msra.mxu0 0.0
      %3236 = vmatprep.subr.mxu0 0.0
      %3237 = vmatpush1.msra.mxu0 0.0
      %3238 = vmatprep.subr.mxu0 0.0
      %3239 = vmatpush1.msra.mxu0 0.0
      %3240 = vmatprep.subr.mxu0 0.0
      %3241 = vmatpush1.msra.mxu0 0.0
      %3242 = vmatprep.subr.mxu0 0.0
      %3243 = vmatpush1.msra.mxu0 0.0
      %3244 = vmatprep.subr.mxu0 0.0
      %3245 = vmatpush1.msra.mxu0 0.0
      %3246 = vmatprep.subr.mxu0 0.0
      %3247 = vmatpush1.msra.mxu0 0.0
      %3248 = vmatprep.subr.mxu0 0.0
      %3249 = vmatpush1.msra.mxu0 0.0
      %3250 = vmatprep.subr.mxu0 0.0
      %3251 = vmatpush1.msra.mxu0 0.0
      %3252 = vmatprep.subr.mxu0 0.0
      %3253 = vmatpush1.msra.mxu0 0.0
      %3254 = vmatprep.mubr.f32.mxu0 0.0
      %3255 = vmatmul.mubr.f32.gmra.mrb[0].mxu0 %v628
      %v3256 = vpop.f32.mrb[0].mxu0
      %v3257 = vadd.f32 %v3185, %v3256
      %v3258 = vpop.f32.mrb[0].mxu0
      %3259 = vdwg.mxu0
      %3260 = vrot.lane.b32.xlu0 %v3112, 126
      %v3261 = vpop.permute.xlu0 %3260
      %v3262 = vsel %vm290, %v3261, 0
      %3264 = vmatprep.subr.mxu0 0.0
      %3265 = vmatpush1.msra.mxu0 %v3262
      %3266 = vmatprep.subr.mxu0 0.0
      %3267 = vmatpush1.msra.mxu0 0.0
      %3268 = vmatprep.subr.mxu0 0.0
      %3269 = vmatpush1.msra.mxu0 0.0
      %3270 = vmatprep.subr.mxu0 0.0
      %3271 = vmatpush1.msra.mxu0 0.0
      %3272 = vmatprep.subr.mxu0 0.0
      %3273 = vmatpush1.msra.mxu0 0.0
      %3274 = vmatprep.subr.mxu0 0.0
      %3275 = vmatpush1.msra.mxu0 0.0
      %3276 = vmatprep.subr.mxu0 0.0
      %3277 = vmatpush1.msra.mxu0 0.0
      %3278 = vmatprep.subr.mxu0 0.0
      %3279 = vmatpush1.msra.mxu0 0.0
      %3280 = vmatprep.subr.mxu0 0.0
      %3281 = vmatpush1.msra.mxu0 0.0
      %3282 = vmatprep.subr.mxu0 0.0
      %3283 = vmatpush1.msra.mxu0 0.0
      %3284 = vmatprep.subr.mxu0 0.0
      %3285 = vmatpush1.msra.mxu0 0.0
      %3286 = vmatprep.subr.mxu0 0.0
      %3287 = vmatpush1.msra.mxu0 0.0
      %3288 = vmatprep.subr.mxu0 0.0
      %3289 = vmatpush1.msra.mxu0 0.0
      %3290 = vmatprep.subr.mxu0 0.0
      %3291 = vmatpush1.msra.mxu0 0.0
      %3292 = vmatprep.subr.mxu0 0.0
      %3293 = vmatpush1.msra.mxu0 0.0
      %3294 = vmatprep.subr.mxu0 0.0
      %3295 = vmatpush1.msra.mxu0 0.0
      %3296 = vmatprep.subr.mxu0 0.0
      %3297 = vmatpush1.msra.mxu0 0.0
      %3298 = vmatprep.subr.mxu0 0.0
      %3299 = vmatpush1.msra.mxu0 0.0
      %3300 = vmatprep.subr.mxu0 0.0
      %3301 = vmatpush1.msra.mxu0 0.0
      %3302 = vmatprep.subr.mxu0 0.0
      %3303 = vmatpush1.msra.mxu0 0.0
      %3304 = vmatprep.subr.mxu0 0.0
      %3305 = vmatpush1.msra.mxu0 0.0
      %3306 = vmatprep.subr.mxu0 0.0
      %3307 = vmatpush1.msra.mxu0 0.0
      %3308 = vmatprep.subr.mxu0 0.0
      %3309 = vmatpush1.msra.mxu0 0.0
      %3310 = vmatprep.subr.mxu0 0.0
      %3311 = vmatpush1.msra.mxu0 0.0
      %3312 = vmatprep.subr.mxu0 0.0
      %3313 = vmatpush1.msra.mxu0 0.0
      %3314 = vmatprep.subr.mxu0 0.0
      %3315 = vmatpush1.msra.mxu0 0.0
      %3316 = vmatprep.subr.mxu0 0.0
      %3317 = vmatpush1.msra.mxu0 0.0
      %3318 = vmatprep.subr.mxu0 0.0
      %3319 = vmatpush1.msra.mxu0 0.0
      %3320 = vmatprep.subr.mxu0 0.0
      %3321 = vmatpush1.msra.mxu0 0.0
      %3322 = vmatprep.subr.mxu0 0.0
      %3323 = vmatpush1.msra.mxu0 0.0
      %3324 = vmatprep.subr.mxu0 0.0
      %3325 = vmatpush1.msra.mxu0 0.0
      %3326 = vmatprep.subr.mxu0 0.0
      %3327 = vmatpush1.msra.mxu0 0.0
      %3328 = vmatprep.mubr.f32.mxu0 0.0
      %3329 = vmatmul.mubr.f32.gmra.mrb[0].mxu0 %v705
      %v3330 = vpop.f32.mrb[0].mxu0
      %v3331 = vadd.f32 0.0, %v3330
      %v3332 = vpop.f32.mrb[0].mxu0
      %3333 = vdwg.mxu0
      %v3334 = vadd.f32 %v3257, %v3331
      %v3335 = vadd.f32 %v2824, %v3334
      %v3336 = vmul.f32 %v3334, %v3334
      %v3337 = vadd.f32 %v2826, %v3336
      %v3338 = vpack.c.bf16 %v3334, %v3334
      %v3340 = vunpack.c.l.b16 %v3338
      %v3341 = vpack.c.b16 %v3340, %v3340
      %3342 = vrot.lane.b32.xlu0 %v3341, 108
      %v3343 = vpop.permute.xlu0 %3342
      %vm3345 = vcmask 1027936
      %3346 = vst.msk [vmem:[%s237] sm:$0xf] %vm3345, %v3343
      %v3347 = vld [vmem:[%s232 + $0x6] sm:$0x1]
      %v3348 = vld [vmem:[%s232 + $0x1e] sm:$0x1]
      %v3349 = vld [vmem:[%s232 + $0x36] sm:$0x1]
      %v3350 = vld [vmem:[%s232 + $0x4e] sm:$0x1]
      %v3351 = vmax.f32 %v3347, 0.0
      %v3352 = vmax.f32 %v3348, 0.0
      %v3353 = vmax.f32 %v3349, 0.0
      %v3354 = vmax.f32 %v3350, 0.0
      %v3355 = vld [vmem:[%s232 + $0x7] sm:$0x1]
      %v3356 = vld [vmem:[%s232 + $0x1f] sm:$0x1]
      %v3357 = vld [vmem:[%s232 + $0x37] sm:$0x1]
      %v3358 = vld [vmem:[%s232 + $0x4f] sm:$0x1]
      %v3359 = vmax.f32 %v3355, 0.0
      %v3360 = vmax.f32 %v3356, 0.0
      %v3361 = vmax.f32 %v3357, 0.0
      %v3362 = vmax.f32 %v3358, 0.0
      %v3367 = vrot.slane %v3360, 7
      %v3368 = vsel %vm278, %v3367, %v3359
      %v3369 = vrot.slane %v3361, 6
      %v3370 = vsel %vm281, %v3369, %v3368
      %v3371 = vrot.slane %v3362, 5
      %v3372 = vsel %vm284, %v3371, %v3370
      %v3373 = vsel %vm290, %v3372, 0
      %3375 = vmatprep.subr.mxu0 0.0
      %3376 = vmatpush1.msra.mxu0 %v3373
      %3377 = vmatprep.subr.mxu0 0.0
      %3378 = vmatpush1.msra.mxu0 0.0
      %3379 = vmatprep.subr.mxu0 0.0
      %3380 = vmatpush1.msra.mxu0 0.0
      %3381 = vmatprep.subr.mxu0 0.0
      %3382 = vmatpush1.msra.mxu0 0.0
      %3383 = vmatprep.subr.mxu0 0.0
      %3384 = vmatpush1.msra.mxu0 0.0
      %3385 = vmatprep.subr.mxu0 0.0
      %3386 = vmatpush1.msra.mxu0 0.0
      %3387 = vmatprep.subr.mxu0 0.0
      %3388 = vmatpush1.msra.mxu0 0.0
      %3389 = vmatprep.subr.mxu0 0.0
      %3390 = vmatpush1.msra.mxu0 0.0
      %3391 = vmatprep.subr.mxu0 0.0
      %3392 = vmatpush1.msra.mxu0 0.0
      %3393 = vmatprep.subr.mxu0 0.0
      %3394 = vmatpush1.msra.mxu0 0.0
      %3395 = vmatprep.subr.mxu0 0.0
      %3396 = vmatpush1.msra.mxu0 0.0
      %3397 = vmatprep.subr.mxu0 0.0
      %3398 = vmatpush1.msra.mxu0 0.0
      %3399 = vmatprep.subr.mxu0 0.0
      %3400 = vmatpush1.msra.mxu0 0.0
      %3401 = vmatprep.subr.mxu0 0.0
      %3402 = vmatpush1.msra.mxu0 0.0
      %3403 = vmatprep.subr.mxu0 0.0
      %3404 = vmatpush1.msra.mxu0 0.0
      %3405 = vmatprep.subr.mxu0 0.0
      %3406 = vmatpush1.msra.mxu0 0.0
      %3407 = vmatprep.subr.mxu0 0.0
      %3408 = vmatpush1.msra.mxu0 0.0
      %3409 = vmatprep.subr.mxu0 0.0
      %3410 = vmatpush1.msra.mxu0 0.0
      %3411 = vmatprep.subr.mxu0 0.0
      %3412 = vmatpush1.msra.mxu0 0.0
      %3413 = vmatprep.subr.mxu0 0.0
      %3414 = vmatpush1.msra.mxu0 0.0
      %3415 = vmatprep.subr.mxu0 0.0
      %3416 = vmatpush1.msra.mxu0 0.0
      %3417 = vmatprep.subr.mxu0 0.0
      %3418 = vmatpush1.msra.mxu0 0.0
      %3419 = vmatprep.subr.mxu0 0.0
      %3420 = vmatpush1.msra.mxu0 0.0
      %3421 = vmatprep.subr.mxu0 0.0
      %3422 = vmatpush1.msra.mxu0 0.0
      %3423 = vmatprep.subr.mxu0 0.0
      %3424 = vmatpush1.msra.mxu0 0.0
      %3425 = vmatprep.subr.mxu0 0.0
      %3426 = vmatpush1.msra.mxu0 0.0
      %3427 = vmatprep.subr.mxu0 0.0
      %3428 = vmatpush1.msra.mxu0 0.0
      %3429 = vmatprep.subr.mxu0 0.0
      %3430 = vmatpush1.msra.mxu0 0.0
      %3431 = vmatprep.subr.mxu0 0.0
      %3432 = vmatpush1.msra.mxu0 0.0
      %3433 = vmatprep.subr.mxu0 0.0
      %3434 = vmatpush1.msra.mxu0 0.0
      %3435 = vmatprep.subr.mxu0 0.0
      %3436 = vmatpush1.msra.mxu0 0.0
      %3437 = vmatprep.subr.mxu0 0.0
      %3438 = vmatpush1.msra.mxu0 0.0
      %3439 = vmatprep.mubr.f32.mxu0 0.0
      %3440 = vmatmul.mubr.f32.gmra.mrb[0].mxu0 %v288
      %v3441 = vpop.f32.mrb[0].mxu0
      %v3442 = vadd.f32 0.0, %v3441
      %v3443 = vpop.f32.mrb[0].mxu0
      %3444 = vdwg.mxu0
      %v3449 = vrot.slane %v3352, 7
      %v3450 = vsel %vm278, %v3449, %v3351
      %v3451 = vrot.slane %v3353, 6
      %v3452 = vsel %vm281, %v3451, %v3450
      %v3453 = vrot.slane %v3354, 5
      %v3454 = vsel %vm284, %v3453, %v3452
      %v3455 = vsel %vm290, %v3454, 0
      %3457 = vmatprep.subr.mxu0 0.0
      %3458 = vmatpush1.msra.mxu0 %v3455
      %3459 = vmatprep.subr.mxu0 0.0
      %3460 = vmatpush1.msra.mxu0 0.0
      %3461 = vmatprep.subr.mxu0 0.0
      %3462 = vmatpush1.msra.mxu0 0.0
      %3463 = vmatprep.subr.mxu0 0.0
      %3464 = vmatpush1.msra.mxu0 0.0
      %3465 = vmatprep.subr.mxu0 0.0
      %3466 = vmatpush1.msra.mxu0 0.0
      %3467 = vmatprep.subr.mxu0 0.0
      %3468 = vmatpush1.msra.mxu0 0.0
      %3469 = vmatprep.subr.mxu0 0.0
      %3470 = vmatpush1.msra.mxu0 0.0
      %3471 = vmatprep.subr.mxu0 0.0
      %3472 = vmatpush1.msra.mxu0 0.0
      %3473 = vmatprep.subr.mxu0 0.0
      %3474 = vmatpush1.msra.mxu0 0.0
      %3475 = vmatprep.subr.mxu0 0.0
      %3476 = vmatpush1.msra.mxu0 0.0
      %3477 = vmatprep.subr.mxu0 0.0
      %3478 = vmatpush1.msra.mxu0 0.0
      %3479 = vmatprep.subr.mxu0 0.0
      %3480 = vmatpush1.msra.mxu0 0.0
      %3481 = vmatprep.subr.mxu0 0.0
      %3482 = vmatpush1.msra.mxu0 0.0
      %3483 = vmatprep.subr.mxu0 0.0
      %3484 = vmatpush1.msra.mxu0 0.0
      %3485 = vmatprep.subr.mxu0 0.0
      %3486 = vmatpush1.msra.mxu0 0.0
      %3487 = vmatprep.subr.mxu0 0.0
      %3488 = vmatpush1.msra.mxu0 0.0
      %3489 = vmatprep.subr.mxu0 0.0
      %3490 = vmatpush1.msra.mxu0 0.0
      %3491 = vmatprep.subr.mxu0 0.0
      %3492 = vmatpush1.msra.mxu0 0.0
      %3493 = vmatprep.subr.mxu0 0.0
      %3494 = vmatpush1.msra.mxu0 0.0
      %3495 = vmatprep.subr.mxu0 0.0
      %3496 = vmatpush1.msra.mxu0 0.0
      %3497 = vmatprep.subr.mxu0 0.0
      %3498 = vmatpush1.msra.mxu0 0.0
      %3499 = vmatprep.subr.mxu0 0.0
      %3500 = vmatpush1.msra.mxu0 0.0
      %3501 = vmatprep.subr.mxu0 0.0
      %3502 = vmatpush1.msra.mxu0 0.0
      %3503 = vmatprep.subr.mxu0 0.0
      %3504 = vmatpush1.msra.mxu0 0.0
      %3505 = vmatprep.subr.mxu0 0.0
      %3506 = vmatpush1.msra.mxu0 0.0
      %3507 = vmatprep.subr.mxu0 0.0
      %3508 = vmatpush1.msra.mxu0 0.0
      %3509 = vmatprep.subr.mxu0 0.0
      %3510 = vmatpush1.msra.mxu0 0.0
      %3511 = vmatprep.subr.mxu0 0.0
      %3512 = vmatpush1.msra.mxu0 0.0
      %3513 = vmatprep.subr.mxu0 0.0
      %3514 = vmatpush1.msra.mxu0 0.0
      %3515 = vmatprep.subr.mxu0 0.0
      %3516 = vmatpush1.msra.mxu0 0.0
      %3517 = vmatprep.subr.mxu0 0.0
      %3518 = vmatpush1.msra.mxu0 0.0
      %3519 = vmatprep.subr.mxu0 0.0
      %3520 = vmatpush1.msra.mxu0 0.0
      %3521 = vmatprep.mubr.f32.mxu0 0.0
      %3522 = vmatmul.mubr.f32.gmra.mrb[0].mxu0 %v374
      %v3523 = vpop.f32.mrb[0].mxu0
      %v3524 = vadd.f32 %v3442, %v3523
      %v3525 = vpop.f32.mrb[0].mxu0
      %3526 = vdwg.mxu0
      %v3527 = vld [vmem:[%s232 + $0x8] sm:$0x1]
      %v3528 = vld [vmem:[%s232 + $0x20] sm:$0x1]
      %v3529 = vld [vmem:[%s232 + $0x38] sm:$0x1]
      %v3530 = vld [vmem:[%s232 + $0x50] sm:$0x1]
      %v3531 = vmax.f32 %v3527, 0.0
      %v3532 = vmax.f32 %v3528, 0.0
      %v3533 = vmax.f32 %v3529, 0.0
      %v3534 = vmax.f32 %v3530, 0.0
      %v3539 = vrot.slane %v3532, 7
      %v3540 = vsel %vm278, %v3539, %v3531
      %v3541 = vrot.slane %v3533, 6
      %v3542 = vsel %vm281, %v3541, %v3540
      %v3543 = vrot.slane %v3534, 5
      %v3544 = vsel %vm284, %v3543, %v3542
      %v3545 = vsel %vm290, %v3544, 0
      %3547 = vmatprep.subr.mxu0 0.0
      %3548 = vmatpush1.msra.mxu0 %v3545
      %3549 = vmatprep.subr.mxu0 0.0
      %3550 = vmatpush1.msra.mxu0 0.0
      %3551 = vmatprep.subr.mxu0 0.0
      %3552 = vmatpush1.msra.mxu0 0.0
      %3553 = vmatprep.subr.mxu0 0.0
      %3554 = vmatpush1.msra.mxu0 0.0
      %3555 = vmatprep.subr.mxu0 0.0
      %3556 = vmatpush1.msra.mxu0 0.0
      %3557 = vmatprep.subr.mxu0 0.0
      %3558 = vmatpush1.msra.mxu0 0.0
      %3559 = vmatprep.subr.mxu0 0.0
      %3560 = vmatpush1.msra.mxu0 0.0
      %3561 = vmatprep.subr.mxu0 0.0
      %3562 = vmatpush1.msra.mxu0 0.0
      %3563 = vmatprep.subr.mxu0 0.0
      %3564 = vmatpush1.msra.mxu0 0.0
      %3565 = vmatprep.subr.mxu0 0.0
      %3566 = vmatpush1.msra.mxu0 0.0
      %3567 = vmatprep.subr.mxu0 0.0
      %3568 = vmatpush1.msra.mxu0 0.0
      %3569 = vmatprep.subr.mxu0 0.0
      %3570 = vmatpush1.msra.mxu0 0.0
      %3571 = vmatprep.subr.mxu0 0.0
      %3572 = vmatpush1.msra.mxu0 0.0
      %3573 = vmatprep.subr.mxu0 0.0
      %3574 = vmatpush1.msra.mxu0 0.0
      %3575 = vmatprep.subr.mxu0 0.0
      %3576 = vmatpush1.msra.mxu0 0.0
      %3577 = vmatprep.subr.mxu0 0.0
      %3578 = vmatpush1.msra.mxu0 0.0
      %3579 = vmatprep.subr.mxu0 0.0
      %3580 = vmatpush1.msra.mxu0 0.0
      %3581 = vmatprep.subr.mxu0 0.0
      %3582 = vmatpush1.msra.mxu0 0.0
      %3583 = vmatprep.subr.mxu0 0.0
      %3584 = vmatpush1.msra.mxu0 0.0
      %3585 = vmatprep.subr.mxu0 0.0
      %3586 = vmatpush1.msra.mxu0 0.0
      %3587 = vmatprep.subr.mxu0 0.0
      %3588 = vmatpush1.msra.mxu0 0.0
      %3589 = vmatprep.subr.mxu0 0.0
      %3590 = vmatpush1.msra.mxu0 0.0
      %3591 = vmatprep.subr.mxu0 0.0
      %3592 = vmatpush1.msra.mxu0 0.0
      %3593 = vmatprep.subr.mxu0 0.0
      %3594 = vmatpush1.msra.mxu0 0.0
      %3595 = vmatprep.subr.mxu0 0.0
      %3596 = vmatpush1.msra.mxu0 0.0
      %3597 = vmatprep.subr.mxu0 0.0
      %3598 = vmatpush1.msra.mxu0 0.0
      %3599 = vmatprep.subr.mxu0 0.0
      %3600 = vmatpush1.msra.mxu0 0.0
      %3601 = vmatprep.subr.mxu0 0.0
      %3602 = vmatpush1.msra.mxu0 0.0
      %3603 = vmatprep.subr.mxu0 0.0
      %3604 = vmatpush1.msra.mxu0 0.0
      %3605 = vmatprep.subr.mxu0 0.0
      %3606 = vmatpush1.msra.mxu0 0.0
      %3607 = vmatprep.subr.mxu0 0.0
      %3608 = vmatpush1.msra.mxu0 0.0
      %3609 = vmatprep.subr.mxu0 0.0
      %3610 = vmatpush1.msra.mxu0 0.0
      %3611 = vmatprep.mubr.f32.mxu0 0.0
      %3612 = vmatmul.mubr.f32.gmra.mrb[0].mxu0 %v467
      %v3613 = vpop.f32.mrb[0].mxu0
      %v3614 = vadd.f32 0.0, %v3613
      %v3615 = vpop.f32.mrb[0].mxu0
      %3616 = vdwg.mxu0
      %v3617 = vadd.f32 %v3524, %v3614
      %3619 = vrot.lane.b32.xlu0 %v3617, 1
      %v3620 = vpop.permute.xlu0 %3619
      %3622 = vst.msk [vmem:[#allocation2] sm:$0xf] %vm546, %v3620
      %v3623 = vld [vmem:[#allocation2] sm:$0xf]
      %3625 = vrot.lane.b32.xlu0 %v3623, 127
      %v3626 = vpop.permute.xlu0 %3625
      %v3627 = vsel %vm290, %v3626, 0
      %3629 = vmatprep.subr.mxu0 0.0
      %3630 = vmatpush1.msra.mxu0 %v3627
      %3631 = vmatprep.subr.mxu0 0.0
      %3632 = vmatpush1.msra.mxu0 0.0
      %3633 = vmatprep.subr.mxu0 0.0
      %3634 = vmatpush1.msra.mxu0 0.0
      %3635 = vmatprep.subr.mxu0 0.0
      %3636 = vmatpush1.msra.mxu0 0.0
      %3637 = vmatprep.subr.mxu0 0.0
      %3638 = vmatpush1.msra.mxu0 0.0
      %3639 = vmatprep.subr.mxu0 0.0
      %3640 = vmatpush1.msra.mxu0 0.0
      %3641 = vmatprep.subr.mxu0 0.0
      %3642 = vmatpush1.msra.mxu0 0.0
      %3643 = vmatprep.subr.mxu0 0.0
      %3644 = vmatpush1.msra.mxu0 0.0
      %3645 = vmatprep.subr.mxu0 0.0
      %3646 = vmatpush1.msra.mxu0 0.0
      %3647 = vmatprep.subr.mxu0 0.0
      %3648 = vmatpush1.msra.mxu0 0.0
      %3649 = vmatprep.subr.mxu0 0.0
      %3650 = vmatpush1.msra.mxu0 0.0
      %3651 = vmatprep.subr.mxu0 0.0
      %3652 = vmatpush1.msra.mxu0 0.0
      %3653 = vmatprep.subr.mxu0 0.0
      %3654 = vmatpush1.msra.mxu0 0.0
      %3655 = vmatprep.subr.mxu0 0.0
      %3656 = vmatpush1.msra.mxu0 0.0
      %3657 = vmatprep.subr.mxu0 0.0
      %3658 = vmatpush1.msra.mxu0 0.0
      %3659 = vmatprep.subr.mxu0 0.0
      %3660 = vmatpush1.msra.mxu0 0.0
      %3661 = vmatprep.subr.mxu0 0.0
      %3662 = vmatpush1.msra.mxu0 0.0
      %3663 = vmatprep.subr.mxu0 0.0
      %3664 = vmatpush1.msra.mxu0 0.0
      %3665 = vmatprep.subr.mxu0 0.0
      %3666 = vmatpush1.msra.mxu0 0.0
      %3667 = vmatprep.subr.mxu0 0.0
      %3668 = vmatpush1.msra.mxu0 0.0
      %3669 = vmatprep.subr.mxu0 0.0
      %3670 = vmatpush1.msra.mxu0 0.0
      %3671 = vmatprep.subr.mxu0 0.0
      %3672 = vmatpush1.msra.mxu0 0.0
      %3673 = vmatprep.subr.mxu0 0.0
      %3674 = vmatpush1.msra.mxu0 0.0
      %3675 = vmatprep.subr.mxu0 0.0
      %3676 = vmatpush1.msra.mxu0 0.0
      %3677 = vmatprep.subr.mxu0 0.0
      %3678 = vmatpush1.msra.mxu0 0.0
      %3679 = vmatprep.subr.mxu0 0.0
      %3680 = vmatpush1.msra.mxu0 0.0
      %3681 = vmatprep.subr.mxu0 0.0
      %3682 = vmatpush1.msra.mxu0 0.0
      %3683 = vmatprep.subr.mxu0 0.0
      %3684 = vmatpush1.msra.mxu0 0.0
      %3685 = vmatprep.subr.mxu0 0.0
      %3686 = vmatpush1.msra.mxu0 0.0
      %3687 = vmatprep.subr.mxu0 0.0
      %3688 = vmatpush1.msra.mxu0 0.0
      %3689 = vmatprep.subr.mxu0 0.0
      %3690 = vmatpush1.msra.mxu0 0.0
      %3691 = vmatprep.subr.mxu0 0.0
      %3692 = vmatpush1.msra.mxu0 0.0
      %3693 = vmatprep.mubr.f32.mxu0 0.0
      %3694 = vmatmul.mubr.f32.gmra.mrb[0].mxu0 %v553
      %v3695 = vpop.f32.mrb[0].mxu0
      %v3696 = vadd.f32 0.0, %v3695
      %v3697 = vpop.f32.mrb[0].mxu0
      %3698 = vdwg.mxu0
      %v3699 = vsel %vm290, %v3623, 0
      %3701 = vmatprep.subr.mxu0 0.0
      %3702 = vmatpush1.msra.mxu0 %v3699
      %3703 = vmatprep.subr.mxu0 0.0
      %3704 = vmatpush1.msra.mxu0 0.0
      %3705 = vmatprep.subr.mxu0 0.0
      %3706 = vmatpush1.msra.mxu0 0.0
      %3707 = vmatprep.subr.mxu0 0.0
      %3708 = vmatpush1.msra.mxu0 0.0
      %3709 = vmatprep.subr.mxu0 0.0
      %3710 = vmatpush1.msra.mxu0 0.0
      %3711 = vmatprep.subr.mxu0 0.0
      %3712 = vmatpush1.msra.mxu0 0.0
      %3713 = vmatprep.subr.mxu0 0.0
      %3714 = vmatpush1.msra.mxu0 0.0
      %3715 = vmatprep.subr.mxu0 0.0
      %3716 = vmatpush1.msra.mxu0 0.0
      %3717 = vmatprep.subr.mxu0 0.0
      %3718 = vmatpush1.msra.mxu0 0.0
      %3719 = vmatprep.subr.mxu0 0.0
      %3720 = vmatpush1.msra.mxu0 0.0
      %3721 = vmatprep.subr.mxu0 0.0
      %3722 = vmatpush1.msra.mxu0 0.0
      %3723 = vmatprep.subr.mxu0 0.0
      %3724 = vmatpush1.msra.mxu0 0.0
      %3725 = vmatprep.subr.mxu0 0.0
      %3726 = vmatpush1.msra.mxu0 0.0
      %3727 = vmatprep.subr.mxu0 0.0
      %3728 = vmatpush1.msra.mxu0 0.0
      %3729 = vmatprep.subr.mxu0 0.0
      %3730 = vmatpush1.msra.mxu0 0.0
      %3731 = vmatprep.subr.mxu0 0.0
      %3732 = vmatpush1.msra.mxu0 0.0
      %3733 = vmatprep.subr.mxu0 0.0
      %3734 = vmatpush1.msra.mxu0 0.0
      %3735 = vmatprep.subr.mxu0 0.0
      %3736 = vmatpush1.msra.mxu0 0.0
      %3737 = vmatprep.subr.mxu0 0.0
      %3738 = vmatpush1.msra.mxu0 0.0
      %3739 = vmatprep.subr.mxu0 0.0
      %3740 = vmatpush1.msra.mxu0 0.0
      %3741 = vmatprep.subr.mxu0 0.0
      %3742 = vmatpush1.msra.mxu0 0.0
      %3743 = vmatprep.subr.mxu0 0.0
      %3744 = vmatpush1.msra.mxu0 0.0
      %3745 = vmatprep.subr.mxu0 0.0
      %3746 = vmatpush1.msra.mxu0 0.0
      %3747 = vmatprep.subr.mxu0 0.0
      %3748 = vmatpush1.msra.mxu0 0.0
      %3749 = vmatprep.subr.mxu0 0.0
      %3750 = vmatpush1.msra.mxu0 0.0
      %3751 = vmatprep.subr.mxu0 0.0
      %3752 = vmatpush1.msra.mxu0 0.0
      %3753 = vmatprep.subr.mxu0 0.0
      %3754 = vmatpush1.msra.mxu0 0.0
      %3755 = vmatprep.subr.mxu0 0.0
      %3756 = vmatpush1.msra.mxu0 0.0
      %3757 = vmatprep.subr.mxu0 0.0
      %3758 = vmatpush1.msra.mxu0 0.0
      %3759 = vmatprep.subr.mxu0 0.0
      %3760 = vmatpush1.msra.mxu0 0.0
      %3761 = vmatprep.subr.mxu0 0.0
      %3762 = vmatpush1.msra.mxu0 0.0
      %3763 = vmatprep.subr.mxu0 0.0
      %3764 = vmatpush1.msra.mxu0 0.0
      %3765 = vmatprep.mubr.f32.mxu0 0.0
      %3766 = vmatmul.mubr.f32.gmra.mrb[0].mxu0 %v628
      %v3767 = vpop.f32.mrb[0].mxu0
      %v3768 = vadd.f32 %v3696, %v3767
      %v3769 = vpop.f32.mrb[0].mxu0
      %3770 = vdwg.mxu0
      %3771 = vrot.lane.b32.xlu0 %v3623, 126
      %v3772 = vpop.permute.xlu0 %3771
      %v3773 = vsel %vm290, %v3772, 0
      %3775 = vmatprep.subr.mxu0 0.0
      %3776 = vmatpush1.msra.mxu0 %v3773
      %3777 = vmatprep.subr.mxu0 0.0
      %3778 = vmatpush1.msra.mxu0 0.0
      %3779 = vmatprep.subr.mxu0 0.0
      %3780 = vmatpush1.msra.mxu0 0.0
      %3781 = vmatprep.subr.mxu0 0.0
      %3782 = vmatpush1.msra.mxu0 0.0
      %3783 = vmatprep.subr.mxu0 0.0
      %3784 = vmatpush1.msra.mxu0 0.0
      %3785 = vmatprep.subr.mxu0 0.0
      %3786 = vmatpush1.msra.mxu0 0.0
      %3787 = vmatprep.subr.mxu0 0.0
      %3788 = vmatpush1.msra.mxu0 0.0
      %3789 = vmatprep.subr.mxu0 0.0
      %3790 = vmatpush1.msra.mxu0 0.0
      %3791 = vmatprep.subr.mxu0 0.0
      %3792 = vmatpush1.msra.mxu0 0.0
      %3793 = vmatprep.subr.mxu0 0.0
      %3794 = vmatpush1.msra.mxu0 0.0
      %3795 = vmatprep.subr.mxu0 0.0
      %3796 = vmatpush1.msra.mxu0 0.0
      %3797 = vmatprep.subr.mxu0 0.0
      %3798 = vmatpush1.msra.mxu0 0.0
      %3799 = vmatprep.subr.mxu0 0.0
      %3800 = vmatpush1.msra.mxu0 0.0
      %3801 = vmatprep.subr.mxu0 0.0
      %3802 = vmatpush1.msra.mxu0 0.0
      %3803 = vmatprep.subr.mxu0 0.0
      %3804 = vmatpush1.msra.mxu0 0.0
      %3805 = vmatprep.subr.mxu0 0.0
      %3806 = vmatpush1.msra.mxu0 0.0
      %3807 = vmatprep.subr.mxu0 0.0
      %3808 = vmatpush1.msra.mxu0 0.0
      %3809 = vmatprep.subr.mxu0 0.0
      %3810 = vmatpush1.msra.mxu0 0.0
      %3811 = vmatprep.subr.mxu0 0.0
      %3812 = vmatpush1.msra.mxu0 0.0
      %3813 = vmatprep.subr.mxu0 0.0
      %3814 = vmatpush1.msra.mxu0 0.0
      %3815 = vmatprep.subr.mxu0 0.0
      %3816 = vmatpush1.msra.mxu0 0.0
      %3817 = vmatprep.subr.mxu0 0.0
      %3818 = vmatpush1.msra.mxu0 0.0
      %3819 = vmatprep.subr.mxu0 0.0
      %3820 = vmatpush1.msra.mxu0 0.0
      %3821 = vmatprep.subr.mxu0 0.0
      %3822 = vmatpush1.msra.mxu0 0.0
      %3823 = vmatprep.subr.mxu0 0.0
      %3824 = vmatpush1.msra.mxu0 0.0
      %3825 = vmatprep.subr.mxu0 0.0
      %3826 = vmatpush1.msra.mxu0 0.0
      %3827 = vmatprep.subr.mxu0 0.0
      %3828 = vmatpush1.msra.mxu0 0.0
      %3829 = vmatprep.subr.mxu0 0.0
      %3830 = vmatpush1.msra.mxu0 0.0
      %3831 = vmatprep.subr.mxu0 0.0
      %3832 = vmatpush1.msra.mxu0 0.0
      %3833 = vmatprep.subr.mxu0 0.0
      %3834 = vmatpush1.msra.mxu0 0.0
      %3835 = vmatprep.subr.mxu0 0.0
      %3836 = vmatpush1.msra.mxu0 0.0
      %3837 = vmatprep.subr.mxu0 0.0
      %3838 = vmatpush1.msra.mxu0 0.0
      %3839 = vmatprep.mubr.f32.mxu0 0.0
      %3840 = vmatmul.mubr.f32.gmra.mrb[0].mxu0 %v705
      %v3841 = vpop.f32.mrb[0].mxu0
      %v3842 = vadd.f32 0.0, %v3841
      %v3843 = vpop.f32.mrb[0].mxu0
      %3844 = vdwg.mxu0
      %v3845 = vadd.f32 %v3768, %v3842
      %v3846 = vadd.f32 %v3335, %v3845
      %v3847 = vmul.f32 %v3845, %v3845
      %v3848 = vadd.f32 %v3337, %v3847
      %v3849 = vpack.c.bf16 %v3845, %v3845
      %v3851 = vunpack.c.l.b16 %v3849
      %v3852 = vpack.c.b16 %v3851, %v3851
      %3853 = vrot.lane.b32.xlu0 %v3852, 126
      %v3854 = vpop.permute.xlu0 %3853
      %v3855 = vrot.slane %v3854, 4
      %vm3856 = vcmask 1031168
      %v3857 = vsel %vm3856, %v3855, %v3854
      %vm3859 = vcmask 1044464
      %vm3860 = vcmask 130052
      %vm3861 = vmor %vm3860, %vm3859
      %3862 = vst.msk [vmem:[%s237] sm:$0xff] %vm3861, %v3857
      %v3863 = vld [vmem:[%s232 + $0x7] sm:$0x1]
      %v3864 = vld [vmem:[%s232 + $0x1f] sm:$0x1]
      %v3865 = vld [vmem:[%s232 + $0x37] sm:$0x1]
      %v3866 = vld [vmem:[%s232 + $0x4f] sm:$0x1]
      %v3867 = vmax.f32 %v3863, 0.0
      %v3868 = vmax.f32 %v3864, 0.0
      %v3869 = vmax.f32 %v3865, 0.0
      %v3870 = vmax.f32 %v3866, 0.0
      %v3871 = vld [vmem:[%s232 + $0x8] sm:$0x1]
      %v3872 = vld [vmem:[%s232 + $0x20] sm:$0x1]
      %v3873 = vld [vmem:[%s232 + $0x38] sm:$0x1]
      %v3874 = vld [vmem:[%s232 + $0x50] sm:$0x1]
      %v3875 = vmax.f32 %v3871, 0.0
      %v3876 = vmax.f32 %v3872, 0.0
      %v3877 = vmax.f32 %v3873, 0.0
      %v3878 = vmax.f32 %v3874, 0.0
      %v3883 = vrot.slane %v3876, 7
      %v3884 = vsel %vm278, %v3883, %v3875
      %v3885 = vrot.slane %v3877, 6
      %v3886 = vsel %vm281, %v3885, %v3884
      %v3887 = vrot.slane %v3878, 5
      %v3888 = vsel %vm284, %v3887, %v3886
      %v3889 = vsel %vm290, %v3888, 0
      %3891 = vmatprep.subr.mxu0 0.0
      %3892 = vmatpush1.msra.mxu0 %v3889
      %3893 = vmatprep.subr.mxu0 0.0
      %3894 = vmatpush1.msra.mxu0 0.0
      %3895 = vmatprep.subr.mxu0 0.0
      %3896 = vmatpush1.msra.mxu0 0.0
      %3897 = vmatprep.subr.mxu0 0.0
      %3898 = vmatpush1.msra.mxu0 0.0
      %3899 = vmatprep.subr.mxu0 0.0
      %3900 = vmatpush1.msra.mxu0 0.0
      %3901 = vmatprep.subr.mxu0 0.0
      %3902 = vmatpush1.msra.mxu0 0.0
      %3903 = vmatprep.subr.mxu0 0.0
      %3904 = vmatpush1.msra.mxu0 0.0
      %3905 = vmatprep.subr.mxu0 0.0
      %3906 = vmatpush1.msra.mxu0 0.0
      %3907 = vmatprep.subr.mxu0 0.0
      %3908 = vmatpush1.msra.mxu0 0.0
      %3909 = vmatprep.subr.mxu0 0.0
      %3910 = vmatpush1.msra.mxu0 0.0
      %3911 = vmatprep.subr.mxu0 0.0
      %3912 = vmatpush1.msra.mxu0 0.0
      %3913 = vmatprep.subr.mxu0 0.0
      %3914 = vmatpush1.msra.mxu0 0.0
      %3915 = vmatprep.subr.mxu0 0.0
      %3916 = vmatpush1.msra.mxu0 0.0
      %3917 = vmatprep.subr.mxu0 0.0
      %3918 = vmatpush1.msra.mxu0 0.0
      %3919 = vmatprep.subr.mxu0 0.0
      %3920 = vmatpush1.msra.mxu0 0.0
      %3921 = vmatprep.subr.mxu0 0.0
      %3922 = vmatpush1.msra.mxu0 0.0
      %3923 = vmatprep.subr.mxu0 0.0
      %3924 = vmatpush1.msra.mxu0 0.0
      %3925 = vmatprep.subr.mxu0 0.0
      %3926 = vmatpush1.msra.mxu0 0.0
      %3927 = vmatprep.subr.mxu0 0.0
      %3928 = vmatpush1.msra.mxu0 0.0
      %3929 = vmatprep.subr.mxu0 0.0
      %3930 = vmatpush1.msra.mxu0 0.0
      %3931 = vmatprep.subr.mxu0 0.0
      %3932 = vmatpush1.msra.mxu0 0.0
      %3933 = vmatprep.subr.mxu0 0.0
      %3934 = vmatpush1.msra.mxu0 0.0
      %3935 = vmatprep.subr.mxu0 0.0
      %3936 = vmatpush1.msra.mxu0 0.0
      %3937 = vmatprep.subr.mxu0 0.0
      %3938 = vmatpush1.msra.mxu0 0.0
      %3939 = vmatprep.subr.mxu0 0.0
      %3940 = vmatpush1.msra.mxu0 0.0
      %3941 = vmatprep.subr.mxu0 0.0
      %3942 = vmatpush1.msra.mxu0 0.0
      %3943 = vmatprep.subr.mxu0 0.0
      %3944 = vmatpush1.msra.mxu0 0.0
      %3945 = vmatprep.subr.mxu0 0.0
      %3946 = vmatpush1.msra.mxu0 0.0
      %3947 = vmatprep.subr.mxu0 0.0
      %3948 = vmatpush1.msra.mxu0 0.0
      %3949 = vmatprep.subr.mxu0 0.0
      %3950 = vmatpush1.msra.mxu0 0.0
      %3951 = vmatprep.subr.mxu0 0.0
      %3952 = vmatpush1.msra.mxu0 0.0
      %3953 = vmatprep.subr.mxu0 0.0
      %3954 = vmatpush1.msra.mxu0 0.0
      %3955 = vmatprep.mubr.f32.mxu0 0.0
      %3956 = vmatmul.mubr.f32.gmra.mrb[0].mxu0 %v288
      %v3957 = vpop.f32.mrb[0].mxu0
      %v3958 = vadd.f32 0.0, %v3957
      %v3959 = vpop.f32.mrb[0].mxu0
      %3960 = vdwg.mxu0
      %v3965 = vrot.slane %v3868, 7
      %v3966 = vsel %vm278, %v3965, %v3867
      %v3967 = vrot.slane %v3869, 6
      %v3968 = vsel %vm281, %v3967, %v3966
      %v3969 = vrot.slane %v3870, 5
      %v3970 = vsel %vm284, %v3969, %v3968
      %v3971 = vsel %vm290, %v3970, 0
      %3973 = vmatprep.subr.mxu0 0.0
      %3974 = vmatpush1.msra.mxu0 %v3971
      %3975 = vmatprep.subr.mxu0 0.0
      %3976 = vmatpush1.msra.mxu0 0.0
      %3977 = vmatprep.subr.mxu0 0.0
      %3978 = vmatpush1.msra.mxu0 0.0
      %3979 = vmatprep.subr.mxu0 0.0
      %3980 = vmatpush1.msra.mxu0 0.0
      %3981 = vmatprep.subr.mxu0 0.0
      %3982 = vmatpush1.msra.mxu0 0.0
      %3983 = vmatprep.subr.mxu0 0.0
      %3984 = vmatpush1.msra.mxu0 0.0
      %3985 = vmatprep.subr.mxu0 0.0
      %3986 = vmatpush1.msra.mxu0 0.0
      %3987 = vmatprep.subr.mxu0 0.0
      %3988 = vmatpush1.msra.mxu0 0.0
      %3989 = vmatprep.subr.mxu0 0.0
      %3990 = vmatpush1.msra.mxu0 0.0
      %3991 = vmatprep.subr.mxu0 0.0
      %3992 = vmatpush1.msra.mxu0 0.0
      %3993 = vmatprep.subr.mxu0 0.0
      %3994 = vmatpush1.msra.mxu0 0.0
      %3995 = vmatprep.subr.mxu0 0.0
      %3996 = vmatpush1.msra.mxu0 0.0
      %3997 = vmatprep.subr.mxu0 0.0
      %3998 = vmatpush1.msra.mxu0 0.0
      %3999 = vmatprep.subr.mxu0 0.0
      %4000 = vmatpush1.msra.mxu0 0.0
      %4001 = vmatprep.subr.mxu0 0.0
      %4002 = vmatpush1.msra.mxu0 0.0
      %4003 = vmatprep.subr.mxu0 0.0
      %4004 = vmatpush1.msra.mxu0 0.0
      %4005 = vmatprep.subr.mxu0 0.0
      %4006 = vmatpush1.msra.mxu0 0.0
      %4007 = vmatprep.subr.mxu0 0.0
      %4008 = vmatpush1.msra.mxu0 0.0
      %4009 = vmatprep.subr.mxu0 0.0
      %4010 = vmatpush1.msra.mxu0 0.0
      %4011 = vmatprep.subr.mxu0 0.0
      %4012 = vmatpush1.msra.mxu0 0.0
      %4013 = vmatprep.subr.mxu0 0.0
      %4014 = vmatpush1.msra.mxu0 0.0
      %4015 = vmatprep.subr.mxu0 0.0
      %4016 = vmatpush1.msra.mxu0 0.0
      %4017 = vmatprep.subr.mxu0 0.0
      %4018 = vmatpush1.msra.mxu0 0.0
      %4019 = vmatprep.subr.mxu0 0.0
      %4020 = vmatpush1.msra.mxu0 0.0
      %4021 = vmatprep.subr.mxu0 0.0
      %4022 = vmatpush1.msra.mxu0 0.0
      %4023 = vmatprep.subr.mxu0 0.0
      %4024 = vmatpush1.msra.mxu0 0.0
      %4025 = vmatprep.subr.mxu0 0.0
      %4026 = vmatpush1.msra.mxu0 0.0
      %4027 = vmatprep.subr.mxu0 0.0
      %4028 = vmatpush1.msra.mxu0 0.0
      %4029 = vmatprep.subr.mxu0 0.0
      %4030 = vmatpush1.msra.mxu0 0.0
      %4031 = vmatprep.subr.mxu0 0.0
      %4032 = vmatpush1.msra.mxu0 0.0
      %4033 = vmatprep.subr.mxu0 0.0
      %4034 = vmatpush1.msra.mxu0 0.0
      %4035 = vmatprep.subr.mxu0 0.0
      %4036 = vmatpush1.msra.mxu0 0.0
      %4037 = vmatprep.mubr.f32.mxu0 0.0
      %4038 = vmatmul.mubr.f32.gmra.mrb[0].mxu0 %v374
      %v4039 = vpop.f32.mrb[0].mxu0
      %v4040 = vadd.f32 %v3958, %v4039
      %v4041 = vpop.f32.mrb[0].mxu0
      %4042 = vdwg.mxu0
      %v4043 = vld [vmem:[%s232 + $0x9] sm:$0x1]
      %v4044 = vld [vmem:[%s232 + $0x21] sm:$0x1]
      %v4045 = vld [vmem:[%s232 + $0x39] sm:$0x1]
      %v4046 = vld [vmem:[%s232 + $0x51] sm:$0x1]
      %v4047 = vmax.f32 %v4043, 0.0
      %v4048 = vmax.f32 %v4044, 0.0
      %v4049 = vmax.f32 %v4045, 0.0
      %v4050 = vmax.f32 %v4046, 0.0
      %v4055 = vrot.slane %v4048, 7
      %v4056 = vsel %vm278, %v4055, %v4047
      %v4057 = vrot.slane %v4049, 6
      %v4058 = vsel %vm281, %v4057, %v4056
      %v4059 = vrot.slane %v4050, 5
      %v4060 = vsel %vm284, %v4059, %v4058
      %v4061 = vsel %vm290, %v4060, 0
      %4063 = vmatprep.subr.mxu0 0.0
      %4064 = vmatpush1.msra.mxu0 %v4061
      %4065 = vmatprep.subr.mxu0 0.0
      %4066 = vmatpush1.msra.mxu0 0.0
      %4067 = vmatprep.subr.mxu0 0.0
      %4068 = vmatpush1.msra.mxu0 0.0
      %4069 = vmatprep.subr.mxu0 0.0
      %4070 = vmatpush1.msra.mxu0 0.0
      %4071 = vmatprep.subr.mxu0 0.0
      %4072 = vmatpush1.msra.mxu0 0.0
      %4073 = vmatprep.subr.mxu0 0.0
      %4074 = vmatpush1.msra.mxu0 0.0
      %4075 = vmatprep.subr.mxu0 0.0
      %4076 = vmatpush1.msra.mxu0 0.0
      %4077 = vmatprep.subr.mxu0 0.0
      %4078 = vmatpush1.msra.mxu0 0.0
      %4079 = vmatprep.subr.mxu0 0.0
      %4080 = vmatpush1.msra.mxu0 0.0
      %4081 = vmatprep.subr.mxu0 0.0
      %4082 = vmatpush1.msra.mxu0 0.0
      %4083 = vmatprep.subr.mxu0 0.0
      %4084 = vmatpush1.msra.mxu0 0.0
      %4085 = vmatprep.subr.mxu0 0.0
      %4086 = vmatpush1.msra.mxu0 0.0
      %4087 = vmatprep.subr.mxu0 0.0
      %4088 = vmatpush1.msra.mxu0 0.0
      %4089 = vmatprep.subr.mxu0 0.0
      %4090 = vmatpush1.msra.mxu0 0.0
      %4091 = vmatprep.subr.mxu0 0.0
      %4092 = vmatpush1.msra.mxu0 0.0
      %4093 = vmatprep.subr.mxu0 0.0
      %4094 = vmatpush1.msra.mxu0 0.0
      %4095 = vmatprep.subr.mxu0 0.0
      %4096 = vmatpush1.msra.mxu0 0.0
      %4097 = vmatprep.subr.mxu0 0.0
      %4098 = vmatpush1.msra.mxu0 0.0
      %4099 = vmatprep.subr.mxu0 0.0
      %4100 = vmatpush1.msra.mxu0 0.0
      %4101 = vmatprep.subr.mxu0 0.0
      %4102 = vmatpush1.msra.mxu0 0.0
      %4103 = vmatprep.subr.mxu0 0.0
      %4104 = vmatpush1.msra.mxu0 0.0
      %4105 = vmatprep.subr.mxu0 0.0
      %4106 = vmatpush1.msra.mxu0 0.0
      %4107 = vmatprep.subr.mxu0 0.0
      %4108 = vmatpush1.msra.mxu0 0.0
      %4109 = vmatprep.subr.mxu0 0.0
      %4110 = vmatpush1.msra.mxu0 0.0
      %4111 = vmatprep.subr.mxu0 0.0
      %4112 = vmatpush1.msra.mxu0 0.0
      %4113 = vmatprep.subr.mxu0 0.0
      %4114 = vmatpush1.msra.mxu0 0.0
      %4115 = vmatprep.subr.mxu0 0.0
      %4116 = vmatpush1.msra.mxu0 0.0
      %4117 = vmatprep.subr.mxu0 0.0
      %4118 = vmatpush1.msra.mxu0 0.0
      %4119 = vmatprep.subr.mxu0 0.0
      %4120 = vmatpush1.msra.mxu0 0.0
      %4121 = vmatprep.subr.mxu0 0.0
      %4122 = vmatpush1.msra.mxu0 0.0
      %4123 = vmatprep.subr.mxu0 0.0
      %4124 = vmatpush1.msra.mxu0 0.0
      %4125 = vmatprep.subr.mxu0 0.0
      %4126 = vmatpush1.msra.mxu0 0.0
      %4127 = vmatprep.mubr.f32.mxu0 0.0
      %4128 = vmatmul.mubr.f32.gmra.mrb[0].mxu0 %v467
      %v4129 = vpop.f32.mrb[0].mxu0
      %v4130 = vadd.f32 0.0, %v4129
      %v4131 = vpop.f32.mrb[0].mxu0
      %4132 = vdwg.mxu0
      %v4133 = vadd.f32 %v4040, %v4130
      %4135 = vrot.lane.b32.xlu0 %v4133, 1
      %v4136 = vpop.permute.xlu0 %4135
      %4138 = vst.msk [vmem:[#allocation2] sm:$0xf] %vm546, %v4136
      %v4139 = vld [vmem:[#allocation2] sm:$0xf]
      %4141 = vrot.lane.b32.xlu0 %v4139, 127
      %v4142 = vpop.permute.xlu0 %4141
      %v4143 = vsel %vm290, %v4142, 0
      %4145 = vmatprep.subr.mxu0 0.0
      %4146 = vmatpush1.msra.mxu0 %v4143
      %4147 = vmatprep.subr.mxu0 0.0
      %4148 = vmatpush1.msra.mxu0 0.0
      %4149 = vmatprep.subr.mxu0 0.0
      %4150 = vmatpush1.msra.mxu0 0.0
      %4151 = vmatprep.subr.mxu0 0.0
      %4152 = vmatpush1.msra.mxu0 0.0
      %4153 = vmatprep.subr.mxu0 0.0
      %4154 = vmatpush1.msra.mxu0 0.0
      %4155 = vmatprep.subr.mxu0 0.0
      %4156 = vmatpush1.msra.mxu0 0.0
      %4157 = vmatprep.subr.mxu0 0.0
      %4158 = vmatpush1.msra.mxu0 0.0
      %4159 = vmatprep.subr.mxu0 0.0
      %4160 = vmatpush1.msra.mxu0 0.0
      %4161 = vmatprep.subr.mxu0 0.0
      %4162 = vmatpush1.msra.mxu0 0.0
      %4163 = vmatprep.subr.mxu0 0.0
      %4164 = vmatpush1.msra.mxu0 0.0
      %4165 = vmatprep.subr.mxu0 0.0
      %4166 = vmatpush1.msra.mxu0 0.0
      %4167 = vmatprep.subr.mxu0 0.0
      %4168 = vmatpush1.msra.mxu0 0.0
      %4169 = vmatprep.subr.mxu0 0.0
      %4170 = vmatpush1.msra.mxu0 0.0
      %4171 = vmatprep.subr.mxu0 0.0
      %4172 = vmatpush1.msra.mxu0 0.0
      %4173 = vmatprep.subr.mxu0 0.0
      %4174 = vmatpush1.msra.mxu0 0.0
      %4175 = vmatprep.subr.mxu0 0.0
      %4176 = vmatpush1.msra.mxu0 0.0
      %4177 = vmatprep.subr.mxu0 0.0
      %4178 = vmatpush1.msra.mxu0 0.0
      %4179 = vmatprep.subr.mxu0 0.0
      %4180 = vmatpush1.msra.mxu0 0.0
      %4181 = vmatprep.subr.mxu0 0.0
      %4182 = vmatpush1.msra.mxu0 0.0
      %4183 = vmatprep.subr.mxu0 0.0
      %4184 = vmatpush1.msra.mxu0 0.0
      %4185 = vmatprep.subr.mxu0 0.0
      %4186 = vmatpush1.msra.mxu0 0.0
      %4187 = vmatprep.subr.mxu0 0.0
      %4188 = vmatpush1.msra.mxu0 0.0
      %4189 = vmatprep.subr.mxu0 0.0
      %4190 = vmatpush1.msra.mxu0 0.0
      %4191 = vmatprep.subr.mxu0 0.0
      %4192 = vmatpush1.msra.mxu0 0.0
      %4193 = vmatprep.subr.mxu0 0.0
      %4194 = vmatpush1.msra.mxu0 0.0
      %4195 = vmatprep.subr.mxu0 0.0
      %4196 = vmatpush1.msra.mxu0 0.0
      %4197 = vmatprep.subr.mxu0 0.0
      %4198 = vmatpush1.msra.mxu0 0.0
      %4199 = vmatprep.subr.mxu0 0.0
      %4200 = vmatpush1.msra.mxu0 0.0
      %4201 = vmatprep.subr.mxu0 0.0
      %4202 = vmatpush1.msra.mxu0 0.0
      %4203 = vmatprep.subr.mxu0 0.0
      %4204 = vmatpush1.msra.mxu0 0.0
      %4205 = vmatprep.subr.mxu0 0.0
      %4206 = vmatpush1.msra.mxu0 0.0
      %4207 = vmatprep.subr.mxu0 0.0
      %4208 = vmatpush1.msra.mxu0 0.0
      %4209 = vmatprep.mubr.f32.mxu0 0.0
      %4210 = vmatmul.mubr.f32.gmra.mrb[0].mxu0 %v553
      %v4211 = vpop.f32.mrb[0].mxu0
      %v4212 = vadd.f32 0.0, %v4211
      %v4213 = vpop.f32.mrb[0].mxu0
      %4214 = vdwg.mxu0
      %v4215 = vsel %vm290, %v4139, 0
      %4217 = vmatprep.subr.mxu0 0.0
      %4218 = vmatpush1.msra.mxu0 %v4215
      %4219 = vmatprep.subr.mxu0 0.0
      %4220 = vmatpush1.msra.mxu0 0.0
      %4221 = vmatprep.subr.mxu0 0.0
      %4222 = vmatpush1.msra.mxu0 0.0
      %4223 = vmatprep.subr.mxu0 0.0
      %4224 = vmatpush1.msra.mxu0 0.0
      %4225 = vmatprep.subr.mxu0 0.0
      %4226 = vmatpush1.msra.mxu0 0.0
      %4227 = vmatprep.subr.mxu0 0.0
      %4228 = vmatpush1.msra.mxu0 0.0
      %4229 = vmatprep.subr.mxu0 0.0
      %4230 = vmatpush1.msra.mxu0 0.0
      %4231 = vmatprep.subr.mxu0 0.0
      %4232 = vmatpush1.msra.mxu0 0.0
      %4233 = vmatprep.subr.mxu0 0.0
      %4234 = vmatpush1.msra.mxu0 0.0
      %4235 = vmatprep.subr.mxu0 0.0
      %4236 = vmatpush1.msra.mxu0 0.0
      %4237 = vmatprep.subr.mxu0 0.0
      %4238 = vmatpush1.msra.mxu0 0.0
      %4239 = vmatprep.subr.mxu0 0.0
      %4240 = vmatpush1.msra.mxu0 0.0
      %4241 = vmatprep.subr.mxu0 0.0
      %4242 = vmatpush1.msra.mxu0 0.0
      %4243 = vmatprep.subr.mxu0 0.0
      %4244 = vmatpush1.msra.mxu0 0.0
      %4245 = vmatprep.subr.mxu0 0.0
      %4246 = vmatpush1.msra.mxu0 0.0
      %4247 = vmatprep.subr.mxu0 0.0
      %4248 = vmatpush1.msra.mxu0 0.0
      %4249 = vmatprep.subr.mxu0 0.0
      %4250 = vmatpush1.msra.mxu0 0.0
      %4251 = vmatprep.subr.mxu0 0.0
      %4252 = vmatpush1.msra.mxu0 0.0
      %4253 = vmatprep.subr.mxu0 0.0
      %4254 = vmatpush1.msra.mxu0 0.0
      %4255 = vmatprep.subr.mxu0 0.0
      %4256 = vmatpush1.msra.mxu0 0.0
      %4257 = vmatprep.subr.mxu0 0.0
      %4258 = vmatpush1.msra.mxu0 0.0
      %4259 = vmatprep.subr.mxu0 0.0
      %4260 = vmatpush1.msra.mxu0 0.0
      %4261 = vmatprep.subr.mxu0 0.0
      %4262 = vmatpush1.msra.mxu0 0.0
      %4263 = vmatprep.subr.mxu0 0.0
      %4264 = vmatpush1.msra.mxu0 0.0
      %4265 = vmatprep.subr.mxu0 0.0
      %4266 = vmatpush1.msra.mxu0 0.0
      %4267 = vmatprep.subr.mxu0 0.0
      %4268 = vmatpush1.msra.mxu0 0.0
      %4269 = vmatprep.subr.mxu0 0.0
      %4270 = vmatpush1.msra.mxu0 0.0
      %4271 = vmatprep.subr.mxu0 0.0
      %4272 = vmatpush1.msra.mxu0 0.0
      %4273 = vmatprep.subr.mxu0 0.0
      %4274 = vmatpush1.msra.mxu0 0.0
      %4275 = vmatprep.subr.mxu0 0.0
      %4276 = vmatpush1.msra.mxu0 0.0
      %4277 = vmatprep.subr.mxu0 0.0
      %4278 = vmatpush1.msra.mxu0 0.0
      %4279 = vmatprep.subr.mxu0 0.0
      %4280 = vmatpush1.msra.mxu0 0.0
      %4281 = vmatprep.mubr.f32.mxu0 0.0
      %4282 = vmatmul.mubr.f32.gmra.mrb[0].mxu0 %v628
      %v4283 = vpop.f32.mrb[0].mxu0
      %v4284 = vadd.f32 %v4212, %v4283
      %v4285 = vpop.f32.mrb[0].mxu0
      %4286 = vdwg.mxu0
      %4287 = vrot.lane.b32.xlu0 %v4139, 126
      %v4288 = vpop.permute.xlu0 %4287
      %v4289 = vsel %vm290, %v4288, 0
      %4291 = vmatprep.subr.mxu0 0.0
      %4292 = vmatpush1.msra.mxu0 %v4289
      %4293 = vmatprep.subr.mxu0 0.0
      %4294 = vmatpush1.msra.mxu0 0.0
      %4295 = vmatprep.subr.mxu0 0.0
      %4296 = vmatpush1.msra.mxu0 0.0
      %4297 = vmatprep.subr.mxu0 0.0
      %4298 = vmatpush1.msra.mxu0 0.0
      %4299 = vmatprep.subr.mxu0 0.0
      %4300 = vmatpush1.msra.mxu0 0.0
      %4301 = vmatprep.subr.mxu0 0.0
      %4302 = vmatpush1.msra.mxu0 0.0
      %4303 = vmatprep.subr.mxu0 0.0
      %4304 = vmatpush1.msra.mxu0 0.0
      %4305 = vmatprep.subr.mxu0 0.0
      %4306 = vmatpush1.msra.mxu0 0.0
      %4307 = vmatprep.subr.mxu0 0.0
      %4308 = vmatpush1.msra.mxu0 0.0
      %4309 = vmatprep.subr.mxu0 0.0
      %4310 = vmatpush1.msra.mxu0 0.0
      %4311 = vmatprep.subr.mxu0 0.0
      %4312 = vmatpush1.msra.mxu0 0.0
      %4313 = vmatprep.subr.mxu0 0.0
      %4314 = vmatpush1.msra.mxu0 0.0
      %4315 = vmatprep.subr.mxu0 0.0
      %4316 = vmatpush1.msra.mxu0 0.0
      %4317 = vmatprep.subr.mxu0 0.0
      %4318 = vmatpush1.msra.mxu0 0.0
      %4319 = vmatprep.subr.mxu0 0.0
      %4320 = vmatpush1.msra.mxu0 0.0
      %4321 = vmatprep.subr.mxu0 0.0
      %4322 = vmatpush1.msra.mxu0 0.0
      %4323 = vmatprep.subr.mxu0 0.0
      %4324 = vmatpush1.msra.mxu0 0.0
      %4325 = vmatprep.subr.mxu0 0.0
      %4326 = vmatpush1.msra.mxu0 0.0
      %4327 = vmatprep.subr.mxu0 0.0
      %4328 = vmatpush1.msra.mxu0 0.0
      %4329 = vmatprep.subr.mxu0 0.0
      %4330 = vmatpush1.msra.mxu0 0.0
      %4331 = vmatprep.subr.mxu0 0.0
      %4332 = vmatpush1.msra.mxu0 0.0
      %4333 = vmatprep.subr.mxu0 0.0
      %4334 = vmatpush1.msra.mxu0 0.0
      %4335 = vmatprep.subr.mxu0 0.0
      %4336 = vmatpush1.msra.mxu0 0.0
      %4337 = vmatprep.subr.mxu0 0.0
      %4338 = vmatpush1.msra.mxu0 0.0
      %4339 = vmatprep.subr.mxu0 0.0
      %4340 = vmatpush1.msra.mxu0 0.0
      %4341 = vmatprep.subr.mxu0 0.0
      %4342 = vmatpush1.msra.mxu0 0.0
      %4343 = vmatprep.subr.mxu0 0.0
      %4344 = vmatpush1.msra.mxu0 0.0
      %4345 = vmatprep.subr.mxu0 0.0
      %4346 = vmatpush1.msra.mxu0 0.0
      %4347 = vmatprep.subr.mxu0 0.0
      %4348 = vmatpush1.msra.mxu0 0.0
      %4349 = vmatprep.subr.mxu0 0.0
      %4350 = vmatpush1.msra.mxu0 0.0
      %4351 = vmatprep.subr.mxu0 0.0
      %4352 = vmatpush1.msra.mxu0 0.0
      %4353 = vmatprep.subr.mxu0 0.0
      %4354 = vmatpush1.msra.mxu0 0.0
      %4355 = vmatprep.mubr.f32.mxu0 0.0
      %4356 = vmatmul.mubr.f32.gmra.mrb[0].mxu0 %v705
      %v4357 = vpop.f32.mrb[0].mxu0
      %v4358 = vadd.f32 0.0, %v4357
      %v4359 = vpop.f32.mrb[0].mxu0
      %4360 = vdwg.mxu0
      %v4361 = vadd.f32 %v4284, %v4358
      %v4362 = vadd.f32 %v3846, %v4361
      %v4363 = vmul.f32 %v4361, %v4361
      %v4364 = vadd.f32 %v3848, %v4363
      %v4365 = vpack.c.bf16 %v4361, %v4361
      %v4367 = vunpack.c.l.b16 %v4365
      %v4368 = vpack.c.b16 %v4367, %v4367
      %4369 = vrot.lane.b32.xlu0 %v4368, 16
      %v4370 = vpop.permute.xlu0 %4369
      %vm4372 = vcmask 273536
      %4373 = vst.msk [vmem:[%s237 + $0x4] sm:$0xf] %vm4372, %v4370
      %v4374 = vld [vmem:[%s232 + $0x8] sm:$0x1]
      %v4375 = vld [vmem:[%s232 + $0x20] sm:$0x1]
      %v4376 = vld [vmem:[%s232 + $0x38] sm:$0x1]
      %v4377 = vld [vmem:[%s232 + $0x50] sm:$0x1]
      %v4378 = vmax.f32 %v4374, 0.0
      %v4379 = vmax.f32 %v4375, 0.0
      %v4380 = vmax.f32 %v4376, 0.0
      %v4381 = vmax.f32 %v4377, 0.0
      %v4382 = vld [vmem:[%s232 + $0x9] sm:$0x1]
      %v4383 = vld [vmem:[%s232 + $0x21] sm:$0x1]
      %v4384 = vld [vmem:[%s232 + $0x39] sm:$0x1]
      %v4385 = vld [vmem:[%s232 + $0x51] sm:$0x1]
      %v4386 = vmax.f32 %v4382, 0.0
      %v4387 = vmax.f32 %v4383, 0.0
      %v4388 = vmax.f32 %v4384, 0.0
      %v4389 = vmax.f32 %v4385, 0.0
      %v4394 = vrot.slane %v4387, 7
      %v4395 = vsel %vm278, %v4394, %v4386
      %v4396 = vrot.slane %v4388, 6
      %v4397 = vsel %vm281, %v4396, %v4395
      %v4398 = vrot.slane %v4389, 5
      %v4399 = vsel %vm284, %v4398, %v4397
      %v4400 = vsel %vm290, %v4399, 0
      %4402 = vmatprep.subr.mxu0 0.0
      %4403 = vmatpush1.msra.mxu0 %v4400
      %4404 = vmatprep.subr.mxu0 0.0
      %4405 = vmatpush1.msra.mxu0 0.0
      %4406 = vmatprep.subr.mxu0 0.0
      %4407 = vmatpush1.msra.mxu0 0.0
      %4408 = vmatprep.subr.mxu0 0.0
      %4409 = vmatpush1.msra.mxu0 0.0
      %4410 = vmatprep.subr.mxu0 0.0
      %4411 = vmatpush1.msra.mxu0 0.0
      %4412 = vmatprep.subr.mxu0 0.0
      %4413 = vmatpush1.msra.mxu0 0.0
      %4414 = vmatprep.subr.mxu0 0.0
      %4415 = vmatpush1.msra.mxu0 0.0
      %4416 = vmatprep.subr.mxu0 0.0
      %4417 = vmatpush1.msra.mxu0 0.0
      %4418 = vmatprep.subr.mxu0 0.0
      %4419 = vmatpush1.msra.mxu0 0.0
      %4420 = vmatprep.subr.mxu0 0.0
      %4421 = vmatpush1.msra.mxu0 0.0
      %4422 = vmatprep.subr.mxu0 0.0
      %4423 = vmatpush1.msra.mxu0 0.0
      %4424 = vmatprep.subr.mxu0 0.0
      %4425 = vmatpush1.msra.mxu0 0.0
      %4426 = vmatprep.subr.mxu0 0.0
      %4427 = vmatpush1.msra.mxu0 0.0
      %4428 = vmatprep.subr.mxu0 0.0
      %4429 = vmatpush1.msra.mxu0 0.0
      %4430 = vmatprep.subr.mxu0 0.0
      %4431 = vmatpush1.msra.mxu0 0.0
      %4432 = vmatprep.subr.mxu0 0.0
      %4433 = vmatpush1.msra.mxu0 0.0
      %4434 = vmatprep.subr.mxu0 0.0
      %4435 = vmatpush1.msra.mxu0 0.0
      %4436 = vmatprep.subr.mxu0 0.0
      %4437 = vmatpush1.msra.mxu0 0.0
      %4438 = vmatprep.subr.mxu0 0.0
      %4439 = vmatpush1.msra.mxu0 0.0
      %4440 = vmatprep.subr.mxu0 0.0
      %4441 = vmatpush1.msra.mxu0 0.0
      %4442 = vmatprep.subr.mxu0 0.0
      %4443 = vmatpush1.msra.mxu0 0.0
      %4444 = vmatprep.subr.mxu0 0.0
      %4445 = vmatpush1.msra.mxu0 0.0
      %4446 = vmatprep.subr.mxu0 0.0
      %4447 = vmatpush1.msra.mxu0 0.0
      %4448 = vmatprep.subr.mxu0 0.0
      %4449 = vmatpush1.msra.mxu0 0.0
      %4450 = vmatprep.subr.mxu0 0.0
      %4451 = vmatpush1.msra.mxu0 0.0
      %4452 = vmatprep.subr.mxu0 0.0
      %4453 = vmatpush1.msra.mxu0 0.0
      %4454 = vmatprep.subr.mxu0 0.0
      %4455 = vmatpush1.msra.mxu0 0.0
      %4456 = vmatprep.subr.mxu0 0.0
      %4457 = vmatpush1.msra.mxu0 0.0
      %4458 = vmatprep.subr.mxu0 0.0
      %4459 = vmatpush1.msra.mxu0 0.0
      %4460 = vmatprep.subr.mxu0 0.0
      %4461 = vmatpush1.msra.mxu0 0.0
      %4462 = vmatprep.subr.mxu0 0.0
      %4463 = vmatpush1.msra.mxu0 0.0
      %4464 = vmatprep.subr.mxu0 0.0
      %4465 = vmatpush1.msra.mxu0 0.0
      %4466 = vmatprep.mubr.f32.mxu0 0.0
      %4467 = vmatmul.mubr.f32.gmra.mrb[0].mxu0 %v288
      %v4468 = vpop.f32.mrb[0].mxu0
      %v4469 = vadd.f32 0.0, %v4468
      %v4470 = vpop.f32.mrb[0].mxu0
      %4471 = vdwg.mxu0
      %v4476 = vrot.slane %v4379, 7
      %v4477 = vsel %vm278, %v4476, %v4378
      %v4478 = vrot.slane %v4380, 6
      %v4479 = vsel %vm281, %v4478, %v4477
      %v4480 = vrot.slane %v4381, 5
      %v4481 = vsel %vm284, %v4480, %v4479
      %v4482 = vsel %vm290, %v4481, 0
      %4484 = vmatprep.subr.mxu0 0.0
      %4485 = vmatpush1.msra.mxu0 %v4482
      %4486 = vmatprep.subr.mxu0 0.0
      %4487 = vmatpush1.msra.mxu0 0.0
      %4488 = vmatprep.subr.mxu0 0.0
      %4489 = vmatpush1.msra.mxu0 0.0
      %4490 = vmatprep.subr.mxu0 0.0
      %4491 = vmatpush1.msra.mxu0 0.0
      %4492 = vmatprep.subr.mxu0 0.0
      %4493 = vmatpush1.msra.mxu0 0.0
      %4494 = vmatprep.subr.mxu0 0.0
      %4495 = vmatpush1.msra.mxu0 0.0
      %4496 = vmatprep.subr.mxu0 0.0
      %4497 = vmatpush1.msra.mxu0 0.0
      %4498 = vmatprep.subr.mxu0 0.0
      %4499 = vmatpush1.msra.mxu0 0.0
      %4500 = vmatprep.subr.mxu0 0.0
      %4501 = vmatpush1.msra.mxu0 0.0
      %4502 = vmatprep.subr.mxu0 0.0
      %4503 = vmatpush1.msra.mxu0 0.0
      %4504 = vmatprep.subr.mxu0 0.0
      %4505 = vmatpush1.msra.mxu0 0.0
      %4506 = vmatprep.subr.mxu0 0.0
      %4507 = vmatpush1.msra.mxu0 0.0
      %4508 = vmatprep.subr.mxu0 0.0
      %4509 = vmatpush1.msra.mxu0 0.0
      %4510 = vmatprep.subr.mxu0 0.0
      %4511 = vmatpush1.msra.mxu0 0.0
      %4512 = vmatprep.subr.mxu0 0.0
      %4513 = vmatpush1.msra.mxu0 0.0
      %4514 = vmatprep.subr.mxu0 0.0
      %4515 = vmatpush1.msra.mxu0 0.0
      %4516 = vmatprep.subr.mxu0 0.0
      %4517 = vmatpush1.msra.mxu0 0.0
      %4518 = vmatprep.subr.mxu0 0.0
      %4519 = vmatpush1.msra.mxu0 0.0
      %4520 = vmatprep.subr.mxu0 0.0
      %4521 = vmatpush1.msra.mxu0 0.0
      %4522 = vmatprep.subr.mxu0 0.0
      %4523 = vmatpush1.msra.mxu0 0.0
      %4524 = vmatprep.subr.mxu0 0.0
      %4525 = vmatpush1.msra.mxu0 0.0
      %4526 = vmatprep.subr.mxu0 0.0
      %4527 = vmatpush1.msra.mxu0 0.0
      %4528 = vmatprep.subr.mxu0 0.0
      %4529 = vmatpush1.msra.mxu0 0.0
      %4530 = vmatprep.subr.mxu0 0.0
      %4531 = vmatpush1.msra.mxu0 0.0
      %4532 = vmatprep.subr.mxu0 0.0
      %4533 = vmatpush1.msra.mxu0 0.0
      %4534 = vmatprep.subr.mxu0 0.0
      %4535 = vmatpush1.msra.mxu0 0.0
      %4536 = vmatprep.subr.mxu0 0.0
      %4537 = vmatpush1.msra.mxu0 0.0
      %4538 = vmatprep.subr.mxu0 0.0
      %4539 = vmatpush1.msra.mxu0 0.0
      %4540 = vmatprep.subr.mxu0 0.0
      %4541 = vmatpush1.msra.mxu0 0.0
      %4542 = vmatprep.subr.mxu0 0.0
      %4543 = vmatpush1.msra.mxu0 0.0
      %4544 = vmatprep.subr.mxu0 0.0
      %4545 = vmatpush1.msra.mxu0 0.0
      %4546 = vmatprep.subr.mxu0 0.0
      %4547 = vmatpush1.msra.mxu0 0.0
      %4548 = vmatprep.mubr.f32.mxu0 0.0
      %4549 = vmatmul.mubr.f32.gmra.mrb[0].mxu0 %v374
      %v4550 = vpop.f32.mrb[0].mxu0
      %v4551 = vadd.f32 %v4469, %v4550
      %v4552 = vpop.f32.mrb[0].mxu0
      %4553 = vdwg.mxu0
      %v4554 = vld [vmem:[%s232 + $0xa] sm:$0x1]
      %v4555 = vld [vmem:[%s232 + $0x22] sm:$0x1]
      %v4556 = vld [vmem:[%s232 + $0x3a] sm:$0x1]
      %v4557 = vld [vmem:[%s232 + $0x52] sm:$0x1]
      %v4558 = vmax.f32 %v4554, 0.0
      %v4559 = vmax.f32 %v4555, 0.0
      %v4560 = vmax.f32 %v4556, 0.0
      %v4561 = vmax.f32 %v4557, 0.0
      %v4566 = vrot.slane %v4559, 7
      %v4567 = vsel %vm278, %v4566, %v4558
      %v4568 = vrot.slane %v4560, 6
      %v4569 = vsel %vm281, %v4568, %v4567
      %v4570 = vrot.slane %v4561, 5
      %v4571 = vsel %vm284, %v4570, %v4569
      %v4572 = vsel %vm290, %v4571, 0
      %4574 = vmatprep.subr.mxu0 0.0
      %4575 = vmatpush1.msra.mxu0 %v4572
      %4576 = vmatprep.subr.mxu0 0.0
      %4577 = vmatpush1.msra.mxu0 0.0
      %4578 = vmatprep.subr.mxu0 0.0
      %4579 = vmatpush1.msra.mxu0 0.0
      %4580 = vmatprep.subr.mxu0 0.0
      %4581 = vmatpush1.msra.mxu0 0.0
      %4582 = vmatprep.subr.mxu0 0.0
      %4583 = vmatpush1.msra.mxu0 0.0
      %4584 = vmatprep.subr.mxu0 0.0
      %4585 = vmatpush1.msra.mxu0 0.0
      %4586 = vmatprep.subr.mxu0 0.0
      %4587 = vmatpush1.msra.mxu0 0.0
      %4588 = vmatprep.subr.mxu0 0.0
      %4589 = vmatpush1.msra.mxu0 0.0
      %4590 = vmatprep.subr.mxu0 0.0
      %4591 = vmatpush1.msra.mxu0 0.0
      %4592 = vmatprep.subr.mxu0 0.0
      %4593 = vmatpush1.msra.mxu0 0.0
      %4594 = vmatprep.subr.mxu0 0.0
      %4595 = vmatpush1.msra.mxu0 0.0
      %4596 = vmatprep.subr.mxu0 0.0
      %4597 = vmatpush1.msra.mxu0 0.0
      %4598 = vmatprep.subr.mxu0 0.0
      %4599 = vmatpush1.msra.mxu0 0.0
      %4600 = vmatprep.subr.mxu0 0.0
      %4601 = vmatpush1.msra.mxu0 0.0
      %4602 = vmatprep.subr.mxu0 0.0
      %4603 = vmatpush1.msra.mxu0 0.0
      %4604 = vmatprep.subr.mxu0 0.0
      %4605 = vmatpush1.msra.mxu0 0.0
      %4606 = vmatprep.subr.mxu0 0.0
      %4607 = vmatpush1.msra.mxu0 0.0
      %4608 = vmatprep.subr.mxu0 0.0
      %4609 = vmatpush1.msra.mxu0 0.0
      %4610 = vmatprep.subr.mxu0 0.0
      %4611 = vmatpush1.msra.mxu0 0.0
      %4612 = vmatprep.subr.mxu0 0.0
      %4613 = vmatpush1.msra.mxu0 0.0
      %4614 = vmatprep.subr.mxu0 0.0
      %4615 = vmatpush1.msra.mxu0 0.0
      %4616 = vmatprep.subr.mxu0 0.0
      %4617 = vmatpush1.msra.mxu0 0.0
      %4618 = vmatprep.subr.mxu0 0.0
      %4619 = vmatpush1.msra.mxu0 0.0
      %4620 = vmatprep.subr.mxu0 0.0
      %4621 = vmatpush1.msra.mxu0 0.0
      %4622 = vmatprep.subr.mxu0 0.0
      %4623 = vmatpush1.msra.mxu0 0.0
      %4624 = vmatprep.subr.mxu0 0.0
      %4625 = vmatpush1.msra.mxu0 0.0
      %4626 = vmatprep.subr.mxu0 0.0
      %4627 = vmatpush1.msra.mxu0 0.0
      %4628 = vmatprep.subr.mxu0 0.0
      %4629 = vmatpush1.msra.mxu0 0.0
      %4630 = vmatprep.subr.mxu0 0.0
      %4631 = vmatpush1.msra.mxu0 0.0
      %4632 = vmatprep.subr.mxu0 0.0
      %4633 = vmatpush1.msra.mxu0 0.0
      %4634 = vmatprep.subr.mxu0 0.0
      %4635 = vmatpush1.msra.mxu0 0.0
      %4636 = vmatprep.subr.mxu0 0.0
      %4637 = vmatpush1.msra.mxu0 0.0
      %4638 = vmatprep.mubr.f32.mxu0 0.0
      %4639 = vmatmul.mubr.f32.gmra.mrb[0].mxu0 %v467
      %v4640 = vpop.f32.mrb[0].mxu0
      %v4641 = vadd.f32 0.0, %v4640
      %v4642 = vpop.f32.mrb[0].mxu0
      %4643 = vdwg.mxu0
      %v4644 = vadd.f32 %v4551, %v4641
      %4646 = vrot.lane.b32.xlu0 %v4644, 1
      %v4647 = vpop.permute.xlu0 %4646
      %4649 = vst.msk [vmem:[#allocation2] sm:$0xf] %vm546, %v4647
      %v4650 = vld [vmem:[#allocation2] sm:$0xf]
      %4652 = vrot.lane.b32.xlu0 %v4650, 127
      %v4653 = vpop.permute.xlu0 %4652
      %v4654 = vsel %vm290, %v4653, 0
      %4656 = vmatprep.subr.mxu0 0.0
      %4657 = vmatpush1.msra.mxu0 %v4654
      %4658 = vmatprep.subr.mxu0 0.0
      %4659 = vmatpush1.msra.mxu0 0.0
      %4660 = vmatprep.subr.mxu0 0.0
      %4661 = vmatpush1.msra.mxu0 0.0
      %4662 = vmatprep.subr.mxu0 0.0
      %4663 = vmatpush1.msra.mxu0 0.0
      %4664 = vmatprep.subr.mxu0 0.0
      %4665 = vmatpush1.msra.mxu0 0.0
      %4666 = vmatprep.subr.mxu0 0.0
      %4667 = vmatpush1.msra.mxu0 0.0
      %4668 = vmatprep.subr.mxu0 0.0
      %4669 = vmatpush1.msra.mxu0 0.0
      %4670 = vmatprep.subr.mxu0 0.0
      %4671 = vmatpush1.msra.mxu0 0.0
      %4672 = vmatprep.subr.mxu0 0.0
      %4673 = vmatpush1.msra.mxu0 0.0
      %4674 = vmatprep.subr.mxu0 0.0
      %4675 = vmatpush1.msra.mxu0 0.0
      %4676 = vmatprep.subr.mxu0 0.0
      %4677 = vmatpush1.msra.mxu0 0.0
      %4678 = vmatprep.subr.mxu0 0.0
      %4679 = vmatpush1.msra.mxu0 0.0
      %4680 = vmatprep.subr.mxu0 0.0
      %4681 = vmatpush1.msra.mxu0 0.0
      %4682 = vmatprep.subr.mxu0 0.0
      %4683 = vmatpush1.msra.mxu0 0.0
      %4684 = vmatprep.subr.mxu0 0.0
      %4685 = vmatpush1.msra.mxu0 0.0
      %4686 = vmatprep.subr.mxu0 0.0
      %4687 = vmatpush1.msra.mxu0 0.0
      %4688 = vmatprep.subr.mxu0 0.0
      %4689 = vmatpush1.msra.mxu0 0.0
      %4690 = vmatprep.subr.mxu0 0.0
      %4691 = vmatpush1.msra.mxu0 0.0
      %4692 = vmatprep.subr.mxu0 0.0
      %4693 = vmatpush1.msra.mxu0 0.0
      %4694 = vmatprep.subr.mxu0 0.0
      %4695 = vmatpush1.msra.mxu0 0.0
      %4696 = vmatprep.subr.mxu0 0.0
      %4697 = vmatpush1.msra.mxu0 0.0
      %4698 = vmatprep.subr.mxu0 0.0
      %4699 = vmatpush1.msra.mxu0 0.0
      %4700 = vmatprep.subr.mxu0 0.0
      %4701 = vmatpush1.msra.mxu0 0.0
      %4702 = vmatprep.subr.mxu0 0.0
      %4703 = vmatpush1.msra.mxu0 0.0
      %4704 = vmatprep.subr.mxu0 0.0
      %4705 = vmatpush1.msra.mxu0 0.0
      %4706 = vmatprep.subr.mxu0 0.0
      %4707 = vmatpush1.msra.mxu0 0.0
      %4708 = vmatprep.subr.mxu0 0.0
      %4709 = vmatpush1.msra.mxu0 0.0
      %4710 = vmatprep.subr.mxu0 0.0
      %4711 = vmatpush1.msra.mxu0 0.0
      %4712 = vmatprep.subr.mxu0 0.0
      %4713 = vmatpush1.msra.mxu0 0.0
      %4714 = vmatprep.subr.mxu0 0.0
      %4715 = vmatpush1.msra.mxu0 0.0
      %4716 = vmatprep.subr.mxu0 0.0
      %4717 = vmatpush1.msra.mxu0 0.0
      %4718 = vmatprep.subr.mxu0 0.0
      %4719 = vmatpush1.msra.mxu0 0.0
      %4720 = vmatprep.mubr.f32.mxu0 0.0
      %4721 = vmatmul.mubr.f32.gmra.mrb[0].mxu0 %v553
      %v4722 = vpop.f32.mrb[0].mxu0
      %v4723 = vadd.f32 0.0, %v4722
      %v4724 = vpop.f32.mrb[0].mxu0
      %4725 = vdwg.mxu0
      %v4726 = vsel %vm290, %v4650, 0
      %4728 = vmatprep.subr.mxu0 0.0
      %4729 = vmatpush1.msra.mxu0 %v4726
      %4730 = vmatprep.subr.mxu0 0.0
      %4731 = vmatpush1.msra.mxu0 0.0
      %4732 = vmatprep.subr.mxu0 0.0
      %4733 = vmatpush1.msra.mxu0 0.0
      %4734 = vmatprep.subr.mxu0 0.0
      %4735 = vmatpush1.msra.mxu0 0.0
      %4736 = vmatprep.subr.mxu0 0.0
      %4737 = vmatpush1.msra.mxu0 0.0
      %4738 = vmatprep.subr.mxu0 0.0
      %4739 = vmatpush1.msra.mxu0 0.0
      %4740 = vmatprep.subr.mxu0 0.0
      %4741 = vmatpush1.msra.mxu0 0.0
      %4742 = vmatprep.subr.mxu0 0.0
      %4743 = vmatpush1.msra.mxu0 0.0
      %4744 = vmatprep.subr.mxu0 0.0
      %4745 = vmatpush1.msra.mxu0 0.0
      %4746 = vmatprep.subr.mxu0 0.0
      %4747 = vmatpush1.msra.mxu0 0.0
      %4748 = vmatprep.subr.mxu0 0.0
      %4749 = vmatpush1.msra.mxu0 0.0
      %4750 = vmatprep.subr.mxu0 0.0
      %4751 = vmatpush1.msra.mxu0 0.0
      %4752 = vmatprep.subr.mxu0 0.0
      %4753 = vmatpush1.msra.mxu0 0.0
      %4754 = vmatprep.subr.mxu0 0.0
      %4755 = vmatpush1.msra.mxu0 0.0
      %4756 = vmatprep.subr.mxu0 0.0
      %4757 = vmatpush1.msra.mxu0 0.0
      %4758 = vmatprep.subr.mxu0 0.0
      %4759 = vmatpush1.msra.mxu0 0.0
      %4760 = vmatprep.subr.mxu0 0.0
      %4761 = vmatpush1.msra.mxu0 0.0
      %4762 = vmatprep.subr.mxu0 0.0
      %4763 = vmatpush1.msra.mxu0 0.0
      %4764 = vmatprep.subr.mxu0 0.0
      %4765 = vmatpush1.msra.mxu0 0.0
      %4766 = vmatprep.subr.mxu0 0.0
      %4767 = vmatpush1.msra.mxu0 0.0
      %4768 = vmatprep.subr.mxu0 0.0
      %4769 = vmatpush1.msra.mxu0 0.0
      %4770 = vmatprep.subr.mxu0 0.0
      %4771 = vmatpush1.msra.mxu0 0.0
      %4772 = vmatprep.subr.mxu0 0.0
      %4773 = vmatpush1.msra.mxu0 0.0
      %4774 = vmatprep.subr.mxu0 0.0
      %4775 = vmatpush1.msra.mxu0 0.0
      %4776 = vmatprep.subr.mxu0 0.0
      %4777 = vmatpush1.msra.mxu0 0.0
      %4778 = vmatprep.subr.mxu0 0.0
      %4779 = vmatpush1.msra.mxu0 0.0
      %4780 = vmatprep.subr.mxu0 0.0
      %4781 = vmatpush1.msra.mxu0 0.0
      %4782 = vmatprep.subr.mxu0 0.0
      %4783 = vmatpush1.msra.mxu0 0.0
      %4784 = vmatprep.subr.mxu0 0.0
      %4785 = vmatpush1.msra.mxu0 0.0
      %4786 = vmatprep.subr.mxu0 0.0
      %4787 = vmatpush1.msra.mxu0 0.0
      %4788 = vmatprep.subr.mxu0 0.0
      %4789 = vmatpush1.msra.mxu0 0.0
      %4790 = vmatprep.subr.mxu0 0.0
      %4791 = vmatpush1.msra.mxu0 0.0
      %4792 = vmatprep.mubr.f32.mxu0 0.0
      %4793 = vmatmul.mubr.f32.gmra.mrb[0].mxu0 %v628
      %v4794 = vpop.f32.mrb[0].mxu0
      %v4795 = vadd.f32 %v4723, %v4794
      %v4796 = vpop.f32.mrb[0].mxu0
      %4797 = vdwg.mxu0
      %4798 = vrot.lane.b32.xlu0 %v4650, 126
      %v4799 = vpop.permute.xlu0 %4798
      %v4800 = vsel %vm290, %v4799, 0
      %4802 = vmatprep.subr.mxu0 0.0
      %4803 = vmatpush1.msra.mxu0 %v4800
      %4804 = vmatprep.subr.mxu0 0.0
      %4805 = vmatpush1.msra.mxu0 0.0
      %4806 = vmatprep.subr.mxu0 0.0
      %4807 = vmatpush1.msra.mxu0 0.0
      %4808 = vmatprep.subr.mxu0 0.0
      %4809 = vmatpush1.msra.mxu0 0.0
      %4810 = vmatprep.subr.mxu0 0.0
      %4811 = vmatpush1.msra.mxu0 0.0
      %4812 = vmatprep.subr.mxu0 0.0
      %4813 = vmatpush1.msra.mxu0 0.0
      %4814 = vmatprep.subr.mxu0 0.0
      %4815 = vmatpush1.msra.mxu0 0.0
      %4816 = vmatprep.subr.mxu0 0.0
      %4817 = vmatpush1.msra.mxu0 0.0
      %4818 = vmatprep.subr.mxu0 0.0
      %4819 = vmatpush1.msra.mxu0 0.0
      %4820 = vmatprep.subr.mxu0 0.0
      %4821 = vmatpush1.msra.mxu0 0.0
      %4822 = vmatprep.subr.mxu0 0.0
      %4823 = vmatpush1.msra.mxu0 0.0
      %4824 = vmatprep.subr.mxu0 0.0
      %4825 = vmatpush1.msra.mxu0 0.0
      %4826 = vmatprep.subr.mxu0 0.0
      %4827 = vmatpush1.msra.mxu0 0.0
      %4828 = vmatprep.subr.mxu0 0.0
      %4829 = vmatpush1.msra.mxu0 0.0
      %4830 = vmatprep.subr.mxu0 0.0
      %4831 = vmatpush1.msra.mxu0 0.0
      %4832 = vmatprep.subr.mxu0 0.0
      %4833 = vmatpush1.msra.mxu0 0.0
      %4834 = vmatprep.subr.mxu0 0.0
      %4835 = vmatpush1.msra.mxu0 0.0
      %4836 = vmatprep.subr.mxu0 0.0
      %4837 = vmatpush1.msra.mxu0 0.0
      %4838 = vmatprep.subr.mxu0 0.0
      %4839 = vmatpush1.msra.mxu0 0.0
      %4840 = vmatprep.subr.mxu0 0.0
      %4841 = vmatpush1.msra.mxu0 0.0
      %4842 = vmatprep.subr.mxu0 0.0
      %4843 = vmatpush1.msra.mxu0 0.0
      %4844 = vmatprep.subr.mxu0 0.0
      %4845 = vmatpush1.msra.mxu0 0.0
      %4846 = vmatprep.subr.mxu0 0.0
      %4847 = vmatpush1.msra.mxu0 0.0
      %4848 = vmatprep.subr.mxu0 0.0
      %4849 = vmatpush1.msra.mxu0 0.0
      %4850 = vmatprep.subr.mxu0 0.0
      %4851 = vmatpush1.msra.mxu0 0.0
      %4852 = vmatprep.subr.mxu0 0.0
      %4853 = vmatpush1.msra.mxu0 0.0
      %4854 = vmatprep.subr.mxu0 0.0
      %4855 = vmatpush1.msra.mxu0 0.0
      %4856 = vmatprep.subr.mxu0 0.0
      %4857 = vmatpush1.msra.mxu0 0.0
      %4858 = vmatprep.subr.mxu0 0.0
      %4859 = vmatpush1.msra.mxu0 0.0
      %4860 = vmatprep.subr.mxu0 0.0
      %4861 = vmatpush1.msra.mxu0 0.0
      %4862 = vmatprep.subr.mxu0 0.0
      %4863 = vmatpush1.msra.mxu0 0.0
      %4864 = vmatprep.subr.mxu0 0.0
      %4865 = vmatpush1.msra.mxu0 0.0
      %4866 = vmatprep.mubr.f32.mxu0 0.0
      %4867 = vmatmul.mubr.f32.gmra.mrb[0].mxu0 %v705
      %v4868 = vpop.f32.mrb[0].mxu0
      %v4869 = vadd.f32 0.0, %v4868
      %v4870 = vpop.f32.mrb[0].mxu0
      %4871 = vdwg.mxu0
      %v4872 = vadd.f32 %v4795, %v4869
      %v4873 = vadd.f32 %v4362, %v4872
      %v4874 = vmul.f32 %v4872, %v4872
      %v4875 = vadd.f32 %v4364, %v4874
      %v4876 = vpack.c.bf16 %v4872, %v4872
      %v4878 = vunpack.c.l.b16 %v4876
      %v4879 = vpack.c.b16 %v4878, %v4878
      %4880 = vrot.lane.b32.xlu0 %v4879, 34
      %v4881 = vpop.permute.xlu0 %4880
      %vm4883 = vcmask 421136
      %4884 = vst.msk [vmem:[%s237 + $0x4] sm:$0xf] %vm4883, %v4881
      %v4885 = vld [vmem:[%s232 + $0x9] sm:$0x1]
      %v4886 = vld [vmem:[%s232 + $0x21] sm:$0x1]
      %v4887 = vld [vmem:[%s232 + $0x39] sm:$0x1]
      %v4888 = vld [vmem:[%s232 + $0x51] sm:$0x1]
      %v4889 = vmax.f32 %v4885, 0.0
      %v4890 = vmax.f32 %v4886, 0.0
      %v4891 = vmax.f32 %v4887, 0.0
      %v4892 = vmax.f32 %v4888, 0.0
      %v4893 = vld [vmem:[%s232 + $0xa] sm:$0x1]
      %v4894 = vld [vmem:[%s232 + $0x22] sm:$0x1]
      %v4895 = vld [vmem:[%s232 + $0x3a] sm:$0x1]
      %v4896 = vld [vmem:[%s232 + $0x52] sm:$0x1]
      %v4897 = vmax.f32 %v4893, 0.0
      %v4898 = vmax.f32 %v4894, 0.0
      %v4899 = vmax.f32 %v4895, 0.0
      %v4900 = vmax.f32 %v4896, 0.0
      %v4905 = vrot.slane %v4898, 7
      %v4906 = vsel %vm278, %v4905, %v4897
      %v4907 = vrot.slane %v4899, 6
      %v4908 = vsel %vm281, %v4907, %v4906
      %v4909 = vrot.slane %v4900, 5
      %v4910 = vsel %vm284, %v4909, %v4908
      %v4911 = vsel %vm290, %v4910, 0
      %4913 = vmatprep.subr.mxu0 0.0
      %4914 = vmatpush1.msra.mxu0 %v4911
      %4915 = vmatprep.subr.mxu0 0.0
      %4916 = vmatpush1.msra.mxu0 0.0
      %4917 = vmatprep.subr.mxu0 0.0
      %4918 = vmatpush1.msra.mxu0 0.0
      %4919 = vmatprep.subr.mxu0 0.0
      %4920 = vmatpush1.msra.mxu0 0.0
      %4921 = vmatprep.subr.mxu0 0.0
      %4922 = vmatpush1.msra.mxu0 0.0
      %4923 = vmatprep.subr.mxu0 0.0
      %4924 = vmatpush1.msra.mxu0 0.0
      %4925 = vmatprep.subr.mxu0 0.0
      %4926 = vmatpush1.msra.mxu0 0.0
      %4927 = vmatprep.subr.mxu0 0.0
      %4928 = vmatpush1.msra.mxu0 0.0
      %4929 = vmatprep.subr.mxu0 0.0
      %4930 = vmatpush1.msra.mxu0 0.0
      %4931 = vmatprep.subr.mxu0 0.0
      %4932 = vmatpush1.msra.mxu0 0.0
      %4933 = vmatprep.subr.mxu0 0.0
      %4934 = vmatpush1.msra.mxu0 0.0
      %4935 = vmatprep.subr.mxu0 0.0
      %4936 = vmatpush1.msra.mxu0 0.0
      %4937 = vmatprep.subr.mxu0 0.0
      %4938 = vmatpush1.msra.mxu0 0.0
      %4939 = vmatprep.subr.mxu0 0.0
      %4940 = vmatpush1.msra.mxu0 0.0
      %4941 = vmatprep.subr.mxu0 0.0
      %4942 = vmatpush1.msra.mxu0 0.0
      %4943 = vmatprep.subr.mxu0 0.0
      %4944 = vmatpush1.msra.mxu0 0.0
      %4945 = vmatprep.subr.mxu0 0.0
      %4946 = vmatpush1.msra.mxu0 0.0
      %4947 = vmatprep.subr.mxu0 0.0
      %4948 = vmatpush1.msra.mxu0 0.0
      %4949 = vmatprep.subr.mxu0 0.0
      %4950 = vmatpush1.msra.mxu0 0.0
      %4951 = vmatprep.subr.mxu0 0.0
      %4952 = vmatpush1.msra.mxu0 0.0
      %4953 = vmatprep.subr.mxu0 0.0
      %4954 = vmatpush1.msra.mxu0 0.0
      %4955 = vmatprep.subr.mxu0 0.0
      %4956 = vmatpush1.msra.mxu0 0.0
      %4957 = vmatprep.subr.mxu0 0.0
      %4958 = vmatpush1.msra.mxu0 0.0
      %4959 = vmatprep.subr.mxu0 0.0
      %4960 = vmatpush1.msra.mxu0 0.0
      %4961 = vmatprep.subr.mxu0 0.0
      %4962 = vmatpush1.msra.mxu0 0.0
      %4963 = vmatprep.subr.mxu0 0.0
      %4964 = vmatpush1.msra.mxu0 0.0
      %4965 = vmatprep.subr.mxu0 0.0
      %4966 = vmatpush1.msra.mxu0 0.0
      %4967 = vmatprep.subr.mxu0 0.0
      %4968 = vmatpush1.msra.mxu0 0.0
      %4969 = vmatprep.subr.mxu0 0.0
      %4970 = vmatpush1.msra.mxu0 0.0
      %4971 = vmatprep.subr.mxu0 0.0
      %4972 = vmatpush1.msra.mxu0 0.0
      %4973 = vmatprep.subr.mxu0 0.0
      %4974 = vmatpush1.msra.mxu0 0.0
      %4975 = vmatprep.subr.mxu0 0.0
      %4976 = vmatpush1.msra.mxu0 0.0
      %4977 = vmatprep.mubr.f32.mxu0 0.0
      %4978 = vmatmul.mubr.f32.gmra.mrb[0].mxu0 %v288
      %v4979 = vpop.f32.mrb[0].mxu0
      %v4980 = vadd.f32 0.0, %v4979
      %v4981 = vpop.f32.mrb[0].mxu0
      %4982 = vdwg.mxu0
      %v4987 = vrot.slane %v4890, 7
      %v4988 = vsel %vm278, %v4987, %v4889
      %v4989 = vrot.slane %v4891, 6
      %v4990 = vsel %vm281, %v4989, %v4988
      %v4991 = vrot.slane %v4892, 5
      %v4992 = vsel %vm284, %v4991, %v4990
      %v4993 = vsel %vm290, %v4992, 0
      %4995 = vmatprep.subr.mxu0 0.0
      %4996 = vmatpush1.msra.mxu0 %v4993
      %4997 = vmatprep.subr.mxu0 0.0
      %4998 = vmatpush1.msra.mxu0 0.0
      %4999 = vmatprep.subr.mxu0 0.0
      %5000 = vmatpush1.msra.mxu0 0.0
      %5001 = vmatprep.subr.mxu0 0.0
      %5002 = vmatpush1.msra.mxu0 0.0
      %5003 = vmatprep.subr.mxu0 0.0
      %5004 = vmatpush1.msra.mxu0 0.0
      %5005 = vmatprep.subr.mxu0 0.0
      %5006 = vmatpush1.msra.mxu0 0.0
      %5007 = vmatprep.subr.mxu0 0.0
      %5008 = vmatpush1.msra.mxu0 0.0
      %5009 = vmatprep.subr.mxu0 0.0
      %5010 = vmatpush1.msra.mxu0 0.0
      %5011 = vmatprep.subr.mxu0 0.0
      %5012 = vmatpush1.msra.mxu0 0.0
      %5013 = vmatprep.subr.mxu0 0.0
      %5014 = vmatpush1.msra.mxu0 0.0
      %5015 = vmatprep.subr.mxu0 0.0
      %5016 = vmatpush1.msra.mxu0 0.0
      %5017 = vmatprep.subr.mxu0 0.0
      %5018 = vmatpush1.msra.mxu0 0.0
      %5019 = vmatprep.subr.mxu0 0.0
      %5020 = vmatpush1.msra.mxu0 0.0
      %5021 = vmatprep.subr.mxu0 0.0
      %5022 = vmatpush1.msra.mxu0 0.0
      %5023 = vmatprep.subr.mxu0 0.0
      %5024 = vmatpush1.msra.mxu0 0.0
      %5025 = vmatprep.subr.mxu0 0.0
      %5026 = vmatpush1.msra.mxu0 0.0
      %5027 = vmatprep.subr.mxu0 0.0
      %5028 = vmatpush1.msra.mxu0 0.0
      %5029 = vmatprep.subr.mxu0 0.0
      %5030 = vmatpush1.msra.mxu0 0.0
      %5031 = vmatprep.subr.mxu0 0.0
      %5032 = vmatpush1.msra.mxu0 0.0
      %5033 = vmatprep.subr.mxu0 0.0
      %5034 = vmatpush1.msra.mxu0 0.0
      %5035 = vmatprep.subr.mxu0 0.0
      %5036 = vmatpush1.msra.mxu0 0.0
      %5037 = vmatprep.subr.mxu0 0.0
      %5038 = vmatpush1.msra.mxu0 0.0
      %5039 = vmatprep.subr.mxu0 0.0
      %5040 = vmatpush1.msra.mxu0 0.0
      %5041 = vmatprep.subr.mxu0 0.0
      %5042 = vmatpush1.msra.mxu0 0.0
      %5043 = vmatprep.subr.mxu0 0.0
      %5044 = vmatpush1.msra.mxu0 0.0
      %5045 = vmatprep.subr.mxu0 0.0
      %5046 = vmatpush1.msra.mxu0 0.0
      %5047 = vmatprep.subr.mxu0 0.0
      %5048 = vmatpush1.msra.mxu0 0.0
      %5049 = vmatprep.subr.mxu0 0.0
      %5050 = vmatpush1.msra.mxu0 0.0
      %5051 = vmatprep.subr.mxu0 0.0
      %5052 = vmatpush1.msra.mxu0 0.0
      %5053 = vmatprep.subr.mxu0 0.0
      %5054 = vmatpush1.msra.mxu0 0.0
      %5055 = vmatprep.subr.mxu0 0.0
      %5056 = vmatpush1.msra.mxu0 0.0
      %5057 = vmatprep.subr.mxu0 0.0
      %5058 = vmatpush1.msra.mxu0 0.0
      %5059 = vmatprep.mubr.f32.mxu0 0.0
      %5060 = vmatmul.mubr.f32.gmra.mrb[0].mxu0 %v374
      %v5061 = vpop.f32.mrb[0].mxu0
      %v5062 = vadd.f32 %v4980, %v5061
      %v5063 = vpop.f32.mrb[0].mxu0
      %5064 = vdwg.mxu0
      %v5065 = vld [vmem:[%s232 + $0xb] sm:$0x1]
      %v5066 = vld [vmem:[%s232 + $0x23] sm:$0x1]
      %v5067 = vld [vmem:[%s232 + $0x3b] sm:$0x1]
      %v5068 = vld [vmem:[%s232 + $0x53] sm:$0x1]
      %v5069 = vmax.f32 %v5065, 0.0
      %v5070 = vmax.f32 %v5066, 0.0
      %v5071 = vmax.f32 %v5067, 0.0
      %v5072 = vmax.f32 %v5068, 0.0
      %v5077 = vrot.slane %v5070, 7
      %v5078 = vsel %vm278, %v5077, %v5069
      %v5079 = vrot.slane %v5071, 6
      %v5080 = vsel %vm281, %v5079, %v5078
      %v5081 = vrot.slane %v5072, 5
      %v5082 = vsel %vm284, %v5081, %v5080
      %v5083 = vsel %vm290, %v5082, 0
      %5085 = vmatprep.subr.mxu0 0.0
      %5086 = vmatpush1.msra.mxu0 %v5083
      %5087 = vmatprep.subr.mxu0 0.0
      %5088 = vmatpush1.msra.mxu0 0.0
      %5089 = vmatprep.subr.mxu0 0.0
      %5090 = vmatpush1.msra.mxu0 0.0
      %5091 = vmatprep.subr.mxu0 0.0
      %5092 = vmatpush1.msra.mxu0 0.0
      %5093 = vmatprep.subr.mxu0 0.0
      %5094 = vmatpush1.msra.mxu0 0.0
      %5095 = vmatprep.subr.mxu0 0.0
      %5096 = vmatpush1.msra.mxu0 0.0
      %5097 = vmatprep.subr.mxu0 0.0
      %5098 = vmatpush1.msra.mxu0 0.0
      %5099 = vmatprep.subr.mxu0 0.0
      %5100 = vmatpush1.msra.mxu0 0.0
      %5101 = vmatprep.subr.mxu0 0.0
      %5102 = vmatpush1.msra.mxu0 0.0
      %5103 = vmatprep.subr.mxu0 0.0
      %5104 = vmatpush1.msra.mxu0 0.0
      %5105 = vmatprep.subr.mxu0 0.0
      %5106 = vmatpush1.msra.mxu0 0.0
      %5107 = vmatprep.subr.mxu0 0.0
      %5108 = vmatpush1.msra.mxu0 0.0
      %5109 = vmatprep.subr.mxu0 0.0
      %5110 = vmatpush1.msra.mxu0 0.0
      %5111 = vmatprep.subr.mxu0 0.0
      %5112 = vmatpush1.msra.mxu0 0.0
      %5113 = vmatprep.subr.mxu0 0.0
      %5114 = vmatpush1.msra.mxu0 0.0
      %5115 = vmatprep.subr.mxu0 0.0
      %5116 = vmatpush1.msra.mxu0 0.0
      %5117 = vmatprep.subr.mxu0 0.0
      %5118 = vmatpush1.msra.mxu0 0.0
      %5119 = vmatprep.subr.mxu0 0.0
      %5120 = vmatpush1.msra.mxu0 0.0
      %5121 = vmatprep.subr.mxu0 0.0
      %5122 = vmatpush1.msra.mxu0 0.0
      %5123 = vmatprep.subr.mxu0 0.0
      %5124 = vmatpush1.msra.mxu0 0.0
      %5125 = vmatprep.subr.mxu0 0.0
      %5126 = vmatpush1.msra.mxu0 0.0
      %5127 = vmatprep.subr.mxu0 0.0
      %5128 = vmatpush1.msra.mxu0 0.0
      %5129 = vmatprep.subr.mxu0 0.0
      %5130 = vmatpush1.msra.mxu0 0.0
      %5131 = vmatprep.subr.mxu0 0.0
      %5132 = vmatpush1.msra.mxu0 0.0
      %5133 = vmatprep.subr.mxu0 0.0
      %5134 = vmatpush1.msra.mxu0 0.0
      %5135 = vmatprep.subr.mxu0 0.0
      %5136 = vmatpush1.msra.mxu0 0.0
      %5137 = vmatprep.subr.mxu0 0.0
      %5138 = vmatpush1.msra.mxu0 0.0
      %5139 = vmatprep.subr.mxu0 0.0
      %5140 = vmatpush1.msra.mxu0 0.0
      %5141 = vmatprep.subr.mxu0 0.0
      %5142 = vmatpush1.msra.mxu0 0.0
      %5143 = vmatprep.subr.mxu0 0.0
      %5144 = vmatpush1.msra.mxu0 0.0
      %5145 = vmatprep.subr.mxu0 0.0
      %5146 = vmatpush1.msra.mxu0 0.0
      %5147 = vmatprep.subr.mxu0 0.0
      %5148 = vmatpush1.msra.mxu0 0.0
      %5149 = vmatprep.mubr.f32.mxu0 0.0
      %5150 = vmatmul.mubr.f32.gmra.mrb[0].mxu0 %v467
      %v5151 = vpop.f32.mrb[0].mxu0
      %v5152 = vadd.f32 0.0, %v5151
      %v5153 = vpop.f32.mrb[0].mxu0
      %5154 = vdwg.mxu0
      %v5155 = vadd.f32 %v5062, %v5152
      %5157 = vrot.lane.b32.xlu0 %v5155, 1
      %v5158 = vpop.permute.xlu0 %5157
      %5160 = vst.msk [vmem:[#allocation2] sm:$0xf] %vm546, %v5158
      %v5161 = vld [vmem:[#allocation2] sm:$0xf]
      %5163 = vrot.lane.b32.xlu0 %v5161, 127
      %v5164 = vpop.permute.xlu0 %5163
      %v5165 = vsel %vm290, %v5164, 0
      %5167 = vmatprep.subr.mxu0 0.0
      %5168 = vmatpush1.msra.mxu0 %v5165
      %5169 = vmatprep.subr.mxu0 0.0
      %5170 = vmatpush1.msra.mxu0 0.0
      %5171 = vmatprep.subr.mxu0 0.0
      %5172 = vmatpush1.msra.mxu0 0.0
      %5173 = vmatprep.subr.mxu0 0.0
      %5174 = vmatpush1.msra.mxu0 0.0
      %5175 = vmatprep.subr.mxu0 0.0
      %5176 = vmatpush1.msra.mxu0 0.0
      %5177 = vmatprep.subr.mxu0 0.0
      %5178 = vmatpush1.msra.mxu0 0.0
      %5179 = vmatprep.subr.mxu0 0.0
      %5180 = vmatpush1.msra.mxu0 0.0
      %5181 = vmatprep.subr.mxu0 0.0
      %5182 = vmatpush1.msra.mxu0 0.0
      %5183 = vmatprep.subr.mxu0 0.0
      %5184 = vmatpush1.msra.mxu0 0.0
      %5185 = vmatprep.subr.mxu0 0.0
      %5186 = vmatpush1.msra.mxu0 0.0
      %5187 = vmatprep.subr.mxu0 0.0
      %5188 = vmatpush1.msra.mxu0 0.0
      %5189 = vmatprep.subr.mxu0 0.0
      %5190 = vmatpush1.msra.mxu0 0.0
      %5191 = vmatprep.subr.mxu0 0.0
      %5192 = vmatpush1.msra.mxu0 0.0
      %5193 = vmatprep.subr.mxu0 0.0
      %5194 = vmatpush1.msra.mxu0 0.0
      %5195 = vmatprep.subr.mxu0 0.0
      %5196 = vmatpush1.msra.mxu0 0.0
      %5197 = vmatprep.subr.mxu0 0.0
      %5198 = vmatpush1.msra.mxu0 0.0
      %5199 = vmatprep.subr.mxu0 0.0
      %5200 = vmatpush1.msra.mxu0 0.0
      %5201 = vmatprep.subr.mxu0 0.0
      %5202 = vmatpush1.msra.mxu0 0.0
      %5203 = vmatprep.subr.mxu0 0.0
      %5204 = vmatpush1.msra.mxu0 0.0
      %5205 = vmatprep.subr.mxu0 0.0
      %5206 = vmatpush1.msra.mxu0 0.0
      %5207 = vmatprep.subr.mxu0 0.0
      %5208 = vmatpush1.msra.mxu0 0.0
      %5209 = vmatprep.subr.mxu0 0.0
      %5210 = vmatpush1.msra.mxu0 0.0
      %5211 = vmatprep.subr.mxu0 0.0
      %5212 = vmatpush1.msra.mxu0 0.0
      %5213 = vmatprep.subr.mxu0 0.0
      %5214 = vmatpush1.msra.mxu0 0.0
      %5215 = vmatprep.subr.mxu0 0.0
      %5216 = vmatpush1.msra.mxu0 0.0
      %5217 = vmatprep.subr.mxu0 0.0
      %5218 = vmatpush1.msra.mxu0 0.0
      %5219 = vmatprep.subr.mxu0 0.0
      %5220 = vmatpush1.msra.mxu0 0.0
      %5221 = vmatprep.subr.mxu0 0.0
      %5222 = vmatpush1.msra.mxu0 0.0
      %5223 = vmatprep.subr.mxu0 0.0
      %5224 = vmatpush1.msra.mxu0 0.0
      %5225 = vmatprep.subr.mxu0 0.0
      %5226 = vmatpush1.msra.mxu0 0.0
      %5227 = vmatprep.subr.mxu0 0.0
      %5228 = vmatpush1.msra.mxu0 0.0
      %5229 = vmatprep.subr.mxu0 0.0
      %5230 = vmatpush1.msra.mxu0 0.0
      %5231 = vmatprep.mubr.f32.mxu0 0.0
      %5232 = vmatmul.mubr.f32.gmra.mrb[0].mxu0 %v553
      %v5233 = vpop.f32.mrb[0].mxu0
      %v5234 = vadd.f32 0.0, %v5233
      %v5235 = vpop.f32.mrb[0].mxu0
      %5236 = vdwg.mxu0
      %v5237 = vsel %vm290, %v5161, 0
      %5239 = vmatprep.subr.mxu0 0.0
      %5240 = vmatpush1.msra.mxu0 %v5237
      %5241 = vmatprep.subr.mxu0 0.0
      %5242 = vmatpush1.msra.mxu0 0.0
      %5243 = vmatprep.subr.mxu0 0.0
      %5244 = vmatpush1.msra.mxu0 0.0
      %5245 = vmatprep.subr.mxu0 0.0
      %5246 = vmatpush1.msra.mxu0 0.0
      %5247 = vmatprep.subr.mxu0 0.0
      %5248 = vmatpush1.msra.mxu0 0.0
      %5249 = vmatprep.subr.mxu0 0.0
      %5250 = vmatpush1.msra.mxu0 0.0
      %5251 = vmatprep.subr.mxu0 0.0
      %5252 = vmatpush1.msra.mxu0 0.0
      %5253 = vmatprep.subr.mxu0 0.0
      %5254 = vmatpush1.msra.mxu0 0.0
      %5255 = vmatprep.subr.mxu0 0.0
      %5256 = vmatpush1.msra.mxu0 0.0
      %5257 = vmatprep.subr.mxu0 0.0
      %5258 = vmatpush1.msra.mxu0 0.0
      %5259 = vmatprep.subr.mxu0 0.0
      %5260 = vmatpush1.msra.mxu0 0.0
      %5261 = vmatprep.subr.mxu0 0.0
      %5262 = vmatpush1.msra.mxu0 0.0
      %5263 = vmatprep.subr.mxu0 0.0
      %5264 = vmatpush1.msra.mxu0 0.0
      %5265 = vmatprep.subr.mxu0 0.0
      %5266 = vmatpush1.msra.mxu0 0.0
      %5267 = vmatprep.subr.mxu0 0.0
      %5268 = vmatpush1.msra.mxu0 0.0
      %5269 = vmatprep.subr.mxu0 0.0
      %5270 = vmatpush1.msra.mxu0 0.0
      %5271 = vmatprep.subr.mxu0 0.0
      %5272 = vmatpush1.msra.mxu0 0.0
      %5273 = vmatprep.subr.mxu0 0.0
      %5274 = vmatpush1.msra.mxu0 0.0
      %5275 = vmatprep.subr.mxu0 0.0
      %5276 = vmatpush1.msra.mxu0 0.0
      %5277 = vmatprep.subr.mxu0 0.0
      %5278 = vmatpush1.msra.mxu0 0.0
      %5279 = vmatprep.subr.mxu0 0.0
      %5280 = vmatpush1.msra.mxu0 0.0
      %5281 = vmatprep.subr.mxu0 0.0
      %5282 = vmatpush1.msra.mxu0 0.0
      %5283 = vmatprep.subr.mxu0 0.0
      %5284 = vmatpush1.msra.mxu0 0.0
      %5285 = vmatprep.subr.mxu0 0.0
      %5286 = vmatpush1.msra.mxu0 0.0
      %5287 = vmatprep.subr.mxu0 0.0
      %5288 = vmatpush1.msra.mxu0 0.0
      %5289 = vmatprep.subr.mxu0 0.0
      %5290 = vmatpush1.msra.mxu0 0.0
      %5291 = vmatprep.subr.mxu0 0.0
      %5292 = vmatpush1.msra.mxu0 0.0
      %5293 = vmatprep.subr.mxu0 0.0
      %5294 = vmatpush1.msra.mxu0 0.0
      %5295 = vmatprep.subr.mxu0 0.0
      %5296 = vmatpush1.msra.mxu0 0.0
      %5297 = vmatprep.subr.mxu0 0.0
      %5298 = vmatpush1.msra.mxu0 0.0
      %5299 = vmatprep.subr.mxu0 0.0
      %5300 = vmatpush1.msra.mxu0 0.0
      %5301 = vmatprep.subr.mxu0 0.0
      %5302 = vmatpush1.msra.mxu0 0.0
      %5303 = vmatprep.mubr.f32.mxu0 0.0
      %5304 = vmatmul.mubr.f32.gmra.mrb[0].mxu0 %v628
      %v5305 = vpop.f32.mrb[0].mxu0
      %v5306 = vadd.f32 %v5234, %v5305
      %v5307 = vpop.f32.mrb[0].mxu0
      %5308 = vdwg.mxu0
      %5309 = vrot.lane.b32.xlu0 %v5161, 126
      %v5310 = vpop.permute.xlu0 %5309
      %v5311 = vsel %vm290, %v5310, 0
      %5313 = vmatprep.subr.mxu0 0.0
      %5314 = vmatpush1.msra.mxu0 %v5311
      %5315 = vmatprep.subr.mxu0 0.0
      %5316 = vmatpush1.msra.mxu0 0.0
      %5317 = vmatprep.subr.mxu0 0.0
      %5318 = vmatpush1.msra.mxu0 0.0
      %5319 = vmatprep.subr.mxu0 0.0
      %5320 = vmatpush1.msra.mxu0 0.0
      %5321 = vmatprep.subr.mxu0 0.0
      %5322 = vmatpush1.msra.mxu0 0.0
      %5323 = vmatprep.subr.mxu0 0.0
      %5324 = vmatpush1.msra.mxu0 0.0
      %5325 = vmatprep.subr.mxu0 0.0
      %5326 = vmatpush1.msra.mxu0 0.0
      %5327 = vmatprep.subr.mxu0 0.0
      %5328 = vmatpush1.msra.mxu0 0.0
      %5329 = vmatprep.subr.mxu0 0.0
      %5330 = vmatpush1.msra.mxu0 0.0
      %5331 = vmatprep.subr.mxu0 0.0
      %5332 = vmatpush1.msra.mxu0 0.0
      %5333 = vmatprep.subr.mxu0 0.0
      %5334 = vmatpush1.msra.mxu0 0.0
      %5335 = vmatprep.subr.mxu0 0.0
      %5336 = vmatpush1.msra.mxu0 0.0
      %5337 = vmatprep.subr.mxu0 0.0
      %5338 = vmatpush1.msra.mxu0 0.0
      %5339 = vmatprep.subr.mxu0 0.0
      %5340 = vmatpush1.msra.mxu0 0.0
      %5341 = vmatprep.subr.mxu0 0.0
      %5342 = vmatpush1.msra.mxu0 0.0
      %5343 = vmatprep.subr.mxu0 0.0
      %5344 = vmatpush1.msra.mxu0 0.0
      %5345 = vmatprep.subr.mxu0 0.0
      %5346 = vmatpush1.msra.mxu0 0.0
      %5347 = vmatprep.subr.mxu0 0.0
      %5348 = vmatpush1.msra.mxu0 0.0
      %5349 = vmatprep.subr.mxu0 0.0
      %5350 = vmatpush1.msra.mxu0 0.0
      %5351 = vmatprep.subr.mxu0 0.0
      %5352 = vmatpush1.msra.mxu0 0.0
      %5353 = vmatprep.subr.mxu0 0.0
      %5354 = vmatpush1.msra.mxu0 0.0
      %5355 = vmatprep.subr.mxu0 0.0
      %5356 = vmatpush1.msra.mxu0 0.0
      %5357 = vmatprep.subr.mxu0 0.0
      %5358 = vmatpush1.msra.mxu0 0.0
      %5359 = vmatprep.subr.mxu0 0.0
      %5360 = vmatpush1.msra.mxu0 0.0
      %5361 = vmatprep.subr.mxu0 0.0
      %5362 = vmatpush1.msra.mxu0 0.0
      %5363 = vmatprep.subr.mxu0 0.0
      %5364 = vmatpush1.msra.mxu0 0.0
      %5365 = vmatprep.subr.mxu0 0.0
      %5366 = vmatpush1.msra.mxu0 0.0
      %5367 = vmatprep.subr.mxu0 0.0
      %5368 = vmatpush1.msra.mxu0 0.0
      %5369 = vmatprep.subr.mxu0 0.0
      %5370 = vmatpush1.msra.mxu0 0.0
      %5371 = vmatprep.subr.mxu0 0.0
      %5372 = vmatpush1.msra.mxu0 0.0
      %5373 = vmatprep.subr.mxu0 0.0
      %5374 = vmatpush1.msra.mxu0 0.0
      %5375 = vmatprep.subr.mxu0 0.0
      %5376 = vmatpush1.msra.mxu0 0.0
      %5377 = vmatprep.mubr.f32.mxu0 0.0
      %5378 = vmatmul.mubr.f32.gmra.mrb[0].mxu0 %v705
      %v5379 = vpop.f32.mrb[0].mxu0
      %v5380 = vadd.f32 0.0, %v5379
      %v5381 = vpop.f32.mrb[0].mxu0
      %5382 = vdwg.mxu0
      %v5383 = vadd.f32 %v5306, %v5380
      %v5384 = vadd.f32 %v4873, %v5383
      %v5385 = vmul.f32 %v5383, %v5383
      %v5386 = vadd.f32 %v4875, %v5385
      %v5387 = vpack.c.bf16 %v5383, %v5383
      %v5389 = vunpack.c.l.b16 %v5387
      %v5390 = vpack.c.b16 %v5389, %v5389
      %5391 = vrot.lane.b32.xlu0 %v5390, 52
      %v5392 = vpop.permute.xlu0 %5391
      %vm5394 = vcmask 568736
      %5395 = vst.msk [vmem:[%s237 + $0x4] sm:$0xf] %vm5394, %v5392
      %v5396 = vld [vmem:[%s232 + $0xa] sm:$0x1]
      %v5397 = vld [vmem:[%s232 + $0x22] sm:$0x1]
      %v5398 = vld [vmem:[%s232 + $0x3a] sm:$0x1]
      %v5399 = vld [vmem:[%s232 + $0x52] sm:$0x1]
      %v5400 = vmax.f32 %v5396, 0.0
      %v5401 = vmax.f32 %v5397, 0.0
      %v5402 = vmax.f32 %v5398, 0.0
      %v5403 = vmax.f32 %v5399, 0.0
      %v5404 = vld [vmem:[%s232 + $0xb] sm:$0x1]
      %v5405 = vld [vmem:[%s232 + $0x23] sm:$0x1]
      %v5406 = vld [vmem:[%s232 + $0x3b] sm:$0x1]
      %v5407 = vld [vmem:[%s232 + $0x53] sm:$0x1]
      %v5408 = vmax.f32 %v5404, 0.0
      %v5409 = vmax.f32 %v5405, 0.0
      %v5410 = vmax.f32 %v5406, 0.0
      %v5411 = vmax.f32 %v5407, 0.0
      %v5416 = vrot.slane %v5409, 7
      %v5417 = vsel %vm278, %v5416, %v5408
      %v5418 = vrot.slane %v5410, 6
      %v5419 = vsel %vm281, %v5418, %v5417
      %v5420 = vrot.slane %v5411, 5
      %v5421 = vsel %vm284, %v5420, %v5419
      %v5422 = vsel %vm290, %v5421, 0
      %5424 = vmatprep.subr.mxu0 0.0
      %5425 = vmatpush1.msra.mxu0 %v5422
      %5426 = vmatprep.subr.mxu0 0.0
      %5427 = vmatpush1.msra.mxu0 0.0
      %5428 = vmatprep.subr.mxu0 0.0
      %5429 = vmatpush1.msra.mxu0 0.0
      %5430 = vmatprep.subr.mxu0 0.0
      %5431 = vmatpush1.msra.mxu0 0.0
      %5432 = vmatprep.subr.mxu0 0.0
      %5433 = vmatpush1.msra.mxu0 0.0
      %5434 = vmatprep.subr.mxu0 0.0
      %5435 = vmatpush1.msra.mxu0 0.0
      %5436 = vmatprep.subr.mxu0 0.0
      %5437 = vmatpush1.msra.mxu0 0.0
      %5438 = vmatprep.subr.mxu0 0.0
      %5439 = vmatpush1.msra.mxu0 0.0
      %5440 = vmatprep.subr.mxu0 0.0
      %5441 = vmatpush1.msra.mxu0 0.0
      %5442 = vmatprep.subr.mxu0 0.0
      %5443 = vmatpush1.msra.mxu0 0.0
      %5444 = vmatprep.subr.mxu0 0.0
      %5445 = vmatpush1.msra.mxu0 0.0
      %5446 = vmatprep.subr.mxu0 0.0
      %5447 = vmatpush1.msra.mxu0 0.0
      %5448 = vmatprep.subr.mxu0 0.0
      %5449 = vmatpush1.msra.mxu0 0.0
      %5450 = vmatprep.subr.mxu0 0.0
      %5451 = vmatpush1.msra.mxu0 0.0
      %5452 = vmatprep.subr.mxu0 0.0
      %5453 = vmatpush1.msra.mxu0 0.0
      %5454 = vmatprep.subr.mxu0 0.0
      %5455 = vmatpush1.msra.mxu0 0.0
      %5456 = vmatprep.subr.mxu0 0.0
      %5457 = vmatpush1.msra.mxu0 0.0
      %5458 = vmatprep.subr.mxu0 0.0
      %5459 = vmatpush1.msra.mxu0 0.0
      %5460 = vmatprep.subr.mxu0 0.0
      %5461 = vmatpush1.msra.mxu0 0.0
      %5462 = vmatprep.subr.mxu0 0.0
      %5463 = vmatpush1.msra.mxu0 0.0
      %5464 = vmatprep.subr.mxu0 0.0
      %5465 = vmatpush1.msra.mxu0 0.0
      %5466 = vmatprep.subr.mxu0 0.0
      %5467 = vmatpush1.msra.mxu0 0.0
      %5468 = vmatprep.subr.mxu0 0.0
      %5469 = vmatpush1.msra.mxu0 0.0
      %5470 = vmatprep.subr.mxu0 0.0
      %5471 = vmatpush1.msra.mxu0 0.0
      %5472 = vmatprep.subr.mxu0 0.0
      %5473 = vmatpush1.msra.mxu0 0.0
      %5474 = vmatprep.subr.mxu0 0.0
      %5475 = vmatpush1.msra.mxu0 0.0
      %5476 = vmatprep.subr.mxu0 0.0
      %5477 = vmatpush1.msra.mxu0 0.0
      %5478 = vmatprep.subr.mxu0 0.0
      %5479 = vmatpush1.msra.mxu0 0.0
      %5480 = vmatprep.subr.mxu0 0.0
      %5481 = vmatpush1.msra.mxu0 0.0
      %5482 = vmatprep.subr.mxu0 0.0
      %5483 = vmatpush1.msra.mxu0 0.0
      %5484 = vmatprep.subr.mxu0 0.0
      %5485 = vmatpush1.msra.mxu0 0.0
      %5486 = vmatprep.subr.mxu0 0.0
      %5487 = vmatpush1.msra.mxu0 0.0
      %5488 = vmatprep.mubr.f32.mxu0 0.0
      %5489 = vmatmul.mubr.f32.gmra.mrb[0].mxu0 %v288
      %v5490 = vpop.f32.mrb[0].mxu0
      %v5491 = vadd.f32 0.0, %v5490
      %v5492 = vpop.f32.mrb[0].mxu0
      %5493 = vdwg.mxu0
      %v5498 = vrot.slane %v5401, 7
      %v5499 = vsel %vm278, %v5498, %v5400
      %v5500 = vrot.slane %v5402, 6
      %v5501 = vsel %vm281, %v5500, %v5499
      %v5502 = vrot.slane %v5403, 5
      %v5503 = vsel %vm284, %v5502, %v5501
      %v5504 = vsel %vm290, %v5503, 0
      %5506 = vmatprep.subr.mxu0 0.0
      %5507 = vmatpush1.msra.mxu0 %v5504
      %5508 = vmatprep.subr.mxu0 0.0
      %5509 = vmatpush1.msra.mxu0 0.0
      %5510 = vmatprep.subr.mxu0 0.0
      %5511 = vmatpush1.msra.mxu0 0.0
      %5512 = vmatprep.subr.mxu0 0.0
      %5513 = vmatpush1.msra.mxu0 0.0
      %5514 = vmatprep.subr.mxu0 0.0
      %5515 = vmatpush1.msra.mxu0 0.0
      %5516 = vmatprep.subr.mxu0 0.0
      %5517 = vmatpush1.msra.mxu0 0.0
      %5518 = vmatprep.subr.mxu0 0.0
      %5519 = vmatpush1.msra.mxu0 0.0
      %5520 = vmatprep.subr.mxu0 0.0
      %5521 = vmatpush1.msra.mxu0 0.0
      %5522 = vmatprep.subr.mxu0 0.0
      %5523 = vmatpush1.msra.mxu0 0.0
      %5524 = vmatprep.subr.mxu0 0.0
      %5525 = vmatpush1.msra.mxu0 0.0
      %5526 = vmatprep.subr.mxu0 0.0
      %5527 = vmatpush1.msra.mxu0 0.0
      %5528 = vmatprep.subr.mxu0 0.0
      %5529 = vmatpush1.msra.mxu0 0.0
      %5530 = vmatprep.subr.mxu0 0.0
      %5531 = vmatpush1.msra.mxu0 0.0
      %5532 = vmatprep.subr.mxu0 0.0
      %5533 = vmatpush1.msra.mxu0 0.0
      %5534 = vmatprep.subr.mxu0 0.0
      %5535 = vmatpush1.msra.mxu0 0.0
      %5536 = vmatprep.subr.mxu0 0.0
      %5537 = vmatpush1.msra.mxu0 0.0
      %5538 = vmatprep.subr.mxu0 0.0
      %5539 = vmatpush1.msra.mxu0 0.0
      %5540 = vmatprep.subr.mxu0 0.0
      %5541 = vmatpush1.msra.mxu0 0.0
      %5542 = vmatprep.subr.mxu0 0.0
      %5543 = vmatpush1.msra.mxu0 0.0
      %5544 = vmatprep.subr.mxu0 0.0
      %5545 = vmatpush1.msra.mxu0 0.0
      %5546 = vmatprep.subr.mxu0 0.0
      %5547 = vmatpush1.msra.mxu0 0.0
      %5548 = vmatprep.subr.mxu0 0.0
      %5549 = vmatpush1.msra.mxu0 0.0
      %5550 = vmatprep.subr.mxu0 0.0
      %5551 = vmatpush1.msra.mxu0 0.0
      %5552 = vmatprep.subr.mxu0 0.0
      %5553 = vmatpush1.msra.mxu0 0.0
      %5554 = vmatprep.subr.mxu0 0.0
      %5555 = vmatpush1.msra.mxu0 0.0
      %5556 = vmatprep.subr.mxu0 0.0
      %5557 = vmatpush1.msra.mxu0 0.0
      %5558 = vmatprep.subr.mxu0 0.0
      %5559 = vmatpush1.msra.mxu0 0.0
      %5560 = vmatprep.subr.mxu0 0.0
      %5561 = vmatpush1.msra.mxu0 0.0
      %5562 = vmatprep.subr.mxu0 0.0
      %5563 = vmatpush1.msra.mxu0 0.0
      %5564 = vmatprep.subr.mxu0 0.0
      %5565 = vmatpush1.msra.mxu0 0.0
      %5566 = vmatprep.subr.mxu0 0.0
      %5567 = vmatpush1.msra.mxu0 0.0
      %5568 = vmatprep.subr.mxu0 0.0
      %5569 = vmatpush1.msra.mxu0 0.0
      %5570 = vmatprep.mubr.f32.mxu0 0.0
      %5571 = vmatmul.mubr.f32.gmra.mrb[0].mxu0 %v374
      %v5572 = vpop.f32.mrb[0].mxu0
      %v5573 = vadd.f32 %v5491, %v5572
      %v5574 = vpop.f32.mrb[0].mxu0
      %5575 = vdwg.mxu0
      %v5576 = vld [vmem:[%s232 + $0xc] sm:$0x1]
      %v5577 = vld [vmem:[%s232 + $0x24] sm:$0x1]
      %v5578 = vld [vmem:[%s232 + $0x3c] sm:$0x1]
      %v5579 = vld [vmem:[%s232 + $0x54] sm:$0x1]
      %v5580 = vmax.f32 %v5576, 0.0
      %v5581 = vmax.f32 %v5577, 0.0
      %v5582 = vmax.f32 %v5578, 0.0
      %v5583 = vmax.f32 %v5579, 0.0
      %v5588 = vrot.slane %v5581, 7
      %v5589 = vsel %vm278, %v5588, %v5580
      %v5590 = vrot.slane %v5582, 6
      %v5591 = vsel %vm281, %v5590, %v5589
      %v5592 = vrot.slane %v5583, 5
      %v5593 = vsel %vm284, %v5592, %v5591
      %v5594 = vsel %vm290, %v5593, 0
      %5596 = vmatprep.subr.mxu0 0.0
      %5597 = vmatpush1.msra.mxu0 %v5594
      %5598 = vmatprep.subr.mxu0 0.0
      %5599 = vmatpush1.msra.mxu0 0.0
      %5600 = vmatprep.subr.mxu0 0.0
      %5601 = vmatpush1.msra.mxu0 0.0
      %5602 = vmatprep.subr.mxu0 0.0
      %5603 = vmatpush1.msra.mxu0 0.0
      %5604 = vmatprep.subr.mxu0 0.0
      %5605 = vmatpush1.msra.mxu0 0.0
      %5606 = vmatprep.subr.mxu0 0.0
      %5607 = vmatpush1.msra.mxu0 0.0
      %5608 = vmatprep.subr.mxu0 0.0
      %5609 = vmatpush1.msra.mxu0 0.0
      %5610 = vmatprep.subr.mxu0 0.0
      %5611 = vmatpush1.msra.mxu0 0.0
      %5612 = vmatprep.subr.mxu0 0.0
      %5613 = vmatpush1.msra.mxu0 0.0
      %5614 = vmatprep.subr.mxu0 0.0
      %5615 = vmatpush1.msra.mxu0 0.0
      %5616 = vmatprep.subr.mxu0 0.0
      %5617 = vmatpush1.msra.mxu0 0.0
      %5618 = vmatprep.subr.mxu0 0.0
      %5619 = vmatpush1.msra.mxu0 0.0
      %5620 = vmatprep.subr.mxu0 0.0
      %5621 = vmatpush1.msra.mxu0 0.0
      %5622 = vmatprep.subr.mxu0 0.0
      %5623 = vmatpush1.msra.mxu0 0.0
      %5624 = vmatprep.subr.mxu0 0.0
      %5625 = vmatpush1.msra.mxu0 0.0
      %5626 = vmatprep.subr.mxu0 0.0
      %5627 = vmatpush1.msra.mxu0 0.0
      %5628 = vmatprep.subr.mxu0 0.0
      %5629 = vmatpush1.msra.mxu0 0.0
      %5630 = vmatprep.subr.mxu0 0.0
      %5631 = vmatpush1.msra.mxu0 0.0
      %5632 = vmatprep.subr.mxu0 0.0
      %5633 = vmatpush1.msra.mxu0 0.0
      %5634 = vmatprep.subr.mxu0 0.0
      %5635 = vmatpush1.msra.mxu0 0.0
      %5636 = vmatprep.subr.mxu0 0.0
      %5637 = vmatpush1.msra.mxu0 0.0
      %5638 = vmatprep.subr.mxu0 0.0
      %5639 = vmatpush1.msra.mxu0 0.0
      %5640 = vmatprep.subr.mxu0 0.0
      %5641 = vmatpush1.msra.mxu0 0.0
      %5642 = vmatprep.subr.mxu0 0.0
      %5643 = vmatpush1.msra.mxu0 0.0
      %5644 = vmatprep.subr.mxu0 0.0
      %5645 = vmatpush1.msra.mxu0 0.0
      %5646 = vmatprep.subr.mxu0 0.0
      %5647 = vmatpush1.msra.mxu0 0.0
      %5648 = vmatprep.subr.mxu0 0.0
      %5649 = vmatpush1.msra.mxu0 0.0
      %5650 = vmatprep.subr.mxu0 0.0
      %5651 = vmatpush1.msra.mxu0 0.0
      %5652 = vmatprep.subr.mxu0 0.0
      %5653 = vmatpush1.msra.mxu0 0.0
      %5654 = vmatprep.subr.mxu0 0.0
      %5655 = vmatpush1.msra.mxu0 0.0
      %5656 = vmatprep.subr.mxu0 0.0
      %5657 = vmatpush1.msra.mxu0 0.0
      %5658 = vmatprep.subr.mxu0 0.0
      %5659 = vmatpush1.msra.mxu0 0.0
      %5660 = vmatprep.mubr.f32.mxu0 0.0
      %5661 = vmatmul.mubr.f32.gmra.mrb[0].mxu0 %v467
      %v5662 = vpop.f32.mrb[0].mxu0
      %v5663 = vadd.f32 0.0, %v5662
      %v5664 = vpop.f32.mrb[0].mxu0
      %5665 = vdwg.mxu0
      %v5666 = vadd.f32 %v5573, %v5663
      %5668 = vrot.lane.b32.xlu0 %v5666, 1
      %v5669 = vpop.permute.xlu0 %5668
      %5671 = vst.msk [vmem:[#allocation2] sm:$0xf] %vm546, %v5669
      %v5672 = vld [vmem:[#allocation2] sm:$0xf]
      %5674 = vrot.lane.b32.xlu0 %v5672, 127
      %v5675 = vpop.permute.xlu0 %5674
      %v5676 = vsel %vm290, %v5675, 0
      %5678 = vmatprep.subr.mxu0 0.0
      %5679 = vmatpush1.msra.mxu0 %v5676
      %5680 = vmatprep.subr.mxu0 0.0
      %5681 = vmatpush1.msra.mxu0 0.0
      %5682 = vmatprep.subr.mxu0 0.0
      %5683 = vmatpush1.msra.mxu0 0.0
      %5684 = vmatprep.subr.mxu0 0.0
      %5685 = vmatpush1.msra.mxu0 0.0
      %5686 = vmatprep.subr.mxu0 0.0
      %5687 = vmatpush1.msra.mxu0 0.0
      %5688 = vmatprep.subr.mxu0 0.0
      %5689 = vmatpush1.msra.mxu0 0.0
      %5690 = vmatprep.subr.mxu0 0.0
      %5691 = vmatpush1.msra.mxu0 0.0
      %5692 = vmatprep.subr.mxu0 0.0
      %5693 = vmatpush1.msra.mxu0 0.0
      %5694 = vmatprep.subr.mxu0 0.0
      %5695 = vmatpush1.msra.mxu0 0.0
      %5696 = vmatprep.subr.mxu0 0.0
      %5697 = vmatpush1.msra.mxu0 0.0
      %5698 = vmatprep.subr.mxu0 0.0
      %5699 = vmatpush1.msra.mxu0 0.0
      %5700 = vmatprep.subr.mxu0 0.0
      %5701 = vmatpush1.msra.mxu0 0.0
      %5702 = vmatprep.subr.mxu0 0.0
      %5703 = vmatpush1.msra.mxu0 0.0
      %5704 = vmatprep.subr.mxu0 0.0
      %5705 = vmatpush1.msra.mxu0 0.0
      %5706 = vmatprep.subr.mxu0 0.0
      %5707 = vmatpush1.msra.mxu0 0.0
      %5708 = vmatprep.subr.mxu0 0.0
      %5709 = vmatpush1.msra.mxu0 0.0
      %5710 = vmatprep.subr.mxu0 0.0
      %5711 = vmatpush1.msra.mxu0 0.0
      %5712 = vmatprep.subr.mxu0 0.0
      %5713 = vmatpush1.msra.mxu0 0.0
      %5714 = vmatprep.subr.mxu0 0.0
      %5715 = vmatpush1.msra.mxu0 0.0
      %5716 = vmatprep.subr.mxu0 0.0
      %5717 = vmatpush1.msra.mxu0 0.0
      %5718 = vmatprep.subr.mxu0 0.0
      %5719 = vmatpush1.msra.mxu0 0.0
      %5720 = vmatprep.subr.mxu0 0.0
      %5721 = vmatpush1.msra.mxu0 0.0
      %5722 = vmatprep.subr.mxu0 0.0
      %5723 = vmatpush1.msra.mxu0 0.0
      %5724 = vmatprep.subr.mxu0 0.0
      %5725 = vmatpush1.msra.mxu0 0.0
      %5726 = vmatprep.subr.mxu0 0.0
      %5727 = vmatpush1.msra.mxu0 0.0
      %5728 = vmatprep.subr.mxu0 0.0
      %5729 = vmatpush1.msra.mxu0 0.0
      %5730 = vmatprep.subr.mxu0 0.0
      %5731 = vmatpush1.msra.mxu0 0.0
      %5732 = vmatprep.subr.mxu0 0.0
      %5733 = vmatpush1.msra.mxu0 0.0
      %5734 = vmatprep.subr.mxu0 0.0
      %5735 = vmatpush1.msra.mxu0 0.0
      %5736 = vmatprep.subr.mxu0 0.0
      %5737 = vmatpush1.msra.mxu0 0.0
      %5738 = vmatprep.subr.mxu0 0.0
      %5739 = vmatpush1.msra.mxu0 0.0
      %5740 = vmatprep.subr.mxu0 0.0
      %5741 = vmatpush1.msra.mxu0 0.0
      %5742 = vmatprep.mubr.f32.mxu0 0.0
      %5743 = vmatmul.mubr.f32.gmra.mrb[0].mxu0 %v553
      %v5744 = vpop.f32.mrb[0].mxu0
      %v5745 = vadd.f32 0.0, %v5744
      %v5746 = vpop.f32.mrb[0].mxu0
      %5747 = vdwg.mxu0
      %v5748 = vsel %vm290, %v5672, 0
      %5750 = vmatprep.subr.mxu0 0.0
      %5751 = vmatpush1.msra.mxu0 %v5748
      %5752 = vmatprep.subr.mxu0 0.0
      %5753 = vmatpush1.msra.mxu0 0.0
      %5754 = vmatprep.subr.mxu0 0.0
      %5755 = vmatpush1.msra.mxu0 0.0
      %5756 = vmatprep.subr.mxu0 0.0
      %5757 = vmatpush1.msra.mxu0 0.0
      %5758 = vmatprep.subr.mxu0 0.0
      %5759 = vmatpush1.msra.mxu0 0.0
      %5760 = vmatprep.subr.mxu0 0.0
      %5761 = vmatpush1.msra.mxu0 0.0
      %5762 = vmatprep.subr.mxu0 0.0
      %5763 = vmatpush1.msra.mxu0 0.0
      %5764 = vmatprep.subr.mxu0 0.0
      %5765 = vmatpush1.msra.mxu0 0.0
      %5766 = vmatprep.subr.mxu0 0.0
      %5767 = vmatpush1.msra.mxu0 0.0
      %5768 = vmatprep.subr.mxu0 0.0
      %5769 = vmatpush1.msra.mxu0 0.0
      %5770 = vmatprep.subr.mxu0 0.0
      %5771 = vmatpush1.msra.mxu0 0.0
      %5772 = vmatprep.subr.mxu0 0.0
      %5773 = vmatpush1.msra.mxu0 0.0
      %5774 = vmatprep.subr.mxu0 0.0
      %5775 = vmatpush1.msra.mxu0 0.0
      %5776 = vmatprep.subr.mxu0 0.0
      %5777 = vmatpush1.msra.mxu0 0.0
      %5778 = vmatprep.subr.mxu0 0.0
      %5779 = vmatpush1.msra.mxu0 0.0
      %5780 = vmatprep.subr.mxu0 0.0
      %5781 = vmatpush1.msra.mxu0 0.0
      %5782 = vmatprep.subr.mxu0 0.0
      %5783 = vmatpush1.msra.mxu0 0.0
      %5784 = vmatprep.subr.mxu0 0.0
      %5785 = vmatpush1.msra.mxu0 0.0
      %5786 = vmatprep.subr.mxu0 0.0
      %5787 = vmatpush1.msra.mxu0 0.0
      %5788 = vmatprep.subr.mxu0 0.0
      %5789 = vmatpush1.msra.mxu0 0.0
      %5790 = vmatprep.subr.mxu0 0.0
      %5791 = vmatpush1.msra.mxu0 0.0
      %5792 = vmatprep.subr.mxu0 0.0
      %5793 = vmatpush1.msra.mxu0 0.0
      %5794 = vmatprep.subr.mxu0 0.0
      %5795 = vmatpush1.msra.mxu0 0.0
      %5796 = vmatprep.subr.mxu0 0.0
      %5797 = vmatpush1.msra.mxu0 0.0
      %5798 = vmatprep.subr.mxu0 0.0
      %5799 = vmatpush1.msra.mxu0 0.0
      %5800 = vmatprep.subr.mxu0 0.0
      %5801 = vmatpush1.msra.mxu0 0.0
      %5802 = vmatprep.subr.mxu0 0.0
      %5803 = vmatpush1.msra.mxu0 0.0
      %5804 = vmatprep.subr.mxu0 0.0
      %5805 = vmatpush1.msra.mxu0 0.0
      %5806 = vmatprep.subr.mxu0 0.0
      %5807 = vmatpush1.msra.mxu0 0.0
      %5808 = vmatprep.subr.mxu0 0.0
      %5809 = vmatpush1.msra.mxu0 0.0
      %5810 = vmatprep.subr.mxu0 0.0
      %5811 = vmatpush1.msra.mxu0 0.0
      %5812 = vmatprep.subr.mxu0 0.0
      %5813 = vmatpush1.msra.mxu0 0.0
      %5814 = vmatprep.mubr.f32.mxu0 0.0
      %5815 = vmatmul.mubr.f32.gmra.mrb[0].mxu0 %v628
      %v5816 = vpop.f32.mrb[0].mxu0
      %v5817 = vadd.f32 %v5745, %v5816
      %v5818 = vpop.f32.mrb[0].mxu0
      %5819 = vdwg.mxu0
      %5820 = vrot.lane.b32.xlu0 %v5672, 126
      %v5821 = vpop.permute.xlu0 %5820
      %v5822 = vsel %vm290, %v5821, 0
      %5824 = vmatprep.subr.mxu0 0.0
      %5825 = vmatpush1.msra.mxu0 %v5822
      %5826 = vmatprep.subr.mxu0 0.0
      %5827 = vmatpush1.msra.mxu0 0.0
      %5828 = vmatprep.subr.mxu0 0.0
      %5829 = vmatpush1.msra.mxu0 0.0
      %5830 = vmatprep.subr.mxu0 0.0
      %5831 = vmatpush1.msra.mxu0 0.0
      %5832 = vmatprep.subr.mxu0 0.0
      %5833 = vmatpush1.msra.mxu0 0.0
      %5834 = vmatprep.subr.mxu0 0.0
      %5835 = vmatpush1.msra.mxu0 0.0
      %5836 = vmatprep.subr.mxu0 0.0
      %5837 = vmatpush1.msra.mxu0 0.0
      %5838 = vmatprep.subr.mxu0 0.0
      %5839 = vmatpush1.msra.mxu0 0.0
      %5840 = vmatprep.subr.mxu0 0.0
      %5841 = vmatpush1.msra.mxu0 0.0
      %5842 = vmatprep.subr.mxu0 0.0
      %5843 = vmatpush1.msra.mxu0 0.0
      %5844 = vmatprep.subr.mxu0 0.0
      %5845 = vmatpush1.msra.mxu0 0.0
      %5846 = vmatprep.subr.mxu0 0.0
      %5847 = vmatpush1.msra.mxu0 0.0
      %5848 = vmatprep.subr.mxu0 0.0
      %5849 = vmatpush1.msra.mxu0 0.0
      %5850 = vmatprep.subr.mxu0 0.0
      %5851 = vmatpush1.msra.mxu0 0.0
      %5852 = vmatprep.subr.mxu0 0.0
      %5853 = vmatpush1.msra.mxu0 0.0
      %5854 = vmatprep.subr.mxu0 0.0
      %5855 = vmatpush1.msra.mxu0 0.0
      %5856 = vmatprep.subr.mxu0 0.0
      %5857 = vmatpush1.msra.mxu0 0.0
      %5858 = vmatprep.subr.mxu0 0.0
      %5859 = vmatpush1.msra.mxu0 0.0
      %5860 = vmatprep.subr.mxu0 0.0
      %5861 = vmatpush1.msra.mxu0 0.0
      %5862 = vmatprep.subr.mxu0 0.0
      %5863 = vmatpush1.msra.mxu0 0.0
      %5864 = vmatprep.subr.mxu0 0.0
      %5865 = vmatpush1.msra.mxu0 0.0
      %5866 = vmatprep.subr.mxu0 0.0
      %5867 = vmatpush1.msra.mxu0 0.0
      %5868 = vmatprep.subr.mxu0 0.0
      %5869 = vmatpush1.msra.mxu0 0.0
      %5870 = vmatprep.subr.mxu0 0.0
      %5871 = vmatpush1.msra.mxu0 0.0
      %5872 = vmatprep.subr.mxu0 0.0
      %5873 = vmatpush1.msra.mxu0 0.0
      %5874 = vmatprep.subr.mxu0 0.0
      %5875 = vmatpush1.msra.mxu0 0.0
      %5876 = vmatprep.subr.mxu0 0.0
      %5877 = vmatpush1.msra.mxu0 0.0
      %5878 = vmatprep.subr.mxu0 0.0
      %5879 = vmatpush1.msra.mxu0 0.0
      %5880 = vmatprep.subr.mxu0 0.0
      %5881 = vmatpush1.msra.mxu0 0.0
      %5882 = vmatprep.subr.mxu0 0.0
      %5883 = vmatpush1.msra.mxu0 0.0
      %5884 = vmatprep.subr.mxu0 0.0
      %5885 = vmatpush1.msra.mxu0 0.0
      %5886 = vmatprep.subr.mxu0 0.0
      %5887 = vmatpush1.msra.mxu0 0.0
      %5888 = vmatprep.mubr.f32.mxu0 0.0
      %5889 = vmatmul.mubr.f32.gmra.mrb[0].mxu0 %v705
      %v5890 = vpop.f32.mrb[0].mxu0
      %v5891 = vadd.f32 0.0, %v5890
      %v5892 = vpop.f32.mrb[0].mxu0
      %5893 = vdwg.mxu0
      %v5894 = vadd.f32 %v5817, %v5891
      %v5895 = vadd.f32 %v5384, %v5894
      %v5896 = vmul.f32 %v5894, %v5894
      %v5897 = vadd.f32 %v5386, %v5896
      %v5898 = vpack.c.bf16 %v5894, %v5894
      %v5900 = vunpack.c.l.b16 %v5898
      %v5901 = vpack.c.b16 %v5900, %v5900
      %5902 = vrot.lane.b32.xlu0 %v5901, 70
      %v5903 = vpop.permute.xlu0 %5902
      %vm5905 = vcmask 716336
      %5906 = vst.msk [vmem:[%s237 + $0x4] sm:$0xf] %vm5905, %v5903
      %v5907 = vld [vmem:[%s232 + $0xb] sm:$0x1]
      %v5908 = vld [vmem:[%s232 + $0x23] sm:$0x1]
      %v5909 = vld [vmem:[%s232 + $0x3b] sm:$0x1]
      %v5910 = vld [vmem:[%s232 + $0x53] sm:$0x1]
      %v5911 = vmax.f32 %v5907, 0.0
      %v5912 = vmax.f32 %v5908, 0.0
      %v5913 = vmax.f32 %v5909, 0.0
      %v5914 = vmax.f32 %v5910, 0.0
      %v5915 = vld [vmem:[%s232 + $0xc] sm:$0x1]
      %v5916 = vld [vmem:[%s232 + $0x24] sm:$0x1]
      %v5917 = vld [vmem:[%s232 + $0x3c] sm:$0x1]
      %v5918 = vld [vmem:[%s232 + $0x54] sm:$0x1]
      %v5919 = vmax.f32 %v5915, 0.0
      %v5920 = vmax.f32 %v5916, 0.0
      %v5921 = vmax.f32 %v5917, 0.0
      %v5922 = vmax.f32 %v5918, 0.0
      %v5927 = vrot.slane %v5920, 7
      %v5928 = vsel %vm278, %v5927, %v5919
      %v5929 = vrot.slane %v5921, 6
      %v5930 = vsel %vm281, %v5929, %v5928
      %v5931 = vrot.slane %v5922, 5
      %v5932 = vsel %vm284, %v5931, %v5930
      %v5933 = vsel %vm290, %v5932, 0
      %5935 = vmatprep.subr.mxu0 0.0
      %5936 = vmatpush1.msra.mxu0 %v5933
      %5937 = vmatprep.subr.mxu0 0.0
      %5938 = vmatpush1.msra.mxu0 0.0
      %5939 = vmatprep.subr.mxu0 0.0
      %5940 = vmatpush1.msra.mxu0 0.0
      %5941 = vmatprep.subr.mxu0 0.0
      %5942 = vmatpush1.msra.mxu0 0.0
      %5943 = vmatprep.subr.mxu0 0.0
      %5944 = vmatpush1.msra.mxu0 0.0
      %5945 = vmatprep.subr.mxu0 0.0
      %5946 = vmatpush1.msra.mxu0 0.0
      %5947 = vmatprep.subr.mxu0 0.0
      %5948 = vmatpush1.msra.mxu0 0.0
      %5949 = vmatprep.subr.mxu0 0.0
      %5950 = vmatpush1.msra.mxu0 0.0
      %5951 = vmatprep.subr.mxu0 0.0
      %5952 = vmatpush1.msra.mxu0 0.0
      %5953 = vmatprep.subr.mxu0 0.0
      %5954 = vmatpush1.msra.mxu0 0.0
      %5955 = vmatprep.subr.mxu0 0.0
      %5956 = vmatpush1.msra.mxu0 0.0
      %5957 = vmatprep.subr.mxu0 0.0
      %5958 = vmatpush1.msra.mxu0 0.0
      %5959 = vmatprep.subr.mxu0 0.0
      %5960 = vmatpush1.msra.mxu0 0.0
      %5961 = vmatprep.subr.mxu0 0.0
      %5962 = vmatpush1.msra.mxu0 0.0
      %5963 = vmatprep.subr.mxu0 0.0
      %5964 = vmatpush1.msra.mxu0 0.0
      %5965 = vmatprep.subr.mxu0 0.0
      %5966 = vmatpush1.msra.mxu0 0.0
      %5967 = vmatprep.subr.mxu0 0.0
      %5968 = vmatpush1.msra.mxu0 0.0
      %5969 = vmatprep.subr.mxu0 0.0
      %5970 = vmatpush1.msra.mxu0 0.0
      %5971 = vmatprep.subr.mxu0 0.0
      %5972 = vmatpush1.msra.mxu0 0.0
      %5973 = vmatprep.subr.mxu0 0.0
      %5974 = vmatpush1.msra.mxu0 0.0
      %5975 = vmatprep.subr.mxu0 0.0
      %5976 = vmatpush1.msra.mxu0 0.0
      %5977 = vmatprep.subr.mxu0 0.0
      %5978 = vmatpush1.msra.mxu0 0.0
      %5979 = vmatprep.subr.mxu0 0.0
      %5980 = vmatpush1.msra.mxu0 0.0
      %5981 = vmatprep.subr.mxu0 0.0
      %5982 = vmatpush1.msra.mxu0 0.0
      %5983 = vmatprep.subr.mxu0 0.0
      %5984 = vmatpush1.msra.mxu0 0.0
      %5985 = vmatprep.subr.mxu0 0.0
      %5986 = vmatpush1.msra.mxu0 0.0
      %5987 = vmatprep.subr.mxu0 0.0
      %5988 = vmatpush1.msra.mxu0 0.0
      %5989 = vmatprep.subr.mxu0 0.0
      %5990 = vmatpush1.msra.mxu0 0.0
      %5991 = vmatprep.subr.mxu0 0.0
      %5992 = vmatpush1.msra.mxu0 0.0
      %5993 = vmatprep.subr.mxu0 0.0
      %5994 = vmatpush1.msra.mxu0 0.0
      %5995 = vmatprep.subr.mxu0 0.0
      %5996 = vmatpush1.msra.mxu0 0.0
      %5997 = vmatprep.subr.mxu0 0.0
      %5998 = vmatpush1.msra.mxu0 0.0
      %5999 = vmatprep.mubr.f32.mxu0 0.0
      %6000 = vmatmul.mubr.f32.gmra.mrb[0].mxu0 %v288
      %v6001 = vpop.f32.mrb[0].mxu0
      %v6002 = vadd.f32 0.0, %v6001
      %v6003 = vpop.f32.mrb[0].mxu0
      %6004 = vdwg.mxu0
      %v6009 = vrot.slane %v5912, 7
      %v6010 = vsel %vm278, %v6009, %v5911
      %v6011 = vrot.slane %v5913, 6
      %v6012 = vsel %vm281, %v6011, %v6010
      %v6013 = vrot.slane %v5914, 5
      %v6014 = vsel %vm284, %v6013, %v6012
      %v6015 = vsel %vm290, %v6014, 0
      %6017 = vmatprep.subr.mxu0 0.0
      %6018 = vmatpush1.msra.mxu0 %v6015
      %6019 = vmatprep.subr.mxu0 0.0
      %6020 = vmatpush1.msra.mxu0 0.0
      %6021 = vmatprep.subr.mxu0 0.0
      %6022 = vmatpush1.msra.mxu0 0.0
      %6023 = vmatprep.subr.mxu0 0.0
      %6024 = vmatpush1.msra.mxu0 0.0
      %6025 = vmatprep.subr.mxu0 0.0
      %6026 = vmatpush1.msra.mxu0 0.0
      %6027 = vmatprep.subr.mxu0 0.0
      %6028 = vmatpush1.msra.mxu0 0.0
      %6029 = vmatprep.subr.mxu0 0.0
      %6030 = vmatpush1.msra.mxu0 0.0
      %6031 = vmatprep.subr.mxu0 0.0
      %6032 = vmatpush1.msra.mxu0 0.0
      %6033 = vmatprep.subr.mxu0 0.0
      %6034 = vmatpush1.msra.mxu0 0.0
      %6035 = vmatprep.subr.mxu0 0.0
      %6036 = vmatpush1.msra.mxu0 0.0
      %6037 = vmatprep.subr.mxu0 0.0
      %6038 = vmatpush1.msra.mxu0 0.0
      %6039 = vmatprep.subr.mxu0 0.0
      %6040 = vmatpush1.msra.mxu0 0.0
      %6041 = vmatprep.subr.mxu0 0.0
      %6042 = vmatpush1.msra.mxu0 0.0
      %6043 = vmatprep.subr.mxu0 0.0
      %6044 = vmatpush1.msra.mxu0 0.0
      %6045 = vmatprep.subr.mxu0 0.0
      %6046 = vmatpush1.msra.mxu0 0.0
      %6047 = vmatprep.subr.mxu0 0.0
      %6048 = vmatpush1.msra.mxu0 0.0
      %6049 = vmatprep.subr.mxu0 0.0
      %6050 = vmatpush1.msra.mxu0 0.0
      %6051 = vmatprep.subr.mxu0 0.0
      %6052 = vmatpush1.msra.mxu0 0.0
      %6053 = vmatprep.subr.mxu0 0.0
      %6054 = vmatpush1.msra.mxu0 0.0
      %6055 = vmatprep.subr.mxu0 0.0
      %6056 = vmatpush1.msra.mxu0 0.0
      %6057 = vmatprep.subr.mxu0 0.0
      %6058 = vmatpush1.msra.mxu0 0.0
      %6059 = vmatprep.subr.mxu0 0.0
      %6060 = vmatpush1.msra.mxu0 0.0
      %6061 = vmatprep.subr.mxu0 0.0
      %6062 = vmatpush1.msra.mxu0 0.0
      %6063 = vmatprep.subr.mxu0 0.0
      %6064 = vmatpush1.msra.mxu0 0.0
      %6065 = vmatprep.subr.mxu0 0.0
      %6066 = vmatpush1.msra.mxu0 0.0
      %6067 = vmatprep.subr.mxu0 0.0
      %6068 = vmatpush1.msra.mxu0 0.0
      %6069 = vmatprep.subr.mxu0 0.0
      %6070 = vmatpush1.msra.mxu0 0.0
      %6071 = vmatprep.subr.mxu0 0.0
      %6072 = vmatpush1.msra.mxu0 0.0
      %6073 = vmatprep.subr.mxu0 0.0
      %6074 = vmatpush1.msra.mxu0 0.0
      %6075 = vmatprep.subr.mxu0 0.0
      %6076 = vmatpush1.msra.mxu0 0.0
      %6077 = vmatprep.subr.mxu0 0.0
      %6078 = vmatpush1.msra.mxu0 0.0
      %6079 = vmatprep.subr.mxu0 0.0
      %6080 = vmatpush1.msra.mxu0 0.0
      %6081 = vmatprep.mubr.f32.mxu0 0.0
      %6082 = vmatmul.mubr.f32.gmra.mrb[0].mxu0 %v374
      %v6083 = vpop.f32.mrb[0].mxu0
      %v6084 = vadd.f32 %v6002, %v6083
      %v6085 = vpop.f32.mrb[0].mxu0
      %6086 = vdwg.mxu0
      %v6087 = vld [vmem:[%s232 + $0xd] sm:$0x1]
      %v6088 = vld [vmem:[%s232 + $0x25] sm:$0x1]
      %v6089 = vld [vmem:[%s232 + $0x3d] sm:$0x1]
      %v6090 = vld [vmem:[%s232 + $0x55] sm:$0x1]
      %v6091 = vmax.f32 %v6087, 0.0
      %v6092 = vmax.f32 %v6088, 0.0
      %v6093 = vmax.f32 %v6089, 0.0
      %v6094 = vmax.f32 %v6090, 0.0
      %v6099 = vrot.slane %v6092, 7
      %v6100 = vsel %vm278, %v6099, %v6091
      %v6101 = vrot.slane %v6093, 6
      %v6102 = vsel %vm281, %v6101, %v6100
      %v6103 = vrot.slane %v6094, 5
      %v6104 = vsel %vm284, %v6103, %v6102
      %v6105 = vsel %vm290, %v6104, 0
      %6107 = vmatprep.subr.mxu0 0.0
      %6108 = vmatpush1.msra.mxu0 %v6105
      %6109 = vmatprep.subr.mxu0 0.0
      %6110 = vmatpush1.msra.mxu0 0.0
      %6111 = vmatprep.subr.mxu0 0.0
      %6112 = vmatpush1.msra.mxu0 0.0
      %6113 = vmatprep.subr.mxu0 0.0
      %6114 = vmatpush1.msra.mxu0 0.0
      %6115 = vmatprep.subr.mxu0 0.0
      %6116 = vmatpush1.msra.mxu0 0.0
      %6117 = vmatprep.subr.mxu0 0.0
      %6118 = vmatpush1.msra.mxu0 0.0
      %6119 = vmatprep.subr.mxu0 0.0
      %6120 = vmatpush1.msra.mxu0 0.0
      %6121 = vmatprep.subr.mxu0 0.0
      %6122 = vmatpush1.msra.mxu0 0.0
      %6123 = vmatprep.subr.mxu0 0.0
      %6124 = vmatpush1.msra.mxu0 0.0
      %6125 = vmatprep.subr.mxu0 0.0
      %6126 = vmatpush1.msra.mxu0 0.0
      %6127 = vmatprep.subr.mxu0 0.0
      %6128 = vmatpush1.msra.mxu0 0.0
      %6129 = vmatprep.subr.mxu0 0.0
      %6130 = vmatpush1.msra.mxu0 0.0
      %6131 = vmatprep.subr.mxu0 0.0
      %6132 = vmatpush1.msra.mxu0 0.0
      %6133 = vmatprep.subr.mxu0 0.0
      %6134 = vmatpush1.msra.mxu0 0.0
      %6135 = vmatprep.subr.mxu0 0.0
      %6136 = vmatpush1.msra.mxu0 0.0
      %6137 = vmatprep.subr.mxu0 0.0
      %6138 = vmatpush1.msra.mxu0 0.0
      %6139 = vmatprep.subr.mxu0 0.0
      %6140 = vmatpush1.msra.mxu0 0.0
      %6141 = vmatprep.subr.mxu0 0.0
      %6142 = vmatpush1.msra.mxu0 0.0
      %6143 = vmatprep.subr.mxu0 0.0
      %6144 = vmatpush1.msra.mxu0 0.0
      %6145 = vmatprep.subr.mxu0 0.0
      %6146 = vmatpush1.msra.mxu0 0.0
      %6147 = vmatprep.subr.mxu0 0.0
      %6148 = vmatpush1.msra.mxu0 0.0
      %6149 = vmatprep.subr.mxu0 0.0
      %6150 = vmatpush1.msra.mxu0 0.0
      %6151 = vmatprep.subr.mxu0 0.0
      %6152 = vmatpush1.msra.mxu0 0.0
      %6153 = vmatprep.subr.mxu0 0.0
      %6154 = vmatpush1.msra.mxu0 0.0
      %6155 = vmatprep.subr.mxu0 0.0
      %6156 = vmatpush1.msra.mxu0 0.0
      %6157 = vmatprep.subr.mxu0 0.0
      %6158 = vmatpush1.msra.mxu0 0.0
      %6159 = vmatprep.subr.mxu0 0.0
      %6160 = vmatpush1.msra.mxu0 0.0
      %6161 = vmatprep.subr.mxu0 0.0
      %6162 = vmatpush1.msra.mxu0 0.0
      %6163 = vmatprep.subr.mxu0 0.0
      %6164 = vmatpush1.msra.mxu0 0.0
      %6165 = vmatprep.subr.mxu0 0.0
      %6166 = vmatpush1.msra.mxu0 0.0
      %6167 = vmatprep.subr.mxu0 0.0
      %6168 = vmatpush1.msra.mxu0 0.0
      %6169 = vmatprep.subr.mxu0 0.0
      %6170 = vmatpush1.msra.mxu0 0.0
      %6171 = vmatprep.mubr.f32.mxu0 0.0
      %6172 = vmatmul.mubr.f32.gmra.mrb[0].mxu0 %v467
      %v6173 = vpop.f32.mrb[0].mxu0
      %v6174 = vadd.f32 0.0, %v6173
      %v6175 = vpop.f32.mrb[0].mxu0
      %6176 = vdwg.mxu0
      %v6177 = vadd.f32 %v6084, %v6174
      %6179 = vrot.lane.b32.xlu0 %v6177, 1
      %v6180 = vpop.permute.xlu0 %6179
      %6182 = vst.msk [vmem:[#allocation2] sm:$0xf] %vm546, %v6180
      %v6183 = vld [vmem:[#allocation2] sm:$0xf]
      %6185 = vrot.lane.b32.xlu0 %v6183, 127
      %v6186 = vpop.permute.xlu0 %6185
      %v6187 = vsel %vm290, %v6186, 0
      %6189 = vmatprep.subr.mxu0 0.0
      %6190 = vmatpush1.msra.mxu0 %v6187
      %6191 = vmatprep.subr.mxu0 0.0
      %6192 = vmatpush1.msra.mxu0 0.0
      %6193 = vmatprep.subr.mxu0 0.0
      %6194 = vmatpush1.msra.mxu0 0.0
      %6195 = vmatprep.subr.mxu0 0.0
      %6196 = vmatpush1.msra.mxu0 0.0
      %6197 = vmatprep.subr.mxu0 0.0
      %6198 = vmatpush1.msra.mxu0 0.0
      %6199 = vmatprep.subr.mxu0 0.0
      %6200 = vmatpush1.msra.mxu0 0.0
      %6201 = vmatprep.subr.mxu0 0.0
      %6202 = vmatpush1.msra.mxu0 0.0
      %6203 = vmatprep.subr.mxu0 0.0
      %6204 = vmatpush1.msra.mxu0 0.0
      %6205 = vmatprep.subr.mxu0 0.0
      %6206 = vmatpush1.msra.mxu0 0.0
      %6207 = vmatprep.subr.mxu0 0.0
      %6208 = vmatpush1.msra.mxu0 0.0
      %6209 = vmatprep.subr.mxu0 0.0
      %6210 = vmatpush1.msra.mxu0 0.0
      %6211 = vmatprep.subr.mxu0 0.0
      %6212 = vmatpush1.msra.mxu0 0.0
      %6213 = vmatprep.subr.mxu0 0.0
      %6214 = vmatpush1.msra.mxu0 0.0
      %6215 = vmatprep.subr.mxu0 0.0
      %6216 = vmatpush1.msra.mxu0 0.0
      %6217 = vmatprep.subr.mxu0 0.0
      %6218 = vmatpush1.msra.mxu0 0.0
      %6219 = vmatprep.subr.mxu0 0.0
      %6220 = vmatpush1.msra.mxu0 0.0
      %6221 = vmatprep.subr.mxu0 0.0
      %6222 = vmatpush1.msra.mxu0 0.0
      %6223 = vmatprep.subr.mxu0 0.0
      %6224 = vmatpush1.msra.mxu0 0.0
      %6225 = vmatprep.subr.mxu0 0.0
      %6226 = vmatpush1.msra.mxu0 0.0
      %6227 = vmatprep.subr.mxu0 0.0
      %6228 = vmatpush1.msra.mxu0 0.0
      %6229 = vmatprep.subr.mxu0 0.0
      %6230 = vmatpush1.msra.mxu0 0.0
      %6231 = vmatprep.subr.mxu0 0.0
      %6232 = vmatpush1.msra.mxu0 0.0
      %6233 = vmatprep.subr.mxu0 0.0
      %6234 = vmatpush1.msra.mxu0 0.0
      %6235 = vmatprep.subr.mxu0 0.0
      %6236 = vmatpush1.msra.mxu0 0.0
      %6237 = vmatprep.subr.mxu0 0.0
      %6238 = vmatpush1.msra.mxu0 0.0
      %6239 = vmatprep.subr.mxu0 0.0
      %6240 = vmatpush1.msra.mxu0 0.0
      %6241 = vmatprep.subr.mxu0 0.0
      %6242 = vmatpush1.msra.mxu0 0.0
      %6243 = vmatprep.subr.mxu0 0.0
      %6244 = vmatpush1.msra.mxu0 0.0
      %6245 = vmatprep.subr.mxu0 0.0
      %6246 = vmatpush1.msra.mxu0 0.0
      %6247 = vmatprep.subr.mxu0 0.0
      %6248 = vmatpush1.msra.mxu0 0.0
      %6249 = vmatprep.subr.mxu0 0.0
      %6250 = vmatpush1.msra.mxu0 0.0
      %6251 = vmatprep.subr.mxu0 0.0
      %6252 = vmatpush1.msra.mxu0 0.0
      %6253 = vmatprep.mubr.f32.mxu0 0.0
      %6254 = vmatmul.mubr.f32.gmra.mrb[0].mxu0 %v553
      %v6255 = vpop.f32.mrb[0].mxu0
      %v6256 = vadd.f32 0.0, %v6255
      %v6257 = vpop.f32.mrb[0].mxu0
      %6258 = vdwg.mxu0
      %v6259 = vsel %vm290, %v6183, 0
      %6261 = vmatprep.subr.mxu0 0.0
      %6262 = vmatpush1.msra.mxu0 %v6259
      %6263 = vmatprep.subr.mxu0 0.0
      %6264 = vmatpush1.msra.mxu0 0.0
      %6265 = vmatprep.subr.mxu0 0.0
      %6266 = vmatpush1.msra.mxu0 0.0
      %6267 = vmatprep.subr.mxu0 0.0
      %6268 = vmatpush1.msra.mxu0 0.0
      %6269 = vmatprep.subr.mxu0 0.0
      %6270 = vmatpush1.msra.mxu0 0.0
      %6271 = vmatprep.subr.mxu0 0.0
      %6272 = vmatpush1.msra.mxu0 0.0
      %6273 = vmatprep.subr.mxu0 0.0
      %6274 = vmatpush1.msra.mxu0 0.0
      %6275 = vmatprep.subr.mxu0 0.0
      %6276 = vmatpush1.msra.mxu0 0.0
      %6277 = vmatprep.subr.mxu0 0.0
      %6278 = vmatpush1.msra.mxu0 0.0
      %6279 = vmatprep.subr.mxu0 0.0
      %6280 = vmatpush1.msra.mxu0 0.0
      %6281 = vmatprep.subr.mxu0 0.0
      %6282 = vmatpush1.msra.mxu0 0.0
      %6283 = vmatprep.subr.mxu0 0.0
      %6284 = vmatpush1.msra.mxu0 0.0
      %6285 = vmatprep.subr.mxu0 0.0
      %6286 = vmatpush1.msra.mxu0 0.0
      %6287 = vmatprep.subr.mxu0 0.0
      %6288 = vmatpush1.msra.mxu0 0.0
      %6289 = vmatprep.subr.mxu0 0.0
      %6290 = vmatpush1.msra.mxu0 0.0
      %6291 = vmatprep.subr.mxu0 0.0
      %6292 = vmatpush1.msra.mxu0 0.0
      %6293 = vmatprep.subr.mxu0 0.0
      %6294 = vmatpush1.msra.mxu0 0.0
      %6295 = vmatprep.subr.mxu0 0.0
      %6296 = vmatpush1.msra.mxu0 0.0
      %6297 = vmatprep.subr.mxu0 0.0
      %6298 = vmatpush1.msra.mxu0 0.0
      %6299 = vmatprep.subr.mxu0 0.0
      %6300 = vmatpush1.msra.mxu0 0.0
      %6301 = vmatprep.subr.mxu0 0.0
      %6302 = vmatpush1.msra.mxu0 0.0
      %6303 = vmatprep.subr.mxu0 0.0
      %6304 = vmatpush1.msra.mxu0 0.0
      %6305 = vmatprep.subr.mxu0 0.0
      %6306 = vmatpush1.msra.mxu0 0.0
      %6307 = vmatprep.subr.mxu0 0.0
      %6308 = vmatpush1.msra.mxu0 0.0
      %6309 = vmatprep.subr.mxu0 0.0
      %6310 = vmatpush1.msra.mxu0 0.0
      %6311 = vmatprep.subr.mxu0 0.0
      %6312 = vmatpush1.msra.mxu0 0.0
      %6313 = vmatprep.subr.mxu0 0.0
      %6314 = vmatpush1.msra.mxu0 0.0
      %6315 = vmatprep.subr.mxu0 0.0
      %6316 = vmatpush1.msra.mxu0 0.0
      %6317 = vmatprep.subr.mxu0 0.0
      %6318 = vmatpush1.msra.mxu0 0.0
      %6319 = vmatprep.subr.mxu0 0.0
      %6320 = vmatpush1.msra.mxu0 0.0
      %6321 = vmatprep.subr.mxu0 0.0
      %6322 = vmatpush1.msra.mxu0 0.0
      %6323 = vmatprep.subr.mxu0 0.0
      %6324 = vmatpush1.msra.mxu0 0.0
      %6325 = vmatprep.mubr.f32.mxu0 0.0
      %6326 = vmatmul.mubr.f32.gmra.mrb[0].mxu0 %v628
      %v6327 = vpop.f32.mrb[0].mxu0
      %v6328 = vadd.f32 %v6256, %v6327
      %v6329 = vpop.f32.mrb[0].mxu0
      %6330 = vdwg.mxu0
      %6331 = vrot.lane.b32.xlu0 %v6183, 126
      %v6332 = vpop.permute.xlu0 %6331
      %v6333 = vsel %vm290, %v6332, 0
      %6335 = vmatprep.subr.mxu0 0.0
      %6336 = vmatpush1.msra.mxu0 %v6333
      %6337 = vmatprep.subr.mxu0 0.0
      %6338 = vmatpush1.msra.mxu0 0.0
      %6339 = vmatprep.subr.mxu0 0.0
      %6340 = vmatpush1.msra.mxu0 0.0
      %6341 = vmatprep.subr.mxu0 0.0
      %6342 = vmatpush1.msra.mxu0 0.0
      %6343 = vmatprep.subr.mxu0 0.0
      %6344 = vmatpush1.msra.mxu0 0.0
      %6345 = vmatprep.subr.mxu0 0.0
      %6346 = vmatpush1.msra.mxu0 0.0
      %6347 = vmatprep.subr.mxu0 0.0
      %6348 = vmatpush1.msra.mxu0 0.0
      %6349 = vmatprep.subr.mxu0 0.0
      %6350 = vmatpush1.msra.mxu0 0.0
      %6351 = vmatprep.subr.mxu0 0.0
      %6352 = vmatpush1.msra.mxu0 0.0
      %6353 = vmatprep.subr.mxu0 0.0
      %6354 = vmatpush1.msra.mxu0 0.0
      %6355 = vmatprep.subr.mxu0 0.0
      %6356 = vmatpush1.msra.mxu0 0.0
      %6357 = vmatprep.subr.mxu0 0.0
      %6358 = vmatpush1.msra.mxu0 0.0
      %6359 = vmatprep.subr.mxu0 0.0
      %6360 = vmatpush1.msra.mxu0 0.0
      %6361 = vmatprep.subr.mxu0 0.0
      %6362 = vmatpush1.msra.mxu0 0.0
      %6363 = vmatprep.subr.mxu0 0.0
      %6364 = vmatpush1.msra.mxu0 0.0
      %6365 = vmatprep.subr.mxu0 0.0
      %6366 = vmatpush1.msra.mxu0 0.0
      %6367 = vmatprep.subr.mxu0 0.0
      %6368 = vmatpush1.msra.mxu0 0.0
      %6369 = vmatprep.subr.mxu0 0.0
      %6370 = vmatpush1.msra.mxu0 0.0
      %6371 = vmatprep.subr.mxu0 0.0
      %6372 = vmatpush1.msra.mxu0 0.0
      %6373 = vmatprep.subr.mxu0 0.0
      %6374 = vmatpush1.msra.mxu0 0.0
      %6375 = vmatprep.subr.mxu0 0.0
      %6376 = vmatpush1.msra.mxu0 0.0
      %6377 = vmatprep.subr.mxu0 0.0
      %6378 = vmatpush1.msra.mxu0 0.0
      %6379 = vmatprep.subr.mxu0 0.0
      %6380 = vmatpush1.msra.mxu0 0.0
      %6381 = vmatprep.subr.mxu0 0.0
      %6382 = vmatpush1.msra.mxu0 0.0
      %6383 = vmatprep.subr.mxu0 0.0
      %6384 = vmatpush1.msra.mxu0 0.0
      %6385 = vmatprep.subr.mxu0 0.0
      %6386 = vmatpush1.msra.mxu0 0.0
      %6387 = vmatprep.subr.mxu0 0.0
      %6388 = vmatpush1.msra.mxu0 0.0
      %6389 = vmatprep.subr.mxu0 0.0
      %6390 = vmatpush1.msra.mxu0 0.0
      %6391 = vmatprep.subr.mxu0 0.0
      %6392 = vmatpush1.msra.mxu0 0.0
      %6393 = vmatprep.subr.mxu0 0.0
      %6394 = vmatpush1.msra.mxu0 0.0
      %6395 = vmatprep.subr.mxu0 0.0
      %6396 = vmatpush1.msra.mxu0 0.0
      %6397 = vmatprep.subr.mxu0 0.0
      %6398 = vmatpush1.msra.mxu0 0.0
      %6399 = vmatprep.mubr.f32.mxu0 0.0
      %6400 = vmatmul.mubr.f32.gmra.mrb[0].mxu0 %v705
      %v6401 = vpop.f32.mrb[0].mxu0
      %v6402 = vadd.f32 0.0, %v6401
      %v6403 = vpop.f32.mrb[0].mxu0
      %6404 = vdwg.mxu0
      %v6405 = vadd.f32 %v6328, %v6402
      %v6406 = vadd.f32 %v5895, %v6405
      %v6407 = vmul.f32 %v6405, %v6405
      %v6408 = vadd.f32 %v5897, %v6407
      %v6409 = vpack.c.bf16 %v6405, %v6405
      %v6411 = vunpack.c.l.b16 %v6409
      %v6412 = vpack.c.b16 %v6411, %v6411
      %6413 = vrot.lane.b32.xlu0 %v6412, 88
      %v6414 = vpop.permute.xlu0 %6413
      %vm6416 = vcmask 863936
      %6417 = vst.msk [vmem:[%s237 + $0x4] sm:$0xf] %vm6416, %v6414
      %v6418 = vld [vmem:[%s232 + $0xc] sm:$0x1]
      %v6419 = vld [vmem:[%s232 + $0x24] sm:$0x1]
      %v6420 = vld [vmem:[%s232 + $0x3c] sm:$0x1]
      %v6421 = vld [vmem:[%s232 + $0x54] sm:$0x1]
      %v6422 = vmax.f32 %v6418, 0.0
      %v6423 = vmax.f32 %v6419, 0.0
      %v6424 = vmax.f32 %v6420, 0.0
      %v6425 = vmax.f32 %v6421, 0.0
      %v6426 = vld [vmem:[%s232 + $0xd] sm:$0x1]
      %v6427 = vld [vmem:[%s232 + $0x25] sm:$0x1]
      %v6428 = vld [vmem:[%s232 + $0x3d] sm:$0x1]
      %v6429 = vld [vmem:[%s232 + $0x55] sm:$0x1]
      %v6430 = vmax.f32 %v6426, 0.0
      %v6431 = vmax.f32 %v6427, 0.0
      %v6432 = vmax.f32 %v6428, 0.0
      %v6433 = vmax.f32 %v6429, 0.0
      %v6438 = vrot.slane %v6431, 7
      %v6439 = vsel %vm278, %v6438, %v6430
      %v6440 = vrot.slane %v6432, 6
      %v6441 = vsel %vm281, %v6440, %v6439
      %v6442 = vrot.slane %v6433, 5
      %v6443 = vsel %vm284, %v6442, %v6441
      %v6444 = vsel %vm290, %v6443, 0
      %6446 = vmatprep.subr.mxu0 0.0
      %6447 = vmatpush1.msra.mxu0 %v6444
      %6448 = vmatprep.subr.mxu0 0.0
      %6449 = vmatpush1.msra.mxu0 0.0
      %6450 = vmatprep.subr.mxu0 0.0
      %6451 = vmatpush1.msra.mxu0 0.0
      %6452 = vmatprep.subr.mxu0 0.0
      %6453 = vmatpush1.msra.mxu0 0.0
      %6454 = vmatprep.subr.mxu0 0.0
      %6455 = vmatpush1.msra.mxu0 0.0
      %6456 = vmatprep.subr.mxu0 0.0
      %6457 = vmatpush1.msra.mxu0 0.0
      %6458 = vmatprep.subr.mxu0 0.0
      %6459 = vmatpush1.msra.mxu0 0.0
      %6460 = vmatprep.subr.mxu0 0.0
      %6461 = vmatpush1.msra.mxu0 0.0
      %6462 = vmatprep.subr.mxu0 0.0
      %6463 = vmatpush1.msra.mxu0 0.0
      %6464 = vmatprep.subr.mxu0 0.0
      %6465 = vmatpush1.msra.mxu0 0.0
      %6466 = vmatprep.subr.mxu0 0.0
      %6467 = vmatpush1.msra.mxu0 0.0
      %6468 = vmatprep.subr.mxu0 0.0
      %6469 = vmatpush1.msra.mxu0 0.0
      %6470 = vmatprep.subr.mxu0 0.0
      %6471 = vmatpush1.msra.mxu0 0.0
      %6472 = vmatprep.subr.mxu0 0.0
      %6473 = vmatpush1.msra.mxu0 0.0
      %6474 = vmatprep.subr.mxu0 0.0
      %6475 = vmatpush1.msra.mxu0 0.0
      %6476 = vmatprep.subr.mxu0 0.0
      %6477 = vmatpush1.msra.mxu0 0.0
      %6478 = vmatprep.subr.mxu0 0.0
      %6479 = vmatpush1.msra.mxu0 0.0
      %6480 = vmatprep.subr.mxu0 0.0
      %6481 = vmatpush1.msra.mxu0 0.0
      %6482 = vmatprep.subr.mxu0 0.0
      %6483 = vmatpush1.msra.mxu0 0.0
      %6484 = vmatprep.subr.mxu0 0.0
      %6485 = vmatpush1.msra.mxu0 0.0
      %6486 = vmatprep.subr.mxu0 0.0
      %6487 = vmatpush1.msra.mxu0 0.0
      %6488 = vmatprep.subr.mxu0 0.0
      %6489 = vmatpush1.msra.mxu0 0.0
      %6490 = vmatprep.subr.mxu0 0.0
      %6491 = vmatpush1.msra.mxu0 0.0
      %6492 = vmatprep.subr.mxu0 0.0
      %6493 = vmatpush1.msra.mxu0 0.0
      %6494 = vmatprep.subr.mxu0 0.0
      %6495 = vmatpush1.msra.mxu0 0.0
      %6496 = vmatprep.subr.mxu0 0.0
      %6497 = vmatpush1.msra.mxu0 0.0
      %6498 = vmatprep.subr.mxu0 0.0
      %6499 = vmatpush1.msra.mxu0 0.0
      %6500 = vmatprep.subr.mxu0 0.0
      %6501 = vmatpush1.msra.mxu0 0.0
      %6502 = vmatprep.subr.mxu0 0.0
      %6503 = vmatpush1.msra.mxu0 0.0
      %6504 = vmatprep.subr.mxu0 0.0
      %6505 = vmatpush1.msra.mxu0 0.0
      %6506 = vmatprep.subr.mxu0 0.0
      %6507 = vmatpush1.msra.mxu0 0.0
      %6508 = vmatprep.subr.mxu0 0.0
      %6509 = vmatpush1.msra.mxu0 0.0
      %6510 = vmatprep.mubr.f32.mxu0 0.0
      %6511 = vmatmul.mubr.f32.gmra.mrb[0].mxu0 %v288
      %v6512 = vpop.f32.mrb[0].mxu0
      %v6513 = vadd.f32 0.0, %v6512
      %v6514 = vpop.f32.mrb[0].mxu0
      %6515 = vdwg.mxu0
      %v6520 = vrot.slane %v6423, 7
      %v6521 = vsel %vm278, %v6520, %v6422
      %v6522 = vrot.slane %v6424, 6
      %v6523 = vsel %vm281, %v6522, %v6521
      %v6524 = vrot.slane %v6425, 5
      %v6525 = vsel %vm284, %v6524, %v6523
      %v6526 = vsel %vm290, %v6525, 0
      %6528 = vmatprep.subr.mxu0 0.0
      %6529 = vmatpush1.msra.mxu0 %v6526
      %6530 = vmatprep.subr.mxu0 0.0
      %6531 = vmatpush1.msra.mxu0 0.0
      %6532 = vmatprep.subr.mxu0 0.0
      %6533 = vmatpush1.msra.mxu0 0.0
      %6534 = vmatprep.subr.mxu0 0.0
      %6535 = vmatpush1.msra.mxu0 0.0
      %6536 = vmatprep.subr.mxu0 0.0
      %6537 = vmatpush1.msra.mxu0 0.0
      %6538 = vmatprep.subr.mxu0 0.0
      %6539 = vmatpush1.msra.mxu0 0.0
      %6540 = vmatprep.subr.mxu0 0.0
      %6541 = vmatpush1.msra.mxu0 0.0
      %6542 = vmatprep.subr.mxu0 0.0
      %6543 = vmatpush1.msra.mxu0 0.0
      %6544 = vmatprep.subr.mxu0 0.0
      %6545 = vmatpush1.msra.mxu0 0.0
      %6546 = vmatprep.subr.mxu0 0.0
      %6547 = vmatpush1.msra.mxu0 0.0
      %6548 = vmatprep.subr.mxu0 0.0
      %6549 = vmatpush1.msra.mxu0 0.0
      %6550 = vmatprep.subr.mxu0 0.0
      %6551 = vmatpush1.msra.mxu0 0.0
      %6552 = vmatprep.subr.mxu0 0.0
      %6553 = vmatpush1.msra.mxu0 0.0
      %6554 = vmatprep.subr.mxu0 0.0
      %6555 = vmatpush1.msra.mxu0 0.0
      %6556 = vmatprep.subr.mxu0 0.0
      %6557 = vmatpush1.msra.mxu0 0.0
      %6558 = vmatprep.subr.mxu0 0.0
      %6559 = vmatpush1.msra.mxu0 0.0
      %6560 = vmatprep.subr.mxu0 0.0
      %6561 = vmatpush1.msra.mxu0 0.0
      %6562 = vmatprep.subr.mxu0 0.0
      %6563 = vmatpush1.msra.mxu0 0.0
      %6564 = vmatprep.subr.mxu0 0.0
      %6565 = vmatpush1.msra.mxu0 0.0
      %6566 = vmatprep.subr.mxu0 0.0
      %6567 = vmatpush1.msra.mxu0 0.0
      %6568 = vmatprep.subr.mxu0 0.0
      %6569 = vmatpush1.msra.mxu0 0.0
      %6570 = vmatprep.subr.mxu0 0.0
      %6571 = vmatpush1.msra.mxu0 0.0
      %6572 = vmatprep.subr.mxu0 0.0
      %6573 = vmatpush1.msra.mxu0 0.0
      %6574 = vmatprep.subr.mxu0 0.0
      %6575 = vmatpush1.msra.mxu0 0.0
      %6576 = vmatprep.subr.mxu0 0.0
      %6577 = vmatpush1.msra.mxu0 0.0
      %6578 = vmatprep.subr.mxu0 0.0
      %6579 = vmatpush1.msra.mxu0 0.0
      %6580 = vmatprep.subr.mxu0 0.0
      %6581 = vmatpush1.msra.mxu0 0.0
      %6582 = vmatprep.subr.mxu0 0.0
      %6583 = vmatpush1.msra.mxu0 0.0
      %6584 = vmatprep.subr.mxu0 0.0
      %6585 = vmatpush1.msra.mxu0 0.0
      %6586 = vmatprep.subr.mxu0 0.0
      %6587 = vmatpush1.msra.mxu0 0.0
      %6588 = vmatprep.subr.mxu0 0.0
      %6589 = vmatpush1.msra.mxu0 0.0
      %6590 = vmatprep.subr.mxu0 0.0
      %6591 = vmatpush1.msra.mxu0 0.0
      %6592 = vmatprep.mubr.f32.mxu0 0.0
      %6593 = vmatmul.mubr.f32.gmra.mrb[0].mxu0 %v374
      %v6594 = vpop.f32.mrb[0].mxu0
      %v6595 = vadd.f32 %v6513, %v6594
      %v6596 = vpop.f32.mrb[0].mxu0
      %6597 = vdwg.mxu0
      %v6598 = vld [vmem:[%s232 + $0xe] sm:$0x1]
      %v6599 = vld [vmem:[%s232 + $0x26] sm:$0x1]
      %v6600 = vld [vmem:[%s232 + $0x3e] sm:$0x1]
      %v6601 = vld [vmem:[%s232 + $0x56] sm:$0x1]
      %v6602 = vmax.f32 %v6598, 0.0
      %v6603 = vmax.f32 %v6599, 0.0
      %v6604 = vmax.f32 %v6600, 0.0
      %v6605 = vmax.f32 %v6601, 0.0
      %v6610 = vrot.slane %v6603, 7
      %v6611 = vsel %vm278, %v6610, %v6602
      %v6612 = vrot.slane %v6604, 6
      %v6613 = vsel %vm281, %v6612, %v6611
      %v6614 = vrot.slane %v6605, 5
      %v6615 = vsel %vm284, %v6614, %v6613
      %v6616 = vsel %vm290, %v6615, 0
      %6618 = vmatprep.subr.mxu0 0.0
      %6619 = vmatpush1.msra.mxu0 %v6616
      %6620 = vmatprep.subr.mxu0 0.0
      %6621 = vmatpush1.msra.mxu0 0.0
      %6622 = vmatprep.subr.mxu0 0.0
      %6623 = vmatpush1.msra.mxu0 0.0
      %6624 = vmatprep.subr.mxu0 0.0
      %6625 = vmatpush1.msra.mxu0 0.0
      %6626 = vmatprep.subr.mxu0 0.0
      %6627 = vmatpush1.msra.mxu0 0.0
      %6628 = vmatprep.subr.mxu0 0.0
      %6629 = vmatpush1.msra.mxu0 0.0
      %6630 = vmatprep.subr.mxu0 0.0
      %6631 = vmatpush1.msra.mxu0 0.0
      %6632 = vmatprep.subr.mxu0 0.0
      %6633 = vmatpush1.msra.mxu0 0.0
      %6634 = vmatprep.subr.mxu0 0.0
      %6635 = vmatpush1.msra.mxu0 0.0
      %6636 = vmatprep.subr.mxu0 0.0
      %6637 = vmatpush1.msra.mxu0 0.0
      %6638 = vmatprep.subr.mxu0 0.0
      %6639 = vmatpush1.msra.mxu0 0.0
      %6640 = vmatprep.subr.mxu0 0.0
      %6641 = vmatpush1.msra.mxu0 0.0
      %6642 = vmatprep.subr.mxu0 0.0
      %6643 = vmatpush1.msra.mxu0 0.0
      %6644 = vmatprep.subr.mxu0 0.0
      %6645 = vmatpush1.msra.mxu0 0.0
      %6646 = vmatprep.subr.mxu0 0.0
      %6647 = vmatpush1.msra.mxu0 0.0
      %6648 = vmatprep.subr.mxu0 0.0
      %6649 = vmatpush1.msra.mxu0 0.0
      %6650 = vmatprep.subr.mxu0 0.0
      %6651 = vmatpush1.msra.mxu0 0.0
      %6652 = vmatprep.subr.mxu0 0.0
      %6653 = vmatpush1.msra.mxu0 0.0
      %6654 = vmatprep.subr.mxu0 0.0
      %6655 = vmatpush1.msra.mxu0 0.0
      %6656 = vmatprep.subr.mxu0 0.0
      %6657 = vmatpush1.msra.mxu0 0.0
      %6658 = vmatprep.subr.mxu0 0.0
      %6659 = vmatpush1.msra.mxu0 0.0
      %6660 = vmatprep.subr.mxu0 0.0
      %6661 = vmatpush1.msra.mxu0 0.0
      %6662 = vmatprep.subr.mxu0 0.0
      %6663 = vmatpush1.msra.mxu0 0.0
      %6664 = vmatprep.subr.mxu0 0.0
      %6665 = vmatpush1.msra.mxu0 0.0
      %6666 = vmatprep.subr.mxu0 0.0
      %6667 = vmatpush1.msra.mxu0 0.0
      %6668 = vmatprep.subr.mxu0 0.0
      %6669 = vmatpush1.msra.mxu0 0.0
      %6670 = vmatprep.subr.mxu0 0.0
      %6671 = vmatpush1.msra.mxu0 0.0
      %6672 = vmatprep.subr.mxu0 0.0
      %6673 = vmatpush1.msra.mxu0 0.0
      %6674 = vmatprep.subr.mxu0 0.0
      %6675 = vmatpush1.msra.mxu0 0.0
      %6676 = vmatprep.subr.mxu0 0.0
      %6677 = vmatpush1.msra.mxu0 0.0
      %6678 = vmatprep.subr.mxu0 0.0
      %6679 = vmatpush1.msra.mxu0 0.0
      %6680 = vmatprep.subr.mxu0 0.0
      %6681 = vmatpush1.msra.mxu0 0.0
      %6682 = vmatprep.mubr.f32.mxu0 0.0
      %6683 = vmatmul.mubr.f32.gmra.mrb[0].mxu0 %v467
      %v6684 = vpop.f32.mrb[0].mxu0
      %v6685 = vadd.f32 0.0, %v6684
      %v6686 = vpop.f32.mrb[0].mxu0
      %6687 = vdwg.mxu0
      %v6688 = vadd.f32 %v6595, %v6685
      %6690 = vrot.lane.b32.xlu0 %v6688, 1
      %v6691 = vpop.permute.xlu0 %6690
      %6693 = vst.msk [vmem:[#allocation2] sm:$0xf] %vm546, %v6691
      %v6694 = vld [vmem:[#allocation2] sm:$0xf]
      %6696 = vrot.lane.b32.xlu0 %v6694, 127
      %v6697 = vpop.permute.xlu0 %6696
      %v6698 = vsel %vm290, %v6697, 0
      %6700 = vmatprep.subr.mxu0 0.0
      %6701 = vmatpush1.msra.mxu0 %v6698
      %6702 = vmatprep.subr.mxu0 0.0
      %6703 = vmatpush1.msra.mxu0 0.0
      %6704 = vmatprep.subr.mxu0 0.0
      %6705 = vmatpush1.msra.mxu0 0.0
      %6706 = vmatprep.subr.mxu0 0.0
      %6707 = vmatpush1.msra.mxu0 0.0
      %6708 = vmatprep.subr.mxu0 0.0
      %6709 = vmatpush1.msra.mxu0 0.0
      %6710 = vmatprep.subr.mxu0 0.0
      %6711 = vmatpush1.msra.mxu0 0.0
      %6712 = vmatprep.subr.mxu0 0.0
      %6713 = vmatpush1.msra.mxu0 0.0
      %6714 = vmatprep.subr.mxu0 0.0
      %6715 = vmatpush1.msra.mxu0 0.0
      %6716 = vmatprep.subr.mxu0 0.0
      %6717 = vmatpush1.msra.mxu0 0.0
      %6718 = vmatprep.subr.mxu0 0.0
      %6719 = vmatpush1.msra.mxu0 0.0
      %6720 = vmatprep.subr.mxu0 0.0
      %6721 = vmatpush1.msra.mxu0 0.0
      %6722 = vmatprep.subr.mxu0 0.0
      %6723 = vmatpush1.msra.mxu0 0.0
      %6724 = vmatprep.subr.mxu0 0.0
      %6725 = vmatpush1.msra.mxu0 0.0
      %6726 = vmatprep.subr.mxu0 0.0
      %6727 = vmatpush1.msra.mxu0 0.0
      %6728 = vmatprep.subr.mxu0 0.0
      %6729 = vmatpush1.msra.mxu0 0.0
      %6730 = vmatprep.subr.mxu0 0.0
      %6731 = vmatpush1.msra.mxu0 0.0
      %6732 = vmatprep.subr.mxu0 0.0
      %6733 = vmatpush1.msra.mxu0 0.0
      %6734 = vmatprep.subr.mxu0 0.0
      %6735 = vmatpush1.msra.mxu0 0.0
      %6736 = vmatprep.subr.mxu0 0.0
      %6737 = vmatpush1.msra.mxu0 0.0
      %6738 = vmatprep.subr.mxu0 0.0
      %6739 = vmatpush1.msra.mxu0 0.0
      %6740 = vmatprep.subr.mxu0 0.0
      %6741 = vmatpush1.msra.mxu0 0.0
      %6742 = vmatprep.subr.mxu0 0.0
      %6743 = vmatpush1.msra.mxu0 0.0
      %6744 = vmatprep.subr.mxu0 0.0
      %6745 = vmatpush1.msra.mxu0 0.0
      %6746 = vmatprep.subr.mxu0 0.0
      %6747 = vmatpush1.msra.mxu0 0.0
      %6748 = vmatprep.subr.mxu0 0.0
      %6749 = vmatpush1.msra.mxu0 0.0
      %6750 = vmatprep.subr.mxu0 0.0
      %6751 = vmatpush1.msra.mxu0 0.0
      %6752 = vmatprep.subr.mxu0 0.0
      %6753 = vmatpush1.msra.mxu0 0.0
      %6754 = vmatprep.subr.mxu0 0.0
      %6755 = vmatpush1.msra.mxu0 0.0
      %6756 = vmatprep.subr.mxu0 0.0
      %6757 = vmatpush1.msra.mxu0 0.0
      %6758 = vmatprep.subr.mxu0 0.0
      %6759 = vmatpush1.msra.mxu0 0.0
      %6760 = vmatprep.subr.mxu0 0.0
      %6761 = vmatpush1.msra.mxu0 0.0
      %6762 = vmatprep.subr.mxu0 0.0
      %6763 = vmatpush1.msra.mxu0 0.0
      %6764 = vmatprep.mubr.f32.mxu0 0.0
      %6765 = vmatmul.mubr.f32.gmra.mrb[0].mxu0 %v553
      %v6766 = vpop.f32.mrb[0].mxu0
      %v6767 = vadd.f32 0.0, %v6766
      %v6768 = vpop.f32.mrb[0].mxu0
      %6769 = vdwg.mxu0
      %v6770 = vsel %vm290, %v6694, 0
      %6772 = vmatprep.subr.mxu0 0.0
      %6773 = vmatpush1.msra.mxu0 %v6770
      %6774 = vmatprep.subr.mxu0 0.0
      %6775 = vmatpush1.msra.mxu0 0.0
      %6776 = vmatprep.subr.mxu0 0.0
      %6777 = vmatpush1.msra.mxu0 0.0
      %6778 = vmatprep.subr.mxu0 0.0
      %6779 = vmatpush1.msra.mxu0 0.0
      %6780 = vmatprep.subr.mxu0 0.0
      %6781 = vmatpush1.msra.mxu0 0.0
      %6782 = vmatprep.subr.mxu0 0.0
      %6783 = vmatpush1.msra.mxu0 0.0
      %6784 = vmatprep.subr.mxu0 0.0
      %6785 = vmatpush1.msra.mxu0 0.0
      %6786 = vmatprep.subr.mxu0 0.0
      %6787 = vmatpush1.msra.mxu0 0.0
      %6788 = vmatprep.subr.mxu0 0.0
      %6789 = vmatpush1.msra.mxu0 0.0
      %6790 = vmatprep.subr.mxu0 0.0
      %6791 = vmatpush1.msra.mxu0 0.0
      %6792 = vmatprep.subr.mxu0 0.0
      %6793 = vmatpush1.msra.mxu0 0.0
      %6794 = vmatprep.subr.mxu0 0.0
      %6795 = vmatpush1.msra.mxu0 0.0
      %6796 = vmatprep.subr.mxu0 0.0
      %6797 = vmatpush1.msra.mxu0 0.0
      %6798 = vmatprep.subr.mxu0 0.0
      %6799 = vmatpush1.msra.mxu0 0.0
      %6800 = vmatprep.subr.mxu0 0.0
      %6801 = vmatpush1.msra.mxu0 0.0
      %6802 = vmatprep.subr.mxu0 0.0
      %6803 = vmatpush1.msra.mxu0 0.0
      %6804 = vmatprep.subr.mxu0 0.0
      %6805 = vmatpush1.msra.mxu0 0.0
      %6806 = vmatprep.subr.mxu0 0.0
      %6807 = vmatpush1.msra.mxu0 0.0
      %6808 = vmatprep.subr.mxu0 0.0
      %6809 = vmatpush1.msra.mxu0 0.0
      %6810 = vmatprep.subr.mxu0 0.0
      %6811 = vmatpush1.msra.mxu0 0.0
      %6812 = vmatprep.subr.mxu0 0.0
      %6813 = vmatpush1.msra.mxu0 0.0
      %6814 = vmatprep.subr.mxu0 0.0
      %6815 = vmatpush1.msra.mxu0 0.0
      %6816 = vmatprep.subr.mxu0 0.0
      %6817 = vmatpush1.msra.mxu0 0.0
      %6818 = vmatprep.subr.mxu0 0.0
      %6819 = vmatpush1.msra.mxu0 0.0
      %6820 = vmatprep.subr.mxu0 0.0
      %6821 = vmatpush1.msra.mxu0 0.0
      %6822 = vmatprep.subr.mxu0 0.0
      %6823 = vmatpush1.msra.mxu0 0.0
      %6824 = vmatprep.subr.mxu0 0.0
      %6825 = vmatpush1.msra.mxu0 0.0
      %6826 = vmatprep.subr.mxu0 0.0
      %6827 = vmatpush1.msra.mxu0 0.0
      %6828 = vmatprep.subr.mxu0 0.0
      %6829 = vmatpush1.msra.mxu0 0.0
      %6830 = vmatprep.subr.mxu0 0.0
      %6831 = vmatpush1.msra.mxu0 0.0
      %6832 = vmatprep.subr.mxu0 0.0
      %6833 = vmatpush1.msra.mxu0 0.0
      %6834 = vmatprep.subr.mxu0 0.0
      %6835 = vmatpush1.msra.mxu0 0.0
      %6836 = vmatprep.mubr.f32.mxu0 0.0
      %6837 = vmatmul.mubr.f32.gmra.mrb[0].mxu0 %v628
      %v6838 = vpop.f32.mrb[0].mxu0
      %v6839 = vadd.f32 %v6767, %v6838
      %v6840 = vpop.f32.mrb[0].mxu0
      %6841 = vdwg.mxu0
      %6842 = vrot.lane.b32.xlu0 %v6694, 126
      %v6843 = vpop.permute.xlu0 %6842
      %v6844 = vsel %vm290, %v6843, 0
      %6846 = vmatprep.subr.mxu0 0.0
      %6847 = vmatpush1.msra.mxu0 %v6844
      %6848 = vmatprep.subr.mxu0 0.0
      %6849 = vmatpush1.msra.mxu0 0.0
      %6850 = vmatprep.subr.mxu0 0.0
      %6851 = vmatpush1.msra.mxu0 0.0
      %6852 = vmatprep.subr.mxu0 0.0
      %6853 = vmatpush1.msra.mxu0 0.0
      %6854 = vmatprep.subr.mxu0 0.0
      %6855 = vmatpush1.msra.mxu0 0.0
      %6856 = vmatprep.subr.mxu0 0.0
      %6857 = vmatpush1.msra.mxu0 0.0
      %6858 = vmatprep.subr.mxu0 0.0
      %6859 = vmatpush1.msra.mxu0 0.0
      %6860 = vmatprep.subr.mxu0 0.0
      %6861 = vmatpush1.msra.mxu0 0.0
      %6862 = vmatprep.subr.mxu0 0.0
      %6863 = vmatpush1.msra.mxu0 0.0
      %6864 = vmatprep.subr.mxu0 0.0
      %6865 = vmatpush1.msra.mxu0 0.0
      %6866 = vmatprep.subr.mxu0 0.0
      %6867 = vmatpush1.msra.mxu0 0.0
      %6868 = vmatprep.subr.mxu0 0.0
      %6869 = vmatpush1.msra.mxu0 0.0
      %6870 = vmatprep.subr.mxu0 0.0
      %6871 = vmatpush1.msra.mxu0 0.0
      %6872 = vmatprep.subr.mxu0 0.0
      %6873 = vmatpush1.msra.mxu0 0.0
      %6874 = vmatprep.subr.mxu0 0.0
      %6875 = vmatpush1.msra.mxu0 0.0
      %6876 = vmatprep.subr.mxu0 0.0
      %6877 = vmatpush1.msra.mxu0 0.0
      %6878 = vmatprep.subr.mxu0 0.0
      %6879 = vmatpush1.msra.mxu0 0.0
      %6880 = vmatprep.subr.mxu0 0.0
      %6881 = vmatpush1.msra.mxu0 0.0
      %6882 = vmatprep.subr.mxu0 0.0
      %6883 = vmatpush1.msra.mxu0 0.0
      %6884 = vmatprep.subr.mxu0 0.0
      %6885 = vmatpush1.msra.mxu0 0.0
      %6886 = vmatprep.subr.mxu0 0.0
      %6887 = vmatpush1.msra.mxu0 0.0
      %6888 = vmatprep.subr.mxu0 0.0
      %6889 = vmatpush1.msra.mxu0 0.0
      %6890 = vmatprep.subr.mxu0 0.0
      %6891 = vmatpush1.msra.mxu0 0.0
      %6892 = vmatprep.subr.mxu0 0.0
      %6893 = vmatpush1.msra.mxu0 0.0
      %6894 = vmatprep.subr.mxu0 0.0
      %6895 = vmatpush1.msra.mxu0 0.0
      %6896 = vmatprep.subr.mxu0 0.0
      %6897 = vmatpush1.msra.mxu0 0.0
      %6898 = vmatprep.subr.mxu0 0.0
      %6899 = vmatpush1.msra.mxu0 0.0
      %6900 = vmatprep.subr.mxu0 0.0
      %6901 = vmatpush1.msra.mxu0 0.0
      %6902 = vmatprep.subr.mxu0 0.0
      %6903 = vmatpush1.msra.mxu0 0.0
      %6904 = vmatprep.subr.mxu0 0.0
      %6905 = vmatpush1.msra.mxu0 0.0
      %6906 = vmatprep.subr.mxu0 0.0
      %6907 = vmatpush1.msra.mxu0 0.0
      %6908 = vmatprep.subr.mxu0 0.0
      %6909 = vmatpush1.msra.mxu0 0.0
      %6910 = vmatprep.mubr.f32.mxu0 0.0
      %6911 = vmatmul.mubr.f32.gmra.mrb[0].mxu0 %v705
      %v6912 = vpop.f32.mrb[0].mxu0
      %v6913 = vadd.f32 0.0, %v6912
      %v6914 = vpop.f32.mrb[0].mxu0
      %6915 = vdwg.mxu0
      %v6916 = vadd.f32 %v6839, %v6913
      %v6917 = vadd.f32 %v6406, %v6916
      %v6918 = vmul.f32 %v6916, %v6916
      %v6919 = vadd.f32 %v6408, %v6918
      %v6920 = vpack.c.bf16 %v6916, %v6916
      %v6922 = vunpack.c.l.b16 %v6920
      %v6923 = vpack.c.b16 %v6922, %v6922
      %6924 = vrot.lane.b32.xlu0 %v6923, 106
      %v6925 = vpop.permute.xlu0 %6924
      %vm6927 = vcmask 1011536
      %6928 = vst.msk [vmem:[%s237 + $0x4] sm:$0xf] %vm6927, %v6925
      %v6929 = vld [vmem:[%s232 + $0xd] sm:$0x1]
      %v6930 = vld [vmem:[%s232 + $0x25] sm:$0x1]
      %v6931 = vld [vmem:[%s232 + $0x3d] sm:$0x1]
      %v6932 = vld [vmem:[%s232 + $0x55] sm:$0x1]
      %v6933 = vmax.f32 %v6929, 0.0
      %v6934 = vmax.f32 %v6930, 0.0
      %v6935 = vmax.f32 %v6931, 0.0
      %v6936 = vmax.f32 %v6932, 0.0
      %v6937 = vld [vmem:[%s232 + $0xe] sm:$0x1]
      %v6938 = vld [vmem:[%s232 + $0x26] sm:$0x1]
      %v6939 = vld [vmem:[%s232 + $0x3e] sm:$0x1]
      %v6940 = vld [vmem:[%s232 + $0x56] sm:$0x1]
      %v6941 = vmax.f32 %v6937, 0.0
      %v6942 = vmax.f32 %v6938, 0.0
      %v6943 = vmax.f32 %v6939, 0.0
      %v6944 = vmax.f32 %v6940, 0.0
      %v6949 = vrot.slane %v6942, 7
      %v6950 = vsel %vm278, %v6949, %v6941
      %v6951 = vrot.slane %v6943, 6
      %v6952 = vsel %vm281, %v6951, %v6950
      %v6953 = vrot.slane %v6944, 5
      %v6954 = vsel %vm284, %v6953, %v6952
      %v6955 = vsel %vm290, %v6954, 0
      %6957 = vmatprep.subr.mxu0 0.0
      %6958 = vmatpush1.msra.mxu0 %v6955
      %6959 = vmatprep.subr.mxu0 0.0
      %6960 = vmatpush1.msra.mxu0 0.0
      %6961 = vmatprep.subr.mxu0 0.0
      %6962 = vmatpush1.msra.mxu0 0.0
      %6963 = vmatprep.subr.mxu0 0.0
      %6964 = vmatpush1.msra.mxu0 0.0
      %6965 = vmatprep.subr.mxu0 0.0
      %6966 = vmatpush1.msra.mxu0 0.0
      %6967 = vmatprep.subr.mxu0 0.0
      %6968 = vmatpush1.msra.mxu0 0.0
      %6969 = vmatprep.subr.mxu0 0.0
      %6970 = vmatpush1.msra.mxu0 0.0
      %6971 = vmatprep.subr.mxu0 0.0
      %6972 = vmatpush1.msra.mxu0 0.0
      %6973 = vmatprep.subr.mxu0 0.0
      %6974 = vmatpush1.msra.mxu0 0.0
      %6975 = vmatprep.subr.mxu0 0.0
      %6976 = vmatpush1.msra.mxu0 0.0
      %6977 = vmatprep.subr.mxu0 0.0
      %6978 = vmatpush1.msra.mxu0 0.0
      %6979 = vmatprep.subr.mxu0 0.0
      %6980 = vmatpush1.msra.mxu0 0.0
      %6981 = vmatprep.subr.mxu0 0.0
      %6982 = vmatpush1.msra.mxu0 0.0
      %6983 = vmatprep.subr.mxu0 0.0
      %6984 = vmatpush1.msra.mxu0 0.0
      %6985 = vmatprep.subr.mxu0 0.0
      %6986 = vmatpush1.msra.mxu0 0.0
      %6987 = vmatprep.subr.mxu0 0.0
      %6988 = vmatpush1.msra.mxu0 0.0
      %6989 = vmatprep.subr.mxu0 0.0
      %6990 = vmatpush1.msra.mxu0 0.0
      %6991 = vmatprep.subr.mxu0 0.0
      %6992 = vmatpush1.msra.mxu0 0.0
      %6993 = vmatprep.subr.mxu0 0.0
      %6994 = vmatpush1.msra.mxu0 0.0
      %6995 = vmatprep.subr.mxu0 0.0
      %6996 = vmatpush1.msra.mxu0 0.0
      %6997 = vmatprep.subr.mxu0 0.0
      %6998 = vmatpush1.msra.mxu0 0.0
      %6999 = vmatprep.subr.mxu0 0.0
      %7000 = vmatpush1.msra.mxu0 0.0
      %7001 = vmatprep.subr.mxu0 0.0
      %7002 = vmatpush1.msra.mxu0 0.0
      %7003 = vmatprep.subr.mxu0 0.0
      %7004 = vmatpush1.msra.mxu0 0.0
      %7005 = vmatprep.subr.mxu0 0.0
      %7006 = vmatpush1.msra.mxu0 0.0
      %7007 = vmatprep.subr.mxu0 0.0
      %7008 = vmatpush1.msra.mxu0 0.0
      %7009 = vmatprep.subr.mxu0 0.0
      %7010 = vmatpush1.msra.mxu0 0.0
      %7011 = vmatprep.subr.mxu0 0.0
      %7012 = vmatpush1.msra.mxu0 0.0
      %7013 = vmatprep.subr.mxu0 0.0
      %7014 = vmatpush1.msra.mxu0 0.0
      %7015 = vmatprep.subr.mxu0 0.0
      %7016 = vmatpush1.msra.mxu0 0.0
      %7017 = vmatprep.subr.mxu0 0.0
      %7018 = vmatpush1.msra.mxu0 0.0
      %7019 = vmatprep.subr.mxu0 0.0
      %7020 = vmatpush1.msra.mxu0 0.0
      %7021 = vmatprep.mubr.f32.mxu0 0.0
      %7022 = vmatmul.mubr.f32.gmra.mrb[0].mxu0 %v288
      %v7023 = vpop.f32.mrb[0].mxu0
      %v7024 = vadd.f32 0.0, %v7023
      %v7025 = vpop.f32.mrb[0].mxu0
      %7026 = vdwg.mxu0
      %v7031 = vrot.slane %v6934, 7
      %v7032 = vsel %vm278, %v7031, %v6933
      %v7033 = vrot.slane %v6935, 6
      %v7034 = vsel %vm281, %v7033, %v7032
      %v7035 = vrot.slane %v6936, 5
      %v7036 = vsel %vm284, %v7035, %v7034
      %v7037 = vsel %vm290, %v7036, 0
      %7039 = vmatprep.subr.mxu0 0.0
      %7040 = vmatpush1.msra.mxu0 %v7037
      %7041 = vmatprep.subr.mxu0 0.0
      %7042 = vmatpush1.msra.mxu0 0.0
      %7043 = vmatprep.subr.mxu0 0.0
      %7044 = vmatpush1.msra.mxu0 0.0
      %7045 = vmatprep.subr.mxu0 0.0
      %7046 = vmatpush1.msra.mxu0 0.0
      %7047 = vmatprep.subr.mxu0 0.0
      %7048 = vmatpush1.msra.mxu0 0.0
      %7049 = vmatprep.subr.mxu0 0.0
      %7050 = vmatpush1.msra.mxu0 0.0
      %7051 = vmatprep.subr.mxu0 0.0
      %7052 = vmatpush1.msra.mxu0 0.0
      %7053 = vmatprep.subr.mxu0 0.0
      %7054 = vmatpush1.msra.mxu0 0.0
      %7055 = vmatprep.subr.mxu0 0.0
      %7056 = vmatpush1.msra.mxu0 0.0
      %7057 = vmatprep.subr.mxu0 0.0
      %7058 = vmatpush1.msra.mxu0 0.0
      %7059 = vmatprep.subr.mxu0 0.0
      %7060 = vmatpush1.msra.mxu0 0.0
      %7061 = vmatprep.subr.mxu0 0.0
      %7062 = vmatpush1.msra.mxu0 0.0
      %7063 = vmatprep.subr.mxu0 0.0
      %7064 = vmatpush1.msra.mxu0 0.0
      %7065 = vmatprep.subr.mxu0 0.0
      %7066 = vmatpush1.msra.mxu0 0.0
      %7067 = vmatprep.subr.mxu0 0.0
      %7068 = vmatpush1.msra.mxu0 0.0
      %7069 = vmatprep.subr.mxu0 0.0
      %7070 = vmatpush1.msra.mxu0 0.0
      %7071 = vmatprep.subr.mxu0 0.0
      %7072 = vmatpush1.msra.mxu0 0.0
      %7073 = vmatprep.subr.mxu0 0.0
      %7074 = vmatpush1.msra.mxu0 0.0
      %7075 = vmatprep.subr.mxu0 0.0
      %7076 = vmatpush1.msra.mxu0 0.0
      %7077 = vmatprep.subr.mxu0 0.0
      %7078 = vmatpush1.msra.mxu0 0.0
      %7079 = vmatprep.subr.mxu0 0.0
      %7080 = vmatpush1.msra.mxu0 0.0
      %7081 = vmatprep.subr.mxu0 0.0
      %7082 = vmatpush1.msra.mxu0 0.0
      %7083 = vmatprep.subr.mxu0 0.0
      %7084 = vmatpush1.msra.mxu0 0.0
      %7085 = vmatprep.subr.mxu0 0.0
      %7086 = vmatpush1.msra.mxu0 0.0
      %7087 = vmatprep.subr.mxu0 0.0
      %7088 = vmatpush1.msra.mxu0 0.0
      %7089 = vmatprep.subr.mxu0 0.0
      %7090 = vmatpush1.msra.mxu0 0.0
      %7091 = vmatprep.subr.mxu0 0.0
      %7092 = vmatpush1.msra.mxu0 0.0
      %7093 = vmatprep.subr.mxu0 0.0
      %7094 = vmatpush1.msra.mxu0 0.0
      %7095 = vmatprep.subr.mxu0 0.0
      %7096 = vmatpush1.msra.mxu0 0.0
      %7097 = vmatprep.subr.mxu0 0.0
      %7098 = vmatpush1.msra.mxu0 0.0
      %7099 = vmatprep.subr.mxu0 0.0
      %7100 = vmatpush1.msra.mxu0 0.0
      %7101 = vmatprep.subr.mxu0 0.0
      %7102 = vmatpush1.msra.mxu0 0.0
      %7103 = vmatprep.mubr.f32.mxu0 0.0
      %7104 = vmatmul.mubr.f32.gmra.mrb[0].mxu0 %v374
      %v7105 = vpop.f32.mrb[0].mxu0
      %v7106 = vadd.f32 %v7024, %v7105
      %v7107 = vpop.f32.mrb[0].mxu0
      %7108 = vdwg.mxu0
      %v7109 = vld [vmem:[%s232 + $0xf] sm:$0x1]
      %v7110 = vld [vmem:[%s232 + $0x27] sm:$0x1]
      %v7111 = vld [vmem:[%s232 + $0x3f] sm:$0x1]
      %v7112 = vld [vmem:[%s232 + $0x57] sm:$0x1]
      %v7113 = vmax.f32 %v7109, 0.0
      %v7114 = vmax.f32 %v7110, 0.0
      %v7115 = vmax.f32 %v7111, 0.0
      %v7116 = vmax.f32 %v7112, 0.0
      %v7121 = vrot.slane %v7114, 7
      %v7122 = vsel %vm278, %v7121, %v7113
      %v7123 = vrot.slane %v7115, 6
      %v7124 = vsel %vm281, %v7123, %v7122
      %v7125 = vrot.slane %v7116, 5
      %v7126 = vsel %vm284, %v7125, %v7124
      %v7127 = vsel %vm290, %v7126, 0
      %7129 = vmatprep.subr.mxu0 0.0
      %7130 = vmatpush1.msra.mxu0 %v7127
      %7131 = vmatprep.subr.mxu0 0.0
      %7132 = vmatpush1.msra.mxu0 0.0
      %7133 = vmatprep.subr.mxu0 0.0
      %7134 = vmatpush1.msra.mxu0 0.0
      %7135 = vmatprep.subr.mxu0 0.0
      %7136 = vmatpush1.msra.mxu0 0.0
      %7137 = vmatprep.subr.mxu0 0.0
      %7138 = vmatpush1.msra.mxu0 0.0
      %7139 = vmatprep.subr.mxu0 0.0
      %7140 = vmatpush1.msra.mxu0 0.0
      %7141 = vmatprep.subr.mxu0 0.0
      %7142 = vmatpush1.msra.mxu0 0.0
      %7143 = vmatprep.subr.mxu0 0.0
      %7144 = vmatpush1.msra.mxu0 0.0
      %7145 = vmatprep.subr.mxu0 0.0
      %7146 = vmatpush1.msra.mxu0 0.0
      %7147 = vmatprep.subr.mxu0 0.0
      %7148 = vmatpush1.msra.mxu0 0.0
      %7149 = vmatprep.subr.mxu0 0.0
      %7150 = vmatpush1.msra.mxu0 0.0
      %7151 = vmatprep.subr.mxu0 0.0
      %7152 = vmatpush1.msra.mxu0 0.0
      %7153 = vmatprep.subr.mxu0 0.0
      %7154 = vmatpush1.msra.mxu0 0.0
      %7155 = vmatprep.subr.mxu0 0.0
      %7156 = vmatpush1.msra.mxu0 0.0
      %7157 = vmatprep.subr.mxu0 0.0
      %7158 = vmatpush1.msra.mxu0 0.0
      %7159 = vmatprep.subr.mxu0 0.0
      %7160 = vmatpush1.msra.mxu0 0.0
      %7161 = vmatprep.subr.mxu0 0.0
      %7162 = vmatpush1.msra.mxu0 0.0
      %7163 = vmatprep.subr.mxu0 0.0
      %7164 = vmatpush1.msra.mxu0 0.0
      %7165 = vmatprep.subr.mxu0 0.0
      %7166 = vmatpush1.msra.mxu0 0.0
      %7167 = vmatprep.subr.mxu0 0.0
      %7168 = vmatpush1.msra.mxu0 0.0
      %7169 = vmatprep.subr.mxu0 0.0
      %7170 = vmatpush1.msra.mxu0 0.0
      %7171 = vmatprep.subr.mxu0 0.0
      %7172 = vmatpush1.msra.mxu0 0.0
      %7173 = vmatprep.subr.mxu0 0.0
      %7174 = vmatpush1.msra.mxu0 0.0
      %7175 = vmatprep.subr.mxu0 0.0
      %7176 = vmatpush1.msra.mxu0 0.0
      %7177 = vmatprep.subr.mxu0 0.0
      %7178 = vmatpush1.msra.mxu0 0.0
      %7179 = vmatprep.subr.mxu0 0.0
      %7180 = vmatpush1.msra.mxu0 0.0
      %7181 = vmatprep.subr.mxu0 0.0
      %7182 = vmatpush1.msra.mxu0 0.0
      %7183 = vmatprep.subr.mxu0 0.0
      %7184 = vmatpush1.msra.mxu0 0.0
      %7185 = vmatprep.subr.mxu0 0.0
      %7186 = vmatpush1.msra.mxu0 0.0
      %7187 = vmatprep.subr.mxu0 0.0
      %7188 = vmatpush1.msra.mxu0 0.0
      %7189 = vmatprep.subr.mxu0 0.0
      %7190 = vmatpush1.msra.mxu0 0.0
      %7191 = vmatprep.subr.mxu0 0.0
      %7192 = vmatpush1.msra.mxu0 0.0
      %7193 = vmatprep.mubr.f32.mxu0 0.0
      %7194 = vmatmul.mubr.f32.gmra.mrb[0].mxu0 %v467
      %v7195 = vpop.f32.mrb[0].mxu0
      %v7196 = vadd.f32 0.0, %v7195
      %v7197 = vpop.f32.mrb[0].mxu0
      %7198 = vdwg.mxu0
      %v7199 = vadd.f32 %v7106, %v7196
      %7201 = vrot.lane.b32.xlu0 %v7199, 1
      %v7202 = vpop.permute.xlu0 %7201
      %7204 = vst.msk [vmem:[#allocation2] sm:$0xf] %vm546, %v7202
      %v7205 = vld [vmem:[#allocation2] sm:$0xf]
      %7207 = vrot.lane.b32.xlu0 %v7205, 127
      %v7208 = vpop.permute.xlu0 %7207
      %v7209 = vsel %vm290, %v7208, 0
      %7211 = vmatprep.subr.mxu0 0.0
      %7212 = vmatpush1.msra.mxu0 %v7209
      %7213 = vmatprep.subr.mxu0 0.0
      %7214 = vmatpush1.msra.mxu0 0.0
      %7215 = vmatprep.subr.mxu0 0.0
      %7216 = vmatpush1.msra.mxu0 0.0
      %7217 = vmatprep.subr.mxu0 0.0
      %7218 = vmatpush1.msra.mxu0 0.0
      %7219 = vmatprep.subr.mxu0 0.0
      %7220 = vmatpush1.msra.mxu0 0.0
      %7221 = vmatprep.subr.mxu0 0.0
      %7222 = vmatpush1.msra.mxu0 0.0
      %7223 = vmatprep.subr.mxu0 0.0
      %7224 = vmatpush1.msra.mxu0 0.0
      %7225 = vmatprep.subr.mxu0 0.0
      %7226 = vmatpush1.msra.mxu0 0.0
      %7227 = vmatprep.subr.mxu0 0.0
      %7228 = vmatpush1.msra.mxu0 0.0
      %7229 = vmatprep.subr.mxu0 0.0
      %7230 = vmatpush1.msra.mxu0 0.0
      %7231 = vmatprep.subr.mxu0 0.0
      %7232 = vmatpush1.msra.mxu0 0.0
      %7233 = vmatprep.subr.mxu0 0.0
      %7234 = vmatpush1.msra.mxu0 0.0
      %7235 = vmatprep.subr.mxu0 0.0
      %7236 = vmatpush1.msra.mxu0 0.0
      %7237 = vmatprep.subr.mxu0 0.0
      %7238 = vmatpush1.msra.mxu0 0.0
      %7239 = vmatprep.subr.mxu0 0.0
      %7240 = vmatpush1.msra.mxu0 0.0
      %7241 = vmatprep.subr.mxu0 0.0
      %7242 = vmatpush1.msra.mxu0 0.0
      %7243 = vmatprep.subr.mxu0 0.0
      %7244 = vmatpush1.msra.mxu0 0.0
      %7245 = vmatprep.subr.mxu0 0.0
      %7246 = vmatpush1.msra.mxu0 0.0
      %7247 = vmatprep.subr.mxu0 0.0
      %7248 = vmatpush1.msra.mxu0 0.0
      %7249 = vmatprep.subr.mxu0 0.0
      %7250 = vmatpush1.msra.mxu0 0.0
      %7251 = vmatprep.subr.mxu0 0.0
      %7252 = vmatpush1.msra.mxu0 0.0
      %7253 = vmatprep.subr.mxu0 0.0
      %7254 = vmatpush1.msra.mxu0 0.0
      %7255 = vmatprep.subr.mxu0 0.0
      %7256 = vmatpush1.msra.mxu0 0.0
      %7257 = vmatprep.subr.mxu0 0.0
      %7258 = vmatpush1.msra.mxu0 0.0
      %7259 = vmatprep.subr.mxu0 0.0
      %7260 = vmatpush1.msra.mxu0 0.0
      %7261 = vmatprep.subr.mxu0 0.0
      %7262 = vmatpush1.msra.mxu0 0.0
      %7263 = vmatprep.subr.mxu0 0.0
      %7264 = vmatpush1.msra.mxu0 0.0
      %7265 = vmatprep.subr.mxu0 0.0
      %7266 = vmatpush1.msra.mxu0 0.0
      %7267 = vmatprep.subr.mxu0 0.0
      %7268 = vmatpush1.msra.mxu0 0.0
      %7269 = vmatprep.subr.mxu0 0.0
      %7270 = vmatpush1.msra.mxu0 0.0
      %7271 = vmatprep.subr.mxu0 0.0
      %7272 = vmatpush1.msra.mxu0 0.0
      %7273 = vmatprep.subr.mxu0 0.0
      %7274 = vmatpush1.msra.mxu0 0.0
      %7275 = vmatprep.mubr.f32.mxu0 0.0
      %7276 = vmatmul.mubr.f32.gmra.mrb[0].mxu0 %v553
      %v7277 = vpop.f32.mrb[0].mxu0
      %v7278 = vadd.f32 0.0, %v7277
      %v7279 = vpop.f32.mrb[0].mxu0
      %7280 = vdwg.mxu0
      %v7281 = vsel %vm290, %v7205, 0
      %7283 = vmatprep.subr.mxu0 0.0
      %7284 = vmatpush1.msra.mxu0 %v7281
      %7285 = vmatprep.subr.mxu0 0.0
      %7286 = vmatpush1.msra.mxu0 0.0
      %7287 = vmatprep.subr.mxu0 0.0
      %7288 = vmatpush1.msra.mxu0 0.0
      %7289 = vmatprep.subr.mxu0 0.0
      %7290 = vmatpush1.msra.mxu0 0.0
      %7291 = vmatprep.subr.mxu0 0.0
      %7292 = vmatpush1.msra.mxu0 0.0
      %7293 = vmatprep.subr.mxu0 0.0
      %7294 = vmatpush1.msra.mxu0 0.0
      %7295 = vmatprep.subr.mxu0 0.0
      %7296 = vmatpush1.msra.mxu0 0.0
      %7297 = vmatprep.subr.mxu0 0.0
      %7298 = vmatpush1.msra.mxu0 0.0
      %7299 = vmatprep.subr.mxu0 0.0
      %7300 = vmatpush1.msra.mxu0 0.0
      %7301 = vmatprep.subr.mxu0 0.0
      %7302 = vmatpush1.msra.mxu0 0.0
      %7303 = vmatprep.subr.mxu0 0.0
      %7304 = vmatpush1.msra.mxu0 0.0
      %7305 = vmatprep.subr.mxu0 0.0
      %7306 = vmatpush1.msra.mxu0 0.0
      %7307 = vmatprep.subr.mxu0 0.0
      %7308 = vmatpush1.msra.mxu0 0.0
      %7309 = vmatprep.subr.mxu0 0.0
      %7310 = vmatpush1.msra.mxu0 0.0
      %7311 = vmatprep.subr.mxu0 0.0
      %7312 = vmatpush1.msra.mxu0 0.0
      %7313 = vmatprep.subr.mxu0 0.0
      %7314 = vmatpush1.msra.mxu0 0.0
      %7315 = vmatprep.subr.mxu0 0.0
      %7316 = vmatpush1.msra.mxu0 0.0
      %7317 = vmatprep.subr.mxu0 0.0
      %7318 = vmatpush1.msra.mxu0 0.0
      %7319 = vmatprep.subr.mxu0 0.0
      %7320 = vmatpush1.msra.mxu0 0.0
      %7321 = vmatprep.subr.mxu0 0.0
      %7322 = vmatpush1.msra.mxu0 0.0
      %7323 = vmatprep.subr.mxu0 0.0
      %7324 = vmatpush1.msra.mxu0 0.0
      %7325 = vmatprep.subr.mxu0 0.0
      %7326 = vmatpush1.msra.mxu0 0.0
      %7327 = vmatprep.subr.mxu0 0.0
      %7328 = vmatpush1.msra.mxu0 0.0
      %7329 = vmatprep.subr.mxu0 0.0
      %7330 = vmatpush1.msra.mxu0 0.0
      %7331 = vmatprep.subr.mxu0 0.0
      %7332 = vmatpush1.msra.mxu0 0.0
      %7333 = vmatprep.subr.mxu0 0.0
      %7334 = vmatpush1.msra.mxu0 0.0
      %7335 = vmatprep.subr.mxu0 0.0
      %7336 = vmatpush1.msra.mxu0 0.0
      %7337 = vmatprep.subr.mxu0 0.0
      %7338 = vmatpush1.msra.mxu0 0.0
      %7339 = vmatprep.subr.mxu0 0.0
      %7340 = vmatpush1.msra.mxu0 0.0
      %7341 = vmatprep.subr.mxu0 0.0
      %7342 = vmatpush1.msra.mxu0 0.0
      %7343 = vmatprep.subr.mxu0 0.0
      %7344 = vmatpush1.msra.mxu0 0.0
      %7345 = vmatprep.subr.mxu0 0.0
      %7346 = vmatpush1.msra.mxu0 0.0
      %7347 = vmatprep.mubr.f32.mxu0 0.0
      %7348 = vmatmul.mubr.f32.gmra.mrb[0].mxu0 %v628
      %v7349 = vpop.f32.mrb[0].mxu0
      %v7350 = vadd.f32 %v7278, %v7349
      %v7351 = vpop.f32.mrb[0].mxu0
      %7352 = vdwg.mxu0
      %7353 = vrot.lane.b32.xlu0 %v7205, 126
      %v7354 = vpop.permute.xlu0 %7353
      %v7355 = vsel %vm290, %v7354, 0
      %7357 = vmatprep.subr.mxu0 0.0
      %7358 = vmatpush1.msra.mxu0 %v7355
      %7359 = vmatprep.subr.mxu0 0.0
      %7360 = vmatpush1.msra.mxu0 0.0
      %7361 = vmatprep.subr.mxu0 0.0
      %7362 = vmatpush1.msra.mxu0 0.0
      %7363 = vmatprep.subr.mxu0 0.0
      %7364 = vmatpush1.msra.mxu0 0.0
      %7365 = vmatprep.subr.mxu0 0.0
      %7366 = vmatpush1.msra.mxu0 0.0
      %7367 = vmatprep.subr.mxu0 0.0
      %7368 = vmatpush1.msra.mxu0 0.0
      %7369 = vmatprep.subr.mxu0 0.0
      %7370 = vmatpush1.msra.mxu0 0.0
      %7371 = vmatprep.subr.mxu0 0.0
      %7372 = vmatpush1.msra.mxu0 0.0
      %7373 = vmatprep.subr.mxu0 0.0
      %7374 = vmatpush1.msra.mxu0 0.0
      %7375 = vmatprep.subr.mxu0 0.0
      %7376 = vmatpush1.msra.mxu0 0.0
      %7377 = vmatprep.subr.mxu0 0.0
      %7378 = vmatpush1.msra.mxu0 0.0
      %7379 = vmatprep.subr.mxu0 0.0
      %7380 = vmatpush1.msra.mxu0 0.0
      %7381 = vmatprep.subr.mxu0 0.0
      %7382 = vmatpush1.msra.mxu0 0.0
      %7383 = vmatprep.subr.mxu0 0.0
      %7384 = vmatpush1.msra.mxu0 0.0
      %7385 = vmatprep.subr.mxu0 0.0
      %7386 = vmatpush1.msra.mxu0 0.0
      %7387 = vmatprep.subr.mxu0 0.0
      %7388 = vmatpush1.msra.mxu0 0.0
      %7389 = vmatprep.subr.mxu0 0.0
      %7390 = vmatpush1.msra.mxu0 0.0
      %7391 = vmatprep.subr.mxu0 0.0
      %7392 = vmatpush1.msra.mxu0 0.0
      %7393 = vmatprep.subr.mxu0 0.0
      %7394 = vmatpush1.msra.mxu0 0.0
      %7395 = vmatprep.subr.mxu0 0.0
      %7396 = vmatpush1.msra.mxu0 0.0
      %7397 = vmatprep.subr.mxu0 0.0
      %7398 = vmatpush1.msra.mxu0 0.0
      %7399 = vmatprep.subr.mxu0 0.0
      %7400 = vmatpush1.msra.mxu0 0.0
      %7401 = vmatprep.subr.mxu0 0.0
      %7402 = vmatpush1.msra.mxu0 0.0
      %7403 = vmatprep.subr.mxu0 0.0
      %7404 = vmatpush1.msra.mxu0 0.0
      %7405 = vmatprep.subr.mxu0 0.0
      %7406 = vmatpush1.msra.mxu0 0.0
      %7407 = vmatprep.subr.mxu0 0.0
      %7408 = vmatpush1.msra.mxu0 0.0
      %7409 = vmatprep.subr.mxu0 0.0
      %7410 = vmatpush1.msra.mxu0 0.0
      %7411 = vmatprep.subr.mxu0 0.0
      %7412 = vmatpush1.msra.mxu0 0.0
      %7413 = vmatprep.subr.mxu0 0.0
      %7414 = vmatpush1.msra.mxu0 0.0
      %7415 = vmatprep.subr.mxu0 0.0
      %7416 = vmatpush1.msra.mxu0 0.0
      %7417 = vmatprep.subr.mxu0 0.0
      %7418 = vmatpush1.msra.mxu0 0.0
      %7419 = vmatprep.subr.mxu0 0.0
      %7420 = vmatpush1.msra.mxu0 0.0
      %7421 = vmatprep.mubr.f32.mxu0 0.0
      %7422 = vmatmul.mubr.f32.gmra.mrb[0].mxu0 %v705
      %v7423 = vpop.f32.mrb[0].mxu0
      %v7424 = vadd.f32 0.0, %v7423
      %v7425 = vpop.f32.mrb[0].mxu0
      %7426 = vdwg.mxu0
      %v7427 = vadd.f32 %v7350, %v7424
      %v7428 = vadd.f32 %v6917, %v7427
      %v7429 = vmul.f32 %v7427, %v7427
      %v7430 = vadd.f32 %v6919, %v7429
      %v7431 = vpack.c.bf16 %v7427, %v7427
      %v7433 = vunpack.c.l.b16 %v7431
      %v7434 = vpack.c.b16 %v7433, %v7433
      %7435 = vrot.lane.b32.xlu0 %v7434, 124
      %v7436 = vpop.permute.xlu0 %7435
      %v7437 = vrot.slane %v7436, 4
      %vm7438 = vcmask 1014784
      %v7439 = vsel %vm7438, %v7437, %v7436
      %vm7441 = vcmask 1044448
      %vm7442 = vcmask 113668
      %vm7443 = vmor %vm7442, %vm7441
      %7444 = vst.msk [vmem:[%s237 + $0x4] sm:$0xff] %vm7443, %v7439
      %v7445 = vld [vmem:[%s232 + $0xe] sm:$0x1]
      %v7446 = vld [vmem:[%s232 + $0x26] sm:$0x1]
      %v7447 = vld [vmem:[%s232 + $0x3e] sm:$0x1]
      %v7448 = vld [vmem:[%s232 + $0x56] sm:$0x1]
      %v7449 = vmax.f32 %v7445, 0.0
      %v7450 = vmax.f32 %v7446, 0.0
      %v7451 = vmax.f32 %v7447, 0.0
      %v7452 = vmax.f32 %v7448, 0.0
      %v7453 = vld [vmem:[%s232 + $0xf] sm:$0x1]
      %v7454 = vld [vmem:[%s232 + $0x27] sm:$0x1]
      %v7455 = vld [vmem:[%s232 + $0x3f] sm:$0x1]
      %v7456 = vld [vmem:[%s232 + $0x57] sm:$0x1]
      %v7457 = vmax.f32 %v7453, 0.0
      %v7458 = vmax.f32 %v7454, 0.0
      %v7459 = vmax.f32 %v7455, 0.0
      %v7460 = vmax.f32 %v7456, 0.0
      %v7465 = vrot.slane %v7458, 7
      %v7466 = vsel %vm278, %v7465, %v7457
      %v7467 = vrot.slane %v7459, 6
      %v7468 = vsel %vm281, %v7467, %v7466
      %v7469 = vrot.slane %v7460, 5
      %v7470 = vsel %vm284, %v7469, %v7468
      %v7471 = vsel %vm290, %v7470, 0
      %7473 = vmatprep.subr.mxu0 0.0
      %7474 = vmatpush1.msra.mxu0 %v7471
      %7475 = vmatprep.subr.mxu0 0.0
      %7476 = vmatpush1.msra.mxu0 0.0
      %7477 = vmatprep.subr.mxu0 0.0
      %7478 = vmatpush1.msra.mxu0 0.0
      %7479 = vmatprep.subr.mxu0 0.0
      %7480 = vmatpush1.msra.mxu0 0.0
      %7481 = vmatprep.subr.mxu0 0.0
      %7482 = vmatpush1.msra.mxu0 0.0
      %7483 = vmatprep.subr.mxu0 0.0
      %7484 = vmatpush1.msra.mxu0 0.0
      %7485 = vmatprep.subr.mxu0 0.0
      %7486 = vmatpush1.msra.mxu0 0.0
      %7487 = vmatprep.subr.mxu0 0.0
      %7488 = vmatpush1.msra.mxu0 0.0
      %7489 = vmatprep.subr.mxu0 0.0
      %7490 = vmatpush1.msra.mxu0 0.0
      %7491 = vmatprep.subr.mxu0 0.0
      %7492 = vmatpush1.msra.mxu0 0.0
      %7493 = vmatprep.subr.mxu0 0.0
      %7494 = vmatpush1.msra.mxu0 0.0
      %7495 = vmatprep.subr.mxu0 0.0
      %7496 = vmatpush1.msra.mxu0 0.0
      %7497 = vmatprep.subr.mxu0 0.0
      %7498 = vmatpush1.msra.mxu0 0.0
      %7499 = vmatprep.subr.mxu0 0.0
      %7500 = vmatpush1.msra.mxu0 0.0
      %7501 = vmatprep.subr.mxu0 0.0
      %7502 = vmatpush1.msra.mxu0 0.0
      %7503 = vmatprep.subr.mxu0 0.0
      %7504 = vmatpush1.msra.mxu0 0.0
      %7505 = vmatprep.subr.mxu0 0.0
      %7506 = vmatpush1.msra.mxu0 0.0
      %7507 = vmatprep.subr.mxu0 0.0
      %7508 = vmatpush1.msra.mxu0 0.0
      %7509 = vmatprep.subr.mxu0 0.0
      %7510 = vmatpush1.msra.mxu0 0.0
      %7511 = vmatprep.subr.mxu0 0.0
      %7512 = vmatpush1.msra.mxu0 0.0
      %7513 = vmatprep.subr.mxu0 0.0
      %7514 = vmatpush1.msra.mxu0 0.0
      %7515 = vmatprep.subr.mxu0 0.0
      %7516 = vmatpush1.msra.mxu0 0.0
      %7517 = vmatprep.subr.mxu0 0.0
      %7518 = vmatpush1.msra.mxu0 0.0
      %7519 = vmatprep.subr.mxu0 0.0
      %7520 = vmatpush1.msra.mxu0 0.0
      %7521 = vmatprep.subr.mxu0 0.0
      %7522 = vmatpush1.msra.mxu0 0.0
      %7523 = vmatprep.subr.mxu0 0.0
      %7524 = vmatpush1.msra.mxu0 0.0
      %7525 = vmatprep.subr.mxu0 0.0
      %7526 = vmatpush1.msra.mxu0 0.0
      %7527 = vmatprep.subr.mxu0 0.0
      %7528 = vmatpush1.msra.mxu0 0.0
      %7529 = vmatprep.subr.mxu0 0.0
      %7530 = vmatpush1.msra.mxu0 0.0
      %7531 = vmatprep.subr.mxu0 0.0
      %7532 = vmatpush1.msra.mxu0 0.0
      %7533 = vmatprep.subr.mxu0 0.0
      %7534 = vmatpush1.msra.mxu0 0.0
      %7535 = vmatprep.subr.mxu0 0.0
      %7536 = vmatpush1.msra.mxu0 0.0
      %7537 = vmatprep.mubr.f32.mxu0 0.0
      %7538 = vmatmul.mubr.f32.gmra.mrb[0].mxu0 %v288
      %v7539 = vpop.f32.mrb[0].mxu0
      %v7540 = vadd.f32 0.0, %v7539
      %v7541 = vpop.f32.mrb[0].mxu0
      %7542 = vdwg.mxu0
      %v7547 = vrot.slane %v7450, 7
      %v7548 = vsel %vm278, %v7547, %v7449
      %v7549 = vrot.slane %v7451, 6
      %v7550 = vsel %vm281, %v7549, %v7548
      %v7551 = vrot.slane %v7452, 5
      %v7552 = vsel %vm284, %v7551, %v7550
      %v7553 = vsel %vm290, %v7552, 0
      %7555 = vmatprep.subr.mxu0 0.0
      %7556 = vmatpush1.msra.mxu0 %v7553
      %7557 = vmatprep.subr.mxu0 0.0
      %7558 = vmatpush1.msra.mxu0 0.0
      %7559 = vmatprep.subr.mxu0 0.0
      %7560 = vmatpush1.msra.mxu0 0.0
      %7561 = vmatprep.subr.mxu0 0.0
      %7562 = vmatpush1.msra.mxu0 0.0
      %7563 = vmatprep.subr.mxu0 0.0
      %7564 = vmatpush1.msra.mxu0 0.0
      %7565 = vmatprep.subr.mxu0 0.0
      %7566 = vmatpush1.msra.mxu0 0.0
      %7567 = vmatprep.subr.mxu0 0.0
      %7568 = vmatpush1.msra.mxu0 0.0
      %7569 = vmatprep.subr.mxu0 0.0
      %7570 = vmatpush1.msra.mxu0 0.0
      %7571 = vmatprep.subr.mxu0 0.0
      %7572 = vmatpush1.msra.mxu0 0.0
      %7573 = vmatprep.subr.mxu0 0.0
      %7574 = vmatpush1.msra.mxu0 0.0
      %7575 = vmatprep.subr.mxu0 0.0
      %7576 = vmatpush1.msra.mxu0 0.0
      %7577 = vmatprep.subr.mxu0 0.0
      %7578 = vmatpush1.msra.mxu0 0.0
      %7579 = vmatprep.subr.mxu0 0.0
      %7580 = vmatpush1.msra.mxu0 0.0
      %7581 = vmatprep.subr.mxu0 0.0
      %7582 = vmatpush1.msra.mxu0 0.0
      %7583 = vmatprep.subr.mxu0 0.0
      %7584 = vmatpush1.msra.mxu0 0.0
      %7585 = vmatprep.subr.mxu0 0.0
      %7586 = vmatpush1.msra.mxu0 0.0
      %7587 = vmatprep.subr.mxu0 0.0
      %7588 = vmatpush1.msra.mxu0 0.0
      %7589 = vmatprep.subr.mxu0 0.0
      %7590 = vmatpush1.msra.mxu0 0.0
      %7591 = vmatprep.subr.mxu0 0.0
      %7592 = vmatpush1.msra.mxu0 0.0
      %7593 = vmatprep.subr.mxu0 0.0
      %7594 = vmatpush1.msra.mxu0 0.0
      %7595 = vmatprep.subr.mxu0 0.0
      %7596 = vmatpush1.msra.mxu0 0.0
      %7597 = vmatprep.subr.mxu0 0.0
      %7598 = vmatpush1.msra.mxu0 0.0
      %7599 = vmatprep.subr.mxu0 0.0
      %7600 = vmatpush1.msra.mxu0 0.0
      %7601 = vmatprep.subr.mxu0 0.0
      %7602 = vmatpush1.msra.mxu0 0.0
      %7603 = vmatprep.subr.mxu0 0.0
      %7604 = vmatpush1.msra.mxu0 0.0
      %7605 = vmatprep.subr.mxu0 0.0
      %7606 = vmatpush1.msra.mxu0 0.0
      %7607 = vmatprep.subr.mxu0 0.0
      %7608 = vmatpush1.msra.mxu0 0.0
      %7609 = vmatprep.subr.mxu0 0.0
      %7610 = vmatpush1.msra.mxu0 0.0
      %7611 = vmatprep.subr.mxu0 0.0
      %7612 = vmatpush1.msra.mxu0 0.0
      %7613 = vmatprep.subr.mxu0 0.0
      %7614 = vmatpush1.msra.mxu0 0.0
      %7615 = vmatprep.subr.mxu0 0.0
      %7616 = vmatpush1.msra.mxu0 0.0
      %7617 = vmatprep.subr.mxu0 0.0
      %7618 = vmatpush1.msra.mxu0 0.0
      %7619 = vmatprep.mubr.f32.mxu0 0.0
      %7620 = vmatmul.mubr.f32.gmra.mrb[0].mxu0 %v374
      %v7621 = vpop.f32.mrb[0].mxu0
      %v7622 = vadd.f32 %v7540, %v7621
      %v7623 = vpop.f32.mrb[0].mxu0
      %7624 = vdwg.mxu0
      %v7625 = vld [vmem:[%s232 + $0x10] sm:$0x1]
      %v7626 = vld [vmem:[%s232 + $0x28] sm:$0x1]
      %v7627 = vld [vmem:[%s232 + $0x40] sm:$0x1]
      %v7628 = vld [vmem:[%s232 + $0x58] sm:$0x1]
      %v7629 = vmax.f32 %v7625, 0.0
      %v7630 = vmax.f32 %v7626, 0.0
      %v7631 = vmax.f32 %v7627, 0.0
      %v7632 = vmax.f32 %v7628, 0.0
      %v7637 = vrot.slane %v7630, 7
      %v7638 = vsel %vm278, %v7637, %v7629
      %v7639 = vrot.slane %v7631, 6
      %v7640 = vsel %vm281, %v7639, %v7638
      %v7641 = vrot.slane %v7632, 5
      %v7642 = vsel %vm284, %v7641, %v7640
      %v7643 = vsel %vm290, %v7642, 0
      %7645 = vmatprep.subr.mxu0 0.0
      %7646 = vmatpush1.msra.mxu0 %v7643
      %7647 = vmatprep.subr.mxu0 0.0
      %7648 = vmatpush1.msra.mxu0 0.0
      %7649 = vmatprep.subr.mxu0 0.0
      %7650 = vmatpush1.msra.mxu0 0.0
      %7651 = vmatprep.subr.mxu0 0.0
      %7652 = vmatpush1.msra.mxu0 0.0
      %7653 = vmatprep.subr.mxu0 0.0
      %7654 = vmatpush1.msra.mxu0 0.0
      %7655 = vmatprep.subr.mxu0 0.0
      %7656 = vmatpush1.msra.mxu0 0.0
      %7657 = vmatprep.subr.mxu0 0.0
      %7658 = vmatpush1.msra.mxu0 0.0
      %7659 = vmatprep.subr.mxu0 0.0
      %7660 = vmatpush1.msra.mxu0 0.0
      %7661 = vmatprep.subr.mxu0 0.0
      %7662 = vmatpush1.msra.mxu0 0.0
      %7663 = vmatprep.subr.mxu0 0.0
      %7664 = vmatpush1.msra.mxu0 0.0
      %7665 = vmatprep.subr.mxu0 0.0
      %7666 = vmatpush1.msra.mxu0 0.0
      %7667 = vmatprep.subr.mxu0 0.0
      %7668 = vmatpush1.msra.mxu0 0.0
      %7669 = vmatprep.subr.mxu0 0.0
      %7670 = vmatpush1.msra.mxu0 0.0
      %7671 = vmatprep.subr.mxu0 0.0
      %7672 = vmatpush1.msra.mxu0 0.0
      %7673 = vmatprep.subr.mxu0 0.0
      %7674 = vmatpush1.msra.mxu0 0.0
      %7675 = vmatprep.subr.mxu0 0.0
      %7676 = vmatpush1.msra.mxu0 0.0
      %7677 = vmatprep.subr.mxu0 0.0
      %7678 = vmatpush1.msra.mxu0 0.0
      %7679 = vmatprep.subr.mxu0 0.0
      %7680 = vmatpush1.msra.mxu0 0.0
      %7681 = vmatprep.subr.mxu0 0.0
      %7682 = vmatpush1.msra.mxu0 0.0
      %7683 = vmatprep.subr.mxu0 0.0
      %7684 = vmatpush1.msra.mxu0 0.0
      %7685 = vmatprep.subr.mxu0 0.0
      %7686 = vmatpush1.msra.mxu0 0.0
      %7687 = vmatprep.subr.mxu0 0.0
      %7688 = vmatpush1.msra.mxu0 0.0
      %7689 = vmatprep.subr.mxu0 0.0
      %7690 = vmatpush1.msra.mxu0 0.0
      %7691 = vmatprep.subr.mxu0 0.0
      %7692 = vmatpush1.msra.mxu0 0.0
      %7693 = vmatprep.subr.mxu0 0.0
      %7694 = vmatpush1.msra.mxu0 0.0
      %7695 = vmatprep.subr.mxu0 0.0
      %7696 = vmatpush1.msra.mxu0 0.0
      %7697 = vmatprep.subr.mxu0 0.0
      %7698 = vmatpush1.msra.mxu0 0.0
      %7699 = vmatprep.subr.mxu0 0.0
      %7700 = vmatpush1.msra.mxu0 0.0
      %7701 = vmatprep.subr.mxu0 0.0
      %7702 = vmatpush1.msra.mxu0 0.0
      %7703 = vmatprep.subr.mxu0 0.0
      %7704 = vmatpush1.msra.mxu0 0.0
      %7705 = vmatprep.subr.mxu0 0.0
      %7706 = vmatpush1.msra.mxu0 0.0
      %7707 = vmatprep.subr.mxu0 0.0
      %7708 = vmatpush1.msra.mxu0 0.0
      %7709 = vmatprep.mubr.f32.mxu0 0.0
      %7710 = vmatmul.mubr.f32.gmra.mrb[0].mxu0 %v467
      %v7711 = vpop.f32.mrb[0].mxu0
      %v7712 = vadd.f32 0.0, %v7711
      %v7713 = vpop.f32.mrb[0].mxu0
      %7714 = vdwg.mxu0
      %v7715 = vadd.f32 %v7622, %v7712
      %7717 = vrot.lane.b32.xlu0 %v7715, 1
      %v7718 = vpop.permute.xlu0 %7717
      %7720 = vst.msk [vmem:[#allocation2] sm:$0xf] %vm546, %v7718
      %v7721 = vld [vmem:[#allocation2] sm:$0xf]
      %7723 = vrot.lane.b32.xlu0 %v7721, 127
      %v7724 = vpop.permute.xlu0 %7723
      %v7725 = vsel %vm290, %v7724, 0
      %7727 = vmatprep.subr.mxu0 0.0
      %7728 = vmatpush1.msra.mxu0 %v7725
      %7729 = vmatprep.subr.mxu0 0.0
      %7730 = vmatpush1.msra.mxu0 0.0
      %7731 = vmatprep.subr.mxu0 0.0
      %7732 = vmatpush1.msra.mxu0 0.0
      %7733 = vmatprep.subr.mxu0 0.0
      %7734 = vmatpush1.msra.mxu0 0.0
      %7735 = vmatprep.subr.mxu0 0.0
      %7736 = vmatpush1.msra.mxu0 0.0
      %7737 = vmatprep.subr.mxu0 0.0
      %7738 = vmatpush1.msra.mxu0 0.0
      %7739 = vmatprep.subr.mxu0 0.0
      %7740 = vmatpush1.msra.mxu0 0.0
      %7741 = vmatprep.subr.mxu0 0.0
      %7742 = vmatpush1.msra.mxu0 0.0
      %7743 = vmatprep.subr.mxu0 0.0
      %7744 = vmatpush1.msra.mxu0 0.0
      %7745 = vmatprep.subr.mxu0 0.0
      %7746 = vmatpush1.msra.mxu0 0.0
      %7747 = vmatprep.subr.mxu0 0.0
      %7748 = vmatpush1.msra.mxu0 0.0
      %7749 = vmatprep.subr.mxu0 0.0
      %7750 = vmatpush1.msra.mxu0 0.0
      %7751 = vmatprep.subr.mxu0 0.0
      %7752 = vmatpush1.msra.mxu0 0.0
      %7753 = vmatprep.subr.mxu0 0.0
      %7754 = vmatpush1.msra.mxu0 0.0
      %7755 = vmatprep.subr.mxu0 0.0
      %7756 = vmatpush1.msra.mxu0 0.0
      %7757 = vmatprep.subr.mxu0 0.0
      %7758 = vmatpush1.msra.mxu0 0.0
      %7759 = vmatprep.subr.mxu0 0.0
      %7760 = vmatpush1.msra.mxu0 0.0
      %7761 = vmatprep.subr.mxu0 0.0
      %7762 = vmatpush1.msra.mxu0 0.0
      %7763 = vmatprep.subr.mxu0 0.0
      %7764 = vmatpush1.msra.mxu0 0.0
      %7765 = vmatprep.subr.mxu0 0.0
      %7766 = vmatpush1.msra.mxu0 0.0
      %7767 = vmatprep.subr.mxu0 0.0
      %7768 = vmatpush1.msra.mxu0 0.0
      %7769 = vmatprep.subr.mxu0 0.0
      %7770 = vmatpush1.msra.mxu0 0.0
      %7771 = vmatprep.subr.mxu0 0.0
      %7772 = vmatpush1.msra.mxu0 0.0
      %7773 = vmatprep.subr.mxu0 0.0
      %7774 = vmatpush1.msra.mxu0 0.0
      %7775 = vmatprep.subr.mxu0 0.0
      %7776 = vmatpush1.msra.mxu0 0.0
      %7777 = vmatprep.subr.mxu0 0.0
      %7778 = vmatpush1.msra.mxu0 0.0
      %7779 = vmatprep.subr.mxu0 0.0
      %7780 = vmatpush1.msra.mxu0 0.0
      %7781 = vmatprep.subr.mxu0 0.0
      %7782 = vmatpush1.msra.mxu0 0.0
      %7783 = vmatprep.subr.mxu0 0.0
      %7784 = vmatpush1.msra.mxu0 0.0
      %7785 = vmatprep.subr.mxu0 0.0
      %7786 = vmatpush1.msra.mxu0 0.0
      %7787 = vmatprep.subr.mxu0 0.0
      %7788 = vmatpush1.msra.mxu0 0.0
      %7789 = vmatprep.subr.mxu0 0.0
      %7790 = vmatpush1.msra.mxu0 0.0
      %7791 = vmatprep.mubr.f32.mxu0 0.0
      %7792 = vmatmul.mubr.f32.gmra.mrb[0].mxu0 %v553
      %v7793 = vpop.f32.mrb[0].mxu0
      %v7794 = vadd.f32 0.0, %v7793
      %v7795 = vpop.f32.mrb[0].mxu0
      %7796 = vdwg.mxu0
      %v7797 = vsel %vm290, %v7721, 0
      %7799 = vmatprep.subr.mxu0 0.0
      %7800 = vmatpush1.msra.mxu0 %v7797
      %7801 = vmatprep.subr.mxu0 0.0
      %7802 = vmatpush1.msra.mxu0 0.0
      %7803 = vmatprep.subr.mxu0 0.0
      %7804 = vmatpush1.msra.mxu0 0.0
      %7805 = vmatprep.subr.mxu0 0.0
      %7806 = vmatpush1.msra.mxu0 0.0
      %7807 = vmatprep.subr.mxu0 0.0
      %7808 = vmatpush1.msra.mxu0 0.0
      %7809 = vmatprep.subr.mxu0 0.0
      %7810 = vmatpush1.msra.mxu0 0.0
      %7811 = vmatprep.subr.mxu0 0.0
      %7812 = vmatpush1.msra.mxu0 0.0
      %7813 = vmatprep.subr.mxu0 0.0
      %7814 = vmatpush1.msra.mxu0 0.0
      %7815 = vmatprep.subr.mxu0 0.0
      %7816 = vmatpush1.msra.mxu0 0.0
      %7817 = vmatprep.subr.mxu0 0.0
      %7818 = vmatpush1.msra.mxu0 0.0
      %7819 = vmatprep.subr.mxu0 0.0
      %7820 = vmatpush1.msra.mxu0 0.0
      %7821 = vmatprep.subr.mxu0 0.0
      %7822 = vmatpush1.msra.mxu0 0.0
      %7823 = vmatprep.subr.mxu0 0.0
      %7824 = vmatpush1.msra.mxu0 0.0
      %7825 = vmatprep.subr.mxu0 0.0
      %7826 = vmatpush1.msra.mxu0 0.0
      %7827 = vmatprep.subr.mxu0 0.0
      %7828 = vmatpush1.msra.mxu0 0.0
      %7829 = vmatprep.subr.mxu0 0.0
      %7830 = vmatpush1.msra.mxu0 0.0
      %7831 = vmatprep.subr.mxu0 0.0
      %7832 = vmatpush1.msra.mxu0 0.0
      %7833 = vmatprep.subr.mxu0 0.0
      %7834 = vmatpush1.msra.mxu0 0.0
      %7835 = vmatprep.subr.mxu0 0.0
      %7836 = vmatpush1.msra.mxu0 0.0
      %7837 = vmatprep.subr.mxu0 0.0
      %7838 = vmatpush1.msra.mxu0 0.0
      %7839 = vmatprep.subr.mxu0 0.0
      %7840 = vmatpush1.msra.mxu0 0.0
      %7841 = vmatprep.subr.mxu0 0.0
      %7842 = vmatpush1.msra.mxu0 0.0
      %7843 = vmatprep.subr.mxu0 0.0
      %7844 = vmatpush1.msra.mxu0 0.0
      %7845 = vmatprep.subr.mxu0 0.0
      %7846 = vmatpush1.msra.mxu0 0.0
      %7847 = vmatprep.subr.mxu0 0.0
      %7848 = vmatpush1.msra.mxu0 0.0
      %7849 = vmatprep.subr.mxu0 0.0
      %7850 = vmatpush1.msra.mxu0 0.0
      %7851 = vmatprep.subr.mxu0 0.0
      %7852 = vmatpush1.msra.mxu0 0.0
      %7853 = vmatprep.subr.mxu0 0.0
      %7854 = vmatpush1.msra.mxu0 0.0
      %7855 = vmatprep.subr.mxu0 0.0
      %7856 = vmatpush1.msra.mxu0 0.0
      %7857 = vmatprep.subr.mxu0 0.0
      %7858 = vmatpush1.msra.mxu0 0.0
      %7859 = vmatprep.subr.mxu0 0.0
      %7860 = vmatpush1.msra.mxu0 0.0
      %7861 = vmatprep.subr.mxu0 0.0
      %7862 = vmatpush1.msra.mxu0 0.0
      %7863 = vmatprep.mubr.f32.mxu0 0.0
      %7864 = vmatmul.mubr.f32.gmra.mrb[0].mxu0 %v628
      %v7865 = vpop.f32.mrb[0].mxu0
      %v7866 = vadd.f32 %v7794, %v7865
      %v7867 = vpop.f32.mrb[0].mxu0
      %7868 = vdwg.mxu0
      %7869 = vrot.lane.b32.xlu0 %v7721, 126
      %v7870 = vpop.permute.xlu0 %7869
      %v7871 = vsel %vm290, %v7870, 0
      %7873 = vmatprep.subr.mxu0 0.0
      %7874 = vmatpush1.msra.mxu0 %v7871
      %7875 = vmatprep.subr.mxu0 0.0
      %7876 = vmatpush1.msra.mxu0 0.0
      %7877 = vmatprep.subr.mxu0 0.0
      %7878 = vmatpush1.msra.mxu0 0.0
      %7879 = vmatprep.subr.mxu0 0.0
      %7880 = vmatpush1.msra.mxu0 0.0
      %7881 = vmatprep.subr.mxu0 0.0
      %7882 = vmatpush1.msra.mxu0 0.0
      %7883 = vmatprep.subr.mxu0 0.0
      %7884 = vmatpush1.msra.mxu0 0.0
      %7885 = vmatprep.subr.mxu0 0.0
      %7886 = vmatpush1.msra.mxu0 0.0
      %7887 = vmatprep.subr.mxu0 0.0
      %7888 = vmatpush1.msra.mxu0 0.0
      %7889 = vmatprep.subr.mxu0 0.0
      %7890 = vmatpush1.msra.mxu0 0.0
      %7891 = vmatprep.subr.mxu0 0.0
      %7892 = vmatpush1.msra.mxu0 0.0
      %7893 = vmatprep.subr.mxu0 0.0
      %7894 = vmatpush1.msra.mxu0 0.0
      %7895 = vmatprep.subr.mxu0 0.0
      %7896 = vmatpush1.msra.mxu0 0.0
      %7897 = vmatprep.subr.mxu0 0.0
      %7898 = vmatpush1.msra.mxu0 0.0
      %7899 = vmatprep.subr.mxu0 0.0
      %7900 = vmatpush1.msra.mxu0 0.0
      %7901 = vmatprep.subr.mxu0 0.0
      %7902 = vmatpush1.msra.mxu0 0.0
      %7903 = vmatprep.subr.mxu0 0.0
      %7904 = vmatpush1.msra.mxu0 0.0
      %7905 = vmatprep.subr.mxu0 0.0
      %7906 = vmatpush1.msra.mxu0 0.0
      %7907 = vmatprep.subr.mxu0 0.0
      %7908 = vmatpush1.msra.mxu0 0.0
      %7909 = vmatprep.subr.mxu0 0.0
      %7910 = vmatpush1.msra.mxu0 0.0
      %7911 = vmatprep.subr.mxu0 0.0
      %7912 = vmatpush1.msra.mxu0 0.0
      %7913 = vmatprep.subr.mxu0 0.0
      %7914 = vmatpush1.msra.mxu0 0.0
      %7915 = vmatprep.subr.mxu0 0.0
      %7916 = vmatpush1.msra.mxu0 0.0
      %7917 = vmatprep.subr.mxu0 0.0
      %7918 = vmatpush1.msra.mxu0 0.0
      %7919 = vmatprep.subr.mxu0 0.0
      %7920 = vmatpush1.msra.mxu0 0.0
      %7921 = vmatprep.subr.mxu0 0.0
      %7922 = vmatpush1.msra.mxu0 0.0
      %7923 = vmatprep.subr.mxu0 0.0
      %7924 = vmatpush1.msra.mxu0 0.0
      %7925 = vmatprep.subr.mxu0 0.0
      %7926 = vmatpush1.msra.mxu0 0.0
      %7927 = vmatprep.subr.mxu0 0.0
      %7928 = vmatpush1.msra.mxu0 0.0
      %7929 = vmatprep.subr.mxu0 0.0
      %7930 = vmatpush1.msra.mxu0 0.0
      %7931 = vmatprep.subr.mxu0 0.0
      %7932 = vmatpush1.msra.mxu0 0.0
      %7933 = vmatprep.subr.mxu0 0.0
      %7934 = vmatpush1.msra.mxu0 0.0
      %7935 = vmatprep.subr.mxu0 0.0
      %7936 = vmatpush1.msra.mxu0 0.0
      %7937 = vmatprep.mubr.f32.mxu0 0.0
      %7938 = vmatmul.mubr.f32.gmra.mrb[0].mxu0 %v705
      %v7939 = vpop.f32.mrb[0].mxu0
      %v7940 = vadd.f32 0.0, %v7939
      %v7941 = vpop.f32.mrb[0].mxu0
      %7942 = vdwg.mxu0
      %v7943 = vadd.f32 %v7866, %v7940
      %v7944 = vadd.f32 %v7428, %v7943
      %v7945 = vmul.f32 %v7943, %v7943
      %v7946 = vadd.f32 %v7430, %v7945
      %v7947 = vpack.c.bf16 %v7943, %v7943
      %v7949 = vunpack.c.l.b16 %v7947
      %v7950 = vpack.c.b16 %v7949, %v7949
      %7951 = vrot.lane.b32.xlu0 %v7950, 14
      %v7952 = vpop.permute.xlu0 %7951
      %vm7954 = vcmask 257136
      %7955 = vst.msk [vmem:[%s237 + $0x8] sm:$0xf] %vm7954, %v7952
      %v7956 = vld [vmem:[%s232 + $0xf] sm:$0x1]
      %v7957 = vld [vmem:[%s232 + $0x27] sm:$0x1]
      %v7958 = vld [vmem:[%s232 + $0x3f] sm:$0x1]
      %v7959 = vld [vmem:[%s232 + $0x57] sm:$0x1]
      %v7960 = vmax.f32 %v7956, 0.0
      %v7961 = vmax.f32 %v7957, 0.0
      %v7962 = vmax.f32 %v7958, 0.0
      %v7963 = vmax.f32 %v7959, 0.0
      %v7964 = vld [vmem:[%s232 + $0x10] sm:$0x1]
      %v7965 = vld [vmem:[%s232 + $0x28] sm:$0x1]
      %v7966 = vld [vmem:[%s232 + $0x40] sm:$0x1]
      %v7967 = vld [vmem:[%s232 + $0x58] sm:$0x1]
      %v7968 = vmax.f32 %v7964, 0.0
      %v7969 = vmax.f32 %v7965, 0.0
      %v7970 = vmax.f32 %v7966, 0.0
      %v7971 = vmax.f32 %v7967, 0.0
      %v7976 = vrot.slane %v7969, 7
      %v7977 = vsel %vm278, %v7976, %v7968
      %v7978 = vrot.slane %v7970, 6
      %v7979 = vsel %vm281, %v7978, %v7977
      %v7980 = vrot.slane %v7971, 5
      %v7981 = vsel %vm284, %v7980, %v7979
      %v7982 = vsel %vm290, %v7981, 0
      %7984 = vmatprep.subr.mxu0 0.0
      %7985 = vmatpush1.msra.mxu0 %v7982
      %7986 = vmatprep.subr.mxu0 0.0
      %7987 = vmatpush1.msra.mxu0 0.0
      %7988 = vmatprep.subr.mxu0 0.0
      %7989 = vmatpush1.msra.mxu0 0.0
      %7990 = vmatprep.subr.mxu0 0.0
      %7991 = vmatpush1.msra.mxu0 0.0
      %7992 = vmatprep.subr.mxu0 0.0
      %7993 = vmatpush1.msra.mxu0 0.0
      %7994 = vmatprep.subr.mxu0 0.0
      %7995 = vmatpush1.msra.mxu0 0.0
      %7996 = vmatprep.subr.mxu0 0.0
      %7997 = vmatpush1.msra.mxu0 0.0
      %7998 = vmatprep.subr.mxu0 0.0
      %7999 = vmatpush1.msra.mxu0 0.0
      %8000 = vmatprep.subr.mxu0 0.0
      %8001 = vmatpush1.msra.mxu0 0.0
      %8002 = vmatprep.subr.mxu0 0.0
      %8003 = vmatpush1.msra.mxu0 0.0
      %8004 = vmatprep.subr.mxu0 0.0
      %8005 = vmatpush1.msra.mxu0 0.0
      %8006 = vmatprep.subr.mxu0 0.0
      %8007 = vmatpush1.msra.mxu0 0.0
      %8008 = vmatprep.subr.mxu0 0.0
      %8009 = vmatpush1.msra.mxu0 0.0
      %8010 = vmatprep.subr.mxu0 0.0
      %8011 = vmatpush1.msra.mxu0 0.0
      %8012 = vmatprep.subr.mxu0 0.0
      %8013 = vmatpush1.msra.mxu0 0.0
      %8014 = vmatprep.subr.mxu0 0.0
      %8015 = vmatpush1.msra.mxu0 0.0
      %8016 = vmatprep.subr.mxu0 0.0
      %8017 = vmatpush1.msra.mxu0 0.0
      %8018 = vmatprep.subr.mxu0 0.0
      %8019 = vmatpush1.msra.mxu0 0.0
      %8020 = vmatprep.subr.mxu0 0.0
      %8021 = vmatpush1.msra.mxu0 0.0
      %8022 = vmatprep.subr.mxu0 0.0
      %8023 = vmatpush1.msra.mxu0 0.0
      %8024 = vmatprep.subr.mxu0 0.0
      %8025 = vmatpush1.msra.mxu0 0.0
      %8026 = vmatprep.subr.mxu0 0.0
      %8027 = vmatpush1.msra.mxu0 0.0
      %8028 = vmatprep.subr.mxu0 0.0
      %8029 = vmatpush1.msra.mxu0 0.0
      %8030 = vmatprep.subr.mxu0 0.0
      %8031 = vmatpush1.msra.mxu0 0.0
      %8032 = vmatprep.subr.mxu0 0.0
      %8033 = vmatpush1.msra.mxu0 0.0
      %8034 = vmatprep.subr.mxu0 0.0
      %8035 = vmatpush1.msra.mxu0 0.0
      %8036 = vmatprep.subr.mxu0 0.0
      %8037 = vmatpush1.msra.mxu0 0.0
      %8038 = vmatprep.subr.mxu0 0.0
      %8039 = vmatpush1.msra.mxu0 0.0
      %8040 = vmatprep.subr.mxu0 0.0
      %8041 = vmatpush1.msra.mxu0 0.0
      %8042 = vmatprep.subr.mxu0 0.0
      %8043 = vmatpush1.msra.mxu0 0.0
      %8044 = vmatprep.subr.mxu0 0.0
      %8045 = vmatpush1.msra.mxu0 0.0
      %8046 = vmatprep.subr.mxu0 0.0
      %8047 = vmatpush1.msra.mxu0 0.0
      %8048 = vmatprep.mubr.f32.mxu0 0.0
      %8049 = vmatmul.mubr.f32.gmra.mrb[0].mxu0 %v288
      %v8050 = vpop.f32.mrb[0].mxu0
      %v8051 = vadd.f32 0.0, %v8050
      %v8052 = vpop.f32.mrb[0].mxu0
      %8053 = vdwg.mxu0
      %v8058 = vrot.slane %v7961, 7
      %v8059 = vsel %vm278, %v8058, %v7960
      %v8060 = vrot.slane %v7962, 6
      %v8061 = vsel %vm281, %v8060, %v8059
      %v8062 = vrot.slane %v7963, 5
      %v8063 = vsel %vm284, %v8062, %v8061
      %v8064 = vsel %vm290, %v8063, 0
      %8066 = vmatprep.subr.mxu0 0.0
      %8067 = vmatpush1.msra.mxu0 %v8064
      %8068 = vmatprep.subr.mxu0 0.0
      %8069 = vmatpush1.msra.mxu0 0.0
      %8070 = vmatprep.subr.mxu0 0.0
      %8071 = vmatpush1.msra.mxu0 0.0
      %8072 = vmatprep.subr.mxu0 0.0
      %8073 = vmatpush1.msra.mxu0 0.0
      %8074 = vmatprep.subr.mxu0 0.0
      %8075 = vmatpush1.msra.mxu0 0.0
      %8076 = vmatprep.subr.mxu0 0.0
      %8077 = vmatpush1.msra.mxu0 0.0
      %8078 = vmatprep.subr.mxu0 0.0
      %8079 = vmatpush1.msra.mxu0 0.0
      %8080 = vmatprep.subr.mxu0 0.0
      %8081 = vmatpush1.msra.mxu0 0.0
      %8082 = vmatprep.subr.mxu0 0.0
      %8083 = vmatpush1.msra.mxu0 0.0
      %8084 = vmatprep.subr.mxu0 0.0
      %8085 = vmatpush1.msra.mxu0 0.0
      %8086 = vmatprep.subr.mxu0 0.0
      %8087 = vmatpush1.msra.mxu0 0.0
      %8088 = vmatprep.subr.mxu0 0.0
      %8089 = vmatpush1.msra.mxu0 0.0
      %8090 = vmatprep.subr.mxu0 0.0
      %8091 = vmatpush1.msra.mxu0 0.0
      %8092 = vmatprep.subr.mxu0 0.0
      %8093 = vmatpush1.msra.mxu0 0.0
      %8094 = vmatprep.subr.mxu0 0.0
      %8095 = vmatpush1.msra.mxu0 0.0
      %8096 = vmatprep.subr.mxu0 0.0
      %8097 = vmatpush1.msra.mxu0 0.0
      %8098 = vmatprep.subr.mxu0 0.0
      %8099 = vmatpush1.msra.mxu0 0.0
      %8100 = vmatprep.subr.mxu0 0.0
      %8101 = vmatpush1.msra.mxu0 0.0
      %8102 = vmatprep.subr.mxu0 0.0
      %8103 = vmatpush1.msra.mxu0 0.0
      %8104 = vmatprep.subr.mxu0 0.0
      %8105 = vmatpush1.msra.mxu0 0.0
      %8106 = vmatprep.subr.mxu0 0.0
      %8107 = vmatpush1.msra.mxu0 0.0
      %8108 = vmatprep.subr.mxu0 0.0
      %8109 = vmatpush1.msra.mxu0 0.0
      %8110 = vmatprep.subr.mxu0 0.0
      %8111 = vmatpush1.msra.mxu0 0.0
      %8112 = vmatprep.subr.mxu0 0.0
      %8113 = vmatpush1.msra.mxu0 0.0
      %8114 = vmatprep.subr.mxu0 0.0
      %8115 = vmatpush1.msra.mxu0 0.0
      %8116 = vmatprep.subr.mxu0 0.0
      %8117 = vmatpush1.msra.mxu0 0.0
      %8118 = vmatprep.subr.mxu0 0.0
      %8119 = vmatpush1.msra.mxu0 0.0
      %8120 = vmatprep.subr.mxu0 0.0
      %8121 = vmatpush1.msra.mxu0 0.0
      %8122 = vmatprep.subr.mxu0 0.0
      %8123 = vmatpush1.msra.mxu0 0.0
      %8124 = vmatprep.subr.mxu0 0.0
      %8125 = vmatpush1.msra.mxu0 0.0
      %8126 = vmatprep.subr.mxu0 0.0
      %8127 = vmatpush1.msra.mxu0 0.0
      %8128 = vmatprep.subr.mxu0 0.0
      %8129 = vmatpush1.msra.mxu0 0.0
      %8130 = vmatprep.mubr.f32.mxu0 0.0
      %8131 = vmatmul.mubr.f32.gmra.mrb[0].mxu0 %v374
      %v8132 = vpop.f32.mrb[0].mxu0
      %v8133 = vadd.f32 %v8051, %v8132
      %v8134 = vpop.f32.mrb[0].mxu0
      %8135 = vdwg.mxu0
      %v8136 = vld [vmem:[%s232 + $0x11] sm:$0x1]
      %v8137 = vld [vmem:[%s232 + $0x29] sm:$0x1]
      %v8138 = vld [vmem:[%s232 + $0x41] sm:$0x1]
      %v8139 = vld [vmem:[%s232 + $0x59] sm:$0x1]
      %v8140 = vmax.f32 %v8136, 0.0
      %v8141 = vmax.f32 %v8137, 0.0
      %v8142 = vmax.f32 %v8138, 0.0
      %v8143 = vmax.f32 %v8139, 0.0
      %v8148 = vrot.slane %v8141, 7
      %v8149 = vsel %vm278, %v8148, %v8140
      %v8150 = vrot.slane %v8142, 6
      %v8151 = vsel %vm281, %v8150, %v8149
      %v8152 = vrot.slane %v8143, 5
      %v8153 = vsel %vm284, %v8152, %v8151
      %v8154 = vsel %vm290, %v8153, 0
      %8156 = vmatprep.subr.mxu0 0.0
      %8157 = vmatpush1.msra.mxu0 %v8154
      %8158 = vmatprep.subr.mxu0 0.0
      %8159 = vmatpush1.msra.mxu0 0.0
      %8160 = vmatprep.subr.mxu0 0.0
      %8161 = vmatpush1.msra.mxu0 0.0
      %8162 = vmatprep.subr.mxu0 0.0
      %8163 = vmatpush1.msra.mxu0 0.0
      %8164 = vmatprep.subr.mxu0 0.0
      %8165 = vmatpush1.msra.mxu0 0.0
      %8166 = vmatprep.subr.mxu0 0.0
      %8167 = vmatpush1.msra.mxu0 0.0
      %8168 = vmatprep.subr.mxu0 0.0
      %8169 = vmatpush1.msra.mxu0 0.0
      %8170 = vmatprep.subr.mxu0 0.0
      %8171 = vmatpush1.msra.mxu0 0.0
      %8172 = vmatprep.subr.mxu0 0.0
      %8173 = vmatpush1.msra.mxu0 0.0
      %8174 = vmatprep.subr.mxu0 0.0
      %8175 = vmatpush1.msra.mxu0 0.0
      %8176 = vmatprep.subr.mxu0 0.0
      %8177 = vmatpush1.msra.mxu0 0.0
      %8178 = vmatprep.subr.mxu0 0.0
      %8179 = vmatpush1.msra.mxu0 0.0
      %8180 = vmatprep.subr.mxu0 0.0
      %8181 = vmatpush1.msra.mxu0 0.0
      %8182 = vmatprep.subr.mxu0 0.0
      %8183 = vmatpush1.msra.mxu0 0.0
      %8184 = vmatprep.subr.mxu0 0.0
      %8185 = vmatpush1.msra.mxu0 0.0
      %8186 = vmatprep.subr.mxu0 0.0
      %8187 = vmatpush1.msra.mxu0 0.0
      %8188 = vmatprep.subr.mxu0 0.0
      %8189 = vmatpush1.msra.mxu0 0.0
      %8190 = vmatprep.subr.mxu0 0.0
      %8191 = vmatpush1.msra.mxu0 0.0
      %8192 = vmatprep.subr.mxu0 0.0
      %8193 = vmatpush1.msra.mxu0 0.0
      %8194 = vmatprep.subr.mxu0 0.0
      %8195 = vmatpush1.msra.mxu0 0.0
      %8196 = vmatprep.subr.mxu0 0.0
      %8197 = vmatpush1.msra.mxu0 0.0
      %8198 = vmatprep.subr.mxu0 0.0
      %8199 = vmatpush1.msra.mxu0 0.0
      %8200 = vmatprep.subr.mxu0 0.0
      %8201 = vmatpush1.msra.mxu0 0.0
      %8202 = vmatprep.subr.mxu0 0.0
      %8203 = vmatpush1.msra.mxu0 0.0
      %8204 = vmatprep.subr.mxu0 0.0
      %8205 = vmatpush1.msra.mxu0 0.0
      %8206 = vmatprep.subr.mxu0 0.0
      %8207 = vmatpush1.msra.mxu0 0.0
      %8208 = vmatprep.subr.mxu0 0.0
      %8209 = vmatpush1.msra.mxu0 0.0
      %8210 = vmatprep.subr.mxu0 0.0
      %8211 = vmatpush1.msra.mxu0 0.0
      %8212 = vmatprep.subr.mxu0 0.0
      %8213 = vmatpush1.msra.mxu0 0.0
      %8214 = vmatprep.subr.mxu0 0.0
      %8215 = vmatpush1.msra.mxu0 0.0
      %8216 = vmatprep.subr.mxu0 0.0
      %8217 = vmatpush1.msra.mxu0 0.0
      %8218 = vmatprep.subr.mxu0 0.0
      %8219 = vmatpush1.msra.mxu0 0.0
      %8220 = vmatprep.mubr.f32.mxu0 0.0
      %8221 = vmatmul.mubr.f32.gmra.mrb[0].mxu0 %v467
      %v8222 = vpop.f32.mrb[0].mxu0
      %v8223 = vadd.f32 0.0, %v8222
      %v8224 = vpop.f32.mrb[0].mxu0
      %8225 = vdwg.mxu0
      %v8226 = vadd.f32 %v8133, %v8223
      %8228 = vrot.lane.b32.xlu0 %v8226, 1
      %v8229 = vpop.permute.xlu0 %8228
      %8231 = vst.msk [vmem:[#allocation2] sm:$0xf] %vm546, %v8229
      %v8232 = vld [vmem:[#allocation2] sm:$0xf]
      %8234 = vrot.lane.b32.xlu0 %v8232, 127
      %v8235 = vpop.permute.xlu0 %8234
      %v8236 = vsel %vm290, %v8235, 0
      %8238 = vmatprep.subr.mxu0 0.0
      %8239 = vmatpush1.msra.mxu0 %v8236
      %8240 = vmatprep.subr.mxu0 0.0
      %8241 = vmatpush1.msra.mxu0 0.0
      %8242 = vmatprep.subr.mxu0 0.0
      %8243 = vmatpush1.msra.mxu0 0.0
      %8244 = vmatprep.subr.mxu0 0.0
      %8245 = vmatpush1.msra.mxu0 0.0
      %8246 = vmatprep.subr.mxu0 0.0
      %8247 = vmatpush1.msra.mxu0 0.0
      %8248 = vmatprep.subr.mxu0 0.0
      %8249 = vmatpush1.msra.mxu0 0.0
      %8250 = vmatprep.subr.mxu0 0.0
      %8251 = vmatpush1.msra.mxu0 0.0
      %8252 = vmatprep.subr.mxu0 0.0
      %8253 = vmatpush1.msra.mxu0 0.0
      %8254 = vmatprep.subr.mxu0 0.0
      %8255 = vmatpush1.msra.mxu0 0.0
      %8256 = vmatprep.subr.mxu0 0.0
      %8257 = vmatpush1.msra.mxu0 0.0
      %8258 = vmatprep.subr.mxu0 0.0
      %8259 = vmatpush1.msra.mxu0 0.0
      %8260 = vmatprep.subr.mxu0 0.0
      %8261 = vmatpush1.msra.mxu0 0.0
      %8262 = vmatprep.subr.mxu0 0.0
      %8263 = vmatpush1.msra.mxu0 0.0
      %8264 = vmatprep.subr.mxu0 0.0
      %8265 = vmatpush1.msra.mxu0 0.0
      %8266 = vmatprep.subr.mxu0 0.0
      %8267 = vmatpush1.msra.mxu0 0.0
      %8268 = vmatprep.subr.mxu0 0.0
      %8269 = vmatpush1.msra.mxu0 0.0
      %8270 = vmatprep.subr.mxu0 0.0
      %8271 = vmatpush1.msra.mxu0 0.0
      %8272 = vmatprep.subr.mxu0 0.0
      %8273 = vmatpush1.msra.mxu0 0.0
      %8274 = vmatprep.subr.mxu0 0.0
      %8275 = vmatpush1.msra.mxu0 0.0
      %8276 = vmatprep.subr.mxu0 0.0
      %8277 = vmatpush1.msra.mxu0 0.0
      %8278 = vmatprep.subr.mxu0 0.0
      %8279 = vmatpush1.msra.mxu0 0.0
      %8280 = vmatprep.subr.mxu0 0.0
      %8281 = vmatpush1.msra.mxu0 0.0
      %8282 = vmatprep.subr.mxu0 0.0
      %8283 = vmatpush1.msra.mxu0 0.0
      %8284 = vmatprep.subr.mxu0 0.0
      %8285 = vmatpush1.msra.mxu0 0.0
      %8286 = vmatprep.subr.mxu0 0.0
      %8287 = vmatpush1.msra.mxu0 0.0
      %8288 = vmatprep.subr.mxu0 0.0
      %8289 = vmatpush1.msra.mxu0 0.0
      %8290 = vmatprep.subr.mxu0 0.0
      %8291 = vmatpush1.msra.mxu0 0.0
      %8292 = vmatprep.subr.mxu0 0.0
      %8293 = vmatpush1.msra.mxu0 0.0
      %8294 = vmatprep.subr.mxu0 0.0
      %8295 = vmatpush1.msra.mxu0 0.0
      %8296 = vmatprep.subr.mxu0 0.0
      %8297 = vmatpush1.msra.mxu0 0.0
      %8298 = vmatprep.subr.mxu0 0.0
      %8299 = vmatpush1.msra.mxu0 0.0
      %8300 = vmatprep.subr.mxu0 0.0
      %8301 = vmatpush1.msra.mxu0 0.0
      %8302 = vmatprep.mubr.f32.mxu0 0.0
      %8303 = vmatmul.mubr.f32.gmra.mrb[0].mxu0 %v553
      %v8304 = vpop.f32.mrb[0].mxu0
      %v8305 = vadd.f32 0.0, %v8304
      %v8306 = vpop.f32.mrb[0].mxu0
      %8307 = vdwg.mxu0
      %v8308 = vsel %vm290, %v8232, 0
      %8310 = vmatprep.subr.mxu0 0.0
      %8311 = vmatpush1.msra.mxu0 %v8308
      %8312 = vmatprep.subr.mxu0 0.0
      %8313 = vmatpush1.msra.mxu0 0.0
      %8314 = vmatprep.subr.mxu0 0.0
      %8315 = vmatpush1.msra.mxu0 0.0
      %8316 = vmatprep.subr.mxu0 0.0
      %8317 = vmatpush1.msra.mxu0 0.0
      %8318 = vmatprep.subr.mxu0 0.0
      %8319 = vmatpush1.msra.mxu0 0.0
      %8320 = vmatprep.subr.mxu0 0.0
      %8321 = vmatpush1.msra.mxu0 0.0
      %8322 = vmatprep.subr.mxu0 0.0
      %8323 = vmatpush1.msra.mxu0 0.0
      %8324 = vmatprep.subr.mxu0 0.0
      %8325 = vmatpush1.msra.mxu0 0.0
      %8326 = vmatprep.subr.mxu0 0.0
      %8327 = vmatpush1.msra.mxu0 0.0
      %8328 = vmatprep.subr.mxu0 0.0
      %8329 = vmatpush1.msra.mxu0 0.0
      %8330 = vmatprep.subr.mxu0 0.0
      %8331 = vmatpush1.msra.mxu0 0.0
      %8332 = vmatprep.subr.mxu0 0.0
      %8333 = vmatpush1.msra.mxu0 0.0
      %8334 = vmatprep.subr.mxu0 0.0
      %8335 = vmatpush1.msra.mxu0 0.0
      %8336 = vmatprep.subr.mxu0 0.0
      %8337 = vmatpush1.msra.mxu0 0.0
      %8338 = vmatprep.subr.mxu0 0.0
      %8339 = vmatpush1.msra.mxu0 0.0
      %8340 = vmatprep.subr.mxu0 0.0
      %8341 = vmatpush1.msra.mxu0 0.0
      %8342 = vmatprep.subr.mxu0 0.0
      %8343 = vmatpush1.msra.mxu0 0.0
      %8344 = vmatprep.subr.mxu0 0.0
      %8345 = vmatpush1.msra.mxu0 0.0
      %8346 = vmatprep.subr.mxu0 0.0
      %8347 = vmatpush1.msra.mxu0 0.0
      %8348 = vmatprep.subr.mxu0 0.0
      %8349 = vmatpush1.msra.mxu0 0.0
      %8350 = vmatprep.subr.mxu0 0.0
      %8351 = vmatpush1.msra.mxu0 0.0
      %8352 = vmatprep.subr.mxu0 0.0
      %8353 = vmatpush1.msra.mxu0 0.0
      %8354 = vmatprep.subr.mxu0 0.0
      %8355 = vmatpush1.msra.mxu0 0.0
      %8356 = vmatprep.subr.mxu0 0.0
      %8357 = vmatpush1.msra.mxu0 0.0
      %8358 = vmatprep.subr.mxu0 0.0
      %8359 = vmatpush1.msra.mxu0 0.0
      %8360 = vmatprep.subr.mxu0 0.0
      %8361 = vmatpush1.msra.mxu0 0.0
      %8362 = vmatprep.subr.mxu0 0.0
      %8363 = vmatpush1.msra.mxu0 0.0
      %8364 = vmatprep.subr.mxu0 0.0
      %8365 = vmatpush1.msra.mxu0 0.0
      %8366 = vmatprep.subr.mxu0 0.0
      %8367 = vmatpush1.msra.mxu0 0.0
      %8368 = vmatprep.subr.mxu0 0.0
      %8369 = vmatpush1.msra.mxu0 0.0
      %8370 = vmatprep.subr.mxu0 0.0
      %8371 = vmatpush1.msra.mxu0 0.0
      %8372 = vmatprep.subr.mxu0 0.0
      %8373 = vmatpush1.msra.mxu0 0.0
      %8374 = vmatprep.mubr.f32.mxu0 0.0
      %8375 = vmatmul.mubr.f32.gmra.mrb[0].mxu0 %v628
      %v8376 = vpop.f32.mrb[0].mxu0
      %v8377 = vadd.f32 %v8305, %v8376
      %v8378 = vpop.f32.mrb[0].mxu0
      %8379 = vdwg.mxu0
      %8380 = vrot.lane.b32.xlu0 %v8232, 126
      %v8381 = vpop.permute.xlu0 %8380
      %v8382 = vsel %vm290, %v8381, 0
      %8384 = vmatprep.subr.mxu0 0.0
      %8385 = vmatpush1.msra.mxu0 %v8382
      %8386 = vmatprep.subr.mxu0 0.0
      %8387 = vmatpush1.msra.mxu0 0.0
      %8388 = vmatprep.subr.mxu0 0.0
      %8389 = vmatpush1.msra.mxu0 0.0
      %8390 = vmatprep.subr.mxu0 0.0
      %8391 = vmatpush1.msra.mxu0 0.0
      %8392 = vmatprep.subr.mxu0 0.0
      %8393 = vmatpush1.msra.mxu0 0.0
      %8394 = vmatprep.subr.mxu0 0.0
      %8395 = vmatpush1.msra.mxu0 0.0
      %8396 = vmatprep.subr.mxu0 0.0
      %8397 = vmatpush1.msra.mxu0 0.0
      %8398 = vmatprep.subr.mxu0 0.0
      %8399 = vmatpush1.msra.mxu0 0.0
      %8400 = vmatprep.subr.mxu0 0.0
      %8401 = vmatpush1.msra.mxu0 0.0
      %8402 = vmatprep.subr.mxu0 0.0
      %8403 = vmatpush1.msra.mxu0 0.0
      %8404 = vmatprep.subr.mxu0 0.0
      %8405 = vmatpush1.msra.mxu0 0.0
      %8406 = vmatprep.subr.mxu0 0.0
      %8407 = vmatpush1.msra.mxu0 0.0
      %8408 = vmatprep.subr.mxu0 0.0
      %8409 = vmatpush1.msra.mxu0 0.0
      %8410 = vmatprep.subr.mxu0 0.0
      %8411 = vmatpush1.msra.mxu0 0.0
      %8412 = vmatprep.subr.mxu0 0.0
      %8413 = vmatpush1.msra.mxu0 0.0
      %8414 = vmatprep.subr.mxu0 0.0
      %8415 = vmatpush1.msra.mxu0 0.0
      %8416 = vmatprep.subr.mxu0 0.0
      %8417 = vmatpush1.msra.mxu0 0.0
      %8418 = vmatprep.subr.mxu0 0.0
      %8419 = vmatpush1.msra.mxu0 0.0
      %8420 = vmatprep.subr.mxu0 0.0
      %8421 = vmatpush1.msra.mxu0 0.0
      %8422 = vmatprep.subr.mxu0 0.0
      %8423 = vmatpush1.msra.mxu0 0.0
      %8424 = vmatprep.subr.mxu0 0.0
      %8425 = vmatpush1.msra.mxu0 0.0
      %8426 = vmatprep.subr.mxu0 0.0
      %8427 = vmatpush1.msra.mxu0 0.0
      %8428 = vmatprep.subr.mxu0 0.0
      %8429 = vmatpush1.msra.mxu0 0.0
      %8430 = vmatprep.subr.mxu0 0.0
      %8431 = vmatpush1.msra.mxu0 0.0
      %8432 = vmatprep.subr.mxu0 0.0
      %8433 = vmatpush1.msra.mxu0 0.0
      %8434 = vmatprep.subr.mxu0 0.0
      %8435 = vmatpush1.msra.mxu0 0.0
      %8436 = vmatprep.subr.mxu0 0.0
      %8437 = vmatpush1.msra.mxu0 0.0
      %8438 = vmatprep.subr.mxu0 0.0
      %8439 = vmatpush1.msra.mxu0 0.0
      %8440 = vmatprep.subr.mxu0 0.0
      %8441 = vmatpush1.msra.mxu0 0.0
      %8442 = vmatprep.subr.mxu0 0.0
      %8443 = vmatpush1.msra.mxu0 0.0
      %8444 = vmatprep.subr.mxu0 0.0
      %8445 = vmatpush1.msra.mxu0 0.0
      %8446 = vmatprep.subr.mxu0 0.0
      %8447 = vmatpush1.msra.mxu0 0.0
      %8448 = vmatprep.mubr.f32.mxu0 0.0
      %8449 = vmatmul.mubr.f32.gmra.mrb[0].mxu0 %v705
      %v8450 = vpop.f32.mrb[0].mxu0
      %v8451 = vadd.f32 0.0, %v8450
      %v8452 = vpop.f32.mrb[0].mxu0
      %8453 = vdwg.mxu0
      %v8454 = vadd.f32 %v8377, %v8451
      %v8455 = vadd.f32 %v7944, %v8454
      %v8456 = vmul.f32 %v8454, %v8454
      %v8457 = vadd.f32 %v7946, %v8456
      %v8458 = vpack.c.bf16 %v8454, %v8454
      %v8460 = vunpack.c.l.b16 %v8458
      %v8461 = vpack.c.b16 %v8460, %v8460
      %8462 = vrot.lane.b32.xlu0 %v8461, 32
      %v8463 = vpop.permute.xlu0 %8462
      %vm8465 = vcmask 404736
      %8466 = vst.msk [vmem:[%s237 + $0x8] sm:$0xf] %vm8465, %v8463
      %vm8467 = vcmask 552336
      %8468 = vst.msk [vmem:[%s237 + $0x8] sm:$0xf] %vm8467, 0
      %vm8469 = vcmask 146432
      %v8470 = vsel %vm8469, %v8455, 0.0
      %8471 = vadd.xlane.f32.xlu0 %v8470
      %v8472 = vpop.xlane.xlu0 %8471
      %vm8473 = vcmask 7168
      %8474 = vst.msk [vmem:[%s241] sm:$0xff] %vm8473, %v8472
      %v8475 = vsel %vm8469, %v8457, 0.0
      %8476 = vadd.xlane.f32.xlu0 %v8475
      %v8477 = vpop.xlane.xlu0 %8476
      %8478 = vst.msk [vmem:[%s245] sm:$0xff] %vm8473, %v8477
      %p8479 = scmp.lt.s32.totalorder %s17, 1
      %s8480 = scalar_select %p8479, %s17, 1
      %s8481 = smul.addr %s8480, 3
      %s8482 = smul.addr %s8481, 4
      %s8483 = scalar_lea.vmem %s3, %s8482
      %p8484 = scmp.lt.s32.totalorder %s17, 1
      %s8485 = scalar_select %p8484, %s17, 1
      %s8486 = smul.addr %s8485, 8
      %s8487 = scalar_lea.vmem %s4, %s8486
      %p8488 = scmp.lt.s32.totalorder %s17, 1
      %s8489 = scalar_select %p8488, %s17, 1
      %s8490 = smul.addr %s8489, 8
      %s8491 = scalar_lea.vmem %s5, %s8490
      // Predicated region
      $region33: #{fac_conv_forward.2} parent=31 // pred_check
        %p8492 = pneg %p103
      $region34: #{fac_conv_forward.2} parent=31 // pred_check_branch
        %8494 = sbr.rel (%p8492) target = $region36
      $region35: #{fac_conv_forward.2} parent=31 // pred_region
        _
      $region36: #{fac_conv_forward.2} parent=31 // pred_fallthru
        _
      // Predicated region
      $region37: #{fac_conv_forward.2} parent=31 // pred_check
        %p8495 = pneg %p129
      $region38: #{fac_conv_forward.2} parent=31 // pred_check_branch
        %8497 = sbr.rel (%p8495) target = $region40
      $region39: #{fac_conv_forward.2} parent=31 // pred_region
        _
      $region40: #{fac_conv_forward.2} parent=31 // pred_fallthru
        _
      // Predicated region
      $region41: #{fac_conv_forward.2} parent=31 // pred_check
        %p8498 = pneg %p155
      $region42: #{fac_conv_forward.2} parent=31 // pred_check_branch
        %8500 = sbr.rel (%p8498) target = $region44
      $region43: #{fac_conv_forward.2} parent=31 // pred_region
        _
      $region44: #{fac_conv_forward.2} parent=31 // pred_fallthru
        _
    $region32: #{fac_conv_forward.2} parent=5 // pred_fallthru
      _
    %p8501 = scmp.le.s32.totalorder 2, %s12
    // Predicated region
    $region45: #{fac_conv_forward.2} parent=5 // pred_check
      %p8502 = pneg %p8501
    $region46: #{fac_conv_forward.2} parent=5 // pred_check_branch
      %8504 = sbr.rel (%p8502) target = $region48
    $region47: #{fac_conv_forward.2} parent=5 // pred_region
      %s8505 = ssub.s32 %s12, 2
      // Predicated region
      $region49: #{fac_conv_forward.2} parent=47 // pred_check
        %p8506 = pneg %p109
      $region50: #{fac_conv_forward.2} parent=47 // pred_check_branch
        %8508 = sbr.rel (%p8506) target = $region52
      $region51: #{fac_conv_forward.2} parent=47 // pred_region
        %p8509 = scmp.lt.s32.totalorder %s18, 1
        %s8510 = scalar_select %p8509, %s18, 1
        %s8511 = smul.addr %s8510, 3
        %s8512 = smul.addr %s8511, 4
        %s8513 = scalar_lea.vmem %s3, %s8512
      $region52: #{fac_conv_forward.2} parent=47 // pred_fallthru
        _
      // Predicated region
      $region53: #{fac_conv_forward.2} parent=47 // pred_check
        %p8514 = pneg %p135
      $region54: #{fac_conv_forward.2} parent=47 // pred_check_branch
        %8516 = sbr.rel (%p8514) target = $region56
      $region55: #{fac_conv_forward.2} parent=47 // pred_region
        %p8517 = scmp.lt.s32.totalorder %s18, 1
        %s8518 = scalar_select %p8517, %s18, 1
        %s8519 = smul.addr %s8518, 8
        %s8520 = scalar_lea.vmem %s4, %s8519
      $region56: #{fac_conv_forward.2} parent=47 // pred_fallthru
        _
      // Predicated region
      $region57: #{fac_conv_forward.2} parent=47 // pred_check
        %p8521 = pneg %p161
      $region58: #{fac_conv_forward.2} parent=47 // pred_check_branch
        %8523 = sbr.rel (%p8521) target = $region60
      $region59: #{fac_conv_forward.2} parent=47 // pred_region
        %p8524 = scmp.lt.s32.totalorder %s18, 1
        %s8525 = scalar_select %p8524, %s18, 1
        %s8526 = smul.addr %s8525, 8
        %s8527 = scalar_lea.vmem %s5, %s8526
      $region60: #{fac_conv_forward.2} parent=47 // pred_fallthru
        _
    $region48: #{fac_conv_forward.2} parent=5 // pred_fallthru
      _
  $region6: #{fac_conv_forward.2} parent=0 // loop_footer
    %s16 = sadd.s32 1, %s12
  $region7: #{fac_conv_forward.2} parent=0 // loop_footer_branch
    %11 = sbr.rel target = $region3
  $region8: #{fac_conv_forward.2} parent=0 // loop_exit
    _

</llo_original>
